<compile_context>
chip_gen: v7x
topology: tpu7x:2x2x1
jax: 0.10.0
libtpu: 0.0.40
codegen_flags: <defaults>
</compile_context>

<pallas_src>
import math

import jax
import jax.numpy as jnp
from jax.experimental import pallas as pl
from jax.experimental.pallas import tpu as pltpu


def _round_up(x, m):
    return (x + m - 1) // m * m


def _default_time_block(x_dtype):
    # f32 packs 8 rows per sublane tile, bf16 packs 16; keep the streamed
    # x / out blocks tile-aligned so their DMAs are dense.
    return 16 if jnp.dtype(x_dtype).itemsize == 2 else 8


def _vmem_limit_bytes(TB, Hp, x_dtype, wih_dtype, whh_dtype):
    isz = lambda d: jnp.dtype(d).itemsize
    invariants = (Hp * 3 * Hp * isz(wih_dtype)       # W_ih^T
                  + Hp * 3 * Hp * isz(whh_dtype)     # W_hh^T
                  + (3 * Hp + Hp + Hp) * 4)          # b_comb, b_hn, h0
    streamed = TB * Hp * (isz(x_dtype) + 4)          # x block + out block
    scratch = Hp * 4                                 # carried hidden
    # Worst-case double buffering on everything (covers the fallback path
    # without pl.Buffered(1)) plus generous slack for compiler-internal scratch.
    return int(2 * (invariants + streamed) + scratch + (8 << 20))


# ----------------------------------------------------------------------------
# Kernel: one grid step == one block of TB GRU time steps.
# ----------------------------------------------------------------------------
def gru_block_kernel(x_ref,        # (TB, Hp)  bf16, embedded tokens for this block
                     h0_ref,       # (1, Hp)   f32, initial hidden
                     w_ih_ref,     # (Hp, 3Hp) bf16, W_ih^T gate-aligned
                     w_hh_ref,     # (Hp, 3Hp) f32,  W_hh^T gate-aligned (f32 recurrence)
                     b_comb_ref,   # (1, 3Hp)  f32, [b_ir+b_hr | b_iz+b_hz | b_in]
                     b_hn_ref,     # (1, Hp)   f32, b_hn (kept separate: scaled by r)
                     out_ref,      # (TB, Hp)  f32, hidden state per step
                     h_scr):       # VMEM scratch (1, Hp) f32: carried hidden
    """PyTorch GRU semantics per step:
       r = sigmoid(W_ir x + b_ir + W_hr h + b_hr)
       z = sigmoid(W_iz x + b_iz + W_hz h + b_hz)
       n = tanh  (W_in x + b_in + r * (W_hn h + b_hn))
       h' = (1 - z) * n + z * h
    """
    Hp = h0_ref.shape[-1]
    TB = x_ref.shape[0]

    @pl.when(pl.program_id(0) == 0)
    def _():
        h_scr[...] = h0_ref[...]

    # ---- Input projection, hoisted off the recurrent critical path ---------
    # One (TB, Hp) x (Hp, 3Hp) bf16 MXU matmul per time block (M = TB fills
    # sublanes instead of M = 1 per step); f32 accumulation; fused r/z biases.
    gx_blk = jnp.dot(x_ref[...], w_ih_ref[...],
                     preferred_element_type=jnp.float32) + b_comb_ref[...]

    w_hh = w_hh_ref[...]            # (Hp, 3Hp) f32 — recurrence stays f32
    b_hn = b_hn_ref[...]            # (1, Hp)   f32
    h = h_scr[...]                  # (1, Hp)   f32 carried hidden state

    # ---- Recurrence: only the hidden projection is per step ----------------
    # TB is small and static, so a static unrolled loop gives free static
    # slices of gx_blk; per-row VMEM stores are cheap masked vst's while the
    # HBM writeback remains one dense (TB, Hp) block DMA per grid step.
    for i in range(TB):
        gx = gx_blk[i:i + 1, :]                                        # (1, 3Hp)
        gh = jnp.dot(h, w_hh, preferred_element_type=jnp.float32)      # (1, 3Hp)
        r = jax.nn.sigmoid(gx[:, 0:Hp] + gh[:, 0:Hp])
        z = jax.nn.sigmoid(gx[:, Hp:2 * Hp] + gh[:, Hp:2 * Hp])
        n = jnp.tanh(gx[:, 2 * Hp:3 * Hp] + r * (gh[:, 2 * Hp:3 * Hp] + b_hn))
        h = (1.0 - z) * n + z * h
        out_ref[i:i + 1, :] = h.astype(out_ref.dtype)

    h_scr[...] = h


# ----------------------------------------------------------------------------
# Parameter init (PyTorch layout) + one-time preparation (transpose/pad/cast).
# ----------------------------------------------------------------------------
def init_params(key, input_size, hidden_size):
    """Deterministic params matching the shapes of encoder_rnn.__init__."""
    k_emb, k_wih, k_whh, k_bih, k_bhh = jax.random.split(key, 5)
    bound = 1.0 / math.sqrt(hidden_size)
    return {
        # nn.Embedding(input_size, hidden_size): N(0, 1)
        "embedding": jax.random.normal(k_emb, (input_size, hidden_size), jnp.float32),
        # nn.GRU(hidden_size, hidden_size): U(-1/sqrt(H), 1/sqrt(H)); gates [r,z,n]
        "w_ih": jax.random.uniform(k_wih, (3 * hidden_size, hidden_size), jnp.float32, -bound, bound),
        "w_hh": jax.random.uniform(k_whh, (3 * hidden_size, hidden_size), jnp.float32, -bound, bound),
        "b_ih": jax.random.uniform(k_bih, (3 * hidden_size,), jnp.float32, -bound, bound),
        "b_hh": jax.random.uniform(k_bhh, (3 * hidden_size,), jnp.float32, -bound, bound),
    }


def prepare_params(params,
                   input_weight_dtype=jnp.bfloat16,
                   recurrent_weight_dtype=jnp.float32):
    """One-time prep: transpose, pad H -> Hp (multiple of 128 lanes) per gate,
    fuse the r/z biases, cast the input-side tiles to bf16.  W_hh stays f32 so
    the recurrent path carries no compounding bf16 rounding.
    (For large H on v6e/v7x, Hp could be padded to a multiple of 256 instead.)"""
    V, H = params["embedding"].shape
    Hp = _round_up(H, 128)

    w_ih, w_hh = params["w_ih"], params["w_hh"]          # (3H, H), rows [r; z; n]
    b_ih, b_hh = params["b_ih"], params["b_hh"]          # (3H,)

    def pad_t(w):                                        # (H, H) -> (Hp, Hp), transposed
        return jnp.zeros((Hp, Hp), jnp.float32).at[:H, :H].set(w.T)

    def pad_b(b):                                        # (H,) -> (1, Hp)
        return jnp.zeros((1, Hp), jnp.float32).at[0, :H].set(b)

    def gate_aligned(w):                                 # (3H, H) -> (Hp, 3Hp) transposed
        out = jnp.zeros((Hp, 3 * Hp), jnp.float32)
        for g in range(3):
            out = out.at[:, g * Hp:(g + 1) * Hp].set(pad_t(w[g * H:(g + 1) * H]))
        return out

    b_comb = jnp.concatenate(
        [pad_b(b_ih[0:H] + b_hh[0:H]),                   # r: b_ir + b_hr
         pad_b(b_ih[H:2 * H] + b_hh[H:2 * H]),           # z: b_iz + b_hz
         pad_b(b_ih[2 * H:3 * H])], axis=1)              # n: b_in only
    b_hn = pad_b(b_hh[2 * H:3 * H])                      # b_hn stays separate (scaled by r)

    emb = jnp.zeros((V, Hp), jnp.float32).at[:, :H].set(params["embedding"])

    return {
        "H": H,
        "Hp": Hp,
        "embedding": emb.astype(input_weight_dtype),
        "w_ih_t": gate_aligned(w_ih).astype(input_weight_dtype),
        "w_hh_t": gate_aligned(w_hh).astype(recurrent_weight_dtype),
        "b_comb": b_comb,
        "b_hn": b_hn,
    }


# ----------------------------------------------------------------------------
# Wrappers.
# ----------------------------------------------------------------------------
def encoder_rnn_encode(tokens, hidden0, prepared, time_block=None):
    """Run the GRU over a whole token sequence in one pallas_call.

    tokens:  (T,) int32 token ids
    hidden0: (1, 1, H) float32 initial hidden
    returns (outputs, hidden): ((T, 1, H), (1, 1, H)) — identical to calling the
    original encoder_rnn.forward() T times.
    """
    H, Hp = prepared["H"], prepared["Hp"]
    emb = prepared["embedding"]
    w_ih, w_hh = prepared["w_ih_t"], prepared["w_hh_t"]
    b_comb, b_hn = prepared["b_comb"], prepared["b_hn"]

    T = int(tokens.shape[0])
    TB = int(time_block) if time_block is not None else _default_time_block(emb.dtype)
    T_pad = _round_up(max(T, 1), TB)
    n_blocks = T_pad // TB

    tokens = jnp.asarray(tokens, jnp.int32)
    tokens_padded = jnp.zeros((T_pad,), jnp.int32).at[:T].set(tokens)

    # Embedding gather hoisted out of the recurrence: one tiny XLA gather for
    # the whole sequence, no per-step DMA / data-dependent index_map.  Padded
    # steps use token 0 (finite values, discarded by the [:T] slice below).
    x_all = jnp.take(emb, tokens_padded, axis=0)               # (T_pad, Hp) bf16

    # Initial hidden; padded lanes are always (re)zeroed here, so a caller can
    # never leak garbage into the padded region.
    h0 = jnp.zeros((1, Hp), jnp.float32).at[0, :H].set(
        hidden0.reshape(-1).astype(jnp.float32))

    vmem_bytes = _vmem_limit_bytes(TB, Hp, x_all.dtype, w_ih.dtype, w_hh.dtype)

    def call(single_buffer_invariants):
        if single_buffer_invariants:
            def inv_spec(shape):
                # Loop-invariant operand: fetched once, single VMEM copy.
                return pl.BlockSpec(shape, lambda tb: (0, 0),
                                    pipeline_mode=pl.Buffered(1))
        else:
            def inv_spec(shape):
                return pl.BlockSpec(shape, lambda tb: (0, 0))

        grid_spec = pltpu.PrefetchScalarGridSpec(
            num_scalar_prefetch=0,
            grid=(n_blocks,),
            in_specs=[
                pl.BlockSpec((TB, Hp), lambda tb: (tb, 0)),    # x block (streamed)
                inv_spec((1, Hp)),                             # h0
                inv_spec((Hp, 3 * Hp)),                        # W_ih^T
                inv_spec((Hp, 3 * Hp)),                        # W_hh^T
                inv_spec((1, 3 * Hp)),                         # fused r/z/n biases
                inv_spec((1, Hp)),                             # b_hn
            ],
            out_specs=pl.BlockSpec((TB, Hp), lambda tb: (tb, 0)),
            scratch_shapes=[pltpu.VMEM((1, Hp), jnp.float32)],
        )
        return pl.pallas_call(
            gru_block_kernel,
            out_shape=jax.ShapeDtypeStruct((T_pad, Hp), jnp.float32),
            grid_spec=grid_spec,
            compiler_params=pltpu.CompilerParams(
                # Recurrence over time: must stay sequential.
                dimension_semantics=("arbitrary",),
                vmem_limit_bytes=vmem_bytes),
        )(x_all, h0, w_ih, w_hh, b_comb, b_hn)

    if hasattr(pl, "Buffered"):
        try:
            out_padded = call(True)
            jax.block_until_ready(out_padded)
        except Exception:
            # Fallback: jax build without pipeline_mode / Buffered(1) lowering
            # support — default double buffering (only costs VMEM headroom).
            out_padded = call(False)
    else:
        out_padded = call(False)

    outputs = out_padded[:T, :H].reshape(T, 1, H)
    hidden = outputs[T - 1].reshape(1, 1, H)
    return outputs, hidden


def encoder_rnn_forward(token, hidden, prepared):
    """Exact equivalent of encoder_rnn.forward(input, hidden) for one token."""
    tokens = jnp.asarray(token, jnp.int32).reshape(1)
    outputs, h_new = encoder_rnn_encode(tokens, hidden, prepared)
    return outputs.reshape(1, 1, -1), h_new


def initialize_hidden(hidden_size):
    return jnp.zeros((1, 1, hidden_size), jnp.float32)


# ----------------------------------------------------------------------------
# Pure-JAX reference (mirrors the kernel's precision: bf16 storage for the
# embedding and W_ih, f32 for W_hh / hidden state / gate math).
# ----------------------------------------------------------------------------
def _reference_encode(tokens, hidden0, params, input_weight_dtype=jnp.bfloat16):
    H = params["embedding"].shape[1]
    emb = params["embedding"].astype(input_weight_dtype).astype(jnp.float32)
    w_ih = params["w_ih"].astype(input_weight_dtype).astype(jnp.float32)
    w_hh = params["w_hh"]                                   # stays f32
    b_ih, b_hh = params["b_ih"], params["b_hh"]
    h = hidden0.reshape(1, H).astype(jnp.float32)
    outs = []
    for t in range(tokens.shape[0]):
        x = emb[tokens[t]].reshape(1, H)
        gx = x @ w_ih.T + b_ih
        gh = h @ w_hh.T + b_hh
        r = jax.nn.sigmoid(gx[:, 0:H] + gh[:, 0:H])
        z = jax.nn.sigmoid(gx[:, H:2 * H] + gh[:, H:2 * H])
        n = jnp.tanh(gx[:, 2 * H:3 * H] + r * gh[:, 2 * H:3 * H])
        h = (1.0 - z) * n + z * h
        outs.append(h)
    return jnp.stack(outs, axis=0), h.reshape(1, 1, H)


if __name__ == "__main__":
    input_size = 16    # vocab size
    hidden_size = 32   # H
    seq_len = 8        # T

    key = jax.random.PRNGKey(0)
    k_params, k_tok = jax.random.split(key)

    params = init_params(k_params, input_size, hidden_size)
    prepared = prepare_params(params)

    tokens = jax.random.randint(k_tok, (seq_len,), 0, input_size, dtype=jnp.int32)
    hidden0 = initialize_hidden(hidden_size)

    # Fused sequence encode: one pallas_call for all seq_len GRU steps.
    outputs, hidden = encoder_rnn_encode(tokens, hidden0, prepared)
    jax.block_until_ready((outputs, hidden))

    ref_out, ref_h = _reference_encode(tokens, hidden0, params)
    assert outputs.shape == (seq_len, 1, hidden_size)
    assert hidden.shape == (1, 1, hidden_size)
    assert jnp.allclose(outputs, ref_out, atol=2e-2, rtol=2e-2)
    assert jnp.allclose(hidden, ref_h, atol=2e-2, rtol=2e-2)

    # Single-step API matching encoder_rnn.forward(input, hidden).
    out1, h1 = encoder_rnn_forward(tokens[0], hidden0, prepared)
    jax.block_until_ready((out1, h1))
    assert out1.shape == (1, 1, hidden_size) and h1.shape == (1, 1, hidden_size)
    assert jnp.allclose(out1, ref_out[0].reshape(1, 1, -1), atol=2e-2, rtol=2e-2)
    assert jnp.allclose(h1, ref_out[0].reshape(1, 1, -1), atol=2e-2, rtol=2e-2)

    print("KERNEL_OK")
</pallas_src>

<mosaic_0001>
module attributes {stable_mosaic.version = 11 : i64} {
  func.func @gru_block_kernel(%arg0: i32, %arg1: memref<16x128xbf16, #tpu.memory_space<vmem>>, %arg2: memref<1x128xf32, #tpu.memory_space<vmem>>, %arg3: memref<128x384xbf16, #tpu.memory_space<vmem>>, %arg4: memref<128x384xf32, #tpu.memory_space<vmem>>, %arg5: memref<1x384xf32, #tpu.memory_space<vmem>>, %arg6: memref<1x128xf32, #tpu.memory_space<vmem>>, %arg7: memref<16x128xf32, #tpu.memory_space<vmem>>, %arg8: memref<1x128xf32, #tpu.memory_space<vmem>>) attributes {dimension_semantics = [#tpu.dimension_semantics<arbitrary>], iteration_bounds = array<i64: 1>, scalar_prefetch = 0 : i64, scratch_operands = 1 : i64, tpu.core_type = #tpu.core_type<tc>, window_params = [{transform_indices = @transform_0, window_bounds = array<i64: 16, 128>}, {pipeline_mode = #tpu.pipeline_mode<synchronous>, transform_indices = @transform_1, window_bounds = array<i64: 1, 128>}, {pipeline_mode = #tpu.pipeline_mode<synchronous>, transform_indices = @transform_2, window_bounds = array<i64: 128, 384>}, {pipeline_mode = #tpu.pipeline_mode<synchronous>, transform_indices = @transform_3, window_bounds = array<i64: 128, 384>}, {pipeline_mode = #tpu.pipeline_mode<synchronous>, transform_indices = @transform_4, window_bounds = array<i64: 1, 384>}, {pipeline_mode = #tpu.pipeline_mode<synchronous>, transform_indices = @transform_5, window_bounds = array<i64: 1, 128>}, {transform_indices = @transform_6, window_bounds = array<i64: 16, 128>}]} {
    %c0_i32 = arith.constant 0 : i32
    %0 = arith.cmpi eq, %arg0, %c0_i32 : i32
    %1 = arith.extui %0 : i1 to i32
    %c0_i32_0 = arith.constant 0 : i32
    %2 = arith.cmpi ne, %1, %c0_i32_0 : i32
    scf.if %2 {
      %c0_95 = arith.constant 0 : index
      %c0_96 = arith.constant 0 : index
      %493 = vector.load %arg2[%c0_95, %c0_96] : memref<1x128xf32, #tpu.memory_space<vmem>>, vector<1x128xf32>
      %c0_97 = arith.constant 0 : index
      %c0_98 = arith.constant 0 : index
      %494 = vector.load %arg8[%c0_97, %c0_98] : memref<1x128xf32, #tpu.memory_space<vmem>>, vector<1x128xf32>
      tpu.vector_store %arg8[%c0_97, %c0_98], %493 {strides = array<i32>} : memref<1x128xf32, #tpu.memory_space<vmem>>, vector<1x128xf32>,
    } else {
    }
    %c0 = arith.constant 0 : index
    %c0_1 = arith.constant 0 : index
    %3 = vector.load %arg1[%c0, %c0_1] : memref<16x128xbf16, #tpu.memory_space<vmem>>, vector<16x128xbf16>
    %c0_2 = arith.constant 0 : index
    %c0_3 = arith.constant 0 : index
    %4 = vector.load %arg3[%c0_2, %c0_3] : memref<128x384xbf16, #tpu.memory_space<vmem>>, vector<128x384xbf16>
    %cst = arith.constant dense<0.000000e+00> : vector<16x384xf32>
    %5 = tpu.matmul %3, %4, %cst {dimension_numbers = #tpu.dot_dimension_numbers<[1], [0], [0], [1], [0, 0, 1, 1], [], []>} : vector<16x128xbf16>, vector<128x384xbf16>, vector<16x384xf32> -> vector<16x384xf32>
    %c0_4 = arith.constant 0 : index
    %c0_5 = arith.constant 0 : index
    %6 = vector.load %arg5[%c0_4, %c0_5] : memref<1x384xf32, #tpu.memory_space<vmem>>, vector<1x384xf32>
    %7 = vector.broadcast %6 : vector<1x384xf32> to vector<16x384xf32>
    %8 = arith.addf %5, %7 : vector<16x384xf32>
    %c0_6 = arith.constant 0 : index
    %c0_7 = arith.constant 0 : index
    %9 = vector.load %arg4[%c0_6, %c0_7] : memref<128x384xf32, #tpu.memory_space<vmem>>, vector<128x384xf32>
    %c0_8 = arith.constant 0 : index
    %c0_9 = arith.constant 0 : index
    %10 = vector.load %arg6[%c0_8, %c0_9] : memref<1x128xf32, #tpu.memory_space<vmem>>, vector<1x128xf32>
    %c0_10 = arith.constant 0 : index
    %c0_11 = arith.constant 0 : index
    %11 = vector.load %arg8[%c0_10, %c0_11] : memref<1x128xf32, #tpu.memory_space<vmem>>, vector<1x128xf32>
    %12 = vector.extract_strided_slice %8 {offsets = [0, 0], sizes = [1, 384], strides = [1, 1]} : vector<16x384xf32> to vector<1x384xf32>
    %cst_12 = arith.constant dense<0.000000e+00> : vector<1x384xf32>
    %13 = tpu.matmul %11, %9, %cst_12 {dimension_numbers = #tpu.dot_dimension_numbers<[1], [0], [0], [1], [0, 0, 1, 1], [], []>} : vector<1x128xf32>, vector<128x384xf32>, vector<1x384xf32> -> vector<1x384xf32>
    %14 = vector.extract_strided_slice %12 {offsets = [0, 0], sizes = [1, 128], strides = [1, 1]} : vector<1x384xf32> to vector<1x128xf32>
    %15 = vector.extract_strided_slice %13 {offsets = [0, 0], sizes = [1, 128], strides = [1, 1]} : vector<1x384xf32> to vector<1x128xf32>
    %16 = arith.addf %14, %15 : vector<1x128xf32>
    %17 = arith.negf %16 : vector<1x128xf32>
    %18 = math.exp %17 : vector<1x128xf32>
    %cst_13 = arith.constant 1.000000e+00 : f32
    %19 = vector.broadcast %cst_13 : f32 to vector<1x128xf32>
    %20 = arith.addf %19, %18 : vector<1x128xf32>
    %21 = arith.divf %19, %20 : vector<1x128xf32>
    %22 = vector.extract_strided_slice %12 {offsets = [0, 128], sizes = [1, 128], strides = [1, 1]} : vector<1x384xf32> to vector<1x128xf32>
    %23 = vector.extract_strided_slice %13 {offsets = [0, 128], sizes = [1, 128], strides = [1, 1]} : vector<1x384xf32> to vector<1x128xf32>
    %24 = arith.addf %22, %23 : vector<1x128xf32>
    %25 = arith.negf %24 : vector<1x128xf32>
    %26 = math.exp %25 : vector<1x128xf32>
    %cst_14 = arith.constant 1.000000e+00 : f32
    %27 = vector.broadcast %cst_14 : f32 to vector<1x128xf32>
    %28 = arith.addf %27, %26 : vector<1x128xf32>
    %29 = arith.divf %27, %28 : vector<1x128xf32>
    %30 = vector.extract_strided_slice %12 {offsets = [0, 256], sizes = [1, 128], strides = [1, 1]} : vector<1x384xf32> to vector<1x128xf32>
    %31 = vector.extract_strided_slice %13 {offsets = [0, 256], sizes = [1, 128], strides = [1, 1]} : vector<1x384xf32> to vector<1x128xf32>
    %32 = arith.addf %31, %10 : vector<1x128xf32>
    %33 = arith.mulf %21, %32 : vector<1x128xf32>
    %34 = arith.addf %30, %33 : vector<1x128xf32>
    %35 = math.tanh %34 : vector<1x128xf32>
    %cst_15 = arith.constant 1.000000e+00 : f32
    %36 = vector.broadcast %cst_15 : f32 to vector<1x128xf32>
    %37 = arith.subf %36, %29 : vector<1x128xf32>
    %38 = arith.mulf %37, %35 : vector<1x128xf32>
    %39 = arith.mulf %29, %11 : vector<1x128xf32>
    %40 = arith.addf %38, %39 : vector<1x128xf32>
    %c0_16 = arith.constant 0 : index
    %c0_17 = arith.constant 0 : index
    %41 = vector.load %arg7[%c0_16, %c0_17] : memref<16x128xf32, #tpu.memory_space<vmem>>, vector<1x128xf32>
    tpu.vector_store %arg7[%c0_16, %c0_17], %40 {strides = array<i32>} : memref<16x128xf32, #tpu.memory_space<vmem>>, vector<1x128xf32>,
    %42 = vector.extract_strided_slice %8 {offsets = [1, 0], sizes = [1, 384], strides = [1, 1]} : vector<16x384xf32> to vector<1x384xf32>
    %cst_18 = arith.constant dense<0.000000e+00> : vector<1x384xf32>
    %43 = tpu.matmul %40, %9, %cst_18 {dimension_numbers = #tpu.dot_dimension_numbers<[1], [0], [0], [1], [0, 0, 1, 1], [], []>} : vector<1x128xf32>, vector<128x384xf32>, vector<1x384xf32> -> vector<1x384xf32>
    %44 = vector.extract_strided_slice %42 {offsets = [0, 0], sizes = [1, 128], strides = [1, 1]} : vector<1x384xf32> to vector<1x128xf32>
    %45 = vector.extract_strided_slice %43 {offsets = [0, 0], sizes = [1, 128], strides = [1, 1]} : vector<1x384xf32> to vector<1x128xf32>
    %46 = arith.addf %44, %45 : vector<1x128xf32>
    %47 = arith.negf %46 : vector<1x128xf32>
    %48 = math.exp %47 : vector<1x128xf32>
    %cst_19 = arith.constant 1.000000e+00 : f32
    %49 = vector.broadcast %cst_19 : f32 to vector<1x128xf32>
    %50 = arith.addf %49, %48 : vector<1x128xf32>
    %51 = arith.divf %49, %50 : vector<1x128xf32>
    %52 = vector.extract_strided_slice %42 {offsets = [0, 128], sizes = [1, 128], strides = [1, 1]} : vector<1x384xf32> to vector<1x128xf32>
    %53 = vector.extract_strided_slice %43 {offsets = [0, 128], sizes = [1, 128], strides = [1, 1]} : vector<1x384xf32> to vector<1x128xf32>
    %54 = arith.addf %52, %53 : vector<1x128xf32>
    %55 = arith.negf %54 : vector<1x128xf32>
    %56 = math.exp %55 : vector<1x128xf32>
    %cst_20 = arith.constant 1.000000e+00 : f32
    %57 = vector.broadcast %cst_20 : f32 to vector<1x128xf32>
    %58 = arith.addf %57, %56 : vector<1x128xf32>
    %59 = arith.divf %57, %58 : vector<1x128xf32>
    %60 = vector.extract_strided_slice %42 {offsets = [0, 256], sizes = [1, 128], strides = [1, 1]} : vector<1x384xf32> to vector<1x128xf32>
    %61 = vector.extract_strided_slice %43 {offsets = [0, 256], sizes = [1, 128], strides = [1, 1]} : vector<1x384xf32> to vector<1x128xf32>
    %62 = arith.addf %61, %10 : vector<1x128xf32>
    %63 = arith.mulf %51, %62 : vector<1x128xf32>
    %64 = arith.addf %60, %63 : vector<1x128xf32>
    %65 = math.tanh %64 : vector<1x128xf32>
    %cst_21 = arith.constant 1.000000e+00 : f32
    %66 = vector.broadcast %cst_21 : f32 to vector<1x128xf32>
    %67 = arith.subf %66, %59 : vector<1x128xf32>
    %68 = arith.mulf %67, %65 : vector<1x128xf32>
    %69 = arith.mulf %59, %40 : vector<1x128xf32>
    %70 = arith.addf %68, %69 : vector<1x128xf32>
    %c1 = arith.constant 1 : index
    %c0_22 = arith.constant 0 : index
    %71 = vector.load %arg7[%c1, %c0_22] : memref<16x128xf32, #tpu.memory_space<vmem>>, vector<1x128xf32>
    tpu.vector_store %arg7[%c1, %c0_22], %70 {strides = array<i32>} : memref<16x128xf32, #tpu.memory_space<vmem>>, vector<1x128xf32>,
    %72 = vector.extract_strided_slice %8 {offsets = [2, 0], sizes = [1, 384], strides = [1, 1]} : vector<16x384xf32> to vector<1x384xf32>
    %cst_23 = arith.constant dense<0.000000e+00> : vector<1x384xf32>
    %73 = tpu.matmul %70, %9, %cst_23 {dimension_numbers = #tpu.dot_dimension_numbers<[1], [0], [0], [1], [0, 0, 1, 1], [], []>} : vector<1x128xf32>, vector<128x384xf32>, vector<1x384xf32> -> vector<1x384xf32>
    %74 = vector.extract_strided_slice %72 {offsets = [0, 0], sizes = [1, 128], strides = [1, 1]} : vector<1x384xf32> to vector<1x128xf32>
    %75 = vector.extract_strided_slice %73 {offsets = [0, 0], sizes = [1, 128], strides = [1, 1]} : vector<1x384xf32> to vector<1x128xf32>
    %76 = arith.addf %74, %75 : vector<1x128xf32>
    %77 = arith.negf %76 : vector<1x128xf32>
    %78 = math.exp %77 : vector<1x128xf32>
    %cst_24 = arith.constant 1.000000e+00 : f32
    %79 = vector.broadcast %cst_24 : f32 to vector<1x128xf32>
    %80 = arith.addf %79, %78 : vector<1x128xf32>
    %81 = arith.divf %79, %80 : vector<1x128xf32>
    %82 = vector.extract_strided_slice %72 {offsets = [0, 128], sizes = [1, 128], strides = [1, 1]} : vector<1x384xf32> to vector<1x128xf32>
    %83 = vector.extract_strided_slice %73 {offsets = [0, 128], sizes = [1, 128], strides = [1, 1]} : vector<1x384xf32> to vector<1x128xf32>
    %84 = arith.addf %82, %83 : vector<1x128xf32>
    %85 = arith.negf %84 : vector<1x128xf32>
    %86 = math.exp %85 : vector<1x128xf32>
    %cst_25 = arith.constant 1.000000e+00 : f32
    %87 = vector.broadcast %cst_25 : f32 to vector<1x128xf32>
    %88 = arith.addf %87, %86 : vector<1x128xf32>
    %89 = arith.divf %87, %88 : vector<1x128xf32>
    %90 = vector.extract_strided_slice %72 {offsets = [0, 256], sizes = [1, 128], strides = [1, 1]} : vector<1x384xf32> to vector<1x128xf32>
    %91 = vector.extract_strided_slice %73 {offsets = [0, 256], sizes = [1, 128], strides = [1, 1]} : vector<1x384xf32> to vector<1x128xf32>
    %92 = arith.addf %91, %10 : vector<1x128xf32>
    %93 = arith.mulf %81, %92 : vector<1x128xf32>
    %94 = arith.addf %90, %93 : vector<1x128xf32>
    %95 = math.tanh %94 : vector<1x128xf32>
    %cst_26 = arith.constant 1.000000e+00 : f32
    %96 = vector.broadcast %cst_26 : f32 to vector<1x128xf32>
    %97 = arith.subf %96, %89 : vector<1x128xf32>
    %98 = arith.mulf %97, %95 : vector<1x128xf32>
    %99 = arith.mulf %89, %70 : vector<1x128xf32>
    %100 = arith.addf %98, %99 : vector<1x128xf32>
    %c2 = arith.constant 2 : index
    %c0_27 = arith.constant 0 : index
    %101 = vector.load %arg7[%c2, %c0_27] : memref<16x128xf32, #tpu.memory_space<vmem>>, vector<1x128xf32>
    tpu.vector_store %arg7[%c2, %c0_27], %100 {strides = array<i32>} : memref<16x128xf32, #tpu.memory_space<vmem>>, vector<1x128xf32>,
    %102 = vector.extract_strided_slice %8 {offsets = [3, 0], sizes = [1, 384], strides = [1, 1]} : vector<16x384xf32> to vector<1x384xf32>
    %cst_28 = arith.constant dense<0.000000e+00> : vector<1x384xf32>
    %103 = tpu.matmul %100, %9, %cst_28 {dimension_numbers = #tpu.dot_dimension_numbers<[1], [0], [0], [1], [0, 0, 1, 1], [], []>} : vector<1x128xf32>, vector<128x384xf32>, vector<1x384xf32> -> vector<1x384xf32>
    %104 = vector.extract_strided_slice %102 {offsets = [0, 0], sizes = [1, 128], strides = [1, 1]} : vector<1x384xf32> to vector<1x128xf32>
    %105 = vector.extract_strided_slice %103 {offsets = [0, 0], sizes = [1, 128], strides = [1, 1]} : vector<1x384xf32> to vector<1x128xf32>
    %106 = arith.addf %104, %105 : vector<1x128xf32>
    %107 = arith.negf %106 : vector<1x128xf32>
    %108 = math.exp %107 : vector<1x128xf32>
    %cst_29 = arith.constant 1.000000e+00 : f32
    %109 = vector.broadcast %cst_29 : f32 to vector<1x128xf32>
    %110 = arith.addf %109, %108 : vector<1x128xf32>
    %111 = arith.divf %109, %110 : vector<1x128xf32>
    %112 = vector.extract_strided_slice %102 {offsets = [0, 128], sizes = [1, 128], strides = [1, 1]} : vector<1x384xf32> to vector<1x128xf32>
    %113 = vector.extract_strided_slice %103 {offsets = [0, 128], sizes = [1, 128], strides = [1, 1]} : vector<1x384xf32> to vector<1x128xf32>
    %114 = arith.addf %112, %113 : vector<1x128xf32>
    %115 = arith.negf %114 : vector<1x128xf32>
    %116 = math.exp %115 : vector<1x128xf32>
    %cst_30 = arith.constant 1.000000e+00 : f32
    %117 = vector.broadcast %cst_30 : f32 to vector<1x128xf32>
    %118 = arith.addf %117, %116 : vector<1x128xf32>
    %119 = arith.divf %117, %118 : vector<1x128xf32>
    %120 = vector.extract_strided_slice %102 {offsets = [0, 256], sizes = [1, 128], strides = [1, 1]} : vector<1x384xf32> to vector<1x128xf32>
    %121 = vector.extract_strided_slice %103 {offsets = [0, 256], sizes = [1, 128], strides = [1, 1]} : vector<1x384xf32> to vector<1x128xf32>
    %122 = arith.addf %121, %10 : vector<1x128xf32>
    %123 = arith.mulf %111, %122 : vector<1x128xf32>
    %124 = arith.addf %120, %123 : vector<1x128xf32>
    %125 = math.tanh %124 : vector<1x128xf32>
    %cst_31 = arith.constant 1.000000e+00 : f32
    %126 = vector.broadcast %cst_31 : f32 to vector<1x128xf32>
    %127 = arith.subf %126, %119 : vector<1x128xf32>
    %128 = arith.mulf %127, %125 : vector<1x128xf32>
    %129 = arith.mulf %119, %100 : vector<1x128xf32>
    %130 = arith.addf %128, %129 : vector<1x128xf32>
    %c3 = arith.constant 3 : index
    %c0_32 = arith.constant 0 : index
    %131 = vector.load %arg7[%c3, %c0_32] : memref<16x128xf32, #tpu.memory_space<vmem>>, vector<1x128xf32>
    tpu.vector_store %arg7[%c3, %c0_32], %130 {strides = array<i32>} : memref<16x128xf32, #tpu.memory_space<vmem>>, vector<1x128xf32>,
    %132 = vector.extract_strided_slice %8 {offsets = [4, 0], sizes = [1, 384], strides = [1, 1]} : vector<16x384xf32> to vector<1x384xf32>
    %cst_33 = arith.constant dense<0.000000e+00> : vector<1x384xf32>
    %133 = tpu.matmul %130, %9, %cst_33 {dimension_numbers = #tpu.dot_dimension_numbers<[1], [0], [0], [1], [0, 0, 1, 1], [], []>} : vector<1x128xf32>, vector<128x384xf32>, vector<1x384xf32> -> vector<1x384xf32>
    %134 = vector.extract_strided_slice %132 {offsets = [0, 0], sizes = [1, 128], strides = [1, 1]} : vector<1x384xf32> to vector<1x128xf32>
    %135 = vector.extract_strided_slice %133 {offsets = [0, 0], sizes = [1, 128], strides = [1, 1]} : vector<1x384xf32> to vector<1x128xf32>
    %136 = arith.addf %134, %135 : vector<1x128xf32>
    %137 = arith.negf %136 : vector<1x128xf32>
    %138 = math.exp %137 : vector<1x128xf32>
    %cst_34 = arith.constant 1.000000e+00 : f32
    %139 = vector.broadcast %cst_34 : f32 to vector<1x128xf32>
    %140 = arith.addf %139, %138 : vector<1x128xf32>
    %141 = arith.divf %139, %140 : vector<1x128xf32>
    %142 = vector.extract_strided_slice %132 {offsets = [0, 128], sizes = [1, 128], strides = [1, 1]} : vector<1x384xf32> to vector<1x128xf32>
    %143 = vector.extract_strided_slice %133 {offsets = [0, 128], sizes = [1, 128], strides = [1, 1]} : vector<1x384xf32> to vector<1x128xf32>
    %144 = arith.addf %142, %143 : vector<1x128xf32>
    %145 = arith.negf %144 : vector<1x128xf32>
    %146 = math.exp %145 : vector<1x128xf32>
    %cst_35 = arith.constant 1.000000e+00 : f32
    %147 = vector.broadcast %cst_35 : f32 to vector<1x128xf32>
    %148 = arith.addf %147, %146 : vector<1x128xf32>
    %149 = arith.divf %147, %148 : vector<1x128xf32>
    %150 = vector.extract_strided_slice %132 {offsets = [0, 256], sizes = [1, 128], strides = [1, 1]} : vector<1x384xf32> to vector<1x128xf32>
    %151 = vector.extract_strided_slice %133 {offsets = [0, 256], sizes = [1, 128], strides = [1, 1]} : vector<1x384xf32> to vector<1x128xf32>
    %152 = arith.addf %151, %10 : vector<1x128xf32>
    %153 = arith.mulf %141, %152 : vector<1x128xf32>
    %154 = arith.addf %150, %153 : vector<1x128xf32>
    %155 = math.tanh %154 : vector<1x128xf32>
    %cst_36 = arith.constant 1.000000e+00 : f32
    %156 = vector.broadcast %cst_36 : f32 to vector<1x128xf32>
    %157 = arith.subf %156, %149 : vector<1x128xf32>
    %158 = arith.mulf %157, %155 : vector<1x128xf32>
    %159 = arith.mulf %149, %130 : vector<1x128xf32>
    %160 = arith.addf %158, %159 : vector<1x128xf32>
    %c4 = arith.constant 4 : index
    %c0_37 = arith.constant 0 : index
    %161 = vector.load %arg7[%c4, %c0_37] : memref<16x128xf32, #tpu.memory_space<vmem>>, vector<1x128xf32>
    tpu.vector_store %arg7[%c4, %c0_37], %160 {strides = array<i32>} : memref<16x128xf32, #tpu.memory_space<vmem>>, vector<1x128xf32>,
    %162 = vector.extract_strided_slice %8 {offsets = [5, 0], sizes = [1, 384], strides = [1, 1]} : vector<16x384xf32> to vector<1x384xf32>
    %cst_38 = arith.constant dense<0.000000e+00> : vector<1x384xf32>
    %163 = tpu.matmul %160, %9, %cst_38 {dimension_numbers = #tpu.dot_dimension_numbers<[1], [0], [0], [1], [0, 0, 1, 1], [], []>} : vector<1x128xf32>, vector<128x384xf32>, vector<1x384xf32> -> vector<1x384xf32>
    %164 = vector.extract_strided_slice %162 {offsets = [0, 0], sizes = [1, 128], strides = [1, 1]} : vector<1x384xf32> to vector<1x128xf32>
    %165 = vector.extract_strided_slice %163 {offsets = [0, 0], sizes = [1, 128], strides = [1, 1]} : vector<1x384xf32> to vector<1x128xf32>
    %166 = arith.addf %164, %165 : vector<1x128xf32>
    %167 = arith.negf %166 : vector<1x128xf32>
    %168 = math.exp %167 : vector<1x128xf32>
    %cst_39 = arith.constant 1.000000e+00 : f32
    %169 = vector.broadcast %cst_39 : f32 to vector<1x128xf32>
    %170 = arith.addf %169, %168 : vector<1x128xf32>
    %171 = arith.divf %169, %170 : vector<1x128xf32>
    %172 = vector.extract_strided_slice %162 {offsets = [0, 128], sizes = [1, 128], strides = [1, 1]} : vector<1x384xf32> to vector<1x128xf32>
    %173 = vector.extract_strided_slice %163 {offsets = [0, 128], sizes = [1, 128], strides = [1, 1]} : vector<1x384xf32> to vector<1x128xf32>
    %174 = arith.addf %172, %173 : vector<1x128xf32>
    %175 = arith.negf %174 : vector<1x128xf32>
    %176 = math.exp %175 : vector<1x128xf32>
    %cst_40 = arith.constant 1.000000e+00 : f32
    %177 = vector.broadcast %cst_40 : f32 to vector<1x128xf32>
    %178 = arith.addf %177, %176 : vector<1x128xf32>
    %179 = arith.divf %177, %178 : vector<1x128xf32>
    %180 = vector.extract_strided_slice %162 {offsets = [0, 256], sizes = [1, 128], strides = [1, 1]} : vector<1x384xf32> to vector<1x128xf32>
    %181 = vector.extract_strided_slice %163 {offsets = [0, 256], sizes = [1, 128], strides = [1, 1]} : vector<1x384xf32> to vector<1x128xf32>
    %182 = arith.addf %181, %10 : vector<1x128xf32>
    %183 = arith.mulf %171, %182 : vector<1x128xf32>
    %184 = arith.addf %180, %183 : vector<1x128xf32>
    %185 = math.tanh %184 : vector<1x128xf32>
    %cst_41 = arith.constant 1.000000e+00 : f32
    %186 = vector.broadcast %cst_41 : f32 to vector<1x128xf32>
    %187 = arith.subf %186, %179 : vector<1x128xf32>
    %188 = arith.mulf %187, %185 : vector<1x128xf32>
    %189 = arith.mulf %179, %160 : vector<1x128xf32>
    %190 = arith.addf %188, %189 : vector<1x128xf32>
    %c5 = arith.constant 5 : index
    %c0_42 = arith.constant 0 : index
    %191 = vector.load %arg7[%c5, %c0_42] : memref<16x128xf32, #tpu.memory_space<vmem>>, vector<1x128xf32>
    tpu.vector_store %arg7[%c5, %c0_42], %190 {strides = array<i32>} : memref<16x128xf32, #tpu.memory_space<vmem>>, vector<1x128xf32>,
    %192 = vector.extract_strided_slice %8 {offsets = [6, 0], sizes = [1, 384], strides = [1, 1]} : vector<16x384xf32> to vector<1x384xf32>
    %cst_43 = arith.constant dense<0.000000e+00> : vector<1x384xf32>
    %193 = tpu.matmul %190, %9, %cst_43 {dimension_numbers = #tpu.dot_dimension_numbers<[1], [0], [0], [1], [0, 0, 1, 1], [], []>} : vector<1x128xf32>, vector<128x384xf32>, vector<1x384xf32> -> vector<1x384xf32>
    %194 = vector.extract_strided_slice %192 {offsets = [0, 0], sizes = [1, 128], strides = [1, 1]} : vector<1x384xf32> to vector<1x128xf32>
    %195 = vector.extract_strided_slice %193 {offsets = [0, 0], sizes = [1, 128], strides = [1, 1]} : vector<1x384xf32> to vector<1x128xf32>
    %196 = arith.addf %194, %195 : vector<1x128xf32>
    %197 = arith.negf %196 : vector<1x128xf32>
    %198 = math.exp %197 : vector<1x128xf32>
    %cst_44 = arith.constant 1.000000e+00 : f32
    %199 = vector.broadcast %cst_44 : f32 to vector<1x128xf32>
    %200 = arith.addf %199, %198 : vector<1x128xf32>
    %201 = arith.divf %199, %200 : vector<1x128xf32>
    %202 = vector.extract_strided_slice %192 {offsets = [0, 128], sizes = [1, 128], strides = [1, 1]} : vector<1x384xf32> to vector<1x128xf32>
    %203 = vector.extract_strided_slice %193 {offsets = [0, 128], sizes = [1, 128], strides = [1, 1]} : vector<1x384xf32> to vector<1x128xf32>
    %204 = arith.addf %202, %203 : vector<1x128xf32>
    %205 = arith.negf %204 : vector<1x128xf32>
    %206 = math.exp %205 : vector<1x128xf32>
    %cst_45 = arith.constant 1.000000e+00 : f32
    %207 = vector.broadcast %cst_45 : f32 to vector<1x128xf32>
    %208 = arith.addf %207, %206 : vector<1x128xf32>
    %209 = arith.divf %207, %208 : vector<1x128xf32>
    %210 = vector.extract_strided_slice %192 {offsets = [0, 256], sizes = [1, 128], strides = [1, 1]} : vector<1x384xf32> to vector<1x128xf32>
    %211 = vector.extract_strided_slice %193 {offsets = [0, 256], sizes = [1, 128], strides = [1, 1]} : vector<1x384xf32> to vector<1x128xf32>
    %212 = arith.addf %211, %10 : vector<1x128xf32>
    %213 = arith.mulf %201, %212 : vector<1x128xf32>
    %214 = arith.addf %210, %213 : vector<1x128xf32>
    %215 = math.tanh %214 : vector<1x128xf32>
    %cst_46 = arith.constant 1.000000e+00 : f32
    %216 = vector.broadcast %cst_46 : f32 to vector<1x128xf32>
    %217 = arith.subf %216, %209 : vector<1x128xf32>
    %218 = arith.mulf %217, %215 : vector<1x128xf32>
    %219 = arith.mulf %209, %190 : vector<1x128xf32>
    %220 = arith.addf %218, %219 : vector<1x128xf32>
    %c6 = arith.constant 6 : index
    %c0_47 = arith.constant 0 : index
    %221 = vector.load %arg7[%c6, %c0_47] : memref<16x128xf32, #tpu.memory_space<vmem>>, vector<1x128xf32>
    tpu.vector_store %arg7[%c6, %c0_47], %220 {strides = array<i32>} : memref<16x128xf32, #tpu.memory_space<vmem>>, vector<1x128xf32>,
    %222 = vector.extract_strided_slice %8 {offsets = [7, 0], sizes = [1, 384], strides = [1, 1]} : vector<16x384xf32> to vector<1x384xf32>
    %cst_48 = arith.constant dense<0.000000e+00> : vector<1x384xf32>
    %223 = tpu.matmul %220, %9, %cst_48 {dimension_numbers = #tpu.dot_dimension_numbers<[1], [0], [0], [1], [0, 0, 1, 1], [], []>} : vector<1x128xf32>, vector<128x384xf32>, vector<1x384xf32> -> vector<1x384xf32>
    %224 = vector.extract_strided_slice %222 {offsets = [0, 0], sizes = [1, 128], strides = [1, 1]} : vector<1x384xf32> to vector<1x128xf32>
    %225 = vector.extract_strided_slice %223 {offsets = [0, 0], sizes = [1, 128], strides = [1, 1]} : vector<1x384xf32> to vector<1x128xf32>
    %226 = arith.addf %224, %225 : vector<1x128xf32>
    %227 = arith.negf %226 : vector<1x128xf32>
    %228 = math.exp %227 : vector<1x128xf32>
    %cst_49 = arith.constant 1.000000e+00 : f32
    %229 = vector.broadcast %cst_49 : f32 to vector<1x128xf32>
    %230 = arith.addf %229, %228 : vector<1x128xf32>
    %231 = arith.divf %229, %230 : vector<1x128xf32>
    %232 = vector.extract_strided_slice %222 {offsets = [0, 128], sizes = [1, 128], strides = [1, 1]} : vector<1x384xf32> to vector<1x128xf32>
    %233 = vector.extract_strided_slice %223 {offsets = [0, 128], sizes = [1, 128], strides = [1, 1]} : vector<1x384xf32> to vector<1x128xf32>
    %234 = arith.addf %232, %233 : vector<1x128xf32>
    %235 = arith.negf %234 : vector<1x128xf32>
    %236 = math.exp %235 : vector<1x128xf32>
    %cst_50 = arith.constant 1.000000e+00 : f32
    %237 = vector.broadcast %cst_50 : f32 to vector<1x128xf32>
    %238 = arith.addf %237, %236 : vector<1x128xf32>
    %239 = arith.divf %237, %238 : vector<1x128xf32>
    %240 = vector.extract_strided_slice %222 {offsets = [0, 256], sizes = [1, 128], strides = [1, 1]} : vector<1x384xf32> to vector<1x128xf32>
    %241 = vector.extract_strided_slice %223 {offsets = [0, 256], sizes = [1, 128], strides = [1, 1]} : vector<1x384xf32> to vector<1x128xf32>
    %242 = arith.addf %241, %10 : vector<1x128xf32>
    %243 = arith.mulf %231, %242 : vector<1x128xf32>
    %244 = arith.addf %240, %243 : vector<1x128xf32>
    %245 = math.tanh %244 : vector<1x128xf32>
    %cst_51 = arith.constant 1.000000e+00 : f32
    %246 = vector.broadcast %cst_51 : f32 to vector<1x128xf32>
    %247 = arith.subf %246, %239 : vector<1x128xf32>
    %248 = arith.mulf %247, %245 : vector<1x128xf32>
    %249 = arith.mulf %239, %220 : vector<1x128xf32>
    %250 = arith.addf %248, %249 : vector<1x128xf32>
    %c7 = arith.constant 7 : index
    %c0_52 = arith.constant 0 : index
    %251 = vector.load %arg7[%c7, %c0_52] : memref<16x128xf32, #tpu.memory_space<vmem>>, vector<1x128xf32>
    tpu.vector_store %arg7[%c7, %c0_52], %250 {strides = array<i32>} : memref<16x128xf32, #tpu.memory_space<vmem>>, vector<1x128xf32>,
    %252 = vector.extract_strided_slice %8 {offsets = [8, 0], sizes = [1, 384], strides = [1, 1]} : vector<16x384xf32> to vector<1x384xf32>
    %cst_53 = arith.constant dense<0.000000e+00> : vector<1x384xf32>
    %253 = tpu.matmul %250, %9, %cst_53 {dimension_numbers = #tpu.dot_dimension_numbers<[1], [0], [0], [1], [0, 0, 1, 1], [], []>} : vector<1x128xf32>, vector<128x384xf32>, vector<1x384xf32> -> vector<1x384xf32>
    %254 = vector.extract_strided_slice %252 {offsets = [0, 0], sizes = [1, 128], strides = [1, 1]} : vector<1x384xf32> to vector<1x128xf32>
    %255 = vector.extract_strided_slice %253 {offsets = [0, 0], sizes = [1, 128], strides = [1, 1]} : vector<1x384xf32> to vector<1x128xf32>
    %256 = arith.addf %254, %255 : vector<1x128xf32>
    %257 = arith.negf %256 : vector<1x128xf32>
    %258 = math.exp %257 : vector<1x128xf32>
    %cst_54 = arith.constant 1.000000e+00 : f32
    %259 = vector.broadcast %cst_54 : f32 to vector<1x128xf32>
    %260 = arith.addf %259, %258 : vector<1x128xf32>
    %261 = arith.divf %259, %260 : vector<1x128xf32>
    %262 = vector.extract_strided_slice %252 {offsets = [0, 128], sizes = [1, 128], strides = [1, 1]} : vector<1x384xf32> to vector<1x128xf32>
    %263 = vector.extract_strided_slice %253 {offsets = [0, 128], sizes = [1, 128], strides = [1, 1]} : vector<1x384xf32> to vector<1x128xf32>
    %264 = arith.addf %262, %263 : vector<1x128xf32>
    %265 = arith.negf %264 : vector<1x128xf32>
    %266 = math.exp %265 : vector<1x128xf32>
    %cst_55 = arith.constant 1.000000e+00 : f32
    %267 = vector.broadcast %cst_55 : f32 to vector<1x128xf32>
    %268 = arith.addf %267, %266 : vector<1x128xf32>
    %269 = arith.divf %267, %268 : vector<1x128xf32>
    %270 = vector.extract_strided_slice %252 {offsets = [0, 256], sizes = [1, 128], strides = [1, 1]} : vector<1x384xf32> to vector<1x128xf32>
    %271 = vector.extract_strided_slice %253 {offsets = [0, 256], sizes = [1, 128], strides = [1, 1]} : vector<1x384xf32> to vector<1x128xf32>
    %272 = arith.addf %271, %10 : vector<1x128xf32>
    %273 = arith.mulf %261, %272 : vector<1x128xf32>
    %274 = arith.addf %270, %273 : vector<1x128xf32>
    %275 = math.tanh %274 : vector<1x128xf32>
    %cst_56 = arith.constant 1.000000e+00 : f32
    %276 = vector.broadcast %cst_56 : f32 to vector<1x128xf32>
    %277 = arith.subf %276, %269 : vector<1x128xf32>
    %278 = arith.mulf %277, %275 : vector<1x128xf32>
    %279 = arith.mulf %269, %250 : vector<1x128xf32>
    %280 = arith.addf %278, %279 : vector<1x128xf32>
    %c8 = arith.constant 8 : index
    %c0_57 = arith.constant 0 : index
    %281 = vector.load %arg7[%c8, %c0_57] : memref<16x128xf32, #tpu.memory_space<vmem>>, vector<1x128xf32>
    tpu.vector_store %arg7[%c8, %c0_57], %280 {strides = array<i32>} : memref<16x128xf32, #tpu.memory_space<vmem>>, vector<1x128xf32>,
    %282 = vector.extract_strided_slice %8 {offsets = [9, 0], sizes = [1, 384], strides = [1, 1]} : vector<16x384xf32> to vector<1x384xf32>
    %cst_58 = arith.constant dense<0.000000e+00> : vector<1x384xf32>
    %283 = tpu.matmul %280, %9, %cst_58 {dimension_numbers = #tpu.dot_dimension_numbers<[1], [0], [0], [1], [0, 0, 1, 1], [], []>} : vector<1x128xf32>, vector<128x384xf32>, vector<1x384xf32> -> vector<1x384xf32>
    %284 = vector.extract_strided_slice %282 {offsets = [0, 0], sizes = [1, 128], strides = [1, 1]} : vector<1x384xf32> to vector<1x128xf32>
    %285 = vector.extract_strided_slice %283 {offsets = [0, 0], sizes = [1, 128], strides = [1, 1]} : vector<1x384xf32> to vector<1x128xf32>
    %286 = arith.addf %284, %285 : vector<1x128xf32>
    %287 = arith.negf %286 : vector<1x128xf32>
    %288 = math.exp %287 : vector<1x128xf32>
    %cst_59 = arith.constant 1.000000e+00 : f32
    %289 = vector.broadcast %cst_59 : f32 to vector<1x128xf32>
    %290 = arith.addf %289, %288 : vector<1x128xf32>
    %291 = arith.divf %289, %290 : vector<1x128xf32>
    %292 = vector.extract_strided_slice %282 {offsets = [0, 128], sizes = [1, 128], strides = [1, 1]} : vector<1x384xf32> to vector<1x128xf32>
    %293 = vector.extract_strided_slice %283 {offsets = [0, 128], sizes = [1, 128], strides = [1, 1]} : vector<1x384xf32> to vector<1x128xf32>
    %294 = arith.addf %292, %293 : vector<1x128xf32>
    %295 = arith.negf %294 : vector<1x128xf32>
    %296 = math.exp %295 : vector<1x128xf32>
    %cst_60 = arith.constant 1.000000e+00 : f32
    %297 = vector.broadcast %cst_60 : f32 to vector<1x128xf32>
    %298 = arith.addf %297, %296 : vector<1x128xf32>
    %299 = arith.divf %297, %298 : vector<1x128xf32>
    %300 = vector.extract_strided_slice %282 {offsets = [0, 256], sizes = [1, 128], strides = [1, 1]} : vector<1x384xf32> to vector<1x128xf32>
    %301 = vector.extract_strided_slice %283 {offsets = [0, 256], sizes = [1, 128], strides = [1, 1]} : vector<1x384xf32> to vector<1x128xf32>
    %302 = arith.addf %301, %10 : vector<1x128xf32>
    %303 = arith.mulf %291, %302 : vector<1x128xf32>
    %304 = arith.addf %300, %303 : vector<1x128xf32>
    %305 = math.tanh %304 : vector<1x128xf32>
    %cst_61 = arith.constant 1.000000e+00 : f32
    %306 = vector.broadcast %cst_61 : f32 to vector<1x128xf32>
    %307 = arith.subf %306, %299 : vector<1x128xf32>
    %308 = arith.mulf %307, %305 : vector<1x128xf32>
    %309 = arith.mulf %299, %280 : vector<1x128xf32>
    %310 = arith.addf %308, %309 : vector<1x128xf32>
    %c9 = arith.constant 9 : index
    %c0_62 = arith.constant 0 : index
    %311 = vector.load %arg7[%c9, %c0_62] : memref<16x128xf32, #tpu.memory_space<vmem>>, vector<1x128xf32>
    tpu.vector_store %arg7[%c9, %c0_62], %310 {strides = array<i32>} : memref<16x128xf32, #tpu.memory_space<vmem>>, vector<1x128xf32>,
    %312 = vector.extract_strided_slice %8 {offsets = [10, 0], sizes = [1, 384], strides = [1, 1]} : vector<16x384xf32> to vector<1x384xf32>
    %cst_63 = arith.constant dense<0.000000e+00> : vector<1x384xf32>
    %313 = tpu.matmul %310, %9, %cst_63 {dimension_numbers = #tpu.dot_dimension_numbers<[1], [0], [0], [1], [0, 0, 1, 1], [], []>} : vector<1x128xf32>, vector<128x384xf32>, vector<1x384xf32> -> vector<1x384xf32>
    %314 = vector.extract_strided_slice %312 {offsets = [0, 0], sizes = [1, 128], strides = [1, 1]} : vector<1x384xf32> to vector<1x128xf32>
    %315 = vector.extract_strided_slice %313 {offsets = [0, 0], sizes = [1, 128], strides = [1, 1]} : vector<1x384xf32> to vector<1x128xf32>
    %316 = arith.addf %314, %315 : vector<1x128xf32>
    %317 = arith.negf %316 : vector<1x128xf32>
    %318 = math.exp %317 : vector<1x128xf32>
    %cst_64 = arith.constant 1.000000e+00 : f32
    %319 = vector.broadcast %cst_64 : f32 to vector<1x128xf32>
    %320 = arith.addf %319, %318 : vector<1x128xf32>
    %321 = arith.divf %319, %320 : vector<1x128xf32>
    %322 = vector.extract_strided_slice %312 {offsets = [0, 128], sizes = [1, 128], strides = [1, 1]} : vector<1x384xf32> to vector<1x128xf32>
    %323 = vector.extract_strided_slice %313 {offsets = [0, 128], sizes = [1, 128], strides = [1, 1]} : vector<1x384xf32> to vector<1x128xf32>
    %324 = arith.addf %322, %323 : vector<1x128xf32>
    %325 = arith.negf %324 : vector<1x128xf32>
    %326 = math.exp %325 : vector<1x128xf32>
    %cst_65 = arith.constant 1.000000e+00 : f32
    %327 = vector.broadcast %cst_65 : f32 to vector<1x128xf32>
    %328 = arith.addf %327, %326 : vector<1x128xf32>
    %329 = arith.divf %327, %328 : vector<1x128xf32>
    %330 = vector.extract_strided_slice %312 {offsets = [0, 256], sizes = [1, 128], strides = [1, 1]} : vector<1x384xf32> to vector<1x128xf32>
    %331 = vector.extract_strided_slice %313 {offsets = [0, 256], sizes = [1, 128], strides = [1, 1]} : vector<1x384xf32> to vector<1x128xf32>
    %332 = arith.addf %331, %10 : vector<1x128xf32>
    %333 = arith.mulf %321, %332 : vector<1x128xf32>
    %334 = arith.addf %330, %333 : vector<1x128xf32>
    %335 = math.tanh %334 : vector<1x128xf32>
    %cst_66 = arith.constant 1.000000e+00 : f32
    %336 = vector.broadcast %cst_66 : f32 to vector<1x128xf32>
    %337 = arith.subf %336, %329 : vector<1x128xf32>
    %338 = arith.mulf %337, %335 : vector<1x128xf32>
    %339 = arith.mulf %329, %310 : vector<1x128xf32>
    %340 = arith.addf %338, %339 : vector<1x128xf32>
    %c10 = arith.constant 10 : index
    %c0_67 = arith.constant 0 : index
    %341 = vector.load %arg7[%c10, %c0_67] : memref<16x128xf32, #tpu.memory_space<vmem>>, vector<1x128xf32>
    tpu.vector_store %arg7[%c10, %c0_67], %340 {strides = array<i32>} : memref<16x128xf32, #tpu.memory_space<vmem>>, vector<1x128xf32>,
    %342 = vector.extract_strided_slice %8 {offsets = [11, 0], sizes = [1, 384], strides = [1, 1]} : vector<16x384xf32> to vector<1x384xf32>
    %cst_68 = arith.constant dense<0.000000e+00> : vector<1x384xf32>
    %343 = tpu.matmul %340, %9, %cst_68 {dimension_numbers = #tpu.dot_dimension_numbers<[1], [0], [0], [1], [0, 0, 1, 1], [], []>} : vector<1x128xf32>, vector<128x384xf32>, vector<1x384xf32> -> vector<1x384xf32>
    %344 = vector.extract_strided_slice %342 {offsets = [0, 0], sizes = [1, 128], strides = [1, 1]} : vector<1x384xf32> to vector<1x128xf32>
    %345 = vector.extract_strided_slice %343 {offsets = [0, 0], sizes = [1, 128], strides = [1, 1]} : vector<1x384xf32> to vector<1x128xf32>
    %346 = arith.addf %344, %345 : vector<1x128xf32>
    %347 = arith.negf %346 : vector<1x128xf32>
    %348 = math.exp %347 : vector<1x128xf32>
    %cst_69 = arith.constant 1.000000e+00 : f32
    %349 = vector.broadcast %cst_69 : f32 to vector<1x128xf32>
    %350 = arith.addf %349, %348 : vector<1x128xf32>
    %351 = arith.divf %349, %350 : vector<1x128xf32>
    %352 = vector.extract_strided_slice %342 {offsets = [0, 128], sizes = [1, 128], strides = [1, 1]} : vector<1x384xf32> to vector<1x128xf32>
    %353 = vector.extract_strided_slice %343 {offsets = [0, 128], sizes = [1, 128], strides = [1, 1]} : vector<1x384xf32> to vector<1x128xf32>
    %354 = arith.addf %352, %353 : vector<1x128xf32>
    %355 = arith.negf %354 : vector<1x128xf32>
    %356 = math.exp %355 : vector<1x128xf32>
    %cst_70 = arith.constant 1.000000e+00 : f32
    %357 = vector.broadcast %cst_70 : f32 to vector<1x128xf32>
    %358 = arith.addf %357, %356 : vector<1x128xf32>
    %359 = arith.divf %357, %358 : vector<1x128xf32>
    %360 = vector.extract_strided_slice %342 {offsets = [0, 256], sizes = [1, 128], strides = [1, 1]} : vector<1x384xf32> to vector<1x128xf32>
    %361 = vector.extract_strided_slice %343 {offsets = [0, 256], sizes = [1, 128], strides = [1, 1]} : vector<1x384xf32> to vector<1x128xf32>
    %362 = arith.addf %361, %10 : vector<1x128xf32>
    %363 = arith.mulf %351, %362 : vector<1x128xf32>
    %364 = arith.addf %360, %363 : vector<1x128xf32>
    %365 = math.tanh %364 : vector<1x128xf32>
    %cst_71 = arith.constant 1.000000e+00 : f32
    %366 = vector.broadcast %cst_71 : f32 to vector<1x128xf32>
    %367 = arith.subf %366, %359 : vector<1x128xf32>
    %368 = arith.mulf %367, %365 : vector<1x128xf32>
    %369 = arith.mulf %359, %340 : vector<1x128xf32>
    %370 = arith.addf %368, %369 : vector<1x128xf32>
    %c11 = arith.constant 11 : index
    %c0_72 = arith.constant 0 : index
    %371 = vector.load %arg7[%c11, %c0_72] : memref<16x128xf32, #tpu.memory_space<vmem>>, vector<1x128xf32>
    tpu.vector_store %arg7[%c11, %c0_72], %370 {strides = array<i32>} : memref<16x128xf32, #tpu.memory_space<vmem>>, vector<1x128xf32>,
    %372 = vector.extract_strided_slice %8 {offsets = [12, 0], sizes = [1, 384], strides = [1, 1]} : vector<16x384xf32> to vector<1x384xf32>
    %cst_73 = arith.constant dense<0.000000e+00> : vector<1x384xf32>
    %373 = tpu.matmul %370, %9, %cst_73 {dimension_numbers = #tpu.dot_dimension_numbers<[1], [0], [0], [1], [0, 0, 1, 1], [], []>} : vector<1x128xf32>, vector<128x384xf32>, vector<1x384xf32> -> vector<1x384xf32>
    %374 = vector.extract_strided_slice %372 {offsets = [0, 0], sizes = [1, 128], strides = [1, 1]} : vector<1x384xf32> to vector<1x128xf32>
    %375 = vector.extract_strided_slice %373 {offsets = [0, 0], sizes = [1, 128], strides = [1, 1]} : vector<1x384xf32> to vector<1x128xf32>
    %376 = arith.addf %374, %375 : vector<1x128xf32>
    %377 = arith.negf %376 : vector<1x128xf32>
    %378 = math.exp %377 : vector<1x128xf32>
    %cst_74 = arith.constant 1.000000e+00 : f32
    %379 = vector.broadcast %cst_74 : f32 to vector<1x128xf32>
    %380 = arith.addf %379, %378 : vector<1x128xf32>
    %381 = arith.divf %379, %380 : vector<1x128xf32>
    %382 = vector.extract_strided_slice %372 {offsets = [0, 128], sizes = [1, 128], strides = [1, 1]} : vector<1x384xf32> to vector<1x128xf32>
    %383 = vector.extract_strided_slice %373 {offsets = [0, 128], sizes = [1, 128], strides = [1, 1]} : vector<1x384xf32> to vector<1x128xf32>
    %384 = arith.addf %382, %383 : vector<1x128xf32>
    %385 = arith.negf %384 : vector<1x128xf32>
    %386 = math.exp %385 : vector<1x128xf32>
    %cst_75 = arith.constant 1.000000e+00 : f32
    %387 = vector.broadcast %cst_75 : f32 to vector<1x128xf32>
    %388 = arith.addf %387, %386 : vector<1x128xf32>
    %389 = arith.divf %387, %388 : vector<1x128xf32>
    %390 = vector.extract_strided_slice %372 {offsets = [0, 256], sizes = [1, 128], strides = [1, 1]} : vector<1x384xf32> to vector<1x128xf32>
    %391 = vector.extract_strided_slice %373 {offsets = [0, 256], sizes = [1, 128], strides = [1, 1]} : vector<1x384xf32> to vector<1x128xf32>
    %392 = arith.addf %391, %10 : vector<1x128xf32>
    %393 = arith.mulf %381, %392 : vector<1x128xf32>
    %394 = arith.addf %390, %393 : vector<1x128xf32>
    %395 = math.tanh %394 : vector<1x128xf32>
    %cst_76 = arith.constant 1.000000e+00 : f32
    %396 = vector.broadcast %cst_76 : f32 to vector<1x128xf32>
    %397 = arith.subf %396, %389 : vector<1x128xf32>
    %398 = arith.mulf %397, %395 : vector<1x128xf32>
    %399 = arith.mulf %389, %370 : vector<1x128xf32>
    %400 = arith.addf %398, %399 : vector<1x128xf32>
    %c12 = arith.constant 12 : index
    %c0_77 = arith.constant 0 : index
    %401 = vector.load %arg7[%c12, %c0_77] : memref<16x128xf32, #tpu.memory_space<vmem>>, vector<1x128xf32>
    tpu.vector_store %arg7[%c12, %c0_77], %400 {strides = array<i32>} : memref<16x128xf32, #tpu.memory_space<vmem>>, vector<1x128xf32>,
    %402 = vector.extract_strided_slice %8 {offsets = [13, 0], sizes = [1, 384], strides = [1, 1]} : vector<16x384xf32> to vector<1x384xf32>
    %cst_78 = arith.constant dense<0.000000e+00> : vector<1x384xf32>
    %403 = tpu.matmul %400, %9, %cst_78 {dimension_numbers = #tpu.dot_dimension_numbers<[1], [0], [0], [1], [0, 0, 1, 1], [], []>} : vector<1x128xf32>, vector<128x384xf32>, vector<1x384xf32> -> vector<1x384xf32>
    %404 = vector.extract_strided_slice %402 {offsets = [0, 0], sizes = [1, 128], strides = [1, 1]} : vector<1x384xf32> to vector<1x128xf32>
    %405 = vector.extract_strided_slice %403 {offsets = [0, 0], sizes = [1, 128], strides = [1, 1]} : vector<1x384xf32> to vector<1x128xf32>
    %406 = arith.addf %404, %405 : vector<1x128xf32>
    %407 = arith.negf %406 : vector<1x128xf32>
    %408 = math.exp %407 : vector<1x128xf32>
    %cst_79 = arith.constant 1.000000e+00 : f32
    %409 = vector.broadcast %cst_79 : f32 to vector<1x128xf32>
    %410 = arith.addf %409, %408 : vector<1x128xf32>
    %411 = arith.divf %409, %410 : vector<1x128xf32>
    %412 = vector.extract_strided_slice %402 {offsets = [0, 128], sizes = [1, 128], strides = [1, 1]} : vector<1x384xf32> to vector<1x128xf32>
    %413 = vector.extract_strided_slice %403 {offsets = [0, 128], sizes = [1, 128], strides = [1, 1]} : vector<1x384xf32> to vector<1x128xf32>
    %414 = arith.addf %412, %413 : vector<1x128xf32>
    %415 = arith.negf %414 : vector<1x128xf32>
    %416 = math.exp %415 : vector<1x128xf32>
    %cst_80 = arith.constant 1.000000e+00 : f32
    %417 = vector.broadcast %cst_80 : f32 to vector<1x128xf32>
    %418 = arith.addf %417, %416 : vector<1x128xf32>
    %419 = arith.divf %417, %418 : vector<1x128xf32>
    %420 = vector.extract_strided_slice %402 {offsets = [0, 256], sizes = [1, 128], strides = [1, 1]} : vector<1x384xf32> to vector<1x128xf32>
    %421 = vector.extract_strided_slice %403 {offsets = [0, 256], sizes = [1, 128], strides = [1, 1]} : vector<1x384xf32> to vector<1x128xf32>
    %422 = arith.addf %421, %10 : vector<1x128xf32>
    %423 = arith.mulf %411, %422 : vector<1x128xf32>
    %424 = arith.addf %420, %423 : vector<1x128xf32>
    %425 = math.tanh %424 : vector<1x128xf32>
    %cst_81 = arith.constant 1.000000e+00 : f32
    %426 = vector.broadcast %cst_81 : f32 to vector<1x128xf32>
    %427 = arith.subf %426, %419 : vector<1x128xf32>
    %428 = arith.mulf %427, %425 : vector<1x128xf32>
    %429 = arith.mulf %419, %400 : vector<1x128xf32>
    %430 = arith.addf %428, %429 : vector<1x128xf32>
    %c13 = arith.constant 13 : index
    %c0_82 = arith.constant 0 : index
    %431 = vector.load %arg7[%c13, %c0_82] : memref<16x128xf32, #tpu.memory_space<vmem>>, vector<1x128xf32>
    tpu.vector_store %arg7[%c13, %c0_82], %430 {strides = array<i32>} : memref<16x128xf32, #tpu.memory_space<vmem>>, vector<1x128xf32>,
    %432 = vector.extract_strided_slice %8 {offsets = [14, 0], sizes = [1, 384], strides = [1, 1]} : vector<16x384xf32> to vector<1x384xf32>
    %cst_83 = arith.constant dense<0.000000e+00> : vector<1x384xf32>
    %433 = tpu.matmul %430, %9, %cst_83 {dimension_numbers = #tpu.dot_dimension_numbers<[1], [0], [0], [1], [0, 0, 1, 1], [], []>} : vector<1x128xf32>, vector<128x384xf32>, vector<1x384xf32> -> vector<1x384xf32>
    %434 = vector.extract_strided_slice %432 {offsets = [0, 0], sizes = [1, 128], strides = [1, 1]} : vector<1x384xf32> to vector<1x128xf32>
    %435 = vector.extract_strided_slice %433 {offsets = [0, 0], sizes = [1, 128], strides = [1, 1]} : vector<1x384xf32> to vector<1x128xf32>
    %436 = arith.addf %434, %435 : vector<1x128xf32>
    %437 = arith.negf %436 : vector<1x128xf32>
    %438 = math.exp %437 : vector<1x128xf32>
    %cst_84 = arith.constant 1.000000e+00 : f32
    %439 = vector.broadcast %cst_84 : f32 to vector<1x128xf32>
    %440 = arith.addf %439, %438 : vector<1x128xf32>
    %441 = arith.divf %439, %440 : vector<1x128xf32>
    %442 = vector.extract_strided_slice %432 {offsets = [0, 128], sizes = [1, 128], strides = [1, 1]} : vector<1x384xf32> to vector<1x128xf32>
    %443 = vector.extract_strided_slice %433 {offsets = [0, 128], sizes = [1, 128], strides = [1, 1]} : vector<1x384xf32> to vector<1x128xf32>
    %444 = arith.addf %442, %443 : vector<1x128xf32>
    %445 = arith.negf %444 : vector<1x128xf32>
    %446 = math.exp %445 : vector<1x128xf32>
    %cst_85 = arith.constant 1.000000e+00 : f32
    %447 = vector.broadcast %cst_85 : f32 to vector<1x128xf32>
    %448 = arith.addf %447, %446 : vector<1x128xf32>
    %449 = arith.divf %447, %448 : vector<1x128xf32>
    %450 = vector.extract_strided_slice %432 {offsets = [0, 256], sizes = [1, 128], strides = [1, 1]} : vector<1x384xf32> to vector<1x128xf32>
    %451 = vector.extract_strided_slice %433 {offsets = [0, 256], sizes = [1, 128], strides = [1, 1]} : vector<1x384xf32> to vector<1x128xf32>
    %452 = arith.addf %451, %10 : vector<1x128xf32>
    %453 = arith.mulf %441, %452 : vector<1x128xf32>
    %454 = arith.addf %450, %453 : vector<1x128xf32>
    %455 = math.tanh %454 : vector<1x128xf32>
    %cst_86 = arith.constant 1.000000e+00 : f32
    %456 = vector.broadcast %cst_86 : f32 to vector<1x128xf32>
    %457 = arith.subf %456, %449 : vector<1x128xf32>
    %458 = arith.mulf %457, %455 : vector<1x128xf32>
    %459 = arith.mulf %449, %430 : vector<1x128xf32>
    %460 = arith.addf %458, %459 : vector<1x128xf32>
    %c14 = arith.constant 14 : index
    %c0_87 = arith.constant 0 : index
    %461 = vector.load %arg7[%c14, %c0_87] : memref<16x128xf32, #tpu.memory_space<vmem>>, vector<1x128xf32>
    tpu.vector_store %arg7[%c14, %c0_87], %460 {strides = array<i32>} : memref<16x128xf32, #tpu.memory_space<vmem>>, vector<1x128xf32>,
    %462 = vector.extract_strided_slice %8 {offsets = [15, 0], sizes = [1, 384], strides = [1, 1]} : vector<16x384xf32> to vector<1x384xf32>
    %cst_88 = arith.constant dense<0.000000e+00> : vector<1x384xf32>
    %463 = tpu.matmul %460, %9, %cst_88 {dimension_numbers = #tpu.dot_dimension_numbers<[1], [0], [0], [1], [0, 0, 1, 1], [], []>} : vector<1x128xf32>, vector<128x384xf32>, vector<1x384xf32> -> vector<1x384xf32>
    %464 = vector.extract_strided_slice %462 {offsets = [0, 0], sizes = [1, 128], strides = [1, 1]} : vector<1x384xf32> to vector<1x128xf32>
    %465 = vector.extract_strided_slice %463 {offsets = [0, 0], sizes = [1, 128], strides = [1, 1]} : vector<1x384xf32> to vector<1x128xf32>
    %466 = arith.addf %464, %465 : vector<1x128xf32>
    %467 = arith.negf %466 : vector<1x128xf32>
    %468 = math.exp %467 : vector<1x128xf32>
    %cst_89 = arith.constant 1.000000e+00 : f32
    %469 = vector.broadcast %cst_89 : f32 to vector<1x128xf32>
    %470 = arith.addf %469, %468 : vector<1x128xf32>
    %471 = arith.divf %469, %470 : vector<1x128xf32>
    %472 = vector.extract_strided_slice %462 {offsets = [0, 128], sizes = [1, 128], strides = [1, 1]} : vector<1x384xf32> to vector<1x128xf32>
    %473 = vector.extract_strided_slice %463 {offsets = [0, 128], sizes = [1, 128], strides = [1, 1]} : vector<1x384xf32> to vector<1x128xf32>
    %474 = arith.addf %472, %473 : vector<1x128xf32>
    %475 = arith.negf %474 : vector<1x128xf32>
    %476 = math.exp %475 : vector<1x128xf32>
    %cst_90 = arith.constant 1.000000e+00 : f32
    %477 = vector.broadcast %cst_90 : f32 to vector<1x128xf32>
    %478 = arith.addf %477, %476 : vector<1x128xf32>
    %479 = arith.divf %477, %478 : vector<1x128xf32>
    %480 = vector.extract_strided_slice %462 {offsets = [0, 256], sizes = [1, 128], strides = [1, 1]} : vector<1x384xf32> to vector<1x128xf32>
    %481 = vector.extract_strided_slice %463 {offsets = [0, 256], sizes = [1, 128], strides = [1, 1]} : vector<1x384xf32> to vector<1x128xf32>
    %482 = arith.addf %481, %10 : vector<1x128xf32>
    %483 = arith.mulf %471, %482 : vector<1x128xf32>
    %484 = arith.addf %480, %483 : vector<1x128xf32>
    %485 = math.tanh %484 : vector<1x128xf32>
    %cst_91 = arith.constant 1.000000e+00 : f32
    %486 = vector.broadcast %cst_91 : f32 to vector<1x128xf32>
    %487 = arith.subf %486, %479 : vector<1x128xf32>
    %488 = arith.mulf %487, %485 : vector<1x128xf32>
    %489 = arith.mulf %479, %460 : vector<1x128xf32>
    %490 = arith.addf %488, %489 : vector<1x128xf32>
    %c15 = arith.constant 15 : index
    %c0_92 = arith.constant 0 : index
    %491 = vector.load %arg7[%c15, %c0_92] : memref<16x128xf32, #tpu.memory_space<vmem>>, vector<1x128xf32>
    tpu.vector_store %arg7[%c15, %c0_92], %490 {strides = array<i32>} : memref<16x128xf32, #tpu.memory_space<vmem>>, vector<1x128xf32>,
    %c0_93 = arith.constant 0 : index
    %c0_94 = arith.constant 0 : index
    %492 = vector.load %arg8[%c0_93, %c0_94] : memref<1x128xf32, #tpu.memory_space<vmem>>, vector<1x128xf32>
    tpu.vector_store %arg8[%c0_93, %c0_94], %490 {strides = array<i32>} : memref<1x128xf32, #tpu.memory_space<vmem>>, vector<1x128xf32>,
    return
  }
  func.func @transform_0(%arg0: i32) -> (i32, i32) {
    %c0_i32 = arith.constant 0 : i32
    %c0_i32_0 = arith.constant 0 : i32
    return %arg0, %c0_i32 : i32, i32
  }
  func.func @transform_1(%arg0: i32) -> (i32, i32) {
    %c0_i32 = arith.constant 0 : i32
    %c0_i32_0 = arith.constant 0 : i32
    %c0_i32_1 = arith.constant 0 : i32
    return %c0_i32, %c0_i32_0 : i32, i32
  }
  func.func @transform_2(%arg0: i32) -> (i32, i32) {
    %c0_i32 = arith.constant 0 : i32
    %c0_i32_0 = arith.constant 0 : i32
    %c0_i32_1 = arith.constant 0 : i32
    return %c0_i32, %c0_i32_0 : i32, i32
  }
  func.func @transform_3(%arg0: i32) -> (i32, i32) {
    %c0_i32 = arith.constant 0 : i32
    %c0_i32_0 = arith.constant 0 : i32
    %c0_i32_1 = arith.constant 0 : i32
    return %c0_i32, %c0_i32_0 : i32, i32
  }
  func.func @transform_4(%arg0: i32) -> (i32, i32) {
    %c0_i32 = arith.constant 0 : i32
    %c0_i32_0 = arith.constant 0 : i32
    %c0_i32_1 = arith.constant 0 : i32
    return %c0_i32, %c0_i32_0 : i32, i32
  }
  func.func @transform_5(%arg0: i32) -> (i32, i32) {
    %c0_i32 = arith.constant 0 : i32
    %c0_i32_0 = arith.constant 0 : i32
    %c0_i32_1 = arith.constant 0 : i32
    return %c0_i32, %c0_i32_0 : i32, i32
  }
  func.func @transform_6(%arg0: i32) -> (i32, i32) {
    %c0_i32 = arith.constant 0 : i32
    %c0_i32_0 = arith.constant 0 : i32
    return %arg0, %c0_i32 : i32, i32
  }
}

module attributes {stable_mosaic.version = 11 : i64} {
  func.func @gru_block_kernel(%arg0: i32, %arg1: memref<16x128xbf16, #tpu.memory_space<vmem>>, %arg2: memref<1x128xf32, #tpu.memory_space<vmem>>, %arg3: memref<128x384xbf16, #tpu.memory_space<vmem>>, %arg4: memref<128x384xf32, #tpu.memory_space<vmem>>, %arg5: memref<1x384xf32, #tpu.memory_space<vmem>>, %arg6: memref<1x128xf32, #tpu.memory_space<vmem>>, %arg7: memref<16x128xf32, #tpu.memory_space<vmem>>, %arg8: memref<1x128xf32, #tpu.memory_space<vmem>>) attributes {dimension_semantics = [#tpu.dimension_semantics<arbitrary>], iteration_bounds = array<i64: 1>, scalar_prefetch = 0 : i64, scratch_operands = 1 : i64, tpu.core_type = #tpu.core_type<tc>, window_params = [{transform_indices = @transform_0, window_bounds = array<i64: 16, 128>}, {pipeline_mode = #tpu.pipeline_mode<synchronous>, transform_indices = @transform_1, window_bounds = array<i64: 1, 128>}, {pipeline_mode = #tpu.pipeline_mode<synchronous>, transform_indices = @transform_2, window_bounds = array<i64: 128, 384>}, {pipeline_mode = #tpu.pipeline_mode<synchronous>, transform_indices = @transform_3, window_bounds = array<i64: 128, 384>}, {pipeline_mode = #tpu.pipeline_mode<synchronous>, transform_indices = @transform_4, window_bounds = array<i64: 1, 384>}, {pipeline_mode = #tpu.pipeline_mode<synchronous>, transform_indices = @transform_5, window_bounds = array<i64: 1, 128>}, {transform_indices = @transform_6, window_bounds = array<i64: 16, 128>}]} {
    %c0_i32 = arith.constant 0 : i32
    %0 = arith.cmpi eq, %arg0, %c0_i32 : i32
    %1 = arith.extui %0 : i1 to i32
    %c0_i32_0 = arith.constant 0 : i32
    %2 = arith.cmpi ne, %1, %c0_i32_0 : i32
    scf.if %2 {
      %c0_95 = arith.constant 0 : index
      %c0_96 = arith.constant 0 : index
      %493 = vector.load %arg2[%c0_95, %c0_96] : memref<1x128xf32, #tpu.memory_space<vmem>>, vector<1x128xf32>
      %c0_97 = arith.constant 0 : index
      %c0_98 = arith.constant 0 : index
      %494 = vector.load %arg8[%c0_97, %c0_98] : memref<1x128xf32, #tpu.memory_space<vmem>>, vector<1x128xf32>
      tpu.vector_store %arg8[%c0_97, %c0_98], %493 {strides = array<i32>} : memref<1x128xf32, #tpu.memory_space<vmem>>, vector<1x128xf32>,
    } else {
    }
    %c0 = arith.constant 0 : index
    %c0_1 = arith.constant 0 : index
    %3 = vector.load %arg1[%c0, %c0_1] : memref<16x128xbf16, #tpu.memory_space<vmem>>, vector<16x128xbf16>
    %c0_2 = arith.constant 0 : index
    %c0_3 = arith.constant 0 : index
    %4 = vector.load %arg3[%c0_2, %c0_3] : memref<128x384xbf16, #tpu.memory_space<vmem>>, vector<128x384xbf16>
    %cst = arith.constant dense<0.000000e+00> : vector<16x384xf32>
    %5 = tpu.matmul %3, %4, %cst {dimension_numbers = #tpu.dot_dimension_numbers<[1], [0], [0], [1], [0, 0, 1, 1], [], []>} : vector<16x128xbf16>, vector<128x384xbf16>, vector<16x384xf32> -> vector<16x384xf32>
    %c0_4 = arith.constant 0 : index
    %c0_5 = arith.constant 0 : index
    %6 = vector.load %arg5[%c0_4, %c0_5] : memref<1x384xf32, #tpu.memory_space<vmem>>, vector<1x384xf32>
    %7 = vector.broadcast %6 : vector<1x384xf32> to vector<16x384xf32>
    %8 = arith.addf %5, %7 : vector<16x384xf32>
    %c0_6 = arith.constant 0 : index
    %c0_7 = arith.constant 0 : index
    %9 = vector.load %arg4[%c0_6, %c0_7] : memref<128x384xf32, #tpu.memory_space<vmem>>, vector<128x384xf32>
    %c0_8 = arith.constant 0 : index
    %c0_9 = arith.constant 0 : index
    %10 = vector.load %arg6[%c0_8, %c0_9] : memref<1x128xf32, #tpu.memory_space<vmem>>, vector<1x128xf32>
    %c0_10 = arith.constant 0 : index
    %c0_11 = arith.constant 0 : index
    %11 = vector.load %arg8[%c0_10, %c0_11] : memref<1x128xf32, #tpu.memory_space<vmem>>, vector<1x128xf32>
    %12 = vector.extract_strided_slice %8 {offsets = [0, 0], sizes = [1, 384], strides = [1, 1]} : vector<16x384xf32> to vector<1x384xf32>
    %cst_12 = arith.constant dense<0.000000e+00> : vector<1x384xf32>
    %13 = tpu.matmul %11, %9, %cst_12 {dimension_numbers = #tpu.dot_dimension_numbers<[1], [0], [0], [1], [0, 0, 1, 1], [], []>} : vector<1x128xf32>, vector<128x384xf32>, vector<1x384xf32> -> vector<1x384xf32>
    %14 = vector.extract_strided_slice %12 {offsets = [0, 0], sizes = [1, 128], strides = [1, 1]} : vector<1x384xf32> to vector<1x128xf32>
    %15 = vector.extract_strided_slice %13 {offsets = [0, 0], sizes = [1, 128], strides = [1, 1]} : vector<1x384xf32> to vector<1x128xf32>
    %16 = arith.addf %14, %15 : vector<1x128xf32>
    %17 = arith.negf %16 : vector<1x128xf32>
    %18 = math.exp %17 : vector<1x128xf32>
    %cst_13 = arith.constant 1.000000e+00 : f32
    %19 = vector.broadcast %cst_13 : f32 to vector<1x128xf32>
    %20 = arith.addf %19, %18 : vector<1x128xf32>
    %21 = arith.divf %19, %20 : vector<1x128xf32>
    %22 = vector.extract_strided_slice %12 {offsets = [0, 128], sizes = [1, 128], strides = [1, 1]} : vector<1x384xf32> to vector<1x128xf32>
    %23 = vector.extract_strided_slice %13 {offsets = [0, 128], sizes = [1, 128], strides = [1, 1]} : vector<1x384xf32> to vector<1x128xf32>
    %24 = arith.addf %22, %23 : vector<1x128xf32>
    %25 = arith.negf %24 : vector<1x128xf32>
    %26 = math.exp %25 : vector<1x128xf32>
    %cst_14 = arith.constant 1.000000e+00 : f32
    %27 = vector.broadcast %cst_14 : f32 to vector<1x128xf32>
    %28 = arith.addf %27, %26 : vector<1x128xf32>
    %29 = arith.divf %27, %28 : vector<1x128xf32>
    %30 = vector.extract_strided_slice %12 {offsets = [0, 256], sizes = [1, 128], strides = [1, 1]} : vector<1x384xf32> to vector<1x128xf32>
    %31 = vector.extract_strided_slice %13 {offsets = [0, 256], sizes = [1, 128], strides = [1, 1]} : vector<1x384xf32> to vector<1x128xf32>
    %32 = arith.addf %31, %10 : vector<1x128xf32>
    %33 = arith.mulf %21, %32 : vector<1x128xf32>
    %34 = arith.addf %30, %33 : vector<1x128xf32>
    %35 = math.tanh %34 : vector<1x128xf32>
    %cst_15 = arith.constant 1.000000e+00 : f32
    %36 = vector.broadcast %cst_15 : f32 to vector<1x128xf32>
    %37 = arith.subf %36, %29 : vector<1x128xf32>
    %38 = arith.mulf %37, %35 : vector<1x128xf32>
    %39 = arith.mulf %29, %11 : vector<1x128xf32>
    %40 = arith.addf %38, %39 : vector<1x128xf32>
    %c0_16 = arith.constant 0 : index
    %c0_17 = arith.constant 0 : index
    %41 = vector.load %arg7[%c0_16, %c0_17] : memref<16x128xf32, #tpu.memory_space<vmem>>, vector<1x128xf32>
    tpu.vector_store %arg7[%c0_16, %c0_17], %40 {strides = array<i32>} : memref<16x128xf32, #tpu.memory_space<vmem>>, vector<1x128xf32>,
    %42 = vector.extract_strided_slice %8 {offsets = [1, 0], sizes = [1, 384], strides = [1, 1]} : vector<16x384xf32> to vector<1x384xf32>
    %cst_18 = arith.constant dense<0.000000e+00> : vector<1x384xf32>
    %43 = tpu.matmul %40, %9, %cst_18 {dimension_numbers = #tpu.dot_dimension_numbers<[1], [0], [0], [1], [0, 0, 1, 1], [], []>} : vector<1x128xf32>, vector<128x384xf32>, vector<1x384xf32> -> vector<1x384xf32>
    %44 = vector.extract_strided_slice %42 {offsets = [0, 0], sizes = [1, 128], strides = [1, 1]} : vector<1x384xf32> to vector<1x128xf32>
    %45 = vector.extract_strided_slice %43 {offsets = [0, 0], sizes = [1, 128], strides = [1, 1]} : vector<1x384xf32> to vector<1x128xf32>
    %46 = arith.addf %44, %45 : vector<1x128xf32>
    %47 = arith.negf %46 : vector<1x128xf32>
    %48 = math.exp %47 : vector<1x128xf32>
    %cst_19 = arith.constant 1.000000e+00 : f32
    %49 = vector.broadcast %cst_19 : f32 to vector<1x128xf32>
    %50 = arith.addf %49, %48 : vector<1x128xf32>
    %51 = arith.divf %49, %50 : vector<1x128xf32>
    %52 = vector.extract_strided_slice %42 {offsets = [0, 128], sizes = [1, 128], strides = [1, 1]} : vector<1x384xf32> to vector<1x128xf32>
    %53 = vector.extract_strided_slice %43 {offsets = [0, 128], sizes = [1, 128], strides = [1, 1]} : vector<1x384xf32> to vector<1x128xf32>
    %54 = arith.addf %52, %53 : vector<1x128xf32>
    %55 = arith.negf %54 : vector<1x128xf32>
    %56 = math.exp %55 : vector<1x128xf32>
    %cst_20 = arith.constant 1.000000e+00 : f32
    %57 = vector.broadcast %cst_20 : f32 to vector<1x128xf32>
    %58 = arith.addf %57, %56 : vector<1x128xf32>
    %59 = arith.divf %57, %58 : vector<1x128xf32>
    %60 = vector.extract_strided_slice %42 {offsets = [0, 256], sizes = [1, 128], strides = [1, 1]} : vector<1x384xf32> to vector<1x128xf32>
    %61 = vector.extract_strided_slice %43 {offsets = [0, 256], sizes = [1, 128], strides = [1, 1]} : vector<1x384xf32> to vector<1x128xf32>
    %62 = arith.addf %61, %10 : vector<1x128xf32>
    %63 = arith.mulf %51, %62 : vector<1x128xf32>
    %64 = arith.addf %60, %63 : vector<1x128xf32>
    %65 = math.tanh %64 : vector<1x128xf32>
    %cst_21 = arith.constant 1.000000e+00 : f32
    %66 = vector.broadcast %cst_21 : f32 to vector<1x128xf32>
    %67 = arith.subf %66, %59 : vector<1x128xf32>
    %68 = arith.mulf %67, %65 : vector<1x128xf32>
    %69 = arith.mulf %59, %40 : vector<1x128xf32>
    %70 = arith.addf %68, %69 : vector<1x128xf32>
    %c1 = arith.constant 1 : index
    %c0_22 = arith.constant 0 : index
    %71 = vector.load %arg7[%c1, %c0_22] : memref<16x128xf32, #tpu.memory_space<vmem>>, vector<1x128xf32>
    tpu.vector_store %arg7[%c1, %c0_22], %70 {strides = array<i32>} : memref<16x128xf32, #tpu.memory_space<vmem>>, vector<1x128xf32>,
    %72 = vector.extract_strided_slice %8 {offsets = [2, 0], sizes = [1, 384], strides = [1, 1]} : vector<16x384xf32> to vector<1x384xf32>
    %cst_23 = arith.constant dense<0.000000e+00> : vector<1x384xf32>
    %73 = tpu.matmul %70, %9, %cst_23 {dimension_numbers = #tpu.dot_dimension_numbers<[1], [0], [0], [1], [0, 0, 1, 1], [], []>} : vector<1x128xf32>, vector<128x384xf32>, vector<1x384xf32> -> vector<1x384xf32>
    %74 = vector.extract_strided_slice %72 {offsets = [0, 0], sizes = [1, 128], strides = [1, 1]} : vector<1x384xf32> to vector<1x128xf32>
    %75 = vector.extract_strided_slice %73 {offsets = [0, 0], sizes = [1, 128], strides = [1, 1]} : vector<1x384xf32> to vector<1x128xf32>
    %76 = arith.addf %74, %75 : vector<1x128xf32>
    %77 = arith.negf %76 : vector<1x128xf32>
    %78 = math.exp %77 : vector<1x128xf32>
    %cst_24 = arith.constant 1.000000e+00 : f32
    %79 = vector.broadcast %cst_24 : f32 to vector<1x128xf32>
    %80 = arith.addf %79, %78 : vector<1x128xf32>
    %81 = arith.divf %79, %80 : vector<1x128xf32>
    %82 = vector.extract_strided_slice %72 {offsets = [0, 128], sizes = [1, 128], strides = [1, 1]} : vector<1x384xf32> to vector<1x128xf32>
    %83 = vector.extract_strided_slice %73 {offsets = [0, 128], sizes = [1, 128], strides = [1, 1]} : vector<1x384xf32> to vector<1x128xf32>
    %84 = arith.addf %82, %83 : vector<1x128xf32>
    %85 = arith.negf %84 : vector<1x128xf32>
    %86 = math.exp %85 : vector<1x128xf32>
    %cst_25 = arith.constant 1.000000e+00 : f32
    %87 = vector.broadcast %cst_25 : f32 to vector<1x128xf32>
    %88 = arith.addf %87, %86 : vector<1x128xf32>
    %89 = arith.divf %87, %88 : vector<1x128xf32>
    %90 = vector.extract_strided_slice %72 {offsets = [0, 256], sizes = [1, 128], strides = [1, 1]} : vector<1x384xf32> to vector<1x128xf32>
    %91 = vector.extract_strided_slice %73 {offsets = [0, 256], sizes = [1, 128], strides = [1, 1]} : vector<1x384xf32> to vector<1x128xf32>
    %92 = arith.addf %91, %10 : vector<1x128xf32>
    %93 = arith.mulf %81, %92 : vector<1x128xf32>
    %94 = arith.addf %90, %93 : vector<1x128xf32>
    %95 = math.tanh %94 : vector<1x128xf32>
    %cst_26 = arith.constant 1.000000e+00 : f32
    %96 = vector.broadcast %cst_26 : f32 to vector<1x128xf32>
    %97 = arith.subf %96, %89 : vector<1x128xf32>
    %98 = arith.mulf %97, %95 : vector<1x128xf32>
    %99 = arith.mulf %89, %70 : vector<1x128xf32>
    %100 = arith.addf %98, %99 : vector<1x128xf32>
    %c2 = arith.constant 2 : index
    %c0_27 = arith.constant 0 : index
    %101 = vector.load %arg7[%c2, %c0_27] : memref<16x128xf32, #tpu.memory_space<vmem>>, vector<1x128xf32>
    tpu.vector_store %arg7[%c2, %c0_27], %100 {strides = array<i32>} : memref<16x128xf32, #tpu.memory_space<vmem>>, vector<1x128xf32>,
    %102 = vector.extract_strided_slice %8 {offsets = [3, 0], sizes = [1, 384], strides = [1, 1]} : vector<16x384xf32> to vector<1x384xf32>
    %cst_28 = arith.constant dense<0.000000e+00> : vector<1x384xf32>
    %103 = tpu.matmul %100, %9, %cst_28 {dimension_numbers = #tpu.dot_dimension_numbers<[1], [0], [0], [1], [0, 0, 1, 1], [], []>} : vector<1x128xf32>, vector<128x384xf32>, vector<1x384xf32> -> vector<1x384xf32>
    %104 = vector.extract_strided_slice %102 {offsets = [0, 0], sizes = [1, 128], strides = [1, 1]} : vector<1x384xf32> to vector<1x128xf32>
    %105 = vector.extract_strided_slice %103 {offsets = [0, 0], sizes = [1, 128], strides = [1, 1]} : vector<1x384xf32> to vector<1x128xf32>
    %106 = arith.addf %104, %105 : vector<1x128xf32>
    %107 = arith.negf %106 : vector<1x128xf32>
    %108 = math.exp %107 : vector<1x128xf32>
    %cst_29 = arith.constant 1.000000e+00 : f32
    %109 = vector.broadcast %cst_29 : f32 to vector<1x128xf32>
    %110 = arith.addf %109, %108 : vector<1x128xf32>
    %111 = arith.divf %109, %110 : vector<1x128xf32>
    %112 = vector.extract_strided_slice %102 {offsets = [0, 128], sizes = [1, 128], strides = [1, 1]} : vector<1x384xf32> to vector<1x128xf32>
    %113 = vector.extract_strided_slice %103 {offsets = [0, 128], sizes = [1, 128], strides = [1, 1]} : vector<1x384xf32> to vector<1x128xf32>
    %114 = arith.addf %112, %113 : vector<1x128xf32>
    %115 = arith.negf %114 : vector<1x128xf32>
    %116 = math.exp %115 : vector<1x128xf32>
    %cst_30 = arith.constant 1.000000e+00 : f32
    %117 = vector.broadcast %cst_30 : f32 to vector<1x128xf32>
    %118 = arith.addf %117, %116 : vector<1x128xf32>
    %119 = arith.divf %117, %118 : vector<1x128xf32>
    %120 = vector.extract_strided_slice %102 {offsets = [0, 256], sizes = [1, 128], strides = [1, 1]} : vector<1x384xf32> to vector<1x128xf32>
    %121 = vector.extract_strided_slice %103 {offsets = [0, 256], sizes = [1, 128], strides = [1, 1]} : vector<1x384xf32> to vector<1x128xf32>
    %122 = arith.addf %121, %10 : vector<1x128xf32>
    %123 = arith.mulf %111, %122 : vector<1x128xf32>
    %124 = arith.addf %120, %123 : vector<1x128xf32>
    %125 = math.tanh %124 : vector<1x128xf32>
    %cst_31 = arith.constant 1.000000e+00 : f32
    %126 = vector.broadcast %cst_31 : f32 to vector<1x128xf32>
    %127 = arith.subf %126, %119 : vector<1x128xf32>
    %128 = arith.mulf %127, %125 : vector<1x128xf32>
    %129 = arith.mulf %119, %100 : vector<1x128xf32>
    %130 = arith.addf %128, %129 : vector<1x128xf32>
    %c3 = arith.constant 3 : index
    %c0_32 = arith.constant 0 : index
    %131 = vector.load %arg7[%c3, %c0_32] : memref<16x128xf32, #tpu.memory_space<vmem>>, vector<1x128xf32>
    tpu.vector_store %arg7[%c3, %c0_32], %130 {strides = array<i32>} : memref<16x128xf32, #tpu.memory_space<vmem>>, vector<1x128xf32>,
    %132 = vector.extract_strided_slice %8 {offsets = [4, 0], sizes = [1, 384], strides = [1, 1]} : vector<16x384xf32> to vector<1x384xf32>
    %cst_33 = arith.constant dense<0.000000e+00> : vector<1x384xf32>
    %133 = tpu.matmul %130, %9, %cst_33 {dimension_numbers = #tpu.dot_dimension_numbers<[1], [0], [0], [1], [0, 0, 1, 1], [], []>} : vector<1x128xf32>, vector<128x384xf32>, vector<1x384xf32> -> vector<1x384xf32>
    %134 = vector.extract_strided_slice %132 {offsets = [0, 0], sizes = [1, 128], strides = [1, 1]} : vector<1x384xf32> to vector<1x128xf32>
    %135 = vector.extract_strided_slice %133 {offsets = [0, 0], sizes = [1, 128], strides = [1, 1]} : vector<1x384xf32> to vector<1x128xf32>
    %136 = arith.addf %134, %135 : vector<1x128xf32>
    %137 = arith.negf %136 : vector<1x128xf32>
    %138 = math.exp %137 : vector<1x128xf32>
    %cst_34 = arith.constant 1.000000e+00 : f32
    %139 = vector.broadcast %cst_34 : f32 to vector<1x128xf32>
    %140 = arith.addf %139, %138 : vector<1x128xf32>
    %141 = arith.divf %139, %140 : vector<1x128xf32>
    %142 = vector.extract_strided_slice %132 {offsets = [0, 128], sizes = [1, 128], strides = [1, 1]} : vector<1x384xf32> to vector<1x128xf32>
    %143 = vector.extract_strided_slice %133 {offsets = [0, 128], sizes = [1, 128], strides = [1, 1]} : vector<1x384xf32> to vector<1x128xf32>
    %144 = arith.addf %142, %143 : vector<1x128xf32>
    %145 = arith.negf %144 : vector<1x128xf32>
    %146 = math.exp %145 : vector<1x128xf32>
    %cst_35 = arith.constant 1.000000e+00 : f32
    %147 = vector.broadcast %cst_35 : f32 to vector<1x128xf32>
    %148 = arith.addf %147, %146 : vector<1x128xf32>
    %149 = arith.divf %147, %148 : vector<1x128xf32>
    %150 = vector.extract_strided_slice %132 {offsets = [0, 256], sizes = [1, 128], strides = [1, 1]} : vector<1x384xf32> to vector<1x128xf32>
    %151 = vector.extract_strided_slice %133 {offsets = [0, 256], sizes = [1, 128], strides = [1, 1]} : vector<1x384xf32> to vector<1x128xf32>
    %152 = arith.addf %151, %10 : vector<1x128xf32>
    %153 = arith.mulf %141, %152 : vector<1x128xf32>
    %154 = arith.addf %150, %153 : vector<1x128xf32>
    %155 = math.tanh %154 : vector<1x128xf32>
    %cst_36 = arith.constant 1.000000e+00 : f32
    %156 = vector.broadcast %cst_36 : f32 to vector<1x128xf32>
    %157 = arith.subf %156, %149 : vector<1x128xf32>
    %158 = arith.mulf %157, %155 : vector<1x128xf32>
    %159 = arith.mulf %149, %130 : vector<1x128xf32>
    %160 = arith.addf %158, %159 : vector<1x128xf32>
    %c4 = arith.constant 4 : index
    %c0_37 = arith.constant 0 : index
    %161 = vector.load %arg7[%c4, %c0_37] : memref<16x128xf32, #tpu.memory_space<vmem>>, vector<1x128xf32>
    tpu.vector_store %arg7[%c4, %c0_37], %160 {strides = array<i32>} : memref<16x128xf32, #tpu.memory_space<vmem>>, vector<1x128xf32>,
    %162 = vector.extract_strided_slice %8 {offsets = [5, 0], sizes = [1, 384], strides = [1, 1]} : vector<16x384xf32> to vector<1x384xf32>
    %cst_38 = arith.constant dense<0.000000e+00> : vector<1x384xf32>
    %163 = tpu.matmul %160, %9, %cst_38 {dimension_numbers = #tpu.dot_dimension_numbers<[1], [0], [0], [1], [0, 0, 1, 1], [], []>} : vector<1x128xf32>, vector<128x384xf32>, vector<1x384xf32> -> vector<1x384xf32>
    %164 = vector.extract_strided_slice %162 {offsets = [0, 0], sizes = [1, 128], strides = [1, 1]} : vector<1x384xf32> to vector<1x128xf32>
    %165 = vector.extract_strided_slice %163 {offsets = [0, 0], sizes = [1, 128], strides = [1, 1]} : vector<1x384xf32> to vector<1x128xf32>
    %166 = arith.addf %164, %165 : vector<1x128xf32>
    %167 = arith.negf %166 : vector<1x128xf32>
    %168 = math.exp %167 : vector<1x128xf32>
    %cst_39 = arith.constant 1.000000e+00 : f32
    %169 = vector.broadcast %cst_39 : f32 to vector<1x128xf32>
    %170 = arith.addf %169, %168 : vector<1x128xf32>
    %171 = arith.divf %169, %170 : vector<1x128xf32>
    %172 = vector.extract_strided_slice %162 {offsets = [0, 128], sizes = [1, 128], strides = [1, 1]} : vector<1x384xf32> to vector<1x128xf32>
    %173 = vector.extract_strided_slice %163 {offsets = [0, 128], sizes = [1, 128], strides = [1, 1]} : vector<1x384xf32> to vector<1x128xf32>
    %174 = arith.addf %172, %173 : vector<1x128xf32>
    %175 = arith.negf %174 : vector<1x128xf32>
    %176 = math.exp %175 : vector<1x128xf32>
    %cst_40 = arith.constant 1.000000e+00 : f32
    %177 = vector.broadcast %cst_40 : f32 to vector<1x128xf32>
    %178 = arith.addf %177, %176 : vector<1x128xf32>
    %179 = arith.divf %177, %178 : vector<1x128xf32>
    %180 = vector.extract_strided_slice %162 {offsets = [0, 256], sizes = [1, 128], strides = [1, 1]} : vector<1x384xf32> to vector<1x128xf32>
    %181 = vector.extract_strided_slice %163 {offsets = [0, 256], sizes = [1, 128], strides = [1, 1]} : vector<1x384xf32> to vector<1x128xf32>
    %182 = arith.addf %181, %10 : vector<1x128xf32>
    %183 = arith.mulf %171, %182 : vector<1x128xf32>
    %184 = arith.addf %180, %183 : vector<1x128xf32>
    %185 = math.tanh %184 : vector<1x128xf32>
    %cst_41 = arith.constant 1.000000e+00 : f32
    %186 = vector.broadcast %cst_41 : f32 to vector<1x128xf32>
    %187 = arith.subf %186, %179 : vector<1x128xf32>
    %188 = arith.mulf %187, %185 : vector<1x128xf32>
    %189 = arith.mulf %179, %160 : vector<1x128xf32>
    %190 = arith.addf %188, %189 : vector<1x128xf32>
    %c5 = arith.constant 5 : index
    %c0_42 = arith.constant 0 : index
    %191 = vector.load %arg7[%c5, %c0_42] : memref<16x128xf32, #tpu.memory_space<vmem>>, vector<1x128xf32>
    tpu.vector_store %arg7[%c5, %c0_42], %190 {strides = array<i32>} : memref<16x128xf32, #tpu.memory_space<vmem>>, vector<1x128xf32>,
    %192 = vector.extract_strided_slice %8 {offsets = [6, 0], sizes = [1, 384], strides = [1, 1]} : vector<16x384xf32> to vector<1x384xf32>
    %cst_43 = arith.constant dense<0.000000e+00> : vector<1x384xf32>
    %193 = tpu.matmul %190, %9, %cst_43 {dimension_numbers = #tpu.dot_dimension_numbers<[1], [0], [0], [1], [0, 0, 1, 1], [], []>} : vector<1x128xf32>, vector<128x384xf32>, vector<1x384xf32> -> vector<1x384xf32>
    %194 = vector.extract_strided_slice %192 {offsets = [0, 0], sizes = [1, 128], strides = [1, 1]} : vector<1x384xf32> to vector<1x128xf32>
    %195 = vector.extract_strided_slice %193 {offsets = [0, 0], sizes = [1, 128], strides = [1, 1]} : vector<1x384xf32> to vector<1x128xf32>
    %196 = arith.addf %194, %195 : vector<1x128xf32>
    %197 = arith.negf %196 : vector<1x128xf32>
    %198 = math.exp %197 : vector<1x128xf32>
    %cst_44 = arith.constant 1.000000e+00 : f32
    %199 = vector.broadcast %cst_44 : f32 to vector<1x128xf32>
    %200 = arith.addf %199, %198 : vector<1x128xf32>
    %201 = arith.divf %199, %200 : vector<1x128xf32>
    %202 = vector.extract_strided_slice %192 {offsets = [0, 128], sizes = [1, 128], strides = [1, 1]} : vector<1x384xf32> to vector<1x128xf32>
    %203 = vector.extract_strided_slice %193 {offsets = [0, 128], sizes = [1, 128], strides = [1, 1]} : vector<1x384xf32> to vector<1x128xf32>
    %204 = arith.addf %202, %203 : vector<1x128xf32>
    %205 = arith.negf %204 : vector<1x128xf32>
    %206 = math.exp %205 : vector<1x128xf32>
    %cst_45 = arith.constant 1.000000e+00 : f32
    %207 = vector.broadcast %cst_45 : f32 to vector<1x128xf32>
    %208 = arith.addf %207, %206 : vector<1x128xf32>
    %209 = arith.divf %207, %208 : vector<1x128xf32>
    %210 = vector.extract_strided_slice %192 {offsets = [0, 256], sizes = [1, 128], strides = [1, 1]} : vector<1x384xf32> to vector<1x128xf32>
    %211 = vector.extract_strided_slice %193 {offsets = [0, 256], sizes = [1, 128], strides = [1, 1]} : vector<1x384xf32> to vector<1x128xf32>
    %212 = arith.addf %211, %10 : vector<1x128xf32>
    %213 = arith.mulf %201, %212 : vector<1x128xf32>
    %214 = arith.addf %210, %213 : vector<1x128xf32>
    %215 = math.tanh %214 : vector<1x128xf32>
    %cst_46 = arith.constant 1.000000e+00 : f32
    %216 = vector.broadcast %cst_46 : f32 to vector<1x128xf32>
    %217 = arith.subf %216, %209 : vector<1x128xf32>
    %218 = arith.mulf %217, %215 : vector<1x128xf32>
    %219 = arith.mulf %209, %190 : vector<1x128xf32>
    %220 = arith.addf %218, %219 : vector<1x128xf32>
    %c6 = arith.constant 6 : index
    %c0_47 = arith.constant 0 : index
    %221 = vector.load %arg7[%c6, %c0_47] : memref<16x128xf32, #tpu.memory_space<vmem>>, vector<1x128xf32>
    tpu.vector_store %arg7[%c6, %c0_47], %220 {strides = array<i32>} : memref<16x128xf32, #tpu.memory_space<vmem>>, vector<1x128xf32>,
    %222 = vector.extract_strided_slice %8 {offsets = [7, 0], sizes = [1, 384], strides = [1, 1]} : vector<16x384xf32> to vector<1x384xf32>
    %cst_48 = arith.constant dense<0.000000e+00> : vector<1x384xf32>
    %223 = tpu.matmul %220, %9, %cst_48 {dimension_numbers = #tpu.dot_dimension_numbers<[1], [0], [0], [1], [0, 0, 1, 1], [], []>} : vector<1x128xf32>, vector<128x384xf32>, vector<1x384xf32> -> vector<1x384xf32>
    %224 = vector.extract_strided_slice %222 {offsets = [0, 0], sizes = [1, 128], strides = [1, 1]} : vector<1x384xf32> to vector<1x128xf32>
    %225 = vector.extract_strided_slice %223 {offsets = [0, 0], sizes = [1, 128], strides = [1, 1]} : vector<1x384xf32> to vector<1x128xf32>
    %226 = arith.addf %224, %225 : vector<1x128xf32>
    %227 = arith.negf %226 : vector<1x128xf32>
    %228 = math.exp %227 : vector<1x128xf32>
    %cst_49 = arith.constant 1.000000e+00 : f32
    %229 = vector.broadcast %cst_49 : f32 to vector<1x128xf32>
    %230 = arith.addf %229, %228 : vector<1x128xf32>
    %231 = arith.divf %229, %230 : vector<1x128xf32>
    %232 = vector.extract_strided_slice %222 {offsets = [0, 128], sizes = [1, 128], strides = [1, 1]} : vector<1x384xf32> to vector<1x128xf32>
    %233 = vector.extract_strided_slice %223 {offsets = [0, 128], sizes = [1, 128], strides = [1, 1]} : vector<1x384xf32> to vector<1x128xf32>
    %234 = arith.addf %232, %233 : vector<1x128xf32>
    %235 = arith.negf %234 : vector<1x128xf32>
    %236 = math.exp %235 : vector<1x128xf32>
    %cst_50 = arith.constant 1.000000e+00 : f32
    %237 = vector.broadcast %cst_50 : f32 to vector<1x128xf32>
    %238 = arith.addf %237, %236 : vector<1x128xf32>
    %239 = arith.divf %237, %238 : vector<1x128xf32>
    %240 = vector.extract_strided_slice %222 {offsets = [0, 256], sizes = [1, 128], strides = [1, 1]} : vector<1x384xf32> to vector<1x128xf32>
    %241 = vector.extract_strided_slice %223 {offsets = [0, 256], sizes = [1, 128], strides = [1, 1]} : vector<1x384xf32> to vector<1x128xf32>
    %242 = arith.addf %241, %10 : vector<1x128xf32>
    %243 = arith.mulf %231, %242 : vector<1x128xf32>
    %244 = arith.addf %240, %243 : vector<1x128xf32>
    %245 = math.tanh %244 : vector<1x128xf32>
    %cst_51 = arith.constant 1.000000e+00 : f32
    %246 = vector.broadcast %cst_51 : f32 to vector<1x128xf32>
    %247 = arith.subf %246, %239 : vector<1x128xf32>
    %248 = arith.mulf %247, %245 : vector<1x128xf32>
    %249 = arith.mulf %239, %220 : vector<1x128xf32>
    %250 = arith.addf %248, %249 : vector<1x128xf32>
    %c7 = arith.constant 7 : index
    %c0_52 = arith.constant 0 : index
    %251 = vector.load %arg7[%c7, %c0_52] : memref<16x128xf32, #tpu.memory_space<vmem>>, vector<1x128xf32>
    tpu.vector_store %arg7[%c7, %c0_52], %250 {strides = array<i32>} : memref<16x128xf32, #tpu.memory_space<vmem>>, vector<1x128xf32>,
    %252 = vector.extract_strided_slice %8 {offsets = [8, 0], sizes = [1, 384], strides = [1, 1]} : vector<16x384xf32> to vector<1x384xf32>
    %cst_53 = arith.constant dense<0.000000e+00> : vector<1x384xf32>
    %253 = tpu.matmul %250, %9, %cst_53 {dimension_numbers = #tpu.dot_dimension_numbers<[1], [0], [0], [1], [0, 0, 1, 1], [], []>} : vector<1x128xf32>, vector<128x384xf32>, vector<1x384xf32> -> vector<1x384xf32>
    %254 = vector.extract_strided_slice %252 {offsets = [0, 0], sizes = [1, 128], strides = [1, 1]} : vector<1x384xf32> to vector<1x128xf32>
    %255 = vector.extract_strided_slice %253 {offsets = [0, 0], sizes = [1, 128], strides = [1, 1]} : vector<1x384xf32> to vector<1x128xf32>
    %256 = arith.addf %254, %255 : vector<1x128xf32>
    %257 = arith.negf %256 : vector<1x128xf32>
    %258 = math.exp %257 : vector<1x128xf32>
    %cst_54 = arith.constant 1.000000e+00 : f32
    %259 = vector.broadcast %cst_54 : f32 to vector<1x128xf32>
    %260 = arith.addf %259, %258 : vector<1x128xf32>
    %261 = arith.divf %259, %260 : vector<1x128xf32>
    %262 = vector.extract_strided_slice %252 {offsets = [0, 128], sizes = [1, 128], strides = [1, 1]} : vector<1x384xf32> to vector<1x128xf32>
    %263 = vector.extract_strided_slice %253 {offsets = [0, 128], sizes = [1, 128], strides = [1, 1]} : vector<1x384xf32> to vector<1x128xf32>
    %264 = arith.addf %262, %263 : vector<1x128xf32>
    %265 = arith.negf %264 : vector<1x128xf32>
    %266 = math.exp %265 : vector<1x128xf32>
    %cst_55 = arith.constant 1.000000e+00 : f32
    %267 = vector.broadcast %cst_55 : f32 to vector<1x128xf32>
    %268 = arith.addf %267, %266 : vector<1x128xf32>
    %269 = arith.divf %267, %268 : vector<1x128xf32>
    %270 = vector.extract_strided_slice %252 {offsets = [0, 256], sizes = [1, 128], strides = [1, 1]} : vector<1x384xf32> to vector<1x128xf32>
    %271 = vector.extract_strided_slice %253 {offsets = [0, 256], sizes = [1, 128], strides = [1, 1]} : vector<1x384xf32> to vector<1x128xf32>
    %272 = arith.addf %271, %10 : vector<1x128xf32>
    %273 = arith.mulf %261, %272 : vector<1x128xf32>
    %274 = arith.addf %270, %273 : vector<1x128xf32>
    %275 = math.tanh %274 : vector<1x128xf32>
    %cst_56 = arith.constant 1.000000e+00 : f32
    %276 = vector.broadcast %cst_56 : f32 to vector<1x128xf32>
    %277 = arith.subf %276, %269 : vector<1x128xf32>
    %278 = arith.mulf %277, %275 : vector<1x128xf32>
    %279 = arith.mulf %269, %250 : vector<1x128xf32>
    %280 = arith.addf %278, %279 : vector<1x128xf32>
    %c8 = arith.constant 8 : index
    %c0_57 = arith.constant 0 : index
    %281 = vector.load %arg7[%c8, %c0_57] : memref<16x128xf32, #tpu.memory_space<vmem>>, vector<1x128xf32>
    tpu.vector_store %arg7[%c8, %c0_57], %280 {strides = array<i32>} : memref<16x128xf32, #tpu.memory_space<vmem>>, vector<1x128xf32>,
    %282 = vector.extract_strided_slice %8 {offsets = [9, 0], sizes = [1, 384], strides = [1, 1]} : vector<16x384xf32> to vector<1x384xf32>
    %cst_58 = arith.constant dense<0.000000e+00> : vector<1x384xf32>
    %283 = tpu.matmul %280, %9, %cst_58 {dimension_numbers = #tpu.dot_dimension_numbers<[1], [0], [0], [1], [0, 0, 1, 1], [], []>} : vector<1x128xf32>, vector<128x384xf32>, vector<1x384xf32> -> vector<1x384xf32>
    %284 = vector.extract_strided_slice %282 {offsets = [0, 0], sizes = [1, 128], strides = [1, 1]} : vector<1x384xf32> to vector<1x128xf32>
    %285 = vector.extract_strided_slice %283 {offsets = [0, 0], sizes = [1, 128], strides = [1, 1]} : vector<1x384xf32> to vector<1x128xf32>
    %286 = arith.addf %284, %285 : vector<1x128xf32>
    %287 = arith.negf %286 : vector<1x128xf32>
    %288 = math.exp %287 : vector<1x128xf32>
    %cst_59 = arith.constant 1.000000e+00 : f32
    %289 = vector.broadcast %cst_59 : f32 to vector<1x128xf32>
    %290 = arith.addf %289, %288 : vector<1x128xf32>
    %291 = arith.divf %289, %290 : vector<1x128xf32>
    %292 = vector.extract_strided_slice %282 {offsets = [0, 128], sizes = [1, 128], strides = [1, 1]} : vector<1x384xf32> to vector<1x128xf32>
    %293 = vector.extract_strided_slice %283 {offsets = [0, 128], sizes = [1, 128], strides = [1, 1]} : vector<1x384xf32> to vector<1x128xf32>
    %294 = arith.addf %292, %293 : vector<1x128xf32>
    %295 = arith.negf %294 : vector<1x128xf32>
    %296 = math.exp %295 : vector<1x128xf32>
    %cst_60 = arith.constant 1.000000e+00 : f32
    %297 = vector.broadcast %cst_60 : f32 to vector<1x128xf32>
    %298 = arith.addf %297, %296 : vector<1x128xf32>
    %299 = arith.divf %297, %298 : vector<1x128xf32>
    %300 = vector.extract_strided_slice %282 {offsets = [0, 256], sizes = [1, 128], strides = [1, 1]} : vector<1x384xf32> to vector<1x128xf32>
    %301 = vector.extract_strided_slice %283 {offsets = [0, 256], sizes = [1, 128], strides = [1, 1]} : vector<1x384xf32> to vector<1x128xf32>
    %302 = arith.addf %301, %10 : vector<1x128xf32>
    %303 = arith.mulf %291, %302 : vector<1x128xf32>
    %304 = arith.addf %300, %303 : vector<1x128xf32>
    %305 = math.tanh %304 : vector<1x128xf32>
    %cst_61 = arith.constant 1.000000e+00 : f32
    %306 = vector.broadcast %cst_61 : f32 to vector<1x128xf32>
    %307 = arith.subf %306, %299 : vector<1x128xf32>
    %308 = arith.mulf %307, %305 : vector<1x128xf32>
    %309 = arith.mulf %299, %280 : vector<1x128xf32>
    %310 = arith.addf %308, %309 : vector<1x128xf32>
    %c9 = arith.constant 9 : index
    %c0_62 = arith.constant 0 : index
    %311 = vector.load %arg7[%c9, %c0_62] : memref<16x128xf32, #tpu.memory_space<vmem>>, vector<1x128xf32>
    tpu.vector_store %arg7[%c9, %c0_62], %310 {strides = array<i32>} : memref<16x128xf32, #tpu.memory_space<vmem>>, vector<1x128xf32>,
    %312 = vector.extract_strided_slice %8 {offsets = [10, 0], sizes = [1, 384], strides = [1, 1]} : vector<16x384xf32> to vector<1x384xf32>
    %cst_63 = arith.constant dense<0.000000e+00> : vector<1x384xf32>
    %313 = tpu.matmul %310, %9, %cst_63 {dimension_numbers = #tpu.dot_dimension_numbers<[1], [0], [0], [1], [0, 0, 1, 1], [], []>} : vector<1x128xf32>, vector<128x384xf32>, vector<1x384xf32> -> vector<1x384xf32>
    %314 = vector.extract_strided_slice %312 {offsets = [0, 0], sizes = [1, 128], strides = [1, 1]} : vector<1x384xf32> to vector<1x128xf32>
    %315 = vector.extract_strided_slice %313 {offsets = [0, 0], sizes = [1, 128], strides = [1, 1]} : vector<1x384xf32> to vector<1x128xf32>
    %316 = arith.addf %314, %315 : vector<1x128xf32>
    %317 = arith.negf %316 : vector<1x128xf32>
    %318 = math.exp %317 : vector<1x128xf32>
    %cst_64 = arith.constant 1.000000e+00 : f32
    %319 = vector.broadcast %cst_64 : f32 to vector<1x128xf32>
    %320 = arith.addf %319, %318 : vector<1x128xf32>
    %321 = arith.divf %319, %320 : vector<1x128xf32>
    %322 = vector.extract_strided_slice %312 {offsets = [0, 128], sizes = [1, 128], strides = [1, 1]} : vector<1x384xf32> to vector<1x128xf32>
    %323 = vector.extract_strided_slice %313 {offsets = [0, 128], sizes = [1, 128], strides = [1, 1]} : vector<1x384xf32> to vector<1x128xf32>
    %324 = arith.addf %322, %323 : vector<1x128xf32>
    %325 = arith.negf %324 : vector<1x128xf32>
    %326 = math.exp %325 : vector<1x128xf32>
    %cst_65 = arith.constant 1.000000e+00 : f32
    %327 = vector.broadcast %cst_65 : f32 to vector<1x128xf32>
    %328 = arith.addf %327, %326 : vector<1x128xf32>
    %329 = arith.divf %327, %328 : vector<1x128xf32>
    %330 = vector.extract_strided_slice %312 {offsets = [0, 256], sizes = [1, 128], strides = [1, 1]} : vector<1x384xf32> to vector<1x128xf32>
    %331 = vector.extract_strided_slice %313 {offsets = [0, 256], sizes = [1, 128], strides = [1, 1]} : vector<1x384xf32> to vector<1x128xf32>
    %332 = arith.addf %331, %10 : vector<1x128xf32>
    %333 = arith.mulf %321, %332 : vector<1x128xf32>
    %334 = arith.addf %330, %333 : vector<1x128xf32>
    %335 = math.tanh %334 : vector<1x128xf32>
    %cst_66 = arith.constant 1.000000e+00 : f32
    %336 = vector.broadcast %cst_66 : f32 to vector<1x128xf32>
    %337 = arith.subf %336, %329 : vector<1x128xf32>
    %338 = arith.mulf %337, %335 : vector<1x128xf32>
    %339 = arith.mulf %329, %310 : vector<1x128xf32>
    %340 = arith.addf %338, %339 : vector<1x128xf32>
    %c10 = arith.constant 10 : index
    %c0_67 = arith.constant 0 : index
    %341 = vector.load %arg7[%c10, %c0_67] : memref<16x128xf32, #tpu.memory_space<vmem>>, vector<1x128xf32>
    tpu.vector_store %arg7[%c10, %c0_67], %340 {strides = array<i32>} : memref<16x128xf32, #tpu.memory_space<vmem>>, vector<1x128xf32>,
    %342 = vector.extract_strided_slice %8 {offsets = [11, 0], sizes = [1, 384], strides = [1, 1]} : vector<16x384xf32> to vector<1x384xf32>
    %cst_68 = arith.constant dense<0.000000e+00> : vector<1x384xf32>
    %343 = tpu.matmul %340, %9, %cst_68 {dimension_numbers = #tpu.dot_dimension_numbers<[1], [0], [0], [1], [0, 0, 1, 1], [], []>} : vector<1x128xf32>, vector<128x384xf32>, vector<1x384xf32> -> vector<1x384xf32>
    %344 = vector.extract_strided_slice %342 {offsets = [0, 0], sizes = [1, 128], strides = [1, 1]} : vector<1x384xf32> to vector<1x128xf32>
    %345 = vector.extract_strided_slice %343 {offsets = [0, 0], sizes = [1, 128], strides = [1, 1]} : vector<1x384xf32> to vector<1x128xf32>
    %346 = arith.addf %344, %345 : vector<1x128xf32>
    %347 = arith.negf %346 : vector<1x128xf32>
    %348 = math.exp %347 : vector<1x128xf32>
    %cst_69 = arith.constant 1.000000e+00 : f32
    %349 = vector.broadcast %cst_69 : f32 to vector<1x128xf32>
    %350 = arith.addf %349, %348 : vector<1x128xf32>
    %351 = arith.divf %349, %350 : vector<1x128xf32>
    %352 = vector.extract_strided_slice %342 {offsets = [0, 128], sizes = [1, 128], strides = [1, 1]} : vector<1x384xf32> to vector<1x128xf32>
    %353 = vector.extract_strided_slice %343 {offsets = [0, 128], sizes = [1, 128], strides = [1, 1]} : vector<1x384xf32> to vector<1x128xf32>
    %354 = arith.addf %352, %353 : vector<1x128xf32>
    %355 = arith.negf %354 : vector<1x128xf32>
    %356 = math.exp %355 : vector<1x128xf32>
    %cst_70 = arith.constant 1.000000e+00 : f32
    %357 = vector.broadcast %cst_70 : f32 to vector<1x128xf32>
    %358 = arith.addf %357, %356 : vector<1x128xf32>
    %359 = arith.divf %357, %358 : vector<1x128xf32>
    %360 = vector.extract_strided_slice %342 {offsets = [0, 256], sizes = [1, 128], strides = [1, 1]} : vector<1x384xf32> to vector<1x128xf32>
    %361 = vector.extract_strided_slice %343 {offsets = [0, 256], sizes = [1, 128], strides = [1, 1]} : vector<1x384xf32> to vector<1x128xf32>
    %362 = arith.addf %361, %10 : vector<1x128xf32>
    %363 = arith.mulf %351, %362 : vector<1x128xf32>
    %364 = arith.addf %360, %363 : vector<1x128xf32>
    %365 = math.tanh %364 : vector<1x128xf32>
    %cst_71 = arith.constant 1.000000e+00 : f32
    %366 = vector.broadcast %cst_71 : f32 to vector<1x128xf32>
    %367 = arith.subf %366, %359 : vector<1x128xf32>
    %368 = arith.mulf %367, %365 : vector<1x128xf32>
    %369 = arith.mulf %359, %340 : vector<1x128xf32>
    %370 = arith.addf %368, %369 : vector<1x128xf32>
    %c11 = arith.constant 11 : index
    %c0_72 = arith.constant 0 : index
    %371 = vector.load %arg7[%c11, %c0_72] : memref<16x128xf32, #tpu.memory_space<vmem>>, vector<1x128xf32>
    tpu.vector_store %arg7[%c11, %c0_72], %370 {strides = array<i32>} : memref<16x128xf32, #tpu.memory_space<vmem>>, vector<1x128xf32>,
    %372 = vector.extract_strided_slice %8 {offsets = [12, 0], sizes = [1, 384], strides = [1, 1]} : vector<16x384xf32> to vector<1x384xf32>
    %cst_73 = arith.constant dense<0.000000e+00> : vector<1x384xf32>
    %373 = tpu.matmul %370, %9, %cst_73 {dimension_numbers = #tpu.dot_dimension_numbers<[1], [0], [0], [1], [0, 0, 1, 1], [], []>} : vector<1x128xf32>, vector<128x384xf32>, vector<1x384xf32> -> vector<1x384xf32>
    %374 = vector.extract_strided_slice %372 {offsets = [0, 0], sizes = [1, 128], strides = [1, 1]} : vector<1x384xf32> to vector<1x128xf32>
    %375 = vector.extract_strided_slice %373 {offsets = [0, 0], sizes = [1, 128], strides = [1, 1]} : vector<1x384xf32> to vector<1x128xf32>
    %376 = arith.addf %374, %375 : vector<1x128xf32>
    %377 = arith.negf %376 : vector<1x128xf32>
    %378 = math.exp %377 : vector<1x128xf32>
    %cst_74 = arith.constant 1.000000e+00 : f32
    %379 = vector.broadcast %cst_74 : f32 to vector<1x128xf32>
    %380 = arith.addf %379, %378 : vector<1x128xf32>
    %381 = arith.divf %379, %380 : vector<1x128xf32>
    %382 = vector.extract_strided_slice %372 {offsets = [0, 128], sizes = [1, 128], strides = [1, 1]} : vector<1x384xf32> to vector<1x128xf32>
    %383 = vector.extract_strided_slice %373 {offsets = [0, 128], sizes = [1, 128], strides = [1, 1]} : vector<1x384xf32> to vector<1x128xf32>
    %384 = arith.addf %382, %383 : vector<1x128xf32>
    %385 = arith.negf %384 : vector<1x128xf32>
    %386 = math.exp %385 : vector<1x128xf32>
    %cst_75 = arith.constant 1.000000e+00 : f32
    %387 = vector.broadcast %cst_75 : f32 to vector<1x128xf32>
    %388 = arith.addf %387, %386 : vector<1x128xf32>
    %389 = arith.divf %387, %388 : vector<1x128xf32>
    %390 = vector.extract_strided_slice %372 {offsets = [0, 256], sizes = [1, 128], strides = [1, 1]} : vector<1x384xf32> to vector<1x128xf32>
    %391 = vector.extract_strided_slice %373 {offsets = [0, 256], sizes = [1, 128], strides = [1, 1]} : vector<1x384xf32> to vector<1x128xf32>
    %392 = arith.addf %391, %10 : vector<1x128xf32>
    %393 = arith.mulf %381, %392 : vector<1x128xf32>
    %394 = arith.addf %390, %393 : vector<1x128xf32>
    %395 = math.tanh %394 : vector<1x128xf32>
    %cst_76 = arith.constant 1.000000e+00 : f32
    %396 = vector.broadcast %cst_76 : f32 to vector<1x128xf32>
    %397 = arith.subf %396, %389 : vector<1x128xf32>
    %398 = arith.mulf %397, %395 : vector<1x128xf32>
    %399 = arith.mulf %389, %370 : vector<1x128xf32>
    %400 = arith.addf %398, %399 : vector<1x128xf32>
    %c12 = arith.constant 12 : index
    %c0_77 = arith.constant 0 : index
    %401 = vector.load %arg7[%c12, %c0_77] : memref<16x128xf32, #tpu.memory_space<vmem>>, vector<1x128xf32>
    tpu.vector_store %arg7[%c12, %c0_77], %400 {strides = array<i32>} : memref<16x128xf32, #tpu.memory_space<vmem>>, vector<1x128xf32>,
    %402 = vector.extract_strided_slice %8 {offsets = [13, 0], sizes = [1, 384], strides = [1, 1]} : vector<16x384xf32> to vector<1x384xf32>
    %cst_78 = arith.constant dense<0.000000e+00> : vector<1x384xf32>
    %403 = tpu.matmul %400, %9, %cst_78 {dimension_numbers = #tpu.dot_dimension_numbers<[1], [0], [0], [1], [0, 0, 1, 1], [], []>} : vector<1x128xf32>, vector<128x384xf32>, vector<1x384xf32> -> vector<1x384xf32>
    %404 = vector.extract_strided_slice %402 {offsets = [0, 0], sizes = [1, 128], strides = [1, 1]} : vector<1x384xf32> to vector<1x128xf32>
    %405 = vector.extract_strided_slice %403 {offsets = [0, 0], sizes = [1, 128], strides = [1, 1]} : vector<1x384xf32> to vector<1x128xf32>
    %406 = arith.addf %404, %405 : vector<1x128xf32>
    %407 = arith.negf %406 : vector<1x128xf32>
    %408 = math.exp %407 : vector<1x128xf32>
    %cst_79 = arith.constant 1.000000e+00 : f32
    %409 = vector.broadcast %cst_79 : f32 to vector<1x128xf32>
    %410 = arith.addf %409, %408 : vector<1x128xf32>
    %411 = arith.divf %409, %410 : vector<1x128xf32>
    %412 = vector.extract_strided_slice %402 {offsets = [0, 128], sizes = [1, 128], strides = [1, 1]} : vector<1x384xf32> to vector<1x128xf32>
    %413 = vector.extract_strided_slice %403 {offsets = [0, 128], sizes = [1, 128], strides = [1, 1]} : vector<1x384xf32> to vector<1x128xf32>
    %414 = arith.addf %412, %413 : vector<1x128xf32>
    %415 = arith.negf %414 : vector<1x128xf32>
    %416 = math.exp %415 : vector<1x128xf32>
    %cst_80 = arith.constant 1.000000e+00 : f32
    %417 = vector.broadcast %cst_80 : f32 to vector<1x128xf32>
    %418 = arith.addf %417, %416 : vector<1x128xf32>
    %419 = arith.divf %417, %418 : vector<1x128xf32>
    %420 = vector.extract_strided_slice %402 {offsets = [0, 256], sizes = [1, 128], strides = [1, 1]} : vector<1x384xf32> to vector<1x128xf32>
    %421 = vector.extract_strided_slice %403 {offsets = [0, 256], sizes = [1, 128], strides = [1, 1]} : vector<1x384xf32> to vector<1x128xf32>
    %422 = arith.addf %421, %10 : vector<1x128xf32>
    %423 = arith.mulf %411, %422 : vector<1x128xf32>
    %424 = arith.addf %420, %423 : vector<1x128xf32>
    %425 = math.tanh %424 : vector<1x128xf32>
    %cst_81 = arith.constant 1.000000e+00 : f32
    %426 = vector.broadcast %cst_81 : f32 to vector<1x128xf32>
    %427 = arith.subf %426, %419 : vector<1x128xf32>
    %428 = arith.mulf %427, %425 : vector<1x128xf32>
    %429 = arith.mulf %419, %400 : vector<1x128xf32>
    %430 = arith.addf %428, %429 : vector<1x128xf32>
    %c13 = arith.constant 13 : index
    %c0_82 = arith.constant 0 : index
    %431 = vector.load %arg7[%c13, %c0_82] : memref<16x128xf32, #tpu.memory_space<vmem>>, vector<1x128xf32>
    tpu.vector_store %arg7[%c13, %c0_82], %430 {strides = array<i32>} : memref<16x128xf32, #tpu.memory_space<vmem>>, vector<1x128xf32>,
    %432 = vector.extract_strided_slice %8 {offsets = [14, 0], sizes = [1, 384], strides = [1, 1]} : vector<16x384xf32> to vector<1x384xf32>
    %cst_83 = arith.constant dense<0.000000e+00> : vector<1x384xf32>
    %433 = tpu.matmul %430, %9, %cst_83 {dimension_numbers = #tpu.dot_dimension_numbers<[1], [0], [0], [1], [0, 0, 1, 1], [], []>} : vector<1x128xf32>, vector<128x384xf32>, vector<1x384xf32> -> vector<1x384xf32>
    %434 = vector.extract_strided_slice %432 {offsets = [0, 0], sizes = [1, 128], strides = [1, 1]} : vector<1x384xf32> to vector<1x128xf32>
    %435 = vector.extract_strided_slice %433 {offsets = [0, 0], sizes = [1, 128], strides = [1, 1]} : vector<1x384xf32> to vector<1x128xf32>
    %436 = arith.addf %434, %435 : vector<1x128xf32>
    %437 = arith.negf %436 : vector<1x128xf32>
    %438 = math.exp %437 : vector<1x128xf32>
    %cst_84 = arith.constant 1.000000e+00 : f32
    %439 = vector.broadcast %cst_84 : f32 to vector<1x128xf32>
    %440 = arith.addf %439, %438 : vector<1x128xf32>
    %441 = arith.divf %439, %440 : vector<1x128xf32>
    %442 = vector.extract_strided_slice %432 {offsets = [0, 128], sizes = [1, 128], strides = [1, 1]} : vector<1x384xf32> to vector<1x128xf32>
    %443 = vector.extract_strided_slice %433 {offsets = [0, 128], sizes = [1, 128], strides = [1, 1]} : vector<1x384xf32> to vector<1x128xf32>
    %444 = arith.addf %442, %443 : vector<1x128xf32>
    %445 = arith.negf %444 : vector<1x128xf32>
    %446 = math.exp %445 : vector<1x128xf32>
    %cst_85 = arith.constant 1.000000e+00 : f32
    %447 = vector.broadcast %cst_85 : f32 to vector<1x128xf32>
    %448 = arith.addf %447, %446 : vector<1x128xf32>
    %449 = arith.divf %447, %448 : vector<1x128xf32>
    %450 = vector.extract_strided_slice %432 {offsets = [0, 256], sizes = [1, 128], strides = [1, 1]} : vector<1x384xf32> to vector<1x128xf32>
    %451 = vector.extract_strided_slice %433 {offsets = [0, 256], sizes = [1, 128], strides = [1, 1]} : vector<1x384xf32> to vector<1x128xf32>
    %452 = arith.addf %451, %10 : vector<1x128xf32>
    %453 = arith.mulf %441, %452 : vector<1x128xf32>
    %454 = arith.addf %450, %453 : vector<1x128xf32>
    %455 = math.tanh %454 : vector<1x128xf32>
    %cst_86 = arith.constant 1.000000e+00 : f32
    %456 = vector.broadcast %cst_86 : f32 to vector<1x128xf32>
    %457 = arith.subf %456, %449 : vector<1x128xf32>
    %458 = arith.mulf %457, %455 : vector<1x128xf32>
    %459 = arith.mulf %449, %430 : vector<1x128xf32>
    %460 = arith.addf %458, %459 : vector<1x128xf32>
    %c14 = arith.constant 14 : index
    %c0_87 = arith.constant 0 : index
    %461 = vector.load %arg7[%c14, %c0_87] : memref<16x128xf32, #tpu.memory_space<vmem>>, vector<1x128xf32>
    tpu.vector_store %arg7[%c14, %c0_87], %460 {strides = array<i32>} : memref<16x128xf32, #tpu.memory_space<vmem>>, vector<1x128xf32>,
    %462 = vector.extract_strided_slice %8 {offsets = [15, 0], sizes = [1, 384], strides = [1, 1]} : vector<16x384xf32> to vector<1x384xf32>
    %cst_88 = arith.constant dense<0.000000e+00> : vector<1x384xf32>
    %463 = tpu.matmul %460, %9, %cst_88 {dimension_numbers = #tpu.dot_dimension_numbers<[1], [0], [0], [1], [0, 0, 1, 1], [], []>} : vector<1x128xf32>, vector<128x384xf32>, vector<1x384xf32> -> vector<1x384xf32>
    %464 = vector.extract_strided_slice %462 {offsets = [0, 0], sizes = [1, 128], strides = [1, 1]} : vector<1x384xf32> to vector<1x128xf32>
    %465 = vector.extract_strided_slice %463 {offsets = [0, 0], sizes = [1, 128], strides = [1, 1]} : vector<1x384xf32> to vector<1x128xf32>
    %466 = arith.addf %464, %465 : vector<1x128xf32>
    %467 = arith.negf %466 : vector<1x128xf32>
    %468 = math.exp %467 : vector<1x128xf32>
    %cst_89 = arith.constant 1.000000e+00 : f32
    %469 = vector.broadcast %cst_89 : f32 to vector<1x128xf32>
    %470 = arith.addf %469, %468 : vector<1x128xf32>
    %471 = arith.divf %469, %470 : vector<1x128xf32>
    %472 = vector.extract_strided_slice %462 {offsets = [0, 128], sizes = [1, 128], strides = [1, 1]} : vector<1x384xf32> to vector<1x128xf32>
    %473 = vector.extract_strided_slice %463 {offsets = [0, 128], sizes = [1, 128], strides = [1, 1]} : vector<1x384xf32> to vector<1x128xf32>
    %474 = arith.addf %472, %473 : vector<1x128xf32>
    %475 = arith.negf %474 : vector<1x128xf32>
    %476 = math.exp %475 : vector<1x128xf32>
    %cst_90 = arith.constant 1.000000e+00 : f32
    %477 = vector.broadcast %cst_90 : f32 to vector<1x128xf32>
    %478 = arith.addf %477, %476 : vector<1x128xf32>
    %479 = arith.divf %477, %478 : vector<1x128xf32>
    %480 = vector.extract_strided_slice %462 {offsets = [0, 256], sizes = [1, 128], strides = [1, 1]} : vector<1x384xf32> to vector<1x128xf32>
    %481 = vector.extract_strided_slice %463 {offsets = [0, 256], sizes = [1, 128], strides = [1, 1]} : vector<1x384xf32> to vector<1x128xf32>
    %482 = arith.addf %481, %10 : vector<1x128xf32>
    %483 = arith.mulf %471, %482 : vector<1x128xf32>
    %484 = arith.addf %480, %483 : vector<1x128xf32>
    %485 = math.tanh %484 : vector<1x128xf32>
    %cst_91 = arith.constant 1.000000e+00 : f32
    %486 = vector.broadcast %cst_91 : f32 to vector<1x128xf32>
    %487 = arith.subf %486, %479 : vector<1x128xf32>
    %488 = arith.mulf %487, %485 : vector<1x128xf32>
    %489 = arith.mulf %479, %460 : vector<1x128xf32>
    %490 = arith.addf %488, %489 : vector<1x128xf32>
    %c15 = arith.constant 15 : index
    %c0_92 = arith.constant 0 : index
    %491 = vector.load %arg7[%c15, %c0_92] : memref<16x128xf32, #tpu.memory_space<vmem>>, vector<1x128xf32>
    tpu.vector_store %arg7[%c15, %c0_92], %490 {strides = array<i32>} : memref<16x128xf32, #tpu.memory_space<vmem>>, vector<1x128xf32>,
    %c0_93 = arith.constant 0 : index
    %c0_94 = arith.constant 0 : index
    %492 = vector.load %arg8[%c0_93, %c0_94] : memref<1x128xf32, #tpu.memory_space<vmem>>, vector<1x128xf32>
    tpu.vector_store %arg8[%c0_93, %c0_94], %490 {strides = array<i32>} : memref<1x128xf32, #tpu.memory_space<vmem>>, vector<1x128xf32>,
    return
  }
  func.func @transform_0(%arg0: i32) -> (i32, i32) {
    %c0_i32 = arith.constant 0 : i32
    %c0_i32_0 = arith.constant 0 : i32
    return %arg0, %c0_i32 : i32, i32
  }
  func.func @transform_1(%arg0: i32) -> (i32, i32) {
    %c0_i32 = arith.constant 0 : i32
    %c0_i32_0 = arith.constant 0 : i32
    %c0_i32_1 = arith.constant 0 : i32
    return %c0_i32, %c0_i32_0 : i32, i32
  }
  func.func @transform_2(%arg0: i32) -> (i32, i32) {
    %c0_i32 = arith.constant 0 : i32
    %c0_i32_0 = arith.constant 0 : i32
    %c0_i32_1 = arith.constant 0 : i32
    return %c0_i32, %c0_i32_0 : i32, i32
  }
  func.func @transform_3(%arg0: i32) -> (i32, i32) {
    %c0_i32 = arith.constant 0 : i32
    %c0_i32_0 = arith.constant 0 : i32
    %c0_i32_1 = arith.constant 0 : i32
    return %c0_i32, %c0_i32_0 : i32, i32
  }
  func.func @transform_4(%arg0: i32) -> (i32, i32) {
    %c0_i32 = arith.constant 0 : i32
    %c0_i32_0 = arith.constant 0 : i32
    %c0_i32_1 = arith.constant 0 : i32
    return %c0_i32, %c0_i32_0 : i32, i32
  }
  func.func @transform_5(%arg0: i32) -> (i32, i32) {
    %c0_i32 = arith.constant 0 : i32
    %c0_i32_0 = arith.constant 0 : i32
    %c0_i32_1 = arith.constant 0 : i32
    return %c0_i32, %c0_i32_0 : i32, i32
  }
  func.func @transform_6(%arg0: i32) -> (i32, i32) {
    %c0_i32 = arith.constant 0 : i32
    %c0_i32_0 = arith.constant 0 : i32
    return %arg0, %c0_i32 : i32, i32
  }
}

</mosaic_0001>

<llo_original>
// kernel: tpu_custom_call.1
$region0: #{tpu_custom_call.1}
  #allocation0 [shape = 'u32[]', space=smem, size = 0x4, offset = 0x4, fixed_abs, tag = 'smem constant byte address 0x4 - core index']
  #allocation1 [shape = 'u32[144,128]{1,0:T(1,128)}', space=vmem, size = 0x12000, scoped, tag = 'internal scratch']
  #allocation2 [shape = 'f32[1,128]{1,0:T(1,128)}', space=vmem, size = 0x200, scoped, tag = 'scratch operand']
  %s0 = inlined_call_operand.hbm [shape: bf16[16,128], index: 0, kind: input, shape index: {}]
  %s1 = inlined_call_operand.vmem [shape: f32[1,128], index: 1, kind: input, shape index: {}]
  %s2 = inlined_call_operand.hbm [shape: bf16[128,384], index: 2, kind: input, shape index: {}]
  %s3 = inlined_call_operand.hbm [shape: f32[128,384], index: 3, kind: input, shape index: {}]
  %s4 = inlined_call_operand.vmem [shape: f32[1,384], index: 4, kind: input, shape index: {}]
  %s5 = inlined_call_operand.vmem [shape: f32[1,128], index: 5, kind: input, shape index: {}]
  %s6 = inlined_call_operand.hbm [shape: f32[16,128], index: 6, kind: output, shape index: {}]
  %s7 = sld [smem:[#allocation0]]
  $region50: #{tpu_custom_call.1} parent=0
    _
  %s9 = ssub.s32 1, %s7
  %s10 = scalar_select 0, %s9, %s7
  $region1: #{tpu_custom_call.1} parent=0
    #allocation3 [shape = 'u8[4096]{0}', space=vmem, size = 0x1000, scoped, tag = 'input window, operand 0, single buffered']
    #allocation4 [shape = 's32[1]{0}', space=sflag, size = 0x4, scoped, tag = 'scoped memory for tpu_custom_call.1']
    #allocation5 [shape = 's32[1]{0}', space=sflag, size = 0x4, scoped, tag = 'scoped memory for tpu_custom_call.1']
    #allocation6 [shape = 'u8[98304]{0}', space=vmem, size = 0x18000, scoped, tag = 'input window, operand 2, single buffered']
    #allocation7 [shape = 's32[1]{0}', space=sflag, size = 0x4, scoped, tag = 'scoped memory for tpu_custom_call.1']
    #allocation8 [shape = 'u8[196608]{0}', space=vmem, size = 0x30000, scoped, tag = 'input window, operand 3, single buffered']
    #allocation9 [shape = 'u8[8192]{0}', space=vmem, size = 0x2000, scoped, tag = 'output window, operand 0, single buffered']
    %11 = vsyncpa [#allocation4], 0
    %12 = vsyncpa [#allocation7], 0
    %13 = vsyncpa [#allocation5], 0
    // Predicated region
    $region2: #{tpu_custom_call.1} parent=1 // pred_check
      _
    $region3: #{tpu_custom_call.1} parent=1 // pred_check_branch
      %15 = sbr.rel (0) target = $region5
    $region4: #{tpu_custom_call.1} parent=1 // pred_region
      %s17 = ssub.s32 128, 128
      %18 = vsyncadd [#allocation4], %s17
      %s19 = sshll.u32 [#allocation3], 4
      %s20 = int_to_ptr.vmem [resolvable:$true] %s19
      %25 = dma.hbm_to_vmem [thread:$0]  %s0, 128, %s20, [#allocation4], 64, 64, 4
    $region5: #{tpu_custom_call.1} parent=1 // pred_fallthru
      _
    // Predicated region
    $region6: #{tpu_custom_call.1} parent=1 // pred_check
      _
    $region7: #{tpu_custom_call.1} parent=1 // pred_check_branch
      %27 = sbr.rel (0) target = $region9
    $region8: #{tpu_custom_call.1} parent=1 // pred_region
      _
    $region9: #{tpu_custom_call.1} parent=1 // pred_fallthru
      _
    // Predicated region
    $region10: #{tpu_custom_call.1} parent=1 // pred_check
      _
    $region11: #{tpu_custom_call.1} parent=1 // pred_check_branch
      %29 = sbr.rel (0) target = $region13
    $region12: #{tpu_custom_call.1} parent=1 // pred_region
      %s31 = ssub.s32 3072, 3072
      %32 = vsyncadd [#allocation7], %s31
      %s33 = sshll.u32 [#allocation6], 4
      %s34 = int_to_ptr.vmem [resolvable:$true] %s33
      %39 = dma.hbm_to_vmem [thread:$0]  %s2, 3072, %s34, [#allocation7], 192, 192, 12
    $region13: #{tpu_custom_call.1} parent=1 // pred_fallthru
      _
    // Predicated region
    $region14: #{tpu_custom_call.1} parent=1 // pred_check
      _
    $region15: #{tpu_custom_call.1} parent=1 // pred_check_branch
      %41 = sbr.rel (0) target = $region17
    $region16: #{tpu_custom_call.1} parent=1 // pred_region
      %s43 = ssub.s32 6144, 6144
      %44 = vsyncadd [#allocation7], %s43
      %s45 = sshll.u32 [#allocation8], 4
      %s46 = int_to_ptr.vmem [resolvable:$true] %s45
      %51 = dma.hbm_to_vmem [thread:$0]  %s3, 6144, %s46, [#allocation7], 384, 384, 24
    $region17: #{tpu_custom_call.1} parent=1 // pred_fallthru
      _
    // Predicated region
    $region18: #{tpu_custom_call.1} parent=1 // pred_check
      _
    $region19: #{tpu_custom_call.1} parent=1 // pred_check_branch
      %53 = sbr.rel (0) target = $region21
    $region20: #{tpu_custom_call.1} parent=1 // pred_region
      _
    $region21: #{tpu_custom_call.1} parent=1 // pred_fallthru
      _
    // Predicated region
    $region22: #{tpu_custom_call.1} parent=1 // pred_check
      _
    $region23: #{tpu_custom_call.1} parent=1 // pred_check_branch
      %55 = sbr.rel (0) target = $region25
    $region24: #{tpu_custom_call.1} parent=1 // pred_region
      _
    $region25: #{tpu_custom_call.1} parent=1 // pred_fallthru
      _
    // Predicated region
    $region26: #{tpu_custom_call.1} parent=1 // pred_check
      _
    $region27: #{tpu_custom_call.1} parent=1 // pred_check_branch
      %57 = sbr.rel (0) target = $region29
    $region28: #{tpu_custom_call.1} parent=1 // pred_region
      %58 = dma.done [#allocation4], 128
    $region29: #{tpu_custom_call.1} parent=1 // pred_fallthru
      _
    // Predicated region
    $region30: #{tpu_custom_call.1} parent=1 // pred_check
      _
    $region31: #{tpu_custom_call.1} parent=1 // pred_check_branch
      %60 = sbr.rel (0) target = $region33
    $region32: #{tpu_custom_call.1} parent=1 // pred_region
      %61 = dma.done [#allocation7], 3072
    $region33: #{tpu_custom_call.1} parent=1 // pred_fallthru
      _
    // Predicated region
    $region34: #{tpu_custom_call.1} parent=1 // pred_check
      _
    $region35: #{tpu_custom_call.1} parent=1 // pred_check_branch
      %63 = sbr.rel (0) target = $region37
    $region36: #{tpu_custom_call.1} parent=1 // pred_region
      %64 = dma.done [#allocation7], 6144
    $region37: #{tpu_custom_call.1} parent=1 // pred_fallthru
      _
    %p66 = scmp.eq.s32.totalorder 0, 0
    // Predicated region
    $region38: #{tpu_custom_call.1} parent=1 // pred_check
      %p67 = pneg %p66
    $region39: #{tpu_custom_call.1} parent=1 // pred_check_branch
      %69 = sbr.rel (%p67) target = $region41
    $region40: #{tpu_custom_call.1} parent=1 // pred_region
      %v70 = vld [vmem:[%s1] sm:$0x1]
      %71 = vst [vmem:[#allocation2] sm:$0x1] %v70
    $region41: #{tpu_custom_call.1} parent=1 // pred_fallthru
      _
    %v72 = vld [vmem:[#allocation3] sm:$0xf]
    %v73 = vld [vmem:[#allocation3 + $0x4] sm:$0xf]
    %v74 = vld [vmem:[#allocation6] sm:$0xff]
    %v75 = vld [vmem:[#allocation6 + $0x8] sm:$0xf]
    %v76 = vld [vmem:[#allocation6 + $0xc] sm:$0xff]
    %v77 = vld [vmem:[#allocation6 + $0x14] sm:$0xf]
    %v78 = vld [vmem:[#allocation6 + $0x18] sm:$0xff]
    %v79 = vld [vmem:[#allocation6 + $0x20] sm:$0xf]
    %v80 = vld [vmem:[#allocation6 + $0x24] sm:$0xff]
    %v81 = vld [vmem:[#allocation6 + $0x2c] sm:$0xf]
    %v82 = vld [vmem:[#allocation6 + $0x30] sm:$0xff]
    %v83 = vld [vmem:[#allocation6 + $0x38] sm:$0xf]
    %v84 = vld [vmem:[#allocation6 + $0x3c] sm:$0xff]
    %v85 = vld [vmem:[#allocation6 + $0x44] sm:$0xf]
    %v86 = vld [vmem:[#allocation6 + $0x48] sm:$0xff]
    %v87 = vld [vmem:[#allocation6 + $0x50] sm:$0xf]
    %v88 = vld [vmem:[#allocation6 + $0x54] sm:$0xff]
    %v89 = vld [vmem:[#allocation6 + $0x5c] sm:$0xf]
    %v90 = vld [vmem:[#allocation6 + $0x60] sm:$0xff]
    %v91 = vld [vmem:[#allocation6 + $0x68] sm:$0xf]
    %v92 = vld [vmem:[#allocation6 + $0x6c] sm:$0xff]
    %v93 = vld [vmem:[#allocation6 + $0x74] sm:$0xf]
    %v94 = vld [vmem:[#allocation6 + $0x78] sm:$0xff]
    %v95 = vld [vmem:[#allocation6 + $0x80] sm:$0xf]
    %v96 = vld [vmem:[#allocation6 + $0x84] sm:$0xff]
    %v97 = vld [vmem:[#allocation6 + $0x8c] sm:$0xf]
    %v98 = vld [vmem:[#allocation6 + $0x90] sm:$0xff]
    %v99 = vld [vmem:[#allocation6 + $0x98] sm:$0xf]
    %v100 = vld [vmem:[#allocation6 + $0x9c] sm:$0xff]
    %v101 = vld [vmem:[#allocation6 + $0xa4] sm:$0xf]
    %v102 = vld [vmem:[#allocation6 + $0xa8] sm:$0xff]
    %v103 = vld [vmem:[#allocation6 + $0xb0] sm:$0xf]
    %v104 = vld [vmem:[#allocation6 + $0xb4] sm:$0xff]
    %v105 = vld [vmem:[#allocation6 + $0xbc] sm:$0xf]
    %v106 = vld [vmem:[%s4] sm:$0x7]
    %v108 = vlaneseq
    %v109 = vshrl.u32 %v108, 7
    %v110 = vsub.s32 0, %v109
    %v111 = vrot.slane %v106, %v110
    %v112 = vlaneseq
    %v113 = vshrl.u32 %v112, 7
    %v114 = vsub.s32 1, %v113
    %v115 = vrot.slane %v106, %v114
    %v116 = vlaneseq
    %v117 = vshrl.u32 %v116, 7
    %v118 = vsub.s32 2, %v117
    %v119 = vrot.slane %v106, %v118
    %v125 = vunpack.c.l.b16 %v72
    %v126 = vunpack.c.l.b16 %v73
    %v127 = vpack.c.b16 %v126, %v125
    %v161 = vunpack.c.l.b16 %v74
    %v162 = vunpack.c.h.b16 %v74
    %v163 = vunpack.c.l.b16 %v75
    %v164 = vunpack.c.l.b16 %v76
    %v165 = vunpack.c.h.b16 %v76
    %v166 = vunpack.c.l.b16 %v77
    %v167 = vunpack.c.l.b16 %v78
    %v168 = vunpack.c.h.b16 %v78
    %v169 = vunpack.c.l.b16 %v79
    %v170 = vunpack.c.l.b16 %v80
    %v171 = vunpack.c.h.b16 %v80
    %v172 = vunpack.c.l.b16 %v81
    %v173 = vunpack.c.l.b16 %v82
    %v174 = vunpack.c.h.b16 %v82
    %v175 = vunpack.c.l.b16 %v83
    %v176 = vunpack.c.l.b16 %v84
    %v177 = vunpack.c.h.b16 %v84
    %v178 = vunpack.c.l.b16 %v85
    %v179 = vunpack.c.l.b16 %v86
    %v180 = vunpack.c.h.b16 %v86
    %v181 = vunpack.c.l.b16 %v87
    %v182 = vunpack.c.l.b16 %v88
    %v183 = vunpack.c.h.b16 %v88
    %v184 = vunpack.c.l.b16 %v89
    %v185 = vunpack.c.l.b16 %v90
    %v186 = vunpack.c.h.b16 %v90
    %v187 = vunpack.c.l.b16 %v91
    %v188 = vunpack.c.l.b16 %v92
    %v189 = vunpack.c.h.b16 %v92
    %v190 = vunpack.c.l.b16 %v93
    %v191 = vunpack.c.l.b16 %v94
    %v192 = vunpack.c.h.b16 %v94
    %v193 = vunpack.c.l.b16 %v95
    %v194 = vunpack.c.l.b16 %v96
    %v195 = vunpack.c.h.b16 %v96
    %v196 = vunpack.c.l.b16 %v97
    %v197 = vunpack.c.l.b16 %v98
    %v198 = vunpack.c.h.b16 %v98
    %v199 = vunpack.c.l.b16 %v99
    %v200 = vunpack.c.l.b16 %v100
    %v201 = vunpack.c.h.b16 %v100
    %v202 = vunpack.c.l.b16 %v101
    %v203 = vunpack.c.l.b16 %v102
    %v204 = vunpack.c.h.b16 %v102
    %v205 = vunpack.c.l.b16 %v103
    %v206 = vunpack.c.l.b16 %v104
    %v207 = vunpack.c.h.b16 %v104
    %v208 = vunpack.c.l.b16 %v105
    %v209 = vpack.c.b16 %v164, %v161
    %v210 = vpack.c.b16 %v165, %v162
    %v211 = vpack.c.b16 %v166, %v163
    %v212 = vpack.c.b16 %v170, %v167
    %v213 = vpack.c.b16 %v171, %v168
    %v214 = vpack.c.b16 %v172, %v169
    %v215 = vpack.c.b16 %v176, %v173
    %v216 = vpack.c.b16 %v177, %v174
    %v217 = vpack.c.b16 %v178, %v175
    %v218 = vpack.c.b16 %v182, %v179
    %v219 = vpack.c.b16 %v183, %v180
    %v220 = vpack.c.b16 %v184, %v181
    %v221 = vpack.c.b16 %v188, %v185
    %v222 = vpack.c.b16 %v189, %v186
    %v223 = vpack.c.b16 %v190, %v187
    %v224 = vpack.c.b16 %v194, %v191
    %v225 = vpack.c.b16 %v195, %v192
    %v226 = vpack.c.b16 %v196, %v193
    %v227 = vpack.c.b16 %v200, %v197
    %v228 = vpack.c.b16 %v201, %v198
    %v229 = vpack.c.b16 %v202, %v199
    %v230 = vpack.c.b16 %v206, %v203
    %v231 = vpack.c.b16 %v207, %v204
    %v232 = vpack.c.b16 %v208, %v205
    %257 = vmatprep.subr.bf16.mxu0 %v210
    %258 = vmatpush1.bf16.msra.mxu0 %v209
    %259 = vmatprep.subr.bf16.mxu0 %v213
    %260 = vmatpush1.bf16.msra.mxu0 %v212
    %261 = vmatprep.subr.bf16.mxu0 %v216
    %262 = vmatpush1.bf16.msra.mxu0 %v215
    %263 = vmatprep.subr.bf16.mxu0 %v219
    %264 = vmatpush1.bf16.msra.mxu0 %v218
    %265 = vmatprep.subr.bf16.mxu0 %v222
    %266 = vmatpush1.bf16.msra.mxu0 %v221
    %267 = vmatprep.subr.bf16.mxu0 %v225
    %268 = vmatpush1.bf16.msra.mxu0 %v224
    %269 = vmatprep.subr.bf16.mxu0 %v228
    %270 = vmatpush1.bf16.msra.mxu0 %v227
    %271 = vmatprep.subr.bf16.mxu0 %v231
    %272 = vmatpush1.bf16.msra.mxu0 %v230
    %273 = vmatprep.subr.bf16.mxu0 0
    %274 = vmatpush1.bf16.msra.mxu0 0
    %275 = vmatprep.subr.bf16.mxu0 0
    %276 = vmatpush1.bf16.msra.mxu0 0
    %277 = vmatprep.subr.bf16.mxu0 0
    %278 = vmatpush1.bf16.msra.mxu0 0
    %279 = vmatprep.subr.bf16.mxu0 0
    %280 = vmatpush1.bf16.msra.mxu0 0
    %281 = vmatprep.subr.bf16.mxu0 0
    %282 = vmatpush1.bf16.msra.mxu0 0
    %283 = vmatprep.subr.bf16.mxu0 0
    %284 = vmatpush1.bf16.msra.mxu0 0
    %285 = vmatprep.subr.bf16.mxu0 0
    %286 = vmatpush1.bf16.msra.mxu0 0
    %287 = vmatprep.subr.bf16.mxu0 0
    %288 = vmatpush1.bf16.msra.mxu0 0
    %289 = vmatprep.mubr.bf16.mxu0 0
    %290 = vmatmul.mubr.bf16.gmra.mrb[0].mxu0 %v127
    %v291 = vpop.f32.mrb[0].mxu0
    %v292 = vadd.f32 %v111, %v291
    %v293 = vpop.f32.mrb[0].mxu0
    %v294 = vadd.f32 %v115, %v293
    %v295 = vpop.f32.mrb[0].mxu0
    %v296 = vadd.f32 %v111, %v295
    %v297 = vpop.f32.mrb[0].mxu0
    %v298 = vadd.f32 %v115, %v297
    %299 = vdwg.mxu0
    %300 = vmatprep.subr.bf16.mxu0 0
    %301 = vmatpush1.bf16.msra.mxu0 %v211
    %302 = vmatprep.subr.bf16.mxu0 0
    %303 = vmatpush1.bf16.msra.mxu0 %v214
    %304 = vmatprep.subr.bf16.mxu0 0
    %305 = vmatpush1.bf16.msra.mxu0 %v217
    %306 = vmatprep.subr.bf16.mxu0 0
    %307 = vmatpush1.bf16.msra.mxu0 %v220
    %308 = vmatprep.subr.bf16.mxu0 0
    %309 = vmatpush1.bf16.msra.mxu0 %v223
    %310 = vmatprep.subr.bf16.mxu0 0
    %311 = vmatpush1.bf16.msra.mxu0 %v226
    %312 = vmatprep.subr.bf16.mxu0 0
    %313 = vmatpush1.bf16.msra.mxu0 %v229
    %314 = vmatprep.subr.bf16.mxu0 0
    %315 = vmatpush1.bf16.msra.mxu0 %v232
    %316 = vmatprep.subr.bf16.mxu0 0
    %317 = vmatpush1.bf16.msra.mxu0 0
    %318 = vmatprep.subr.bf16.mxu0 0
    %319 = vmatpush1.bf16.msra.mxu0 0
    %320 = vmatprep.subr.bf16.mxu0 0
    %321 = vmatpush1.bf16.msra.mxu0 0
    %322 = vmatprep.subr.bf16.mxu0 0
    %323 = vmatpush1.bf16.msra.mxu0 0
    %324 = vmatprep.subr.bf16.mxu0 0
    %325 = vmatpush1.bf16.msra.mxu0 0
    %326 = vmatprep.subr.bf16.mxu0 0
    %327 = vmatpush1.bf16.msra.mxu0 0
    %328 = vmatprep.subr.bf16.mxu0 0
    %329 = vmatpush1.bf16.msra.mxu0 0
    %330 = vmatprep.subr.bf16.mxu0 0
    %331 = vmatpush1.bf16.msra.mxu0 0
    %332 = vmatprep.mubr.bf16.mxu0 0
    %333 = vmatmul.mubr.bf16.gmra.mrb[0].mxu0 %v127
    %v334 = vpop.f32.mrb[0].mxu0
    %v335 = vadd.f32 %v119, %v334
    %v336 = vpop.f32.mrb[0].mxu0
    %v337 = vpop.f32.mrb[0].mxu0
    %v338 = vadd.f32 %v119, %v337
    %v339 = vpop.f32.mrb[0].mxu0
    %340 = vdwg.mxu0
    %v341 = vld [vmem:[#allocation8] sm:$0xff]
    %v342 = vld [vmem:[#allocation8 + $0x8] sm:$0xff]
    %v343 = vld [vmem:[#allocation8 + $0x10] sm:$0xff]
    %v344 = vld [vmem:[#allocation8 + $0x18] sm:$0xff]
    %v345 = vld [vmem:[#allocation8 + $0x20] sm:$0xff]
    %v346 = vld [vmem:[#allocation8 + $0x28] sm:$0xff]
    %v347 = vld [vmem:[#allocation8 + $0x30] sm:$0xff]
    %v348 = vld [vmem:[#allocation8 + $0x38] sm:$0xff]
    %v349 = vld [vmem:[#allocation8 + $0x40] sm:$0xff]
    %v350 = vld [vmem:[#allocation8 + $0x48] sm:$0xff]
    %v351 = vld [vmem:[#allocation8 + $0x50] sm:$0xff]
    %v352 = vld [vmem:[#allocation8 + $0x58] sm:$0xff]
    %v353 = vld [vmem:[#allocation8 + $0x60] sm:$0xff]
    %v354 = vld [vmem:[#allocation8 + $0x68] sm:$0xff]
    %v355 = vld [vmem:[#allocation8 + $0x70] sm:$0xff]
    %v356 = vld [vmem:[#allocation8 + $0x78] sm:$0xff]
    %v357 = vld [vmem:[#allocation8 + $0x80] sm:$0xff]
    %v358 = vld [vmem:[#allocation8 + $0x88] sm:$0xff]
    %v359 = vld [vmem:[#allocation8 + $0x90] sm:$0xff]
    %v360 = vld [vmem:[#allocation8 + $0x98] sm:$0xff]
    %v361 = vld [vmem:[#allocation8 + $0xa0] sm:$0xff]
    %v362 = vld [vmem:[#allocation8 + $0xa8] sm:$0xff]
    %v363 = vld [vmem:[#allocation8 + $0xb0] sm:$0xff]
    %v364 = vld [vmem:[#allocation8 + $0xb8] sm:$0xff]
    %v365 = vld [vmem:[#allocation8 + $0xc0] sm:$0xff]
    %v366 = vld [vmem:[#allocation8 + $0xc8] sm:$0xff]
    %v367 = vld [vmem:[#allocation8 + $0xd0] sm:$0xff]
    %v368 = vld [vmem:[#allocation8 + $0xd8] sm:$0xff]
    %v369 = vld [vmem:[#allocation8 + $0xe0] sm:$0xff]
    %v370 = vld [vmem:[#allocation8 + $0xe8] sm:$0xff]
    %v371 = vld [vmem:[#allocation8 + $0xf0] sm:$0xff]
    %v372 = vld [vmem:[#allocation8 + $0xf8] sm:$0xff]
    %v373 = vld [vmem:[#allocation8 + $0x100] sm:$0xff]
    %v374 = vld [vmem:[#allocation8 + $0x108] sm:$0xff]
    %v375 = vld [vmem:[#allocation8 + $0x110] sm:$0xff]
    %v376 = vld [vmem:[#allocation8 + $0x118] sm:$0xff]
    %v377 = vld [vmem:[#allocation8 + $0x120] sm:$0xff]
    %v378 = vld [vmem:[#allocation8 + $0x128] sm:$0xff]
    %v379 = vld [vmem:[#allocation8 + $0x130] sm:$0xff]
    %v380 = vld [vmem:[#allocation8 + $0x138] sm:$0xff]
    %v381 = vld [vmem:[#allocation8 + $0x140] sm:$0xff]
    %v382 = vld [vmem:[#allocation8 + $0x148] sm:$0xff]
    %v383 = vld [vmem:[#allocation8 + $0x150] sm:$0xff]
    %v384 = vld [vmem:[#allocation8 + $0x158] sm:$0xff]
    %v385 = vld [vmem:[#allocation8 + $0x160] sm:$0xff]
    %v386 = vld [vmem:[#allocation8 + $0x168] sm:$0xff]
    %v387 = vld [vmem:[#allocation8 + $0x170] sm:$0xff]
    %v388 = vld [vmem:[#allocation8 + $0x178] sm:$0xff]
    %v389 = vld [vmem:[%s5] sm:$0x1]
    %v390 = vld [vmem:[#allocation2] sm:$0x1]
    %391 = vmatprep.subr.mxu0 %v342
    %392 = vmatpush1.msra.mxu0 %v341
    %393 = vmatprep.subr.mxu0 %v345
    %394 = vmatpush1.msra.mxu0 %v344
    %395 = vmatprep.subr.mxu0 %v348
    %396 = vmatpush1.msra.mxu0 %v347
    %397 = vmatprep.subr.mxu0 %v351
    %398 = vmatpush1.msra.mxu0 %v350
    %399 = vmatprep.subr.mxu0 %v354
    %400 = vmatpush1.msra.mxu0 %v353
    %401 = vmatprep.subr.mxu0 %v357
    %402 = vmatpush1.msra.mxu0 %v356
    %403 = vmatprep.subr.mxu0 %v360
    %404 = vmatpush1.msra.mxu0 %v359
    %405 = vmatprep.subr.mxu0 %v363
    %406 = vmatpush1.msra.mxu0 %v362
    %407 = vmatprep.subr.mxu0 %v366
    %408 = vmatpush1.msra.mxu0 %v365
    %409 = vmatprep.subr.mxu0 %v369
    %410 = vmatpush1.msra.mxu0 %v368
    %411 = vmatprep.subr.mxu0 %v372
    %412 = vmatpush1.msra.mxu0 %v371
    %413 = vmatprep.subr.mxu0 %v375
    %414 = vmatpush1.msra.mxu0 %v374
    %415 = vmatprep.subr.mxu0 %v378
    %416 = vmatpush1.msra.mxu0 %v377
    %417 = vmatprep.subr.mxu0 %v381
    %418 = vmatpush1.msra.mxu0 %v380
    %419 = vmatprep.subr.mxu0 %v384
    %420 = vmatpush1.msra.mxu0 %v383
    %421 = vmatprep.subr.mxu0 %v387
    %422 = vmatpush1.msra.mxu0 %v386
    %423 = vmatprep.subr.mxu0 0.0
    %424 = vmatpush1.msra.mxu0 0.0
    %425 = vmatprep.subr.mxu0 0.0
    %426 = vmatpush1.msra.mxu0 0.0
    %427 = vmatprep.subr.mxu0 0.0
    %428 = vmatpush1.msra.mxu0 0.0
    %429 = vmatprep.subr.mxu0 0.0
    %430 = vmatpush1.msra.mxu0 0.0
    %431 = vmatprep.subr.mxu0 0.0
    %432 = vmatpush1.msra.mxu0 0.0
    %433 = vmatprep.subr.mxu0 0.0
    %434 = vmatpush1.msra.mxu0 0.0
    %435 = vmatprep.subr.mxu0 0.0
    %436 = vmatpush1.msra.mxu0 0.0
    %437 = vmatprep.subr.mxu0 0.0
    %438 = vmatpush1.msra.mxu0 0.0
    %439 = vmatprep.subr.mxu0 0.0
    %440 = vmatpush1.msra.mxu0 0.0
    %441 = vmatprep.subr.mxu0 0.0
    %442 = vmatpush1.msra.mxu0 0.0
    %443 = vmatprep.subr.mxu0 0.0
    %444 = vmatpush1.msra.mxu0 0.0
    %445 = vmatprep.subr.mxu0 0.0
    %446 = vmatpush1.msra.mxu0 0.0
    %447 = vmatprep.subr.mxu0 0.0
    %448 = vmatpush1.msra.mxu0 0.0
    %449 = vmatprep.subr.mxu0 0.0
    %450 = vmatpush1.msra.mxu0 0.0
    %451 = vmatprep.subr.mxu0 0.0
    %452 = vmatpush1.msra.mxu0 0.0
    %453 = vmatprep.subr.mxu0 0.0
    %454 = vmatpush1.msra.mxu0 0.0
    %455 = vmatprep.mubr.f32.mxu0 0.0
    %456 = vmatmul.mubr.f32.gmra.mrb[0].mxu0 %v390
    %v457 = vpop.f32.mrb[0].mxu0
    %v458 = vadd.f32 0.0, %v457
    %v459 = vpop.f32.mrb[0].mxu0
    %v460 = vadd.f32 0.0, %v459
    %461 = vdwg.mxu0
    %462 = vmatprep.subr.mxu0 0.0
    %463 = vmatpush1.msra.mxu0 %v343
    %464 = vmatprep.subr.mxu0 0.0
    %465 = vmatpush1.msra.mxu0 %v346
    %466 = vmatprep.subr.mxu0 0.0
    %467 = vmatpush1.msra.mxu0 %v349
    %468 = vmatprep.subr.mxu0 0.0
    %469 = vmatpush1.msra.mxu0 %v352
    %470 = vmatprep.subr.mxu0 0.0
    %471 = vmatpush1.msra.mxu0 %v355
    %472 = vmatprep.subr.mxu0 0.0
    %473 = vmatpush1.msra.mxu0 %v358
    %474 = vmatprep.subr.mxu0 0.0
    %475 = vmatpush1.msra.mxu0 %v361
    %476 = vmatprep.subr.mxu0 0.0
    %477 = vmatpush1.msra.mxu0 %v364
    %478 = vmatprep.subr.mxu0 0.0
    %479 = vmatpush1.msra.mxu0 %v367
    %480 = vmatprep.subr.mxu0 0.0
    %481 = vmatpush1.msra.mxu0 %v370
    %482 = vmatprep.subr.mxu0 0.0
    %483 = vmatpush1.msra.mxu0 %v373
    %484 = vmatprep.subr.mxu0 0.0
    %485 = vmatpush1.msra.mxu0 %v376
    %486 = vmatprep.subr.mxu0 0.0
    %487 = vmatpush1.msra.mxu0 %v379
    %488 = vmatprep.subr.mxu0 0.0
    %489 = vmatpush1.msra.mxu0 %v382
    %490 = vmatprep.subr.mxu0 0.0
    %491 = vmatpush1.msra.mxu0 %v385
    %492 = vmatprep.subr.mxu0 0.0
    %493 = vmatpush1.msra.mxu0 %v388
    %494 = vmatprep.subr.mxu0 0.0
    %495 = vmatpush1.msra.mxu0 0.0
    %496 = vmatprep.subr.mxu0 0.0
    %497 = vmatpush1.msra.mxu0 0.0
    %498 = vmatprep.subr.mxu0 0.0
    %499 = vmatpush1.msra.mxu0 0.0
    %500 = vmatprep.subr.mxu0 0.0
    %501 = vmatpush1.msra.mxu0 0.0
    %502 = vmatprep.subr.mxu0 0.0
    %503 = vmatpush1.msra.mxu0 0.0
    %504 = vmatprep.subr.mxu0 0.0
    %505 = vmatpush1.msra.mxu0 0.0
    %506 = vmatprep.subr.mxu0 0.0
    %507 = vmatpush1.msra.mxu0 0.0
    %508 = vmatprep.subr.mxu0 0.0
    %509 = vmatpush1.msra.mxu0 0.0
    %510 = vmatprep.subr.mxu0 0.0
    %511 = vmatpush1.msra.mxu0 0.0
    %512 = vmatprep.subr.mxu0 0.0
    %513 = vmatpush1.msra.mxu0 0.0
    %514 = vmatprep.subr.mxu0 0.0
    %515 = vmatpush1.msra.mxu0 0.0
    %516 = vmatprep.subr.mxu0 0.0
    %517 = vmatpush1.msra.mxu0 0.0
    %518 = vmatprep.subr.mxu0 0.0
    %519 = vmatpush1.msra.mxu0 0.0
    %520 = vmatprep.subr.mxu0 0.0
    %521 = vmatpush1.msra.mxu0 0.0
    %522 = vmatprep.subr.mxu0 0.0
    %523 = vmatpush1.msra.mxu0 0.0
    %524 = vmatprep.subr.mxu0 0.0
    %525 = vmatpush1.msra.mxu0 0.0
    %526 = vmatprep.mubr.f32.mxu0 0.0
    %527 = vmatmul.mubr.f32.gmra.mrb[0].mxu0 %v390
    %v528 = vpop.f32.mrb[0].mxu0
    %v529 = vadd.f32 0.0, %v528
    %v530 = vpop.f32.mrb[0].mxu0
    %531 = vdwg.mxu0
    %v532 = vadd.f32 %v292, %v458
    %v533 = vxor.u32 %v532, 2147483648
    %v534 = vmul.f32 %v533, 1.442695
    %v535 = vpow.pop %v534
    %v536 = vadd.f32 %v535, 1.0
    %v537 = vrcp.pop %v536
    %v538 = vmul.f32 1.0, %v537
    %v539 = vadd.f32 %v294, %v460
    %v540 = vxor.u32 %v539, 2147483648
    %v541 = vmul.f32 %v540, 1.442695
    %v542 = vpow.pop %v541
    %v543 = vadd.f32 %v542, 1.0
    %v544 = vrcp.pop %v543
    %v545 = vmul.f32 1.0, %v544
    %v546 = vadd.f32 %v529, %v389
    %v547 = vmul.f32 %v538, %v546
    %v548 = vadd.f32 %v335, %v547
    %v549 = vtanh.pop %v548
    %v550 = vsub.f32 1.0, %v545
    %v551 = vmul.f32 %v550, %v549
    %v552 = vmul.f32 %v545, %v390
    %v553 = vadd.f32 %v551, %v552
    %554 = vst [vmem:[#allocation9] sm:$0x1] %v553
    %555 = vmatprep.subr.mxu0 %v342
    %556 = vmatpush1.msra.mxu0 %v341
    %557 = vmatprep.subr.mxu0 %v345
    %558 = vmatpush1.msra.mxu0 %v344
    %559 = vmatprep.subr.mxu0 %v348
    %560 = vmatpush1.msra.mxu0 %v347
    %561 = vmatprep.subr.mxu0 %v351
    %562 = vmatpush1.msra.mxu0 %v350
    %563 = vmatprep.subr.mxu0 %v354
    %564 = vmatpush1.msra.mxu0 %v353
    %565 = vmatprep.subr.mxu0 %v357
    %566 = vmatpush1.msra.mxu0 %v356
    %567 = vmatprep.subr.mxu0 %v360
    %568 = vmatpush1.msra.mxu0 %v359
    %569 = vmatprep.subr.mxu0 %v363
    %570 = vmatpush1.msra.mxu0 %v362
    %571 = vmatprep.subr.mxu0 %v366
    %572 = vmatpush1.msra.mxu0 %v365
    %573 = vmatprep.subr.mxu0 %v369
    %574 = vmatpush1.msra.mxu0 %v368
    %575 = vmatprep.subr.mxu0 %v372
    %576 = vmatpush1.msra.mxu0 %v371
    %577 = vmatprep.subr.mxu0 %v375
    %578 = vmatpush1.msra.mxu0 %v374
    %579 = vmatprep.subr.mxu0 %v378
    %580 = vmatpush1.msra.mxu0 %v377
    %581 = vmatprep.subr.mxu0 %v381
    %582 = vmatpush1.msra.mxu0 %v380
    %583 = vmatprep.subr.mxu0 %v384
    %584 = vmatpush1.msra.mxu0 %v383
    %585 = vmatprep.subr.mxu0 %v387
    %586 = vmatpush1.msra.mxu0 %v386
    %587 = vmatprep.subr.mxu0 0.0
    %588 = vmatpush1.msra.mxu0 0.0
    %589 = vmatprep.subr.mxu0 0.0
    %590 = vmatpush1.msra.mxu0 0.0
    %591 = vmatprep.subr.mxu0 0.0
    %592 = vmatpush1.msra.mxu0 0.0
    %593 = vmatprep.subr.mxu0 0.0
    %594 = vmatpush1.msra.mxu0 0.0
    %595 = vmatprep.subr.mxu0 0.0
    %596 = vmatpush1.msra.mxu0 0.0
    %597 = vmatprep.subr.mxu0 0.0
    %598 = vmatpush1.msra.mxu0 0.0
    %599 = vmatprep.subr.mxu0 0.0
    %600 = vmatpush1.msra.mxu0 0.0
    %601 = vmatprep.subr.mxu0 0.0
    %602 = vmatpush1.msra.mxu0 0.0
    %603 = vmatprep.subr.mxu0 0.0
    %604 = vmatpush1.msra.mxu0 0.0
    %605 = vmatprep.subr.mxu0 0.0
    %606 = vmatpush1.msra.mxu0 0.0
    %607 = vmatprep.subr.mxu0 0.0
    %608 = vmatpush1.msra.mxu0 0.0
    %609 = vmatprep.subr.mxu0 0.0
    %610 = vmatpush1.msra.mxu0 0.0
    %611 = vmatprep.subr.mxu0 0.0
    %612 = vmatpush1.msra.mxu0 0.0
    %613 = vmatprep.subr.mxu0 0.0
    %614 = vmatpush1.msra.mxu0 0.0
    %615 = vmatprep.subr.mxu0 0.0
    %616 = vmatpush1.msra.mxu0 0.0
    %617 = vmatprep.subr.mxu0 0.0
    %618 = vmatpush1.msra.mxu0 0.0
    %619 = vmatprep.mubr.f32.mxu0 0.0
    %620 = vmatmul.mubr.f32.gmra.mrb[0].mxu0 %v553
    %v621 = vpop.f32.mrb[0].mxu0
    %v622 = vadd.f32 0.0, %v621
    %v623 = vpop.f32.mrb[0].mxu0
    %v624 = vadd.f32 0.0, %v623
    %625 = vdwg.mxu0
    %626 = vmatprep.subr.mxu0 0.0
    %627 = vmatpush1.msra.mxu0 %v343
    %628 = vmatprep.subr.mxu0 0.0
    %629 = vmatpush1.msra.mxu0 %v346
    %630 = vmatprep.subr.mxu0 0.0
    %631 = vmatpush1.msra.mxu0 %v349
    %632 = vmatprep.subr.mxu0 0.0
    %633 = vmatpush1.msra.mxu0 %v352
    %634 = vmatprep.subr.mxu0 0.0
    %635 = vmatpush1.msra.mxu0 %v355
    %636 = vmatprep.subr.mxu0 0.0
    %637 = vmatpush1.msra.mxu0 %v358
    %638 = vmatprep.subr.mxu0 0.0
    %639 = vmatpush1.msra.mxu0 %v361
    %640 = vmatprep.subr.mxu0 0.0
    %641 = vmatpush1.msra.mxu0 %v364
    %642 = vmatprep.subr.mxu0 0.0
    %643 = vmatpush1.msra.mxu0 %v367
    %644 = vmatprep.subr.mxu0 0.0
    %645 = vmatpush1.msra.mxu0 %v370
    %646 = vmatprep.subr.mxu0 0.0
    %647 = vmatpush1.msra.mxu0 %v373
    %648 = vmatprep.subr.mxu0 0.0
    %649 = vmatpush1.msra.mxu0 %v376
    %650 = vmatprep.subr.mxu0 0.0
    %651 = vmatpush1.msra.mxu0 %v379
    %652 = vmatprep.subr.mxu0 0.0
    %653 = vmatpush1.msra.mxu0 %v382
    %654 = vmatprep.subr.mxu0 0.0
    %655 = vmatpush1.msra.mxu0 %v385
    %656 = vmatprep.subr.mxu0 0.0
    %657 = vmatpush1.msra.mxu0 %v388
    %658 = vmatprep.subr.mxu0 0.0
    %659 = vmatpush1.msra.mxu0 0.0
    %660 = vmatprep.subr.mxu0 0.0
    %661 = vmatpush1.msra.mxu0 0.0
    %662 = vmatprep.subr.mxu0 0.0
    %663 = vmatpush1.msra.mxu0 0.0
    %664 = vmatprep.subr.mxu0 0.0
    %665 = vmatpush1.msra.mxu0 0.0
    %666 = vmatprep.subr.mxu0 0.0
    %667 = vmatpush1.msra.mxu0 0.0
    %668 = vmatprep.subr.mxu0 0.0
    %669 = vmatpush1.msra.mxu0 0.0
    %670 = vmatprep.subr.mxu0 0.0
    %671 = vmatpush1.msra.mxu0 0.0
    %672 = vmatprep.subr.mxu0 0.0
    %673 = vmatpush1.msra.mxu0 0.0
    %674 = vmatprep.subr.mxu0 0.0
    %675 = vmatpush1.msra.mxu0 0.0
    %676 = vmatprep.subr.mxu0 0.0
    %677 = vmatpush1.msra.mxu0 0.0
    %678 = vmatprep.subr.mxu0 0.0
    %679 = vmatpush1.msra.mxu0 0.0
    %680 = vmatprep.subr.mxu0 0.0
    %681 = vmatpush1.msra.mxu0 0.0
    %682 = vmatprep.subr.mxu0 0.0
    %683 = vmatpush1.msra.mxu0 0.0
    %684 = vmatprep.subr.mxu0 0.0
    %685 = vmatpush1.msra.mxu0 0.0
    %686 = vmatprep.subr.mxu0 0.0
    %687 = vmatpush1.msra.mxu0 0.0
    %688 = vmatprep.subr.mxu0 0.0
    %689 = vmatpush1.msra.mxu0 0.0
    %690 = vmatprep.mubr.f32.mxu0 0.0
    %691 = vmatmul.mubr.f32.gmra.mrb[0].mxu0 %v553
    %v692 = vpop.f32.mrb[0].mxu0
    %v693 = vadd.f32 0.0, %v692
    %v694 = vpop.f32.mrb[0].mxu0
    %695 = vdwg.mxu0
    %v697 = vrot.slane %v622, 7
    %v699 = vadd.f32 %v292, %v697
    %v700 = vxor.u32 %v699, 2147483648
    %v701 = vmul.f32 %v700, 1.442695
    %v702 = vpow.pop %v701
    %v703 = vadd.f32 %v702, 1.0
    %v704 = vrcp.pop %v703
    %v705 = vmul.f32 1.0, %v704
    %v707 = vrot.slane %v624, 7
    %v709 = vadd.f32 %v294, %v707
    %v710 = vxor.u32 %v709, 2147483648
    %v711 = vmul.f32 %v710, 1.442695
    %v712 = vpow.pop %v711
    %v713 = vadd.f32 %v712, 1.0
    %v714 = vrcp.pop %v713
    %v715 = vmul.f32 1.0, %v714
    %v716 = vadd.f32 %v693, %v389
    %v718 = vrot.slane %v716, 7
    %v720 = vmul.f32 %v705, %v718
    %v721 = vadd.f32 %v335, %v720
    %v722 = vtanh.pop %v721
    %v723 = vsub.f32 1.0, %v715
    %v724 = vmul.f32 %v723, %v722
    %v726 = vrot.slane %v553, 7
    %v728 = vmul.f32 %v715, %v726
    %v729 = vadd.f32 %v724, %v728
    %730 = vst [vmem:[#allocation9] sm:$0x2] %v729
    %v732 = vrot.slane %v729, 1
    %734 = vmatprep.subr.mxu0 %v342
    %735 = vmatpush1.msra.mxu0 %v341
    %736 = vmatprep.subr.mxu0 %v345
    %737 = vmatpush1.msra.mxu0 %v344
    %738 = vmatprep.subr.mxu0 %v348
    %739 = vmatpush1.msra.mxu0 %v347
    %740 = vmatprep.subr.mxu0 %v351
    %741 = vmatpush1.msra.mxu0 %v350
    %742 = vmatprep.subr.mxu0 %v354
    %743 = vmatpush1.msra.mxu0 %v353
    %744 = vmatprep.subr.mxu0 %v357
    %745 = vmatpush1.msra.mxu0 %v356
    %746 = vmatprep.subr.mxu0 %v360
    %747 = vmatpush1.msra.mxu0 %v359
    %748 = vmatprep.subr.mxu0 %v363
    %749 = vmatpush1.msra.mxu0 %v362
    %750 = vmatprep.subr.mxu0 %v366
    %751 = vmatpush1.msra.mxu0 %v365
    %752 = vmatprep.subr.mxu0 %v369
    %753 = vmatpush1.msra.mxu0 %v368
    %754 = vmatprep.subr.mxu0 %v372
    %755 = vmatpush1.msra.mxu0 %v371
    %756 = vmatprep.subr.mxu0 %v375
    %757 = vmatpush1.msra.mxu0 %v374
    %758 = vmatprep.subr.mxu0 %v378
    %759 = vmatpush1.msra.mxu0 %v377
    %760 = vmatprep.subr.mxu0 %v381
    %761 = vmatpush1.msra.mxu0 %v380
    %762 = vmatprep.subr.mxu0 %v384
    %763 = vmatpush1.msra.mxu0 %v383
    %764 = vmatprep.subr.mxu0 %v387
    %765 = vmatpush1.msra.mxu0 %v386
    %766 = vmatprep.subr.mxu0 0.0
    %767 = vmatpush1.msra.mxu0 0.0
    %768 = vmatprep.subr.mxu0 0.0
    %769 = vmatpush1.msra.mxu0 0.0
    %770 = vmatprep.subr.mxu0 0.0
    %771 = vmatpush1.msra.mxu0 0.0
    %772 = vmatprep.subr.mxu0 0.0
    %773 = vmatpush1.msra.mxu0 0.0
    %774 = vmatprep.subr.mxu0 0.0
    %775 = vmatpush1.msra.mxu0 0.0
    %776 = vmatprep.subr.mxu0 0.0
    %777 = vmatpush1.msra.mxu0 0.0
    %778 = vmatprep.subr.mxu0 0.0
    %779 = vmatpush1.msra.mxu0 0.0
    %780 = vmatprep.subr.mxu0 0.0
    %781 = vmatpush1.msra.mxu0 0.0
    %782 = vmatprep.subr.mxu0 0.0
    %783 = vmatpush1.msra.mxu0 0.0
    %784 = vmatprep.subr.mxu0 0.0
    %785 = vmatpush1.msra.mxu0 0.0
    %786 = vmatprep.subr.mxu0 0.0
    %787 = vmatpush1.msra.mxu0 0.0
    %788 = vmatprep.subr.mxu0 0.0
    %789 = vmatpush1.msra.mxu0 0.0
    %790 = vmatprep.subr.mxu0 0.0
    %791 = vmatpush1.msra.mxu0 0.0
    %792 = vmatprep.subr.mxu0 0.0
    %793 = vmatpush1.msra.mxu0 0.0
    %794 = vmatprep.subr.mxu0 0.0
    %795 = vmatpush1.msra.mxu0 0.0
    %796 = vmatprep.subr.mxu0 0.0
    %797 = vmatpush1.msra.mxu0 0.0
    %798 = vmatprep.mubr.f32.mxu0 0.0
    %799 = vmatmul.mubr.f32.gmra.mrb[0].mxu0 %v732
    %v800 = vpop.f32.mrb[0].mxu0
    %v801 = vadd.f32 0.0, %v800
    %v802 = vpop.f32.mrb[0].mxu0
    %v803 = vadd.f32 0.0, %v802
    %804 = vdwg.mxu0
    %805 = vmatprep.subr.mxu0 0.0
    %806 = vmatpush1.msra.mxu0 %v343
    %807 = vmatprep.subr.mxu0 0.0
    %808 = vmatpush1.msra.mxu0 %v346
    %809 = vmatprep.subr.mxu0 0.0
    %810 = vmatpush1.msra.mxu0 %v349
    %811 = vmatprep.subr.mxu0 0.0
    %812 = vmatpush1.msra.mxu0 %v352
    %813 = vmatprep.subr.mxu0 0.0
    %814 = vmatpush1.msra.mxu0 %v355
    %815 = vmatprep.subr.mxu0 0.0
    %816 = vmatpush1.msra.mxu0 %v358
    %817 = vmatprep.subr.mxu0 0.0
    %818 = vmatpush1.msra.mxu0 %v361
    %819 = vmatprep.subr.mxu0 0.0
    %820 = vmatpush1.msra.mxu0 %v364
    %821 = vmatprep.subr.mxu0 0.0
    %822 = vmatpush1.msra.mxu0 %v367
    %823 = vmatprep.subr.mxu0 0.0
    %824 = vmatpush1.msra.mxu0 %v370
    %825 = vmatprep.subr.mxu0 0.0
    %826 = vmatpush1.msra.mxu0 %v373
    %827 = vmatprep.subr.mxu0 0.0
    %828 = vmatpush1.msra.mxu0 %v376
    %829 = vmatprep.subr.mxu0 0.0
    %830 = vmatpush1.msra.mxu0 %v379
    %831 = vmatprep.subr.mxu0 0.0
    %832 = vmatpush1.msra.mxu0 %v382
    %833 = vmatprep.subr.mxu0 0.0
    %834 = vmatpush1.msra.mxu0 %v385
    %835 = vmatprep.subr.mxu0 0.0
    %836 = vmatpush1.msra.mxu0 %v388
    %837 = vmatprep.subr.mxu0 0.0
    %838 = vmatpush1.msra.mxu0 0.0
    %839 = vmatprep.subr.mxu0 0.0
    %840 = vmatpush1.msra.mxu0 0.0
    %841 = vmatprep.subr.mxu0 0.0
    %842 = vmatpush1.msra.mxu0 0.0
    %843 = vmatprep.subr.mxu0 0.0
    %844 = vmatpush1.msra.mxu0 0.0
    %845 = vmatprep.subr.mxu0 0.0
    %846 = vmatpush1.msra.mxu0 0.0
    %847 = vmatprep.subr.mxu0 0.0
    %848 = vmatpush1.msra.mxu0 0.0
    %849 = vmatprep.subr.mxu0 0.0
    %850 = vmatpush1.msra.mxu0 0.0
    %851 = vmatprep.subr.mxu0 0.0
    %852 = vmatpush1.msra.mxu0 0.0
    %853 = vmatprep.subr.mxu0 0.0
    %854 = vmatpush1.msra.mxu0 0.0
    %855 = vmatprep.subr.mxu0 0.0
    %856 = vmatpush1.msra.mxu0 0.0
    %857 = vmatprep.subr.mxu0 0.0
    %858 = vmatpush1.msra.mxu0 0.0
    %859 = vmatprep.subr.mxu0 0.0
    %860 = vmatpush1.msra.mxu0 0.0
    %861 = vmatprep.subr.mxu0 0.0
    %862 = vmatpush1.msra.mxu0 0.0
    %863 = vmatprep.subr.mxu0 0.0
    %864 = vmatpush1.msra.mxu0 0.0
    %865 = vmatprep.subr.mxu0 0.0
    %866 = vmatpush1.msra.mxu0 0.0
    %867 = vmatprep.subr.mxu0 0.0
    %868 = vmatpush1.msra.mxu0 0.0
    %869 = vmatprep.mubr.f32.mxu0 0.0
    %870 = vmatmul.mubr.f32.gmra.mrb[0].mxu0 %v732
    %v871 = vpop.f32.mrb[0].mxu0
    %v872 = vadd.f32 0.0, %v871
    %v873 = vpop.f32.mrb[0].mxu0
    %874 = vdwg.mxu0
    %v876 = vrot.slane %v801, 6
    %v878 = vadd.f32 %v292, %v876
    %v879 = vxor.u32 %v878, 2147483648
    %v880 = vmul.f32 %v879, 1.442695
    %v881 = vpow.pop %v880
    %v882 = vadd.f32 %v881, 1.0
    %v883 = vrcp.pop %v882
    %v884 = vmul.f32 1.0, %v883
    %v886 = vrot.slane %v803, 6
    %v888 = vadd.f32 %v294, %v886
    %v889 = vxor.u32 %v888, 2147483648
    %v890 = vmul.f32 %v889, 1.442695
    %v891 = vpow.pop %v890
    %v892 = vadd.f32 %v891, 1.0
    %v893 = vrcp.pop %v892
    %v894 = vmul.f32 1.0, %v893
    %v895 = vadd.f32 %v872, %v389
    %v897 = vrot.slane %v895, 6
    %v899 = vmul.f32 %v884, %v897
    %v900 = vadd.f32 %v335, %v899
    %v901 = vtanh.pop %v900
    %v902 = vsub.f32 1.0, %v894
    %v903 = vmul.f32 %v902, %v901
    %v904 = vrot.slane %v729, 7
    %v906 = vmul.f32 %v894, %v904
    %v907 = vadd.f32 %v903, %v906
    %908 = vst [vmem:[#allocation9] sm:$0x4] %v907
    %v910 = vrot.slane %v907, 2
    %912 = vmatprep.subr.mxu0 %v342
    %913 = vmatpush1.msra.mxu0 %v341
    %914 = vmatprep.subr.mxu0 %v345
    %915 = vmatpush1.msra.mxu0 %v344
    %916 = vmatprep.subr.mxu0 %v348
    %917 = vmatpush1.msra.mxu0 %v347
    %918 = vmatprep.subr.mxu0 %v351
    %919 = vmatpush1.msra.mxu0 %v350
    %920 = vmatprep.subr.mxu0 %v354
    %921 = vmatpush1.msra.mxu0 %v353
    %922 = vmatprep.subr.mxu0 %v357
    %923 = vmatpush1.msra.mxu0 %v356
    %924 = vmatprep.subr.mxu0 %v360
    %925 = vmatpush1.msra.mxu0 %v359
    %926 = vmatprep.subr.mxu0 %v363
    %927 = vmatpush1.msra.mxu0 %v362
    %928 = vmatprep.subr.mxu0 %v366
    %929 = vmatpush1.msra.mxu0 %v365
    %930 = vmatprep.subr.mxu0 %v369
    %931 = vmatpush1.msra.mxu0 %v368
    %932 = vmatprep.subr.mxu0 %v372
    %933 = vmatpush1.msra.mxu0 %v371
    %934 = vmatprep.subr.mxu0 %v375
    %935 = vmatpush1.msra.mxu0 %v374
    %936 = vmatprep.subr.mxu0 %v378
    %937 = vmatpush1.msra.mxu0 %v377
    %938 = vmatprep.subr.mxu0 %v381
    %939 = vmatpush1.msra.mxu0 %v380
    %940 = vmatprep.subr.mxu0 %v384
    %941 = vmatpush1.msra.mxu0 %v383
    %942 = vmatprep.subr.mxu0 %v387
    %943 = vmatpush1.msra.mxu0 %v386
    %944 = vmatprep.subr.mxu0 0.0
    %945 = vmatpush1.msra.mxu0 0.0
    %946 = vmatprep.subr.mxu0 0.0
    %947 = vmatpush1.msra.mxu0 0.0
    %948 = vmatprep.subr.mxu0 0.0
    %949 = vmatpush1.msra.mxu0 0.0
    %950 = vmatprep.subr.mxu0 0.0
    %951 = vmatpush1.msra.mxu0 0.0
    %952 = vmatprep.subr.mxu0 0.0
    %953 = vmatpush1.msra.mxu0 0.0
    %954 = vmatprep.subr.mxu0 0.0
    %955 = vmatpush1.msra.mxu0 0.0
    %956 = vmatprep.subr.mxu0 0.0
    %957 = vmatpush1.msra.mxu0 0.0
    %958 = vmatprep.subr.mxu0 0.0
    %959 = vmatpush1.msra.mxu0 0.0
    %960 = vmatprep.subr.mxu0 0.0
    %961 = vmatpush1.msra.mxu0 0.0
    %962 = vmatprep.subr.mxu0 0.0
    %963 = vmatpush1.msra.mxu0 0.0
    %964 = vmatprep.subr.mxu0 0.0
    %965 = vmatpush1.msra.mxu0 0.0
    %966 = vmatprep.subr.mxu0 0.0
    %967 = vmatpush1.msra.mxu0 0.0
    %968 = vmatprep.subr.mxu0 0.0
    %969 = vmatpush1.msra.mxu0 0.0
    %970 = vmatprep.subr.mxu0 0.0
    %971 = vmatpush1.msra.mxu0 0.0
    %972 = vmatprep.subr.mxu0 0.0
    %973 = vmatpush1.msra.mxu0 0.0
    %974 = vmatprep.subr.mxu0 0.0
    %975 = vmatpush1.msra.mxu0 0.0
    %976 = vmatprep.mubr.f32.mxu0 0.0
    %977 = vmatmul.mubr.f32.gmra.mrb[0].mxu0 %v910
    %v978 = vpop.f32.mrb[0].mxu0
    %v979 = vadd.f32 0.0, %v978
    %v980 = vpop.f32.mrb[0].mxu0
    %v981 = vadd.f32 0.0, %v980
    %982 = vdwg.mxu0
    %983 = vmatprep.subr.mxu0 0.0
    %984 = vmatpush1.msra.mxu0 %v343
    %985 = vmatprep.subr.mxu0 0.0
    %986 = vmatpush1.msra.mxu0 %v346
    %987 = vmatprep.subr.mxu0 0.0
    %988 = vmatpush1.msra.mxu0 %v349
    %989 = vmatprep.subr.mxu0 0.0
    %990 = vmatpush1.msra.mxu0 %v352
    %991 = vmatprep.subr.mxu0 0.0
    %992 = vmatpush1.msra.mxu0 %v355
    %993 = vmatprep.subr.mxu0 0.0
    %994 = vmatpush1.msra.mxu0 %v358
    %995 = vmatprep.subr.mxu0 0.0
    %996 = vmatpush1.msra.mxu0 %v361
    %997 = vmatprep.subr.mxu0 0.0
    %998 = vmatpush1.msra.mxu0 %v364
    %999 = vmatprep.subr.mxu0 0.0
    %1000 = vmatpush1.msra.mxu0 %v367
    %1001 = vmatprep.subr.mxu0 0.0
    %1002 = vmatpush1.msra.mxu0 %v370
    %1003 = vmatprep.subr.mxu0 0.0
    %1004 = vmatpush1.msra.mxu0 %v373
    %1005 = vmatprep.subr.mxu0 0.0
    %1006 = vmatpush1.msra.mxu0 %v376
    %1007 = vmatprep.subr.mxu0 0.0
    %1008 = vmatpush1.msra.mxu0 %v379
    %1009 = vmatprep.subr.mxu0 0.0
    %1010 = vmatpush1.msra.mxu0 %v382
    %1011 = vmatprep.subr.mxu0 0.0
    %1012 = vmatpush1.msra.mxu0 %v385
    %1013 = vmatprep.subr.mxu0 0.0
    %1014 = vmatpush1.msra.mxu0 %v388
    %1015 = vmatprep.subr.mxu0 0.0
    %1016 = vmatpush1.msra.mxu0 0.0
    %1017 = vmatprep.subr.mxu0 0.0
    %1018 = vmatpush1.msra.mxu0 0.0
    %1019 = vmatprep.subr.mxu0 0.0
    %1020 = vmatpush1.msra.mxu0 0.0
    %1021 = vmatprep.subr.mxu0 0.0
    %1022 = vmatpush1.msra.mxu0 0.0
    %1023 = vmatprep.subr.mxu0 0.0
    %1024 = vmatpush1.msra.mxu0 0.0
    %1025 = vmatprep.subr.mxu0 0.0
    %1026 = vmatpush1.msra.mxu0 0.0
    %1027 = vmatprep.subr.mxu0 0.0
    %1028 = vmatpush1.msra.mxu0 0.0
    %1029 = vmatprep.subr.mxu0 0.0
    %1030 = vmatpush1.msra.mxu0 0.0
    %1031 = vmatprep.subr.mxu0 0.0
    %1032 = vmatpush1.msra.mxu0 0.0
    %1033 = vmatprep.subr.mxu0 0.0
    %1034 = vmatpush1.msra.mxu0 0.0
    %1035 = vmatprep.subr.mxu0 0.0
    %1036 = vmatpush1.msra.mxu0 0.0
    %1037 = vmatprep.subr.mxu0 0.0
    %1038 = vmatpush1.msra.mxu0 0.0
    %1039 = vmatprep.subr.mxu0 0.0
    %1040 = vmatpush1.msra.mxu0 0.0
    %1041 = vmatprep.subr.mxu0 0.0
    %1042 = vmatpush1.msra.mxu0 0.0
    %1043 = vmatprep.subr.mxu0 0.0
    %1044 = vmatpush1.msra.mxu0 0.0
    %1045 = vmatprep.subr.mxu0 0.0
    %1046 = vmatpush1.msra.mxu0 0.0
    %1047 = vmatprep.mubr.f32.mxu0 0.0
    %1048 = vmatmul.mubr.f32.gmra.mrb[0].mxu0 %v910
    %v1049 = vpop.f32.mrb[0].mxu0
    %v1050 = vadd.f32 0.0, %v1049
    %v1051 = vpop.f32.mrb[0].mxu0
    %1052 = vdwg.mxu0
    %v1054 = vrot.slane %v979, 5
    %v1056 = vadd.f32 %v292, %v1054
    %v1057 = vxor.u32 %v1056, 2147483648
    %v1058 = vmul.f32 %v1057, 1.442695
    %v1059 = vpow.pop %v1058
    %v1060 = vadd.f32 %v1059, 1.0
    %v1061 = vrcp.pop %v1060
    %v1062 = vmul.f32 1.0, %v1061
    %v1064 = vrot.slane %v981, 5
    %v1066 = vadd.f32 %v294, %v1064
    %v1067 = vxor.u32 %v1066, 2147483648
    %v1068 = vmul.f32 %v1067, 1.442695
    %v1069 = vpow.pop %v1068
    %v1070 = vadd.f32 %v1069, 1.0
    %v1071 = vrcp.pop %v1070
    %v1072 = vmul.f32 1.0, %v1071
    %v1073 = vadd.f32 %v1050, %v389
    %v1075 = vrot.slane %v1073, 5
    %v1077 = vmul.f32 %v1062, %v1075
    %v1078 = vadd.f32 %v335, %v1077
    %v1079 = vtanh.pop %v1078
    %v1080 = vsub.f32 1.0, %v1072
    %v1081 = vmul.f32 %v1080, %v1079
    %v1082 = vrot.slane %v907, 7
    %v1084 = vmul.f32 %v1072, %v1082
    %v1085 = vadd.f32 %v1081, %v1084
    %1086 = vst [vmem:[#allocation9] sm:$0x8] %v1085
    %v1088 = vrot.slane %v1085, 3
    %1090 = vmatprep.subr.mxu0 %v342
    %1091 = vmatpush1.msra.mxu0 %v341
    %1092 = vmatprep.subr.mxu0 %v345
    %1093 = vmatpush1.msra.mxu0 %v344
    %1094 = vmatprep.subr.mxu0 %v348
    %1095 = vmatpush1.msra.mxu0 %v347
    %1096 = vmatprep.subr.mxu0 %v351
    %1097 = vmatpush1.msra.mxu0 %v350
    %1098 = vmatprep.subr.mxu0 %v354
    %1099 = vmatpush1.msra.mxu0 %v353
    %1100 = vmatprep.subr.mxu0 %v357
    %1101 = vmatpush1.msra.mxu0 %v356
    %1102 = vmatprep.subr.mxu0 %v360
    %1103 = vmatpush1.msra.mxu0 %v359
    %1104 = vmatprep.subr.mxu0 %v363
    %1105 = vmatpush1.msra.mxu0 %v362
    %1106 = vmatprep.subr.mxu0 %v366
    %1107 = vmatpush1.msra.mxu0 %v365
    %1108 = vmatprep.subr.mxu0 %v369
    %1109 = vmatpush1.msra.mxu0 %v368
    %1110 = vmatprep.subr.mxu0 %v372
    %1111 = vmatpush1.msra.mxu0 %v371
    %1112 = vmatprep.subr.mxu0 %v375
    %1113 = vmatpush1.msra.mxu0 %v374
    %1114 = vmatprep.subr.mxu0 %v378
    %1115 = vmatpush1.msra.mxu0 %v377
    %1116 = vmatprep.subr.mxu0 %v381
    %1117 = vmatpush1.msra.mxu0 %v380
    %1118 = vmatprep.subr.mxu0 %v384
    %1119 = vmatpush1.msra.mxu0 %v383
    %1120 = vmatprep.subr.mxu0 %v387
    %1121 = vmatpush1.msra.mxu0 %v386
    %1122 = vmatprep.subr.mxu0 0.0
    %1123 = vmatpush1.msra.mxu0 0.0
    %1124 = vmatprep.subr.mxu0 0.0
    %1125 = vmatpush1.msra.mxu0 0.0
    %1126 = vmatprep.subr.mxu0 0.0
    %1127 = vmatpush1.msra.mxu0 0.0
    %1128 = vmatprep.subr.mxu0 0.0
    %1129 = vmatpush1.msra.mxu0 0.0
    %1130 = vmatprep.subr.mxu0 0.0
    %1131 = vmatpush1.msra.mxu0 0.0
    %1132 = vmatprep.subr.mxu0 0.0
    %1133 = vmatpush1.msra.mxu0 0.0
    %1134 = vmatprep.subr.mxu0 0.0
    %1135 = vmatpush1.msra.mxu0 0.0
    %1136 = vmatprep.subr.mxu0 0.0
    %1137 = vmatpush1.msra.mxu0 0.0
    %1138 = vmatprep.subr.mxu0 0.0
    %1139 = vmatpush1.msra.mxu0 0.0
    %1140 = vmatprep.subr.mxu0 0.0
    %1141 = vmatpush1.msra.mxu0 0.0
    %1142 = vmatprep.subr.mxu0 0.0
    %1143 = vmatpush1.msra.mxu0 0.0
    %1144 = vmatprep.subr.mxu0 0.0
    %1145 = vmatpush1.msra.mxu0 0.0
    %1146 = vmatprep.subr.mxu0 0.0
    %1147 = vmatpush1.msra.mxu0 0.0
    %1148 = vmatprep.subr.mxu0 0.0
    %1149 = vmatpush1.msra.mxu0 0.0
    %1150 = vmatprep.subr.mxu0 0.0
    %1151 = vmatpush1.msra.mxu0 0.0
    %1152 = vmatprep.subr.mxu0 0.0
    %1153 = vmatpush1.msra.mxu0 0.0
    %1154 = vmatprep.mubr.f32.mxu0 0.0
    %1155 = vmatmul.mubr.f32.gmra.mrb[0].mxu0 %v1088
    %v1156 = vpop.f32.mrb[0].mxu0
    %v1157 = vadd.f32 0.0, %v1156
    %v1158 = vpop.f32.mrb[0].mxu0
    %v1159 = vadd.f32 0.0, %v1158
    %1160 = vdwg.mxu0
    %1161 = vmatprep.subr.mxu0 0.0
    %1162 = vmatpush1.msra.mxu0 %v343
    %1163 = vmatprep.subr.mxu0 0.0
    %1164 = vmatpush1.msra.mxu0 %v346
    %1165 = vmatprep.subr.mxu0 0.0
    %1166 = vmatpush1.msra.mxu0 %v349
    %1167 = vmatprep.subr.mxu0 0.0
    %1168 = vmatpush1.msra.mxu0 %v352
    %1169 = vmatprep.subr.mxu0 0.0
    %1170 = vmatpush1.msra.mxu0 %v355
    %1171 = vmatprep.subr.mxu0 0.0
    %1172 = vmatpush1.msra.mxu0 %v358
    %1173 = vmatprep.subr.mxu0 0.0
    %1174 = vmatpush1.msra.mxu0 %v361
    %1175 = vmatprep.subr.mxu0 0.0
    %1176 = vmatpush1.msra.mxu0 %v364
    %1177 = vmatprep.subr.mxu0 0.0
    %1178 = vmatpush1.msra.mxu0 %v367
    %1179 = vmatprep.subr.mxu0 0.0
    %1180 = vmatpush1.msra.mxu0 %v370
    %1181 = vmatprep.subr.mxu0 0.0
    %1182 = vmatpush1.msra.mxu0 %v373
    %1183 = vmatprep.subr.mxu0 0.0
    %1184 = vmatpush1.msra.mxu0 %v376
    %1185 = vmatprep.subr.mxu0 0.0
    %1186 = vmatpush1.msra.mxu0 %v379
    %1187 = vmatprep.subr.mxu0 0.0
    %1188 = vmatpush1.msra.mxu0 %v382
    %1189 = vmatprep.subr.mxu0 0.0
    %1190 = vmatpush1.msra.mxu0 %v385
    %1191 = vmatprep.subr.mxu0 0.0
    %1192 = vmatpush1.msra.mxu0 %v388
    %1193 = vmatprep.subr.mxu0 0.0
    %1194 = vmatpush1.msra.mxu0 0.0
    %1195 = vmatprep.subr.mxu0 0.0
    %1196 = vmatpush1.msra.mxu0 0.0
    %1197 = vmatprep.subr.mxu0 0.0
    %1198 = vmatpush1.msra.mxu0 0.0
    %1199 = vmatprep.subr.mxu0 0.0
    %1200 = vmatpush1.msra.mxu0 0.0
    %1201 = vmatprep.subr.mxu0 0.0
    %1202 = vmatpush1.msra.mxu0 0.0
    %1203 = vmatprep.subr.mxu0 0.0
    %1204 = vmatpush1.msra.mxu0 0.0
    %1205 = vmatprep.subr.mxu0 0.0
    %1206 = vmatpush1.msra.mxu0 0.0
    %1207 = vmatprep.subr.mxu0 0.0
    %1208 = vmatpush1.msra.mxu0 0.0
    %1209 = vmatprep.subr.mxu0 0.0
    %1210 = vmatpush1.msra.mxu0 0.0
    %1211 = vmatprep.subr.mxu0 0.0
    %1212 = vmatpush1.msra.mxu0 0.0
    %1213 = vmatprep.subr.mxu0 0.0
    %1214 = vmatpush1.msra.mxu0 0.0
    %1215 = vmatprep.subr.mxu0 0.0
    %1216 = vmatpush1.msra.mxu0 0.0
    %1217 = vmatprep.subr.mxu0 0.0
    %1218 = vmatpush1.msra.mxu0 0.0
    %1219 = vmatprep.subr.mxu0 0.0
    %1220 = vmatpush1.msra.mxu0 0.0
    %1221 = vmatprep.subr.mxu0 0.0
    %1222 = vmatpush1.msra.mxu0 0.0
    %1223 = vmatprep.subr.mxu0 0.0
    %1224 = vmatpush1.msra.mxu0 0.0
    %1225 = vmatprep.mubr.f32.mxu0 0.0
    %1226 = vmatmul.mubr.f32.gmra.mrb[0].mxu0 %v1088
    %v1227 = vpop.f32.mrb[0].mxu0
    %v1228 = vadd.f32 0.0, %v1227
    %v1229 = vpop.f32.mrb[0].mxu0
    %1230 = vdwg.mxu0
    %v1232 = vrot.slane %v1157, 4
    %v1234 = vadd.f32 %v292, %v1232
    %v1235 = vxor.u32 %v1234, 2147483648
    %v1236 = vmul.f32 %v1235, 1.442695
    %v1237 = vpow.pop %v1236
    %v1238 = vadd.f32 %v1237, 1.0
    %v1239 = vrcp.pop %v1238
    %v1240 = vmul.f32 1.0, %v1239
    %v1242 = vrot.slane %v1159, 4
    %v1244 = vadd.f32 %v294, %v1242
    %v1245 = vxor.u32 %v1244, 2147483648
    %v1246 = vmul.f32 %v1245, 1.442695
    %v1247 = vpow.pop %v1246
    %v1248 = vadd.f32 %v1247, 1.0
    %v1249 = vrcp.pop %v1248
    %v1250 = vmul.f32 1.0, %v1249
    %v1251 = vadd.f32 %v1228, %v389
    %v1253 = vrot.slane %v1251, 4
    %v1255 = vmul.f32 %v1240, %v1253
    %v1256 = vadd.f32 %v335, %v1255
    %v1257 = vtanh.pop %v1256
    %v1258 = vsub.f32 1.0, %v1250
    %v1259 = vmul.f32 %v1258, %v1257
    %v1260 = vrot.slane %v1085, 7
    %v1262 = vmul.f32 %v1250, %v1260
    %v1263 = vadd.f32 %v1259, %v1262
    %1264 = vst [vmem:[#allocation9] sm:$0x10] %v1263
    %v1266 = vrot.slane %v1263, 4
    %1268 = vmatprep.subr.mxu0 %v342
    %1269 = vmatpush1.msra.mxu0 %v341
    %1270 = vmatprep.subr.mxu0 %v345
    %1271 = vmatpush1.msra.mxu0 %v344
    %1272 = vmatprep.subr.mxu0 %v348
    %1273 = vmatpush1.msra.mxu0 %v347
    %1274 = vmatprep.subr.mxu0 %v351
    %1275 = vmatpush1.msra.mxu0 %v350
    %1276 = vmatprep.subr.mxu0 %v354
    %1277 = vmatpush1.msra.mxu0 %v353
    %1278 = vmatprep.subr.mxu0 %v357
    %1279 = vmatpush1.msra.mxu0 %v356
    %1280 = vmatprep.subr.mxu0 %v360
    %1281 = vmatpush1.msra.mxu0 %v359
    %1282 = vmatprep.subr.mxu0 %v363
    %1283 = vmatpush1.msra.mxu0 %v362
    %1284 = vmatprep.subr.mxu0 %v366
    %1285 = vmatpush1.msra.mxu0 %v365
    %1286 = vmatprep.subr.mxu0 %v369
    %1287 = vmatpush1.msra.mxu0 %v368
    %1288 = vmatprep.subr.mxu0 %v372
    %1289 = vmatpush1.msra.mxu0 %v371
    %1290 = vmatprep.subr.mxu0 %v375
    %1291 = vmatpush1.msra.mxu0 %v374
    %1292 = vmatprep.subr.mxu0 %v378
    %1293 = vmatpush1.msra.mxu0 %v377
    %1294 = vmatprep.subr.mxu0 %v381
    %1295 = vmatpush1.msra.mxu0 %v380
    %1296 = vmatprep.subr.mxu0 %v384
    %1297 = vmatpush1.msra.mxu0 %v383
    %1298 = vmatprep.subr.mxu0 %v387
    %1299 = vmatpush1.msra.mxu0 %v386
    %1300 = vmatprep.subr.mxu0 0.0
    %1301 = vmatpush1.msra.mxu0 0.0
    %1302 = vmatprep.subr.mxu0 0.0
    %1303 = vmatpush1.msra.mxu0 0.0
    %1304 = vmatprep.subr.mxu0 0.0
    %1305 = vmatpush1.msra.mxu0 0.0
    %1306 = vmatprep.subr.mxu0 0.0
    %1307 = vmatpush1.msra.mxu0 0.0
    %1308 = vmatprep.subr.mxu0 0.0
    %1309 = vmatpush1.msra.mxu0 0.0
    %1310 = vmatprep.subr.mxu0 0.0
    %1311 = vmatpush1.msra.mxu0 0.0
    %1312 = vmatprep.subr.mxu0 0.0
    %1313 = vmatpush1.msra.mxu0 0.0
    %1314 = vmatprep.subr.mxu0 0.0
    %1315 = vmatpush1.msra.mxu0 0.0
    %1316 = vmatprep.subr.mxu0 0.0
    %1317 = vmatpush1.msra.mxu0 0.0
    %1318 = vmatprep.subr.mxu0 0.0
    %1319 = vmatpush1.msra.mxu0 0.0
    %1320 = vmatprep.subr.mxu0 0.0
    %1321 = vmatpush1.msra.mxu0 0.0
    %1322 = vmatprep.subr.mxu0 0.0
    %1323 = vmatpush1.msra.mxu0 0.0
    %1324 = vmatprep.subr.mxu0 0.0
    %1325 = vmatpush1.msra.mxu0 0.0
    %1326 = vmatprep.subr.mxu0 0.0
    %1327 = vmatpush1.msra.mxu0 0.0
    %1328 = vmatprep.subr.mxu0 0.0
    %1329 = vmatpush1.msra.mxu0 0.0
    %1330 = vmatprep.subr.mxu0 0.0
    %1331 = vmatpush1.msra.mxu0 0.0
    %1332 = vmatprep.mubr.f32.mxu0 0.0
    %1333 = vmatmul.mubr.f32.gmra.mrb[0].mxu0 %v1266
    %v1334 = vpop.f32.mrb[0].mxu0
    %v1335 = vadd.f32 0.0, %v1334
    %v1336 = vpop.f32.mrb[0].mxu0
    %v1337 = vadd.f32 0.0, %v1336
    %1338 = vdwg.mxu0
    %1339 = vmatprep.subr.mxu0 0.0
    %1340 = vmatpush1.msra.mxu0 %v343
    %1341 = vmatprep.subr.mxu0 0.0
    %1342 = vmatpush1.msra.mxu0 %v346
    %1343 = vmatprep.subr.mxu0 0.0
    %1344 = vmatpush1.msra.mxu0 %v349
    %1345 = vmatprep.subr.mxu0 0.0
    %1346 = vmatpush1.msra.mxu0 %v352
    %1347 = vmatprep.subr.mxu0 0.0
    %1348 = vmatpush1.msra.mxu0 %v355
    %1349 = vmatprep.subr.mxu0 0.0
    %1350 = vmatpush1.msra.mxu0 %v358
    %1351 = vmatprep.subr.mxu0 0.0
    %1352 = vmatpush1.msra.mxu0 %v361
    %1353 = vmatprep.subr.mxu0 0.0
    %1354 = vmatpush1.msra.mxu0 %v364
    %1355 = vmatprep.subr.mxu0 0.0
    %1356 = vmatpush1.msra.mxu0 %v367
    %1357 = vmatprep.subr.mxu0 0.0
    %1358 = vmatpush1.msra.mxu0 %v370
    %1359 = vmatprep.subr.mxu0 0.0
    %1360 = vmatpush1.msra.mxu0 %v373
    %1361 = vmatprep.subr.mxu0 0.0
    %1362 = vmatpush1.msra.mxu0 %v376
    %1363 = vmatprep.subr.mxu0 0.0
    %1364 = vmatpush1.msra.mxu0 %v379
    %1365 = vmatprep.subr.mxu0 0.0
    %1366 = vmatpush1.msra.mxu0 %v382
    %1367 = vmatprep.subr.mxu0 0.0
    %1368 = vmatpush1.msra.mxu0 %v385
    %1369 = vmatprep.subr.mxu0 0.0
    %1370 = vmatpush1.msra.mxu0 %v388
    %1371 = vmatprep.subr.mxu0 0.0
    %1372 = vmatpush1.msra.mxu0 0.0
    %1373 = vmatprep.subr.mxu0 0.0
    %1374 = vmatpush1.msra.mxu0 0.0
    %1375 = vmatprep.subr.mxu0 0.0
    %1376 = vmatpush1.msra.mxu0 0.0
    %1377 = vmatprep.subr.mxu0 0.0
    %1378 = vmatpush1.msra.mxu0 0.0
    %1379 = vmatprep.subr.mxu0 0.0
    %1380 = vmatpush1.msra.mxu0 0.0
    %1381 = vmatprep.subr.mxu0 0.0
    %1382 = vmatpush1.msra.mxu0 0.0
    %1383 = vmatprep.subr.mxu0 0.0
    %1384 = vmatpush1.msra.mxu0 0.0
    %1385 = vmatprep.subr.mxu0 0.0
    %1386 = vmatpush1.msra.mxu0 0.0
    %1387 = vmatprep.subr.mxu0 0.0
    %1388 = vmatpush1.msra.mxu0 0.0
    %1389 = vmatprep.subr.mxu0 0.0
    %1390 = vmatpush1.msra.mxu0 0.0
    %1391 = vmatprep.subr.mxu0 0.0
    %1392 = vmatpush1.msra.mxu0 0.0
    %1393 = vmatprep.subr.mxu0 0.0
    %1394 = vmatpush1.msra.mxu0 0.0
    %1395 = vmatprep.subr.mxu0 0.0
    %1396 = vmatpush1.msra.mxu0 0.0
    %1397 = vmatprep.subr.mxu0 0.0
    %1398 = vmatpush1.msra.mxu0 0.0
    %1399 = vmatprep.subr.mxu0 0.0
    %1400 = vmatpush1.msra.mxu0 0.0
    %1401 = vmatprep.subr.mxu0 0.0
    %1402 = vmatpush1.msra.mxu0 0.0
    %1403 = vmatprep.mubr.f32.mxu0 0.0
    %1404 = vmatmul.mubr.f32.gmra.mrb[0].mxu0 %v1266
    %v1405 = vpop.f32.mrb[0].mxu0
    %v1406 = vadd.f32 0.0, %v1405
    %v1407 = vpop.f32.mrb[0].mxu0
    %1408 = vdwg.mxu0
    %v1410 = vrot.slane %v1335, 3
    %v1412 = vadd.f32 %v292, %v1410
    %v1413 = vxor.u32 %v1412, 2147483648
    %v1414 = vmul.f32 %v1413, 1.442695
    %v1415 = vpow.pop %v1414
    %v1416 = vadd.f32 %v1415, 1.0
    %v1417 = vrcp.pop %v1416
    %v1418 = vmul.f32 1.0, %v1417
    %v1420 = vrot.slane %v1337, 3
    %v1422 = vadd.f32 %v294, %v1420
    %v1423 = vxor.u32 %v1422, 2147483648
    %v1424 = vmul.f32 %v1423, 1.442695
    %v1425 = vpow.pop %v1424
    %v1426 = vadd.f32 %v1425, 1.0
    %v1427 = vrcp.pop %v1426
    %v1428 = vmul.f32 1.0, %v1427
    %v1429 = vadd.f32 %v1406, %v389
    %v1431 = vrot.slane %v1429, 3
    %v1433 = vmul.f32 %v1418, %v1431
    %v1434 = vadd.f32 %v335, %v1433
    %v1435 = vtanh.pop %v1434
    %v1436 = vsub.f32 1.0, %v1428
    %v1437 = vmul.f32 %v1436, %v1435
    %v1438 = vrot.slane %v1263, 7
    %v1440 = vmul.f32 %v1428, %v1438
    %v1441 = vadd.f32 %v1437, %v1440
    %1442 = vst [vmem:[#allocation9] sm:$0x20] %v1441
    %v1444 = vrot.slane %v1441, 5
    %1446 = vmatprep.subr.mxu0 %v342
    %1447 = vmatpush1.msra.mxu0 %v341
    %1448 = vmatprep.subr.mxu0 %v345
    %1449 = vmatpush1.msra.mxu0 %v344
    %1450 = vmatprep.subr.mxu0 %v348
    %1451 = vmatpush1.msra.mxu0 %v347
    %1452 = vmatprep.subr.mxu0 %v351
    %1453 = vmatpush1.msra.mxu0 %v350
    %1454 = vmatprep.subr.mxu0 %v354
    %1455 = vmatpush1.msra.mxu0 %v353
    %1456 = vmatprep.subr.mxu0 %v357
    %1457 = vmatpush1.msra.mxu0 %v356
    %1458 = vmatprep.subr.mxu0 %v360
    %1459 = vmatpush1.msra.mxu0 %v359
    %1460 = vmatprep.subr.mxu0 %v363
    %1461 = vmatpush1.msra.mxu0 %v362
    %1462 = vmatprep.subr.mxu0 %v366
    %1463 = vmatpush1.msra.mxu0 %v365
    %1464 = vmatprep.subr.mxu0 %v369
    %1465 = vmatpush1.msra.mxu0 %v368
    %1466 = vmatprep.subr.mxu0 %v372
    %1467 = vmatpush1.msra.mxu0 %v371
    %1468 = vmatprep.subr.mxu0 %v375
    %1469 = vmatpush1.msra.mxu0 %v374
    %1470 = vmatprep.subr.mxu0 %v378
    %1471 = vmatpush1.msra.mxu0 %v377
    %1472 = vmatprep.subr.mxu0 %v381
    %1473 = vmatpush1.msra.mxu0 %v380
    %1474 = vmatprep.subr.mxu0 %v384
    %1475 = vmatpush1.msra.mxu0 %v383
    %1476 = vmatprep.subr.mxu0 %v387
    %1477 = vmatpush1.msra.mxu0 %v386
    %1478 = vmatprep.subr.mxu0 0.0
    %1479 = vmatpush1.msra.mxu0 0.0
    %1480 = vmatprep.subr.mxu0 0.0
    %1481 = vmatpush1.msra.mxu0 0.0
    %1482 = vmatprep.subr.mxu0 0.0
    %1483 = vmatpush1.msra.mxu0 0.0
    %1484 = vmatprep.subr.mxu0 0.0
    %1485 = vmatpush1.msra.mxu0 0.0
    %1486 = vmatprep.subr.mxu0 0.0
    %1487 = vmatpush1.msra.mxu0 0.0
    %1488 = vmatprep.subr.mxu0 0.0
    %1489 = vmatpush1.msra.mxu0 0.0
    %1490 = vmatprep.subr.mxu0 0.0
    %1491 = vmatpush1.msra.mxu0 0.0
    %1492 = vmatprep.subr.mxu0 0.0
    %1493 = vmatpush1.msra.mxu0 0.0
    %1494 = vmatprep.subr.mxu0 0.0
    %1495 = vmatpush1.msra.mxu0 0.0
    %1496 = vmatprep.subr.mxu0 0.0
    %1497 = vmatpush1.msra.mxu0 0.0
    %1498 = vmatprep.subr.mxu0 0.0
    %1499 = vmatpush1.msra.mxu0 0.0
    %1500 = vmatprep.subr.mxu0 0.0
    %1501 = vmatpush1.msra.mxu0 0.0
    %1502 = vmatprep.subr.mxu0 0.0
    %1503 = vmatpush1.msra.mxu0 0.0
    %1504 = vmatprep.subr.mxu0 0.0
    %1505 = vmatpush1.msra.mxu0 0.0
    %1506 = vmatprep.subr.mxu0 0.0
    %1507 = vmatpush1.msra.mxu0 0.0
    %1508 = vmatprep.subr.mxu0 0.0
    %1509 = vmatpush1.msra.mxu0 0.0
    %1510 = vmatprep.mubr.f32.mxu0 0.0
    %1511 = vmatmul.mubr.f32.gmra.mrb[0].mxu0 %v1444
    %v1512 = vpop.f32.mrb[0].mxu0
    %v1513 = vadd.f32 0.0, %v1512
    %v1514 = vpop.f32.mrb[0].mxu0
    %v1515 = vadd.f32 0.0, %v1514
    %1516 = vdwg.mxu0
    %1517 = vmatprep.subr.mxu0 0.0
    %1518 = vmatpush1.msra.mxu0 %v343
    %1519 = vmatprep.subr.mxu0 0.0
    %1520 = vmatpush1.msra.mxu0 %v346
    %1521 = vmatprep.subr.mxu0 0.0
    %1522 = vmatpush1.msra.mxu0 %v349
    %1523 = vmatprep.subr.mxu0 0.0
    %1524 = vmatpush1.msra.mxu0 %v352
    %1525 = vmatprep.subr.mxu0 0.0
    %1526 = vmatpush1.msra.mxu0 %v355
    %1527 = vmatprep.subr.mxu0 0.0
    %1528 = vmatpush1.msra.mxu0 %v358
    %1529 = vmatprep.subr.mxu0 0.0
    %1530 = vmatpush1.msra.mxu0 %v361
    %1531 = vmatprep.subr.mxu0 0.0
    %1532 = vmatpush1.msra.mxu0 %v364
    %1533 = vmatprep.subr.mxu0 0.0
    %1534 = vmatpush1.msra.mxu0 %v367
    %1535 = vmatprep.subr.mxu0 0.0
    %1536 = vmatpush1.msra.mxu0 %v370
    %1537 = vmatprep.subr.mxu0 0.0
    %1538 = vmatpush1.msra.mxu0 %v373
    %1539 = vmatprep.subr.mxu0 0.0
    %1540 = vmatpush1.msra.mxu0 %v376
    %1541 = vmatprep.subr.mxu0 0.0
    %1542 = vmatpush1.msra.mxu0 %v379
    %1543 = vmatprep.subr.mxu0 0.0
    %1544 = vmatpush1.msra.mxu0 %v382
    %1545 = vmatprep.subr.mxu0 0.0
    %1546 = vmatpush1.msra.mxu0 %v385
    %1547 = vmatprep.subr.mxu0 0.0
    %1548 = vmatpush1.msra.mxu0 %v388
    %1549 = vmatprep.subr.mxu0 0.0
    %1550 = vmatpush1.msra.mxu0 0.0
    %1551 = vmatprep.subr.mxu0 0.0
    %1552 = vmatpush1.msra.mxu0 0.0
    %1553 = vmatprep.subr.mxu0 0.0
    %1554 = vmatpush1.msra.mxu0 0.0
    %1555 = vmatprep.subr.mxu0 0.0
    %1556 = vmatpush1.msra.mxu0 0.0
    %1557 = vmatprep.subr.mxu0 0.0
    %1558 = vmatpush1.msra.mxu0 0.0
    %1559 = vmatprep.subr.mxu0 0.0
    %1560 = vmatpush1.msra.mxu0 0.0
    %1561 = vmatprep.subr.mxu0 0.0
    %1562 = vmatpush1.msra.mxu0 0.0
    %1563 = vmatprep.subr.mxu0 0.0
    %1564 = vmatpush1.msra.mxu0 0.0
    %1565 = vmatprep.subr.mxu0 0.0
    %1566 = vmatpush1.msra.mxu0 0.0
    %1567 = vmatprep.subr.mxu0 0.0
    %1568 = vmatpush1.msra.mxu0 0.0
    %1569 = vmatprep.subr.mxu0 0.0
    %1570 = vmatpush1.msra.mxu0 0.0
    %1571 = vmatprep.subr.mxu0 0.0
    %1572 = vmatpush1.msra.mxu0 0.0
    %1573 = vmatprep.subr.mxu0 0.0
    %1574 = vmatpush1.msra.mxu0 0.0
    %1575 = vmatprep.subr.mxu0 0.0
    %1576 = vmatpush1.msra.mxu0 0.0
    %1577 = vmatprep.subr.mxu0 0.0
    %1578 = vmatpush1.msra.mxu0 0.0
    %1579 = vmatprep.subr.mxu0 0.0
    %1580 = vmatpush1.msra.mxu0 0.0
    %1581 = vmatprep.mubr.f32.mxu0 0.0
    %1582 = vmatmul.mubr.f32.gmra.mrb[0].mxu0 %v1444
    %v1583 = vpop.f32.mrb[0].mxu0
    %v1584 = vadd.f32 0.0, %v1583
    %v1585 = vpop.f32.mrb[0].mxu0
    %1586 = vdwg.mxu0
    %v1588 = vrot.slane %v1513, 2
    %v1590 = vadd.f32 %v292, %v1588
    %v1591 = vxor.u32 %v1590, 2147483648
    %v1592 = vmul.f32 %v1591, 1.442695
    %v1593 = vpow.pop %v1592
    %v1594 = vadd.f32 %v1593, 1.0
    %v1595 = vrcp.pop %v1594
    %v1596 = vmul.f32 1.0, %v1595
    %v1598 = vrot.slane %v1515, 2
    %v1600 = vadd.f32 %v294, %v1598
    %v1601 = vxor.u32 %v1600, 2147483648
    %v1602 = vmul.f32 %v1601, 1.442695
    %v1603 = vpow.pop %v1602
    %v1604 = vadd.f32 %v1603, 1.0
    %v1605 = vrcp.pop %v1604
    %v1606 = vmul.f32 1.0, %v1605
    %v1607 = vadd.f32 %v1584, %v389
    %v1609 = vrot.slane %v1607, 2
    %v1611 = vmul.f32 %v1596, %v1609
    %v1612 = vadd.f32 %v335, %v1611
    %v1613 = vtanh.pop %v1612
    %v1614 = vsub.f32 1.0, %v1606
    %v1615 = vmul.f32 %v1614, %v1613
    %v1616 = vrot.slane %v1441, 7
    %v1618 = vmul.f32 %v1606, %v1616
    %v1619 = vadd.f32 %v1615, %v1618
    %1620 = vst [vmem:[#allocation9] sm:$0x40] %v1619
    %v1622 = vrot.slane %v1619, 6
    %1624 = vmatprep.subr.mxu0 %v342
    %1625 = vmatpush1.msra.mxu0 %v341
    %1626 = vmatprep.subr.mxu0 %v345
    %1627 = vmatpush1.msra.mxu0 %v344
    %1628 = vmatprep.subr.mxu0 %v348
    %1629 = vmatpush1.msra.mxu0 %v347
    %1630 = vmatprep.subr.mxu0 %v351
    %1631 = vmatpush1.msra.mxu0 %v350
    %1632 = vmatprep.subr.mxu0 %v354
    %1633 = vmatpush1.msra.mxu0 %v353
    %1634 = vmatprep.subr.mxu0 %v357
    %1635 = vmatpush1.msra.mxu0 %v356
    %1636 = vmatprep.subr.mxu0 %v360
    %1637 = vmatpush1.msra.mxu0 %v359
    %1638 = vmatprep.subr.mxu0 %v363
    %1639 = vmatpush1.msra.mxu0 %v362
    %1640 = vmatprep.subr.mxu0 %v366
    %1641 = vmatpush1.msra.mxu0 %v365
    %1642 = vmatprep.subr.mxu0 %v369
    %1643 = vmatpush1.msra.mxu0 %v368
    %1644 = vmatprep.subr.mxu0 %v372
    %1645 = vmatpush1.msra.mxu0 %v371
    %1646 = vmatprep.subr.mxu0 %v375
    %1647 = vmatpush1.msra.mxu0 %v374
    %1648 = vmatprep.subr.mxu0 %v378
    %1649 = vmatpush1.msra.mxu0 %v377
    %1650 = vmatprep.subr.mxu0 %v381
    %1651 = vmatpush1.msra.mxu0 %v380
    %1652 = vmatprep.subr.mxu0 %v384
    %1653 = vmatpush1.msra.mxu0 %v383
    %1654 = vmatprep.subr.mxu0 %v387
    %1655 = vmatpush1.msra.mxu0 %v386
    %1656 = vmatprep.subr.mxu0 0.0
    %1657 = vmatpush1.msra.mxu0 0.0
    %1658 = vmatprep.subr.mxu0 0.0
    %1659 = vmatpush1.msra.mxu0 0.0
    %1660 = vmatprep.subr.mxu0 0.0
    %1661 = vmatpush1.msra.mxu0 0.0
    %1662 = vmatprep.subr.mxu0 0.0
    %1663 = vmatpush1.msra.mxu0 0.0
    %1664 = vmatprep.subr.mxu0 0.0
    %1665 = vmatpush1.msra.mxu0 0.0
    %1666 = vmatprep.subr.mxu0 0.0
    %1667 = vmatpush1.msra.mxu0 0.0
    %1668 = vmatprep.subr.mxu0 0.0
    %1669 = vmatpush1.msra.mxu0 0.0
    %1670 = vmatprep.subr.mxu0 0.0
    %1671 = vmatpush1.msra.mxu0 0.0
    %1672 = vmatprep.subr.mxu0 0.0
    %1673 = vmatpush1.msra.mxu0 0.0
    %1674 = vmatprep.subr.mxu0 0.0
    %1675 = vmatpush1.msra.mxu0 0.0
    %1676 = vmatprep.subr.mxu0 0.0
    %1677 = vmatpush1.msra.mxu0 0.0
    %1678 = vmatprep.subr.mxu0 0.0
    %1679 = vmatpush1.msra.mxu0 0.0
    %1680 = vmatprep.subr.mxu0 0.0
    %1681 = vmatpush1.msra.mxu0 0.0
    %1682 = vmatprep.subr.mxu0 0.0
    %1683 = vmatpush1.msra.mxu0 0.0
    %1684 = vmatprep.subr.mxu0 0.0
    %1685 = vmatpush1.msra.mxu0 0.0
    %1686 = vmatprep.subr.mxu0 0.0
    %1687 = vmatpush1.msra.mxu0 0.0
    %1688 = vmatprep.mubr.f32.mxu0 0.0
    %1689 = vmatmul.mubr.f32.gmra.mrb[0].mxu0 %v1622
    %v1690 = vpop.f32.mrb[0].mxu0
    %v1691 = vadd.f32 0.0, %v1690
    %v1692 = vpop.f32.mrb[0].mxu0
    %v1693 = vadd.f32 0.0, %v1692
    %1694 = vdwg.mxu0
    %1695 = vmatprep.subr.mxu0 0.0
    %1696 = vmatpush1.msra.mxu0 %v343
    %1697 = vmatprep.subr.mxu0 0.0
    %1698 = vmatpush1.msra.mxu0 %v346
    %1699 = vmatprep.subr.mxu0 0.0
    %1700 = vmatpush1.msra.mxu0 %v349
    %1701 = vmatprep.subr.mxu0 0.0
    %1702 = vmatpush1.msra.mxu0 %v352
    %1703 = vmatprep.subr.mxu0 0.0
    %1704 = vmatpush1.msra.mxu0 %v355
    %1705 = vmatprep.subr.mxu0 0.0
    %1706 = vmatpush1.msra.mxu0 %v358
    %1707 = vmatprep.subr.mxu0 0.0
    %1708 = vmatpush1.msra.mxu0 %v361
    %1709 = vmatprep.subr.mxu0 0.0
    %1710 = vmatpush1.msra.mxu0 %v364
    %1711 = vmatprep.subr.mxu0 0.0
    %1712 = vmatpush1.msra.mxu0 %v367
    %1713 = vmatprep.subr.mxu0 0.0
    %1714 = vmatpush1.msra.mxu0 %v370
    %1715 = vmatprep.subr.mxu0 0.0
    %1716 = vmatpush1.msra.mxu0 %v373
    %1717 = vmatprep.subr.mxu0 0.0
    %1718 = vmatpush1.msra.mxu0 %v376
    %1719 = vmatprep.subr.mxu0 0.0
    %1720 = vmatpush1.msra.mxu0 %v379
    %1721 = vmatprep.subr.mxu0 0.0
    %1722 = vmatpush1.msra.mxu0 %v382
    %1723 = vmatprep.subr.mxu0 0.0
    %1724 = vmatpush1.msra.mxu0 %v385
    %1725 = vmatprep.subr.mxu0 0.0
    %1726 = vmatpush1.msra.mxu0 %v388
    %1727 = vmatprep.subr.mxu0 0.0
    %1728 = vmatpush1.msra.mxu0 0.0
    %1729 = vmatprep.subr.mxu0 0.0
    %1730 = vmatpush1.msra.mxu0 0.0
    %1731 = vmatprep.subr.mxu0 0.0
    %1732 = vmatpush1.msra.mxu0 0.0
    %1733 = vmatprep.subr.mxu0 0.0
    %1734 = vmatpush1.msra.mxu0 0.0
    %1735 = vmatprep.subr.mxu0 0.0
    %1736 = vmatpush1.msra.mxu0 0.0
    %1737 = vmatprep.subr.mxu0 0.0
    %1738 = vmatpush1.msra.mxu0 0.0
    %1739 = vmatprep.subr.mxu0 0.0
    %1740 = vmatpush1.msra.mxu0 0.0
    %1741 = vmatprep.subr.mxu0 0.0
    %1742 = vmatpush1.msra.mxu0 0.0
    %1743 = vmatprep.subr.mxu0 0.0
    %1744 = vmatpush1.msra.mxu0 0.0
    %1745 = vmatprep.subr.mxu0 0.0
    %1746 = vmatpush1.msra.mxu0 0.0
    %1747 = vmatprep.subr.mxu0 0.0
    %1748 = vmatpush1.msra.mxu0 0.0
    %1749 = vmatprep.subr.mxu0 0.0
    %1750 = vmatpush1.msra.mxu0 0.0
    %1751 = vmatprep.subr.mxu0 0.0
    %1752 = vmatpush1.msra.mxu0 0.0
    %1753 = vmatprep.subr.mxu0 0.0
    %1754 = vmatpush1.msra.mxu0 0.0
    %1755 = vmatprep.subr.mxu0 0.0
    %1756 = vmatpush1.msra.mxu0 0.0
    %1757 = vmatprep.subr.mxu0 0.0
    %1758 = vmatpush1.msra.mxu0 0.0
    %1759 = vmatprep.mubr.f32.mxu0 0.0
    %1760 = vmatmul.mubr.f32.gmra.mrb[0].mxu0 %v1622
    %v1761 = vpop.f32.mrb[0].mxu0
    %v1762 = vadd.f32 0.0, %v1761
    %v1763 = vpop.f32.mrb[0].mxu0
    %1764 = vdwg.mxu0
    %v1766 = vrot.slane %v1691, 1
    %v1768 = vadd.f32 %v292, %v1766
    %v1769 = vxor.u32 %v1768, 2147483648
    %v1770 = vmul.f32 %v1769, 1.442695
    %v1771 = vpow.pop %v1770
    %v1772 = vadd.f32 %v1771, 1.0
    %v1773 = vrcp.pop %v1772
    %v1774 = vmul.f32 1.0, %v1773
    %v1776 = vrot.slane %v1693, 1
    %v1778 = vadd.f32 %v294, %v1776
    %v1779 = vxor.u32 %v1778, 2147483648
    %v1780 = vmul.f32 %v1779, 1.442695
    %v1781 = vpow.pop %v1780
    %v1782 = vadd.f32 %v1781, 1.0
    %v1783 = vrcp.pop %v1782
    %v1784 = vmul.f32 1.0, %v1783
    %v1785 = vadd.f32 %v1762, %v389
    %v1787 = vrot.slane %v1785, 1
    %v1789 = vmul.f32 %v1774, %v1787
    %v1790 = vadd.f32 %v335, %v1789
    %v1791 = vtanh.pop %v1790
    %v1792 = vsub.f32 1.0, %v1784
    %v1793 = vmul.f32 %v1792, %v1791
    %v1794 = vrot.slane %v1619, 7
    %v1796 = vmul.f32 %v1784, %v1794
    %v1797 = vadd.f32 %v1793, %v1796
    %1798 = vst [vmem:[#allocation9] sm:$0x80] %v1797
    %v1800 = vrot.slane %v1797, 7
    %1802 = vmatprep.subr.mxu0 %v342
    %1803 = vmatpush1.msra.mxu0 %v341
    %1804 = vmatprep.subr.mxu0 %v345
    %1805 = vmatpush1.msra.mxu0 %v344
    %1806 = vmatprep.subr.mxu0 %v348
    %1807 = vmatpush1.msra.mxu0 %v347
    %1808 = vmatprep.subr.mxu0 %v351
    %1809 = vmatpush1.msra.mxu0 %v350
    %1810 = vmatprep.subr.mxu0 %v354
    %1811 = vmatpush1.msra.mxu0 %v353
    %1812 = vmatprep.subr.mxu0 %v357
    %1813 = vmatpush1.msra.mxu0 %v356
    %1814 = vmatprep.subr.mxu0 %v360
    %1815 = vmatpush1.msra.mxu0 %v359
    %1816 = vmatprep.subr.mxu0 %v363
    %1817 = vmatpush1.msra.mxu0 %v362
    %1818 = vmatprep.subr.mxu0 %v366
    %1819 = vmatpush1.msra.mxu0 %v365
    %1820 = vmatprep.subr.mxu0 %v369
    %1821 = vmatpush1.msra.mxu0 %v368
    %1822 = vmatprep.subr.mxu0 %v372
    %1823 = vmatpush1.msra.mxu0 %v371
    %1824 = vmatprep.subr.mxu0 %v375
    %1825 = vmatpush1.msra.mxu0 %v374
    %1826 = vmatprep.subr.mxu0 %v378
    %1827 = vmatpush1.msra.mxu0 %v377
    %1828 = vmatprep.subr.mxu0 %v381
    %1829 = vmatpush1.msra.mxu0 %v380
    %1830 = vmatprep.subr.mxu0 %v384
    %1831 = vmatpush1.msra.mxu0 %v383
    %1832 = vmatprep.subr.mxu0 %v387
    %1833 = vmatpush1.msra.mxu0 %v386
    %1834 = vmatprep.subr.mxu0 0.0
    %1835 = vmatpush1.msra.mxu0 0.0
    %1836 = vmatprep.subr.mxu0 0.0
    %1837 = vmatpush1.msra.mxu0 0.0
    %1838 = vmatprep.subr.mxu0 0.0
    %1839 = vmatpush1.msra.mxu0 0.0
    %1840 = vmatprep.subr.mxu0 0.0
    %1841 = vmatpush1.msra.mxu0 0.0
    %1842 = vmatprep.subr.mxu0 0.0
    %1843 = vmatpush1.msra.mxu0 0.0
    %1844 = vmatprep.subr.mxu0 0.0
    %1845 = vmatpush1.msra.mxu0 0.0
    %1846 = vmatprep.subr.mxu0 0.0
    %1847 = vmatpush1.msra.mxu0 0.0
    %1848 = vmatprep.subr.mxu0 0.0
    %1849 = vmatpush1.msra.mxu0 0.0
    %1850 = vmatprep.subr.mxu0 0.0
    %1851 = vmatpush1.msra.mxu0 0.0
    %1852 = vmatprep.subr.mxu0 0.0
    %1853 = vmatpush1.msra.mxu0 0.0
    %1854 = vmatprep.subr.mxu0 0.0
    %1855 = vmatpush1.msra.mxu0 0.0
    %1856 = vmatprep.subr.mxu0 0.0
    %1857 = vmatpush1.msra.mxu0 0.0
    %1858 = vmatprep.subr.mxu0 0.0
    %1859 = vmatpush1.msra.mxu0 0.0
    %1860 = vmatprep.subr.mxu0 0.0
    %1861 = vmatpush1.msra.mxu0 0.0
    %1862 = vmatprep.subr.mxu0 0.0
    %1863 = vmatpush1.msra.mxu0 0.0
    %1864 = vmatprep.subr.mxu0 0.0
    %1865 = vmatpush1.msra.mxu0 0.0
    %1866 = vmatprep.mubr.f32.mxu0 0.0
    %1867 = vmatmul.mubr.f32.gmra.mrb[0].mxu0 %v1800
    %v1868 = vpop.f32.mrb[0].mxu0
    %v1869 = vadd.f32 0.0, %v1868
    %v1870 = vpop.f32.mrb[0].mxu0
    %v1871 = vadd.f32 0.0, %v1870
    %1872 = vdwg.mxu0
    %1873 = vmatprep.subr.mxu0 0.0
    %1874 = vmatpush1.msra.mxu0 %v343
    %1875 = vmatprep.subr.mxu0 0.0
    %1876 = vmatpush1.msra.mxu0 %v346
    %1877 = vmatprep.subr.mxu0 0.0
    %1878 = vmatpush1.msra.mxu0 %v349
    %1879 = vmatprep.subr.mxu0 0.0
    %1880 = vmatpush1.msra.mxu0 %v352
    %1881 = vmatprep.subr.mxu0 0.0
    %1882 = vmatpush1.msra.mxu0 %v355
    %1883 = vmatprep.subr.mxu0 0.0
    %1884 = vmatpush1.msra.mxu0 %v358
    %1885 = vmatprep.subr.mxu0 0.0
    %1886 = vmatpush1.msra.mxu0 %v361
    %1887 = vmatprep.subr.mxu0 0.0
    %1888 = vmatpush1.msra.mxu0 %v364
    %1889 = vmatprep.subr.mxu0 0.0
    %1890 = vmatpush1.msra.mxu0 %v367
    %1891 = vmatprep.subr.mxu0 0.0
    %1892 = vmatpush1.msra.mxu0 %v370
    %1893 = vmatprep.subr.mxu0 0.0
    %1894 = vmatpush1.msra.mxu0 %v373
    %1895 = vmatprep.subr.mxu0 0.0
    %1896 = vmatpush1.msra.mxu0 %v376
    %1897 = vmatprep.subr.mxu0 0.0
    %1898 = vmatpush1.msra.mxu0 %v379
    %1899 = vmatprep.subr.mxu0 0.0
    %1900 = vmatpush1.msra.mxu0 %v382
    %1901 = vmatprep.subr.mxu0 0.0
    %1902 = vmatpush1.msra.mxu0 %v385
    %1903 = vmatprep.subr.mxu0 0.0
    %1904 = vmatpush1.msra.mxu0 %v388
    %1905 = vmatprep.subr.mxu0 0.0
    %1906 = vmatpush1.msra.mxu0 0.0
    %1907 = vmatprep.subr.mxu0 0.0
    %1908 = vmatpush1.msra.mxu0 0.0
    %1909 = vmatprep.subr.mxu0 0.0
    %1910 = vmatpush1.msra.mxu0 0.0
    %1911 = vmatprep.subr.mxu0 0.0
    %1912 = vmatpush1.msra.mxu0 0.0
    %1913 = vmatprep.subr.mxu0 0.0
    %1914 = vmatpush1.msra.mxu0 0.0
    %1915 = vmatprep.subr.mxu0 0.0
    %1916 = vmatpush1.msra.mxu0 0.0
    %1917 = vmatprep.subr.mxu0 0.0
    %1918 = vmatpush1.msra.mxu0 0.0
    %1919 = vmatprep.subr.mxu0 0.0
    %1920 = vmatpush1.msra.mxu0 0.0
    %1921 = vmatprep.subr.mxu0 0.0
    %1922 = vmatpush1.msra.mxu0 0.0
    %1923 = vmatprep.subr.mxu0 0.0
    %1924 = vmatpush1.msra.mxu0 0.0
    %1925 = vmatprep.subr.mxu0 0.0
    %1926 = vmatpush1.msra.mxu0 0.0
    %1927 = vmatprep.subr.mxu0 0.0
    %1928 = vmatpush1.msra.mxu0 0.0
    %1929 = vmatprep.subr.mxu0 0.0
    %1930 = vmatpush1.msra.mxu0 0.0
    %1931 = vmatprep.subr.mxu0 0.0
    %1932 = vmatpush1.msra.mxu0 0.0
    %1933 = vmatprep.subr.mxu0 0.0
    %1934 = vmatpush1.msra.mxu0 0.0
    %1935 = vmatprep.subr.mxu0 0.0
    %1936 = vmatpush1.msra.mxu0 0.0
    %1937 = vmatprep.mubr.f32.mxu0 0.0
    %1938 = vmatmul.mubr.f32.gmra.mrb[0].mxu0 %v1800
    %v1939 = vpop.f32.mrb[0].mxu0
    %v1940 = vadd.f32 0.0, %v1939
    %v1941 = vpop.f32.mrb[0].mxu0
    %1942 = vdwg.mxu0
    %v1943 = vadd.f32 %v296, %v1869
    %v1944 = vxor.u32 %v1943, 2147483648
    %v1945 = vmul.f32 %v1944, 1.442695
    %v1946 = vpow.pop %v1945
    %v1947 = vadd.f32 %v1946, 1.0
    %v1948 = vrcp.pop %v1947
    %v1949 = vmul.f32 1.0, %v1948
    %v1950 = vadd.f32 %v298, %v1871
    %v1951 = vxor.u32 %v1950, 2147483648
    %v1952 = vmul.f32 %v1951, 1.442695
    %v1953 = vpow.pop %v1952
    %v1954 = vadd.f32 %v1953, 1.0
    %v1955 = vrcp.pop %v1954
    %v1956 = vmul.f32 1.0, %v1955
    %v1957 = vadd.f32 %v1940, %v389
    %v1958 = vmul.f32 %v1949, %v1957
    %v1959 = vadd.f32 %v338, %v1958
    %v1960 = vtanh.pop %v1959
    %v1961 = vsub.f32 1.0, %v1956
    %v1962 = vmul.f32 %v1961, %v1960
    %v1963 = vmul.f32 %v1956, %v1800
    %v1964 = vadd.f32 %v1962, %v1963
    %1965 = vst [vmem:[#allocation9 + $0x8] sm:$0x1] %v1964
    %1966 = vmatprep.subr.mxu0 %v342
    %1967 = vmatpush1.msra.mxu0 %v341
    %1968 = vmatprep.subr.mxu0 %v345
    %1969 = vmatpush1.msra.mxu0 %v344
    %1970 = vmatprep.subr.mxu0 %v348
    %1971 = vmatpush1.msra.mxu0 %v347
    %1972 = vmatprep.subr.mxu0 %v351
    %1973 = vmatpush1.msra.mxu0 %v350
    %1974 = vmatprep.subr.mxu0 %v354
    %1975 = vmatpush1.msra.mxu0 %v353
    %1976 = vmatprep.subr.mxu0 %v357
    %1977 = vmatpush1.msra.mxu0 %v356
    %1978 = vmatprep.subr.mxu0 %v360
    %1979 = vmatpush1.msra.mxu0 %v359
    %1980 = vmatprep.subr.mxu0 %v363
    %1981 = vmatpush1.msra.mxu0 %v362
    %1982 = vmatprep.subr.mxu0 %v366
    %1983 = vmatpush1.msra.mxu0 %v365
    %1984 = vmatprep.subr.mxu0 %v369
    %1985 = vmatpush1.msra.mxu0 %v368
    %1986 = vmatprep.subr.mxu0 %v372
    %1987 = vmatpush1.msra.mxu0 %v371
    %1988 = vmatprep.subr.mxu0 %v375
    %1989 = vmatpush1.msra.mxu0 %v374
    %1990 = vmatprep.subr.mxu0 %v378
    %1991 = vmatpush1.msra.mxu0 %v377
    %1992 = vmatprep.subr.mxu0 %v381
    %1993 = vmatpush1.msra.mxu0 %v380
    %1994 = vmatprep.subr.mxu0 %v384
    %1995 = vmatpush1.msra.mxu0 %v383
    %1996 = vmatprep.subr.mxu0 %v387
    %1997 = vmatpush1.msra.mxu0 %v386
    %1998 = vmatprep.subr.mxu0 0.0
    %1999 = vmatpush1.msra.mxu0 0.0
    %2000 = vmatprep.subr.mxu0 0.0
    %2001 = vmatpush1.msra.mxu0 0.0
    %2002 = vmatprep.subr.mxu0 0.0
    %2003 = vmatpush1.msra.mxu0 0.0
    %2004 = vmatprep.subr.mxu0 0.0
    %2005 = vmatpush1.msra.mxu0 0.0
    %2006 = vmatprep.subr.mxu0 0.0
    %2007 = vmatpush1.msra.mxu0 0.0
    %2008 = vmatprep.subr.mxu0 0.0
    %2009 = vmatpush1.msra.mxu0 0.0
    %2010 = vmatprep.subr.mxu0 0.0
    %2011 = vmatpush1.msra.mxu0 0.0
    %2012 = vmatprep.subr.mxu0 0.0
    %2013 = vmatpush1.msra.mxu0 0.0
    %2014 = vmatprep.subr.mxu0 0.0
    %2015 = vmatpush1.msra.mxu0 0.0
    %2016 = vmatprep.subr.mxu0 0.0
    %2017 = vmatpush1.msra.mxu0 0.0
    %2018 = vmatprep.subr.mxu0 0.0
    %2019 = vmatpush1.msra.mxu0 0.0
    %2020 = vmatprep.subr.mxu0 0.0
    %2021 = vmatpush1.msra.mxu0 0.0
    %2022 = vmatprep.subr.mxu0 0.0
    %2023 = vmatpush1.msra.mxu0 0.0
    %2024 = vmatprep.subr.mxu0 0.0
    %2025 = vmatpush1.msra.mxu0 0.0
    %2026 = vmatprep.subr.mxu0 0.0
    %2027 = vmatpush1.msra.mxu0 0.0
    %2028 = vmatprep.subr.mxu0 0.0
    %2029 = vmatpush1.msra.mxu0 0.0
    %2030 = vmatprep.mubr.f32.mxu0 0.0
    %2031 = vmatmul.mubr.f32.gmra.mrb[0].mxu0 %v1964
    %v2032 = vpop.f32.mrb[0].mxu0
    %v2033 = vadd.f32 0.0, %v2032
    %v2034 = vpop.f32.mrb[0].mxu0
    %v2035 = vadd.f32 0.0, %v2034
    %2036 = vdwg.mxu0
    %2037 = vmatprep.subr.mxu0 0.0
    %2038 = vmatpush1.msra.mxu0 %v343
    %2039 = vmatprep.subr.mxu0 0.0
    %2040 = vmatpush1.msra.mxu0 %v346
    %2041 = vmatprep.subr.mxu0 0.0
    %2042 = vmatpush1.msra.mxu0 %v349
    %2043 = vmatprep.subr.mxu0 0.0
    %2044 = vmatpush1.msra.mxu0 %v352
    %2045 = vmatprep.subr.mxu0 0.0
    %2046 = vmatpush1.msra.mxu0 %v355
    %2047 = vmatprep.subr.mxu0 0.0
    %2048 = vmatpush1.msra.mxu0 %v358
    %2049 = vmatprep.subr.mxu0 0.0
    %2050 = vmatpush1.msra.mxu0 %v361
    %2051 = vmatprep.subr.mxu0 0.0
    %2052 = vmatpush1.msra.mxu0 %v364
    %2053 = vmatprep.subr.mxu0 0.0
    %2054 = vmatpush1.msra.mxu0 %v367
    %2055 = vmatprep.subr.mxu0 0.0
    %2056 = vmatpush1.msra.mxu0 %v370
    %2057 = vmatprep.subr.mxu0 0.0
    %2058 = vmatpush1.msra.mxu0 %v373
    %2059 = vmatprep.subr.mxu0 0.0
    %2060 = vmatpush1.msra.mxu0 %v376
    %2061 = vmatprep.subr.mxu0 0.0
    %2062 = vmatpush1.msra.mxu0 %v379
    %2063 = vmatprep.subr.mxu0 0.0
    %2064 = vmatpush1.msra.mxu0 %v382
    %2065 = vmatprep.subr.mxu0 0.0
    %2066 = vmatpush1.msra.mxu0 %v385
    %2067 = vmatprep.subr.mxu0 0.0
    %2068 = vmatpush1.msra.mxu0 %v388
    %2069 = vmatprep.subr.mxu0 0.0
    %2070 = vmatpush1.msra.mxu0 0.0
    %2071 = vmatprep.subr.mxu0 0.0
    %2072 = vmatpush1.msra.mxu0 0.0
    %2073 = vmatprep.subr.mxu0 0.0
    %2074 = vmatpush1.msra.mxu0 0.0
    %2075 = vmatprep.subr.mxu0 0.0
    %2076 = vmatpush1.msra.mxu0 0.0
    %2077 = vmatprep.subr.mxu0 0.0
    %2078 = vmatpush1.msra.mxu0 0.0
    %2079 = vmatprep.subr.mxu0 0.0
    %2080 = vmatpush1.msra.mxu0 0.0
    %2081 = vmatprep.subr.mxu0 0.0
    %2082 = vmatpush1.msra.mxu0 0.0
    %2083 = vmatprep.subr.mxu0 0.0
    %2084 = vmatpush1.msra.mxu0 0.0
    %2085 = vmatprep.subr.mxu0 0.0
    %2086 = vmatpush1.msra.mxu0 0.0
    %2087 = vmatprep.subr.mxu0 0.0
    %2088 = vmatpush1.msra.mxu0 0.0
    %2089 = vmatprep.subr.mxu0 0.0
    %2090 = vmatpush1.msra.mxu0 0.0
    %2091 = vmatprep.subr.mxu0 0.0
    %2092 = vmatpush1.msra.mxu0 0.0
    %2093 = vmatprep.subr.mxu0 0.0
    %2094 = vmatpush1.msra.mxu0 0.0
    %2095 = vmatprep.subr.mxu0 0.0
    %2096 = vmatpush1.msra.mxu0 0.0
    %2097 = vmatprep.subr.mxu0 0.0
    %2098 = vmatpush1.msra.mxu0 0.0
    %2099 = vmatprep.subr.mxu0 0.0
    %2100 = vmatpush1.msra.mxu0 0.0
    %2101 = vmatprep.mubr.f32.mxu0 0.0
    %2102 = vmatmul.mubr.f32.gmra.mrb[0].mxu0 %v1964
    %v2103 = vpop.f32.mrb[0].mxu0
    %v2104 = vadd.f32 0.0, %v2103
    %v2105 = vpop.f32.mrb[0].mxu0
    %2106 = vdwg.mxu0
    %v2108 = vrot.slane %v2033, 7
    %v2110 = vadd.f32 %v296, %v2108
    %v2111 = vxor.u32 %v2110, 2147483648
    %v2112 = vmul.f32 %v2111, 1.442695
    %v2113 = vpow.pop %v2112
    %v2114 = vadd.f32 %v2113, 1.0
    %v2115 = vrcp.pop %v2114
    %v2116 = vmul.f32 1.0, %v2115
    %v2118 = vrot.slane %v2035, 7
    %v2120 = vadd.f32 %v298, %v2118
    %v2121 = vxor.u32 %v2120, 2147483648
    %v2122 = vmul.f32 %v2121, 1.442695
    %v2123 = vpow.pop %v2122
    %v2124 = vadd.f32 %v2123, 1.0
    %v2125 = vrcp.pop %v2124
    %v2126 = vmul.f32 1.0, %v2125
    %v2127 = vadd.f32 %v2104, %v389
    %v2129 = vrot.slane %v2127, 7
    %v2131 = vmul.f32 %v2116, %v2129
    %v2132 = vadd.f32 %v338, %v2131
    %v2133 = vtanh.pop %v2132
    %v2134 = vsub.f32 1.0, %v2126
    %v2135 = vmul.f32 %v2134, %v2133
    %v2137 = vrot.slane %v1964, 7
    %v2139 = vmul.f32 %v2126, %v2137
    %v2140 = vadd.f32 %v2135, %v2139
    %2141 = vst [vmem:[#allocation9 + $0x8] sm:$0x2] %v2140
    %v2143 = vrot.slane %v2140, 1
    %2145 = vmatprep.subr.mxu0 %v342
    %2146 = vmatpush1.msra.mxu0 %v341
    %2147 = vmatprep.subr.mxu0 %v345
    %2148 = vmatpush1.msra.mxu0 %v344
    %2149 = vmatprep.subr.mxu0 %v348
    %2150 = vmatpush1.msra.mxu0 %v347
    %2151 = vmatprep.subr.mxu0 %v351
    %2152 = vmatpush1.msra.mxu0 %v350
    %2153 = vmatprep.subr.mxu0 %v354
    %2154 = vmatpush1.msra.mxu0 %v353
    %2155 = vmatprep.subr.mxu0 %v357
    %2156 = vmatpush1.msra.mxu0 %v356
    %2157 = vmatprep.subr.mxu0 %v360
    %2158 = vmatpush1.msra.mxu0 %v359
    %2159 = vmatprep.subr.mxu0 %v363
    %2160 = vmatpush1.msra.mxu0 %v362
    %2161 = vmatprep.subr.mxu0 %v366
    %2162 = vmatpush1.msra.mxu0 %v365
    %2163 = vmatprep.subr.mxu0 %v369
    %2164 = vmatpush1.msra.mxu0 %v368
    %2165 = vmatprep.subr.mxu0 %v372
    %2166 = vmatpush1.msra.mxu0 %v371
    %2167 = vmatprep.subr.mxu0 %v375
    %2168 = vmatpush1.msra.mxu0 %v374
    %2169 = vmatprep.subr.mxu0 %v378
    %2170 = vmatpush1.msra.mxu0 %v377
    %2171 = vmatprep.subr.mxu0 %v381
    %2172 = vmatpush1.msra.mxu0 %v380
    %2173 = vmatprep.subr.mxu0 %v384
    %2174 = vmatpush1.msra.mxu0 %v383
    %2175 = vmatprep.subr.mxu0 %v387
    %2176 = vmatpush1.msra.mxu0 %v386
    %2177 = vmatprep.subr.mxu0 0.0
    %2178 = vmatpush1.msra.mxu0 0.0
    %2179 = vmatprep.subr.mxu0 0.0
    %2180 = vmatpush1.msra.mxu0 0.0
    %2181 = vmatprep.subr.mxu0 0.0
    %2182 = vmatpush1.msra.mxu0 0.0
    %2183 = vmatprep.subr.mxu0 0.0
    %2184 = vmatpush1.msra.mxu0 0.0
    %2185 = vmatprep.subr.mxu0 0.0
    %2186 = vmatpush1.msra.mxu0 0.0
    %2187 = vmatprep.subr.mxu0 0.0
    %2188 = vmatpush1.msra.mxu0 0.0
    %2189 = vmatprep.subr.mxu0 0.0
    %2190 = vmatpush1.msra.mxu0 0.0
    %2191 = vmatprep.subr.mxu0 0.0
    %2192 = vmatpush1.msra.mxu0 0.0
    %2193 = vmatprep.subr.mxu0 0.0
    %2194 = vmatpush1.msra.mxu0 0.0
    %2195 = vmatprep.subr.mxu0 0.0
    %2196 = vmatpush1.msra.mxu0 0.0
    %2197 = vmatprep.subr.mxu0 0.0
    %2198 = vmatpush1.msra.mxu0 0.0
    %2199 = vmatprep.subr.mxu0 0.0
    %2200 = vmatpush1.msra.mxu0 0.0
    %2201 = vmatprep.subr.mxu0 0.0
    %2202 = vmatpush1.msra.mxu0 0.0
    %2203 = vmatprep.subr.mxu0 0.0
    %2204 = vmatpush1.msra.mxu0 0.0
    %2205 = vmatprep.subr.mxu0 0.0
    %2206 = vmatpush1.msra.mxu0 0.0
    %2207 = vmatprep.subr.mxu0 0.0
    %2208 = vmatpush1.msra.mxu0 0.0
    %2209 = vmatprep.mubr.f32.mxu0 0.0
    %2210 = vmatmul.mubr.f32.gmra.mrb[0].mxu0 %v2143
    %v2211 = vpop.f32.mrb[0].mxu0
    %v2212 = vadd.f32 0.0, %v2211
    %v2213 = vpop.f32.mrb[0].mxu0
    %v2214 = vadd.f32 0.0, %v2213
    %2215 = vdwg.mxu0
    %2216 = vmatprep.subr.mxu0 0.0
    %2217 = vmatpush1.msra.mxu0 %v343
    %2218 = vmatprep.subr.mxu0 0.0
    %2219 = vmatpush1.msra.mxu0 %v346
    %2220 = vmatprep.subr.mxu0 0.0
    %2221 = vmatpush1.msra.mxu0 %v349
    %2222 = vmatprep.subr.mxu0 0.0
    %2223 = vmatpush1.msra.mxu0 %v352
    %2224 = vmatprep.subr.mxu0 0.0
    %2225 = vmatpush1.msra.mxu0 %v355
    %2226 = vmatprep.subr.mxu0 0.0
    %2227 = vmatpush1.msra.mxu0 %v358
    %2228 = vmatprep.subr.mxu0 0.0
    %2229 = vmatpush1.msra.mxu0 %v361
    %2230 = vmatprep.subr.mxu0 0.0
    %2231 = vmatpush1.msra.mxu0 %v364
    %2232 = vmatprep.subr.mxu0 0.0
    %2233 = vmatpush1.msra.mxu0 %v367
    %2234 = vmatprep.subr.mxu0 0.0
    %2235 = vmatpush1.msra.mxu0 %v370
    %2236 = vmatprep.subr.mxu0 0.0
    %2237 = vmatpush1.msra.mxu0 %v373
    %2238 = vmatprep.subr.mxu0 0.0
    %2239 = vmatpush1.msra.mxu0 %v376
    %2240 = vmatprep.subr.mxu0 0.0
    %2241 = vmatpush1.msra.mxu0 %v379
    %2242 = vmatprep.subr.mxu0 0.0
    %2243 = vmatpush1.msra.mxu0 %v382
    %2244 = vmatprep.subr.mxu0 0.0
    %2245 = vmatpush1.msra.mxu0 %v385
    %2246 = vmatprep.subr.mxu0 0.0
    %2247 = vmatpush1.msra.mxu0 %v388
    %2248 = vmatprep.subr.mxu0 0.0
    %2249 = vmatpush1.msra.mxu0 0.0
    %2250 = vmatprep.subr.mxu0 0.0
    %2251 = vmatpush1.msra.mxu0 0.0
    %2252 = vmatprep.subr.mxu0 0.0
    %2253 = vmatpush1.msra.mxu0 0.0
    %2254 = vmatprep.subr.mxu0 0.0
    %2255 = vmatpush1.msra.mxu0 0.0
    %2256 = vmatprep.subr.mxu0 0.0
    %2257 = vmatpush1.msra.mxu0 0.0
    %2258 = vmatprep.subr.mxu0 0.0
    %2259 = vmatpush1.msra.mxu0 0.0
    %2260 = vmatprep.subr.mxu0 0.0
    %2261 = vmatpush1.msra.mxu0 0.0
    %2262 = vmatprep.subr.mxu0 0.0
    %2263 = vmatpush1.msra.mxu0 0.0
    %2264 = vmatprep.subr.mxu0 0.0
    %2265 = vmatpush1.msra.mxu0 0.0
    %2266 = vmatprep.subr.mxu0 0.0
    %2267 = vmatpush1.msra.mxu0 0.0
    %2268 = vmatprep.subr.mxu0 0.0
    %2269 = vmatpush1.msra.mxu0 0.0
    %2270 = vmatprep.subr.mxu0 0.0
    %2271 = vmatpush1.msra.mxu0 0.0
    %2272 = vmatprep.subr.mxu0 0.0
    %2273 = vmatpush1.msra.mxu0 0.0
    %2274 = vmatprep.subr.mxu0 0.0
    %2275 = vmatpush1.msra.mxu0 0.0
    %2276 = vmatprep.subr.mxu0 0.0
    %2277 = vmatpush1.msra.mxu0 0.0
    %2278 = vmatprep.subr.mxu0 0.0
    %2279 = vmatpush1.msra.mxu0 0.0
    %2280 = vmatprep.mubr.f32.mxu0 0.0
    %2281 = vmatmul.mubr.f32.gmra.mrb[0].mxu0 %v2143
    %v2282 = vpop.f32.mrb[0].mxu0
    %v2283 = vadd.f32 0.0, %v2282
    %v2284 = vpop.f32.mrb[0].mxu0
    %2285 = vdwg.mxu0
    %v2287 = vrot.slane %v2212, 6
    %v2289 = vadd.f32 %v296, %v2287
    %v2290 = vxor.u32 %v2289, 2147483648
    %v2291 = vmul.f32 %v2290, 1.442695
    %v2292 = vpow.pop %v2291
    %v2293 = vadd.f32 %v2292, 1.0
    %v2294 = vrcp.pop %v2293
    %v2295 = vmul.f32 1.0, %v2294
    %v2297 = vrot.slane %v2214, 6
    %v2299 = vadd.f32 %v298, %v2297
    %v2300 = vxor.u32 %v2299, 2147483648
    %v2301 = vmul.f32 %v2300, 1.442695
    %v2302 = vpow.pop %v2301
    %v2303 = vadd.f32 %v2302, 1.0
    %v2304 = vrcp.pop %v2303
    %v2305 = vmul.f32 1.0, %v2304
    %v2306 = vadd.f32 %v2283, %v389
    %v2308 = vrot.slane %v2306, 6
    %v2310 = vmul.f32 %v2295, %v2308
    %v2311 = vadd.f32 %v338, %v2310
    %v2312 = vtanh.pop %v2311
    %v2313 = vsub.f32 1.0, %v2305
    %v2314 = vmul.f32 %v2313, %v2312
    %v2315 = vrot.slane %v2140, 7
    %v2317 = vmul.f32 %v2305, %v2315
    %v2318 = vadd.f32 %v2314, %v2317
    %2319 = vst [vmem:[#allocation9 + $0x8] sm:$0x4] %v2318
    %v2321 = vrot.slane %v2318, 2
    %2323 = vmatprep.subr.mxu0 %v342
    %2324 = vmatpush1.msra.mxu0 %v341
    %2325 = vmatprep.subr.mxu0 %v345
    %2326 = vmatpush1.msra.mxu0 %v344
    %2327 = vmatprep.subr.mxu0 %v348
    %2328 = vmatpush1.msra.mxu0 %v347
    %2329 = vmatprep.subr.mxu0 %v351
    %2330 = vmatpush1.msra.mxu0 %v350
    %2331 = vmatprep.subr.mxu0 %v354
    %2332 = vmatpush1.msra.mxu0 %v353
    %2333 = vmatprep.subr.mxu0 %v357
    %2334 = vmatpush1.msra.mxu0 %v356
    %2335 = vmatprep.subr.mxu0 %v360
    %2336 = vmatpush1.msra.mxu0 %v359
    %2337 = vmatprep.subr.mxu0 %v363
    %2338 = vmatpush1.msra.mxu0 %v362
    %2339 = vmatprep.subr.mxu0 %v366
    %2340 = vmatpush1.msra.mxu0 %v365
    %2341 = vmatprep.subr.mxu0 %v369
    %2342 = vmatpush1.msra.mxu0 %v368
    %2343 = vmatprep.subr.mxu0 %v372
    %2344 = vmatpush1.msra.mxu0 %v371
    %2345 = vmatprep.subr.mxu0 %v375
    %2346 = vmatpush1.msra.mxu0 %v374
    %2347 = vmatprep.subr.mxu0 %v378
    %2348 = vmatpush1.msra.mxu0 %v377
    %2349 = vmatprep.subr.mxu0 %v381
    %2350 = vmatpush1.msra.mxu0 %v380
    %2351 = vmatprep.subr.mxu0 %v384
    %2352 = vmatpush1.msra.mxu0 %v383
    %2353 = vmatprep.subr.mxu0 %v387
    %2354 = vmatpush1.msra.mxu0 %v386
    %2355 = vmatprep.subr.mxu0 0.0
    %2356 = vmatpush1.msra.mxu0 0.0
    %2357 = vmatprep.subr.mxu0 0.0
    %2358 = vmatpush1.msra.mxu0 0.0
    %2359 = vmatprep.subr.mxu0 0.0
    %2360 = vmatpush1.msra.mxu0 0.0
    %2361 = vmatprep.subr.mxu0 0.0
    %2362 = vmatpush1.msra.mxu0 0.0
    %2363 = vmatprep.subr.mxu0 0.0
    %2364 = vmatpush1.msra.mxu0 0.0
    %2365 = vmatprep.subr.mxu0 0.0
    %2366 = vmatpush1.msra.mxu0 0.0
    %2367 = vmatprep.subr.mxu0 0.0
    %2368 = vmatpush1.msra.mxu0 0.0
    %2369 = vmatprep.subr.mxu0 0.0
    %2370 = vmatpush1.msra.mxu0 0.0
    %2371 = vmatprep.subr.mxu0 0.0
    %2372 = vmatpush1.msra.mxu0 0.0
    %2373 = vmatprep.subr.mxu0 0.0
    %2374 = vmatpush1.msra.mxu0 0.0
    %2375 = vmatprep.subr.mxu0 0.0
    %2376 = vmatpush1.msra.mxu0 0.0
    %2377 = vmatprep.subr.mxu0 0.0
    %2378 = vmatpush1.msra.mxu0 0.0
    %2379 = vmatprep.subr.mxu0 0.0
    %2380 = vmatpush1.msra.mxu0 0.0
    %2381 = vmatprep.subr.mxu0 0.0
    %2382 = vmatpush1.msra.mxu0 0.0
    %2383 = vmatprep.subr.mxu0 0.0
    %2384 = vmatpush1.msra.mxu0 0.0
    %2385 = vmatprep.subr.mxu0 0.0
    %2386 = vmatpush1.msra.mxu0 0.0
    %2387 = vmatprep.mubr.f32.mxu0 0.0
    %2388 = vmatmul.mubr.f32.gmra.mrb[0].mxu0 %v2321
    %v2389 = vpop.f32.mrb[0].mxu0
    %v2390 = vadd.f32 0.0, %v2389
    %v2391 = vpop.f32.mrb[0].mxu0
    %v2392 = vadd.f32 0.0, %v2391
    %2393 = vdwg.mxu0
    %2394 = vmatprep.subr.mxu0 0.0
    %2395 = vmatpush1.msra.mxu0 %v343
    %2396 = vmatprep.subr.mxu0 0.0
    %2397 = vmatpush1.msra.mxu0 %v346
    %2398 = vmatprep.subr.mxu0 0.0
    %2399 = vmatpush1.msra.mxu0 %v349
    %2400 = vmatprep.subr.mxu0 0.0
    %2401 = vmatpush1.msra.mxu0 %v352
    %2402 = vmatprep.subr.mxu0 0.0
    %2403 = vmatpush1.msra.mxu0 %v355
    %2404 = vmatprep.subr.mxu0 0.0
    %2405 = vmatpush1.msra.mxu0 %v358
    %2406 = vmatprep.subr.mxu0 0.0
    %2407 = vmatpush1.msra.mxu0 %v361
    %2408 = vmatprep.subr.mxu0 0.0
    %2409 = vmatpush1.msra.mxu0 %v364
    %2410 = vmatprep.subr.mxu0 0.0
    %2411 = vmatpush1.msra.mxu0 %v367
    %2412 = vmatprep.subr.mxu0 0.0
    %2413 = vmatpush1.msra.mxu0 %v370
    %2414 = vmatprep.subr.mxu0 0.0
    %2415 = vmatpush1.msra.mxu0 %v373
    %2416 = vmatprep.subr.mxu0 0.0
    %2417 = vmatpush1.msra.mxu0 %v376
    %2418 = vmatprep.subr.mxu0 0.0
    %2419 = vmatpush1.msra.mxu0 %v379
    %2420 = vmatprep.subr.mxu0 0.0
    %2421 = vmatpush1.msra.mxu0 %v382
    %2422 = vmatprep.subr.mxu0 0.0
    %2423 = vmatpush1.msra.mxu0 %v385
    %2424 = vmatprep.subr.mxu0 0.0
    %2425 = vmatpush1.msra.mxu0 %v388
    %2426 = vmatprep.subr.mxu0 0.0
    %2427 = vmatpush1.msra.mxu0 0.0
    %2428 = vmatprep.subr.mxu0 0.0
    %2429 = vmatpush1.msra.mxu0 0.0
    %2430 = vmatprep.subr.mxu0 0.0
    %2431 = vmatpush1.msra.mxu0 0.0
    %2432 = vmatprep.subr.mxu0 0.0
    %2433 = vmatpush1.msra.mxu0 0.0
    %2434 = vmatprep.subr.mxu0 0.0
    %2435 = vmatpush1.msra.mxu0 0.0
    %2436 = vmatprep.subr.mxu0 0.0
    %2437 = vmatpush1.msra.mxu0 0.0
    %2438 = vmatprep.subr.mxu0 0.0
    %2439 = vmatpush1.msra.mxu0 0.0
    %2440 = vmatprep.subr.mxu0 0.0
    %2441 = vmatpush1.msra.mxu0 0.0
    %2442 = vmatprep.subr.mxu0 0.0
    %2443 = vmatpush1.msra.mxu0 0.0
    %2444 = vmatprep.subr.mxu0 0.0
    %2445 = vmatpush1.msra.mxu0 0.0
    %2446 = vmatprep.subr.mxu0 0.0
    %2447 = vmatpush1.msra.mxu0 0.0
    %2448 = vmatprep.subr.mxu0 0.0
    %2449 = vmatpush1.msra.mxu0 0.0
    %2450 = vmatprep.subr.mxu0 0.0
    %2451 = vmatpush1.msra.mxu0 0.0
    %2452 = vmatprep.subr.mxu0 0.0
    %2453 = vmatpush1.msra.mxu0 0.0
    %2454 = vmatprep.subr.mxu0 0.0
    %2455 = vmatpush1.msra.mxu0 0.0
    %2456 = vmatprep.subr.mxu0 0.0
    %2457 = vmatpush1.msra.mxu0 0.0
    %2458 = vmatprep.mubr.f32.mxu0 0.0
    %2459 = vmatmul.mubr.f32.gmra.mrb[0].mxu0 %v2321
    %v2460 = vpop.f32.mrb[0].mxu0
    %v2461 = vadd.f32 0.0, %v2460
    %v2462 = vpop.f32.mrb[0].mxu0
    %2463 = vdwg.mxu0
    %v2465 = vrot.slane %v2390, 5
    %v2467 = vadd.f32 %v296, %v2465
    %v2468 = vxor.u32 %v2467, 2147483648
    %v2469 = vmul.f32 %v2468, 1.442695
    %v2470 = vpow.pop %v2469
    %v2471 = vadd.f32 %v2470, 1.0
    %v2472 = vrcp.pop %v2471
    %v2473 = vmul.f32 1.0, %v2472
    %v2475 = vrot.slane %v2392, 5
    %v2477 = vadd.f32 %v298, %v2475
    %v2478 = vxor.u32 %v2477, 2147483648
    %v2479 = vmul.f32 %v2478, 1.442695
    %v2480 = vpow.pop %v2479
    %v2481 = vadd.f32 %v2480, 1.0
    %v2482 = vrcp.pop %v2481
    %v2483 = vmul.f32 1.0, %v2482
    %v2484 = vadd.f32 %v2461, %v389
    %v2486 = vrot.slane %v2484, 5
    %v2488 = vmul.f32 %v2473, %v2486
    %v2489 = vadd.f32 %v338, %v2488
    %v2490 = vtanh.pop %v2489
    %v2491 = vsub.f32 1.0, %v2483
    %v2492 = vmul.f32 %v2491, %v2490
    %v2493 = vrot.slane %v2318, 7
    %v2495 = vmul.f32 %v2483, %v2493
    %v2496 = vadd.f32 %v2492, %v2495
    %2497 = vst [vmem:[#allocation9 + $0x8] sm:$0x8] %v2496
    %v2499 = vrot.slane %v2496, 3
    %2501 = vmatprep.subr.mxu0 %v342
    %2502 = vmatpush1.msra.mxu0 %v341
    %2503 = vmatprep.subr.mxu0 %v345
    %2504 = vmatpush1.msra.mxu0 %v344
    %2505 = vmatprep.subr.mxu0 %v348
    %2506 = vmatpush1.msra.mxu0 %v347
    %2507 = vmatprep.subr.mxu0 %v351
    %2508 = vmatpush1.msra.mxu0 %v350
    %2509 = vmatprep.subr.mxu0 %v354
    %2510 = vmatpush1.msra.mxu0 %v353
    %2511 = vmatprep.subr.mxu0 %v357
    %2512 = vmatpush1.msra.mxu0 %v356
    %2513 = vmatprep.subr.mxu0 %v360
    %2514 = vmatpush1.msra.mxu0 %v359
    %2515 = vmatprep.subr.mxu0 %v363
    %2516 = vmatpush1.msra.mxu0 %v362
    %2517 = vmatprep.subr.mxu0 %v366
    %2518 = vmatpush1.msra.mxu0 %v365
    %2519 = vmatprep.subr.mxu0 %v369
    %2520 = vmatpush1.msra.mxu0 %v368
    %2521 = vmatprep.subr.mxu0 %v372
    %2522 = vmatpush1.msra.mxu0 %v371
    %2523 = vmatprep.subr.mxu0 %v375
    %2524 = vmatpush1.msra.mxu0 %v374
    %2525 = vmatprep.subr.mxu0 %v378
    %2526 = vmatpush1.msra.mxu0 %v377
    %2527 = vmatprep.subr.mxu0 %v381
    %2528 = vmatpush1.msra.mxu0 %v380
    %2529 = vmatprep.subr.mxu0 %v384
    %2530 = vmatpush1.msra.mxu0 %v383
    %2531 = vmatprep.subr.mxu0 %v387
    %2532 = vmatpush1.msra.mxu0 %v386
    %2533 = vmatprep.subr.mxu0 0.0
    %2534 = vmatpush1.msra.mxu0 0.0
    %2535 = vmatprep.subr.mxu0 0.0
    %2536 = vmatpush1.msra.mxu0 0.0
    %2537 = vmatprep.subr.mxu0 0.0
    %2538 = vmatpush1.msra.mxu0 0.0
    %2539 = vmatprep.subr.mxu0 0.0
    %2540 = vmatpush1.msra.mxu0 0.0
    %2541 = vmatprep.subr.mxu0 0.0
    %2542 = vmatpush1.msra.mxu0 0.0
    %2543 = vmatprep.subr.mxu0 0.0
    %2544 = vmatpush1.msra.mxu0 0.0
    %2545 = vmatprep.subr.mxu0 0.0
    %2546 = vmatpush1.msra.mxu0 0.0
    %2547 = vmatprep.subr.mxu0 0.0
    %2548 = vmatpush1.msra.mxu0 0.0
    %2549 = vmatprep.subr.mxu0 0.0
    %2550 = vmatpush1.msra.mxu0 0.0
    %2551 = vmatprep.subr.mxu0 0.0
    %2552 = vmatpush1.msra.mxu0 0.0
    %2553 = vmatprep.subr.mxu0 0.0
    %2554 = vmatpush1.msra.mxu0 0.0
    %2555 = vmatprep.subr.mxu0 0.0
    %2556 = vmatpush1.msra.mxu0 0.0
    %2557 = vmatprep.subr.mxu0 0.0
    %2558 = vmatpush1.msra.mxu0 0.0
    %2559 = vmatprep.subr.mxu0 0.0
    %2560 = vmatpush1.msra.mxu0 0.0
    %2561 = vmatprep.subr.mxu0 0.0
    %2562 = vmatpush1.msra.mxu0 0.0
    %2563 = vmatprep.subr.mxu0 0.0
    %2564 = vmatpush1.msra.mxu0 0.0
    %2565 = vmatprep.mubr.f32.mxu0 0.0
    %2566 = vmatmul.mubr.f32.gmra.mrb[0].mxu0 %v2499
    %v2567 = vpop.f32.mrb[0].mxu0
    %v2568 = vadd.f32 0.0, %v2567
    %v2569 = vpop.f32.mrb[0].mxu0
    %v2570 = vadd.f32 0.0, %v2569
    %2571 = vdwg.mxu0
    %2572 = vmatprep.subr.mxu0 0.0
    %2573 = vmatpush1.msra.mxu0 %v343
    %2574 = vmatprep.subr.mxu0 0.0
    %2575 = vmatpush1.msra.mxu0 %v346
    %2576 = vmatprep.subr.mxu0 0.0
    %2577 = vmatpush1.msra.mxu0 %v349
    %2578 = vmatprep.subr.mxu0 0.0
    %2579 = vmatpush1.msra.mxu0 %v352
    %2580 = vmatprep.subr.mxu0 0.0
    %2581 = vmatpush1.msra.mxu0 %v355
    %2582 = vmatprep.subr.mxu0 0.0
    %2583 = vmatpush1.msra.mxu0 %v358
    %2584 = vmatprep.subr.mxu0 0.0
    %2585 = vmatpush1.msra.mxu0 %v361
    %2586 = vmatprep.subr.mxu0 0.0
    %2587 = vmatpush1.msra.mxu0 %v364
    %2588 = vmatprep.subr.mxu0 0.0
    %2589 = vmatpush1.msra.mxu0 %v367
    %2590 = vmatprep.subr.mxu0 0.0
    %2591 = vmatpush1.msra.mxu0 %v370
    %2592 = vmatprep.subr.mxu0 0.0
    %2593 = vmatpush1.msra.mxu0 %v373
    %2594 = vmatprep.subr.mxu0 0.0
    %2595 = vmatpush1.msra.mxu0 %v376
    %2596 = vmatprep.subr.mxu0 0.0
    %2597 = vmatpush1.msra.mxu0 %v379
    %2598 = vmatprep.subr.mxu0 0.0
    %2599 = vmatpush1.msra.mxu0 %v382
    %2600 = vmatprep.subr.mxu0 0.0
    %2601 = vmatpush1.msra.mxu0 %v385
    %2602 = vmatprep.subr.mxu0 0.0
    %2603 = vmatpush1.msra.mxu0 %v388
    %2604 = vmatprep.subr.mxu0 0.0
    %2605 = vmatpush1.msra.mxu0 0.0
    %2606 = vmatprep.subr.mxu0 0.0
    %2607 = vmatpush1.msra.mxu0 0.0
    %2608 = vmatprep.subr.mxu0 0.0
    %2609 = vmatpush1.msra.mxu0 0.0
    %2610 = vmatprep.subr.mxu0 0.0
    %2611 = vmatpush1.msra.mxu0 0.0
    %2612 = vmatprep.subr.mxu0 0.0
    %2613 = vmatpush1.msra.mxu0 0.0
    %2614 = vmatprep.subr.mxu0 0.0
    %2615 = vmatpush1.msra.mxu0 0.0
    %2616 = vmatprep.subr.mxu0 0.0
    %2617 = vmatpush1.msra.mxu0 0.0
    %2618 = vmatprep.subr.mxu0 0.0
    %2619 = vmatpush1.msra.mxu0 0.0
    %2620 = vmatprep.subr.mxu0 0.0
    %2621 = vmatpush1.msra.mxu0 0.0
    %2622 = vmatprep.subr.mxu0 0.0
    %2623 = vmatpush1.msra.mxu0 0.0
    %2624 = vmatprep.subr.mxu0 0.0
    %2625 = vmatpush1.msra.mxu0 0.0
    %2626 = vmatprep.subr.mxu0 0.0
    %2627 = vmatpush1.msra.mxu0 0.0
    %2628 = vmatprep.subr.mxu0 0.0
    %2629 = vmatpush1.msra.mxu0 0.0
    %2630 = vmatprep.subr.mxu0 0.0
    %2631 = vmatpush1.msra.mxu0 0.0
    %2632 = vmatprep.subr.mxu0 0.0
    %2633 = vmatpush1.msra.mxu0 0.0
    %2634 = vmatprep.subr.mxu0 0.0
    %2635 = vmatpush1.msra.mxu0 0.0
    %2636 = vmatprep.mubr.f32.mxu0 0.0
    %2637 = vmatmul.mubr.f32.gmra.mrb[0].mxu0 %v2499
    %v2638 = vpop.f32.mrb[0].mxu0
    %v2639 = vadd.f32 0.0, %v2638
    %v2640 = vpop.f32.mrb[0].mxu0
    %2641 = vdwg.mxu0
    %v2643 = vrot.slane %v2568, 4
    %v2645 = vadd.f32 %v296, %v2643
    %v2646 = vxor.u32 %v2645, 2147483648
    %v2647 = vmul.f32 %v2646, 1.442695
    %v2648 = vpow.pop %v2647
    %v2649 = vadd.f32 %v2648, 1.0
    %v2650 = vrcp.pop %v2649
    %v2651 = vmul.f32 1.0, %v2650
    %v2653 = vrot.slane %v2570, 4
    %v2655 = vadd.f32 %v298, %v2653
    %v2656 = vxor.u32 %v2655, 2147483648
    %v2657 = vmul.f32 %v2656, 1.442695
    %v2658 = vpow.pop %v2657
    %v2659 = vadd.f32 %v2658, 1.0
    %v2660 = vrcp.pop %v2659
    %v2661 = vmul.f32 1.0, %v2660
    %v2662 = vadd.f32 %v2639, %v389
    %v2664 = vrot.slane %v2662, 4
    %v2666 = vmul.f32 %v2651, %v2664
    %v2667 = vadd.f32 %v338, %v2666
    %v2668 = vtanh.pop %v2667
    %v2669 = vsub.f32 1.0, %v2661
    %v2670 = vmul.f32 %v2669, %v2668
    %v2671 = vrot.slane %v2496, 7
    %v2673 = vmul.f32 %v2661, %v2671
    %v2674 = vadd.f32 %v2670, %v2673
    %2675 = vst [vmem:[#allocation9 + $0x8] sm:$0x10] %v2674
    %v2677 = vrot.slane %v2674, 4
    %2679 = vmatprep.subr.mxu0 %v342
    %2680 = vmatpush1.msra.mxu0 %v341
    %2681 = vmatprep.subr.mxu0 %v345
    %2682 = vmatpush1.msra.mxu0 %v344
    %2683 = vmatprep.subr.mxu0 %v348
    %2684 = vmatpush1.msra.mxu0 %v347
    %2685 = vmatprep.subr.mxu0 %v351
    %2686 = vmatpush1.msra.mxu0 %v350
    %2687 = vmatprep.subr.mxu0 %v354
    %2688 = vmatpush1.msra.mxu0 %v353
    %2689 = vmatprep.subr.mxu0 %v357
    %2690 = vmatpush1.msra.mxu0 %v356
    %2691 = vmatprep.subr.mxu0 %v360
    %2692 = vmatpush1.msra.mxu0 %v359
    %2693 = vmatprep.subr.mxu0 %v363
    %2694 = vmatpush1.msra.mxu0 %v362
    %2695 = vmatprep.subr.mxu0 %v366
    %2696 = vmatpush1.msra.mxu0 %v365
    %2697 = vmatprep.subr.mxu0 %v369
    %2698 = vmatpush1.msra.mxu0 %v368
    %2699 = vmatprep.subr.mxu0 %v372
    %2700 = vmatpush1.msra.mxu0 %v371
    %2701 = vmatprep.subr.mxu0 %v375
    %2702 = vmatpush1.msra.mxu0 %v374
    %2703 = vmatprep.subr.mxu0 %v378
    %2704 = vmatpush1.msra.mxu0 %v377
    %2705 = vmatprep.subr.mxu0 %v381
    %2706 = vmatpush1.msra.mxu0 %v380
    %2707 = vmatprep.subr.mxu0 %v384
    %2708 = vmatpush1.msra.mxu0 %v383
    %2709 = vmatprep.subr.mxu0 %v387
    %2710 = vmatpush1.msra.mxu0 %v386
    %2711 = vmatprep.subr.mxu0 0.0
    %2712 = vmatpush1.msra.mxu0 0.0
    %2713 = vmatprep.subr.mxu0 0.0
    %2714 = vmatpush1.msra.mxu0 0.0
    %2715 = vmatprep.subr.mxu0 0.0
    %2716 = vmatpush1.msra.mxu0 0.0
    %2717 = vmatprep.subr.mxu0 0.0
    %2718 = vmatpush1.msra.mxu0 0.0
    %2719 = vmatprep.subr.mxu0 0.0
    %2720 = vmatpush1.msra.mxu0 0.0
    %2721 = vmatprep.subr.mxu0 0.0
    %2722 = vmatpush1.msra.mxu0 0.0
    %2723 = vmatprep.subr.mxu0 0.0
    %2724 = vmatpush1.msra.mxu0 0.0
    %2725 = vmatprep.subr.mxu0 0.0
    %2726 = vmatpush1.msra.mxu0 0.0
    %2727 = vmatprep.subr.mxu0 0.0
    %2728 = vmatpush1.msra.mxu0 0.0
    %2729 = vmatprep.subr.mxu0 0.0
    %2730 = vmatpush1.msra.mxu0 0.0
    %2731 = vmatprep.subr.mxu0 0.0
    %2732 = vmatpush1.msra.mxu0 0.0
    %2733 = vmatprep.subr.mxu0 0.0
    %2734 = vmatpush1.msra.mxu0 0.0
    %2735 = vmatprep.subr.mxu0 0.0
    %2736 = vmatpush1.msra.mxu0 0.0
    %2737 = vmatprep.subr.mxu0 0.0
    %2738 = vmatpush1.msra.mxu0 0.0
    %2739 = vmatprep.subr.mxu0 0.0
    %2740 = vmatpush1.msra.mxu0 0.0
    %2741 = vmatprep.subr.mxu0 0.0
    %2742 = vmatpush1.msra.mxu0 0.0
    %2743 = vmatprep.mubr.f32.mxu0 0.0
    %2744 = vmatmul.mubr.f32.gmra.mrb[0].mxu0 %v2677
    %v2745 = vpop.f32.mrb[0].mxu0
    %v2746 = vadd.f32 0.0, %v2745
    %v2747 = vpop.f32.mrb[0].mxu0
    %v2748 = vadd.f32 0.0, %v2747
    %2749 = vdwg.mxu0
    %2750 = vmatprep.subr.mxu0 0.0
    %2751 = vmatpush1.msra.mxu0 %v343
    %2752 = vmatprep.subr.mxu0 0.0
    %2753 = vmatpush1.msra.mxu0 %v346
    %2754 = vmatprep.subr.mxu0 0.0
    %2755 = vmatpush1.msra.mxu0 %v349
    %2756 = vmatprep.subr.mxu0 0.0
    %2757 = vmatpush1.msra.mxu0 %v352
    %2758 = vmatprep.subr.mxu0 0.0
    %2759 = vmatpush1.msra.mxu0 %v355
    %2760 = vmatprep.subr.mxu0 0.0
    %2761 = vmatpush1.msra.mxu0 %v358
    %2762 = vmatprep.subr.mxu0 0.0
    %2763 = vmatpush1.msra.mxu0 %v361
    %2764 = vmatprep.subr.mxu0 0.0
    %2765 = vmatpush1.msra.mxu0 %v364
    %2766 = vmatprep.subr.mxu0 0.0
    %2767 = vmatpush1.msra.mxu0 %v367
    %2768 = vmatprep.subr.mxu0 0.0
    %2769 = vmatpush1.msra.mxu0 %v370
    %2770 = vmatprep.subr.mxu0 0.0
    %2771 = vmatpush1.msra.mxu0 %v373
    %2772 = vmatprep.subr.mxu0 0.0
    %2773 = vmatpush1.msra.mxu0 %v376
    %2774 = vmatprep.subr.mxu0 0.0
    %2775 = vmatpush1.msra.mxu0 %v379
    %2776 = vmatprep.subr.mxu0 0.0
    %2777 = vmatpush1.msra.mxu0 %v382
    %2778 = vmatprep.subr.mxu0 0.0
    %2779 = vmatpush1.msra.mxu0 %v385
    %2780 = vmatprep.subr.mxu0 0.0
    %2781 = vmatpush1.msra.mxu0 %v388
    %2782 = vmatprep.subr.mxu0 0.0
    %2783 = vmatpush1.msra.mxu0 0.0
    %2784 = vmatprep.subr.mxu0 0.0
    %2785 = vmatpush1.msra.mxu0 0.0
    %2786 = vmatprep.subr.mxu0 0.0
    %2787 = vmatpush1.msra.mxu0 0.0
    %2788 = vmatprep.subr.mxu0 0.0
    %2789 = vmatpush1.msra.mxu0 0.0
    %2790 = vmatprep.subr.mxu0 0.0
    %2791 = vmatpush1.msra.mxu0 0.0
    %2792 = vmatprep.subr.mxu0 0.0
    %2793 = vmatpush1.msra.mxu0 0.0
    %2794 = vmatprep.subr.mxu0 0.0
    %2795 = vmatpush1.msra.mxu0 0.0
    %2796 = vmatprep.subr.mxu0 0.0
    %2797 = vmatpush1.msra.mxu0 0.0
    %2798 = vmatprep.subr.mxu0 0.0
    %2799 = vmatpush1.msra.mxu0 0.0
    %2800 = vmatprep.subr.mxu0 0.0
    %2801 = vmatpush1.msra.mxu0 0.0
    %2802 = vmatprep.subr.mxu0 0.0
    %2803 = vmatpush1.msra.mxu0 0.0
    %2804 = vmatprep.subr.mxu0 0.0
    %2805 = vmatpush1.msra.mxu0 0.0
    %2806 = vmatprep.subr.mxu0 0.0
    %2807 = vmatpush1.msra.mxu0 0.0
    %2808 = vmatprep.subr.mxu0 0.0
    %2809 = vmatpush1.msra.mxu0 0.0
    %2810 = vmatprep.subr.mxu0 0.0
    %2811 = vmatpush1.msra.mxu0 0.0
    %2812 = vmatprep.subr.mxu0 0.0
    %2813 = vmatpush1.msra.mxu0 0.0
    %2814 = vmatprep.mubr.f32.mxu0 0.0
    %2815 = vmatmul.mubr.f32.gmra.mrb[0].mxu0 %v2677
    %v2816 = vpop.f32.mrb[0].mxu0
    %v2817 = vadd.f32 0.0, %v2816
    %v2818 = vpop.f32.mrb[0].mxu0
    %2819 = vdwg.mxu0
    %v2821 = vrot.slane %v2746, 3
    %v2823 = vadd.f32 %v296, %v2821
    %v2824 = vxor.u32 %v2823, 2147483648
    %v2825 = vmul.f32 %v2824, 1.442695
    %v2826 = vpow.pop %v2825
    %v2827 = vadd.f32 %v2826, 1.0
    %v2828 = vrcp.pop %v2827
    %v2829 = vmul.f32 1.0, %v2828
    %v2831 = vrot.slane %v2748, 3
    %v2833 = vadd.f32 %v298, %v2831
    %v2834 = vxor.u32 %v2833, 2147483648
    %v2835 = vmul.f32 %v2834, 1.442695
    %v2836 = vpow.pop %v2835
    %v2837 = vadd.f32 %v2836, 1.0
    %v2838 = vrcp.pop %v2837
    %v2839 = vmul.f32 1.0, %v2838
    %v2840 = vadd.f32 %v2817, %v389
    %v2842 = vrot.slane %v2840, 3
    %v2844 = vmul.f32 %v2829, %v2842
    %v2845 = vadd.f32 %v338, %v2844
    %v2846 = vtanh.pop %v2845
    %v2847 = vsub.f32 1.0, %v2839
    %v2848 = vmul.f32 %v2847, %v2846
    %v2849 = vrot.slane %v2674, 7
    %v2851 = vmul.f32 %v2839, %v2849
    %v2852 = vadd.f32 %v2848, %v2851
    %2853 = vst [vmem:[#allocation9 + $0x8] sm:$0x20] %v2852
    %v2855 = vrot.slane %v2852, 5
    %2857 = vmatprep.subr.mxu0 %v342
    %2858 = vmatpush1.msra.mxu0 %v341
    %2859 = vmatprep.subr.mxu0 %v345
    %2860 = vmatpush1.msra.mxu0 %v344
    %2861 = vmatprep.subr.mxu0 %v348
    %2862 = vmatpush1.msra.mxu0 %v347
    %2863 = vmatprep.subr.mxu0 %v351
    %2864 = vmatpush1.msra.mxu0 %v350
    %2865 = vmatprep.subr.mxu0 %v354
    %2866 = vmatpush1.msra.mxu0 %v353
    %2867 = vmatprep.subr.mxu0 %v357
    %2868 = vmatpush1.msra.mxu0 %v356
    %2869 = vmatprep.subr.mxu0 %v360
    %2870 = vmatpush1.msra.mxu0 %v359
    %2871 = vmatprep.subr.mxu0 %v363
    %2872 = vmatpush1.msra.mxu0 %v362
    %2873 = vmatprep.subr.mxu0 %v366
    %2874 = vmatpush1.msra.mxu0 %v365
    %2875 = vmatprep.subr.mxu0 %v369
    %2876 = vmatpush1.msra.mxu0 %v368
    %2877 = vmatprep.subr.mxu0 %v372
    %2878 = vmatpush1.msra.mxu0 %v371
    %2879 = vmatprep.subr.mxu0 %v375
    %2880 = vmatpush1.msra.mxu0 %v374
    %2881 = vmatprep.subr.mxu0 %v378
    %2882 = vmatpush1.msra.mxu0 %v377
    %2883 = vmatprep.subr.mxu0 %v381
    %2884 = vmatpush1.msra.mxu0 %v380
    %2885 = vmatprep.subr.mxu0 %v384
    %2886 = vmatpush1.msra.mxu0 %v383
    %2887 = vmatprep.subr.mxu0 %v387
    %2888 = vmatpush1.msra.mxu0 %v386
    %2889 = vmatprep.subr.mxu0 0.0
    %2890 = vmatpush1.msra.mxu0 0.0
    %2891 = vmatprep.subr.mxu0 0.0
    %2892 = vmatpush1.msra.mxu0 0.0
    %2893 = vmatprep.subr.mxu0 0.0
    %2894 = vmatpush1.msra.mxu0 0.0
    %2895 = vmatprep.subr.mxu0 0.0
    %2896 = vmatpush1.msra.mxu0 0.0
    %2897 = vmatprep.subr.mxu0 0.0
    %2898 = vmatpush1.msra.mxu0 0.0
    %2899 = vmatprep.subr.mxu0 0.0
    %2900 = vmatpush1.msra.mxu0 0.0
    %2901 = vmatprep.subr.mxu0 0.0
    %2902 = vmatpush1.msra.mxu0 0.0
    %2903 = vmatprep.subr.mxu0 0.0
    %2904 = vmatpush1.msra.mxu0 0.0
    %2905 = vmatprep.subr.mxu0 0.0
    %2906 = vmatpush1.msra.mxu0 0.0
    %2907 = vmatprep.subr.mxu0 0.0
    %2908 = vmatpush1.msra.mxu0 0.0
    %2909 = vmatprep.subr.mxu0 0.0
    %2910 = vmatpush1.msra.mxu0 0.0
    %2911 = vmatprep.subr.mxu0 0.0
    %2912 = vmatpush1.msra.mxu0 0.0
    %2913 = vmatprep.subr.mxu0 0.0
    %2914 = vmatpush1.msra.mxu0 0.0
    %2915 = vmatprep.subr.mxu0 0.0
    %2916 = vmatpush1.msra.mxu0 0.0
    %2917 = vmatprep.subr.mxu0 0.0
    %2918 = vmatpush1.msra.mxu0 0.0
    %2919 = vmatprep.subr.mxu0 0.0
    %2920 = vmatpush1.msra.mxu0 0.0
    %2921 = vmatprep.mubr.f32.mxu0 0.0
    %2922 = vmatmul.mubr.f32.gmra.mrb[0].mxu0 %v2855
    %v2923 = vpop.f32.mrb[0].mxu0
    %v2924 = vadd.f32 0.0, %v2923
    %v2925 = vpop.f32.mrb[0].mxu0
    %v2926 = vadd.f32 0.0, %v2925
    %2927 = vdwg.mxu0
    %2928 = vmatprep.subr.mxu0 0.0
    %2929 = vmatpush1.msra.mxu0 %v343
    %2930 = vmatprep.subr.mxu0 0.0
    %2931 = vmatpush1.msra.mxu0 %v346
    %2932 = vmatprep.subr.mxu0 0.0
    %2933 = vmatpush1.msra.mxu0 %v349
    %2934 = vmatprep.subr.mxu0 0.0
    %2935 = vmatpush1.msra.mxu0 %v352
    %2936 = vmatprep.subr.mxu0 0.0
    %2937 = vmatpush1.msra.mxu0 %v355
    %2938 = vmatprep.subr.mxu0 0.0
    %2939 = vmatpush1.msra.mxu0 %v358
    %2940 = vmatprep.subr.mxu0 0.0
    %2941 = vmatpush1.msra.mxu0 %v361
    %2942 = vmatprep.subr.mxu0 0.0
    %2943 = vmatpush1.msra.mxu0 %v364
    %2944 = vmatprep.subr.mxu0 0.0
    %2945 = vmatpush1.msra.mxu0 %v367
    %2946 = vmatprep.subr.mxu0 0.0
    %2947 = vmatpush1.msra.mxu0 %v370
    %2948 = vmatprep.subr.mxu0 0.0
    %2949 = vmatpush1.msra.mxu0 %v373
    %2950 = vmatprep.subr.mxu0 0.0
    %2951 = vmatpush1.msra.mxu0 %v376
    %2952 = vmatprep.subr.mxu0 0.0
    %2953 = vmatpush1.msra.mxu0 %v379
    %2954 = vmatprep.subr.mxu0 0.0
    %2955 = vmatpush1.msra.mxu0 %v382
    %2956 = vmatprep.subr.mxu0 0.0
    %2957 = vmatpush1.msra.mxu0 %v385
    %2958 = vmatprep.subr.mxu0 0.0
    %2959 = vmatpush1.msra.mxu0 %v388
    %2960 = vmatprep.subr.mxu0 0.0
    %2961 = vmatpush1.msra.mxu0 0.0
    %2962 = vmatprep.subr.mxu0 0.0
    %2963 = vmatpush1.msra.mxu0 0.0
    %2964 = vmatprep.subr.mxu0 0.0
    %2965 = vmatpush1.msra.mxu0 0.0
    %2966 = vmatprep.subr.mxu0 0.0
    %2967 = vmatpush1.msra.mxu0 0.0
    %2968 = vmatprep.subr.mxu0 0.0
    %2969 = vmatpush1.msra.mxu0 0.0
    %2970 = vmatprep.subr.mxu0 0.0
    %2971 = vmatpush1.msra.mxu0 0.0
    %2972 = vmatprep.subr.mxu0 0.0
    %2973 = vmatpush1.msra.mxu0 0.0
    %2974 = vmatprep.subr.mxu0 0.0
    %2975 = vmatpush1.msra.mxu0 0.0
    %2976 = vmatprep.subr.mxu0 0.0
    %2977 = vmatpush1.msra.mxu0 0.0
    %2978 = vmatprep.subr.mxu0 0.0
    %2979 = vmatpush1.msra.mxu0 0.0
    %2980 = vmatprep.subr.mxu0 0.0
    %2981 = vmatpush1.msra.mxu0 0.0
    %2982 = vmatprep.subr.mxu0 0.0
    %2983 = vmatpush1.msra.mxu0 0.0
    %2984 = vmatprep.subr.mxu0 0.0
    %2985 = vmatpush1.msra.mxu0 0.0
    %2986 = vmatprep.subr.mxu0 0.0
    %2987 = vmatpush1.msra.mxu0 0.0
    %2988 = vmatprep.subr.mxu0 0.0
    %2989 = vmatpush1.msra.mxu0 0.0
    %2990 = vmatprep.subr.mxu0 0.0
    %2991 = vmatpush1.msra.mxu0 0.0
    %2992 = vmatprep.mubr.f32.mxu0 0.0
    %2993 = vmatmul.mubr.f32.gmra.mrb[0].mxu0 %v2855
    %v2994 = vpop.f32.mrb[0].mxu0
    %v2995 = vadd.f32 0.0, %v2994
    %v2996 = vpop.f32.mrb[0].mxu0
    %2997 = vdwg.mxu0
    %v2999 = vrot.slane %v2924, 2
    %v3001 = vadd.f32 %v296, %v2999
    %v3002 = vxor.u32 %v3001, 2147483648
    %v3003 = vmul.f32 %v3002, 1.442695
    %v3004 = vpow.pop %v3003
    %v3005 = vadd.f32 %v3004, 1.0
    %v3006 = vrcp.pop %v3005
    %v3007 = vmul.f32 1.0, %v3006
    %v3009 = vrot.slane %v2926, 2
    %v3011 = vadd.f32 %v298, %v3009
    %v3012 = vxor.u32 %v3011, 2147483648
    %v3013 = vmul.f32 %v3012, 1.442695
    %v3014 = vpow.pop %v3013
    %v3015 = vadd.f32 %v3014, 1.0
    %v3016 = vrcp.pop %v3015
    %v3017 = vmul.f32 1.0, %v3016
    %v3018 = vadd.f32 %v2995, %v389
    %v3020 = vrot.slane %v3018, 2
    %v3022 = vmul.f32 %v3007, %v3020
    %v3023 = vadd.f32 %v338, %v3022
    %v3024 = vtanh.pop %v3023
    %v3025 = vsub.f32 1.0, %v3017
    %v3026 = vmul.f32 %v3025, %v3024
    %v3027 = vrot.slane %v2852, 7
    %v3029 = vmul.f32 %v3017, %v3027
    %v3030 = vadd.f32 %v3026, %v3029
    %3031 = vst [vmem:[#allocation9 + $0x8] sm:$0x40] %v3030
    %v3033 = vrot.slane %v3030, 6
    %3035 = vmatprep.subr.mxu0 %v342
    %3036 = vmatpush1.msra.mxu0 %v341
    %3037 = vmatprep.subr.mxu0 %v345
    %3038 = vmatpush1.msra.mxu0 %v344
    %3039 = vmatprep.subr.mxu0 %v348
    %3040 = vmatpush1.msra.mxu0 %v347
    %3041 = vmatprep.subr.mxu0 %v351
    %3042 = vmatpush1.msra.mxu0 %v350
    %3043 = vmatprep.subr.mxu0 %v354
    %3044 = vmatpush1.msra.mxu0 %v353
    %3045 = vmatprep.subr.mxu0 %v357
    %3046 = vmatpush1.msra.mxu0 %v356
    %3047 = vmatprep.subr.mxu0 %v360
    %3048 = vmatpush1.msra.mxu0 %v359
    %3049 = vmatprep.subr.mxu0 %v363
    %3050 = vmatpush1.msra.mxu0 %v362
    %3051 = vmatprep.subr.mxu0 %v366
    %3052 = vmatpush1.msra.mxu0 %v365
    %3053 = vmatprep.subr.mxu0 %v369
    %3054 = vmatpush1.msra.mxu0 %v368
    %3055 = vmatprep.subr.mxu0 %v372
    %3056 = vmatpush1.msra.mxu0 %v371
    %3057 = vmatprep.subr.mxu0 %v375
    %3058 = vmatpush1.msra.mxu0 %v374
    %3059 = vmatprep.subr.mxu0 %v378
    %3060 = vmatpush1.msra.mxu0 %v377
    %3061 = vmatprep.subr.mxu0 %v381
    %3062 = vmatpush1.msra.mxu0 %v380
    %3063 = vmatprep.subr.mxu0 %v384
    %3064 = vmatpush1.msra.mxu0 %v383
    %3065 = vmatprep.subr.mxu0 %v387
    %3066 = vmatpush1.msra.mxu0 %v386
    %3067 = vmatprep.subr.mxu0 0.0
    %3068 = vmatpush1.msra.mxu0 0.0
    %3069 = vmatprep.subr.mxu0 0.0
    %3070 = vmatpush1.msra.mxu0 0.0
    %3071 = vmatprep.subr.mxu0 0.0
    %3072 = vmatpush1.msra.mxu0 0.0
    %3073 = vmatprep.subr.mxu0 0.0
    %3074 = vmatpush1.msra.mxu0 0.0
    %3075 = vmatprep.subr.mxu0 0.0
    %3076 = vmatpush1.msra.mxu0 0.0
    %3077 = vmatprep.subr.mxu0 0.0
    %3078 = vmatpush1.msra.mxu0 0.0
    %3079 = vmatprep.subr.mxu0 0.0
    %3080 = vmatpush1.msra.mxu0 0.0
    %3081 = vmatprep.subr.mxu0 0.0
    %3082 = vmatpush1.msra.mxu0 0.0
    %3083 = vmatprep.subr.mxu0 0.0
    %3084 = vmatpush1.msra.mxu0 0.0
    %3085 = vmatprep.subr.mxu0 0.0
    %3086 = vmatpush1.msra.mxu0 0.0
    %3087 = vmatprep.subr.mxu0 0.0
    %3088 = vmatpush1.msra.mxu0 0.0
    %3089 = vmatprep.subr.mxu0 0.0
    %3090 = vmatpush1.msra.mxu0 0.0
    %3091 = vmatprep.subr.mxu0 0.0
    %3092 = vmatpush1.msra.mxu0 0.0
    %3093 = vmatprep.subr.mxu0 0.0
    %3094 = vmatpush1.msra.mxu0 0.0
    %3095 = vmatprep.subr.mxu0 0.0
    %3096 = vmatpush1.msra.mxu0 0.0
    %3097 = vmatprep.subr.mxu0 0.0
    %3098 = vmatpush1.msra.mxu0 0.0
    %3099 = vmatprep.mubr.f32.mxu0 0.0
    %3100 = vmatmul.mubr.f32.gmra.mrb[0].mxu0 %v3033
    %v3101 = vpop.f32.mrb[0].mxu0
    %v3102 = vadd.f32 0.0, %v3101
    %v3103 = vpop.f32.mrb[0].mxu0
    %v3104 = vadd.f32 0.0, %v3103
    %3105 = vdwg.mxu0
    %3106 = vmatprep.subr.mxu0 0.0
    %3107 = vmatpush1.msra.mxu0 %v343
    %3108 = vmatprep.subr.mxu0 0.0
    %3109 = vmatpush1.msra.mxu0 %v346
    %3110 = vmatprep.subr.mxu0 0.0
    %3111 = vmatpush1.msra.mxu0 %v349
    %3112 = vmatprep.subr.mxu0 0.0
    %3113 = vmatpush1.msra.mxu0 %v352
    %3114 = vmatprep.subr.mxu0 0.0
    %3115 = vmatpush1.msra.mxu0 %v355
    %3116 = vmatprep.subr.mxu0 0.0
    %3117 = vmatpush1.msra.mxu0 %v358
    %3118 = vmatprep.subr.mxu0 0.0
    %3119 = vmatpush1.msra.mxu0 %v361
    %3120 = vmatprep.subr.mxu0 0.0
    %3121 = vmatpush1.msra.mxu0 %v364
    %3122 = vmatprep.subr.mxu0 0.0
    %3123 = vmatpush1.msra.mxu0 %v367
    %3124 = vmatprep.subr.mxu0 0.0
    %3125 = vmatpush1.msra.mxu0 %v370
    %3126 = vmatprep.subr.mxu0 0.0
    %3127 = vmatpush1.msra.mxu0 %v373
    %3128 = vmatprep.subr.mxu0 0.0
    %3129 = vmatpush1.msra.mxu0 %v376
    %3130 = vmatprep.subr.mxu0 0.0
    %3131 = vmatpush1.msra.mxu0 %v379
    %3132 = vmatprep.subr.mxu0 0.0
    %3133 = vmatpush1.msra.mxu0 %v382
    %3134 = vmatprep.subr.mxu0 0.0
    %3135 = vmatpush1.msra.mxu0 %v385
    %3136 = vmatprep.subr.mxu0 0.0
    %3137 = vmatpush1.msra.mxu0 %v388
    %3138 = vmatprep.subr.mxu0 0.0
    %3139 = vmatpush1.msra.mxu0 0.0
    %3140 = vmatprep.subr.mxu0 0.0
    %3141 = vmatpush1.msra.mxu0 0.0
    %3142 = vmatprep.subr.mxu0 0.0
    %3143 = vmatpush1.msra.mxu0 0.0
    %3144 = vmatprep.subr.mxu0 0.0
    %3145 = vmatpush1.msra.mxu0 0.0
    %3146 = vmatprep.subr.mxu0 0.0
    %3147 = vmatpush1.msra.mxu0 0.0
    %3148 = vmatprep.subr.mxu0 0.0
    %3149 = vmatpush1.msra.mxu0 0.0
    %3150 = vmatprep.subr.mxu0 0.0
    %3151 = vmatpush1.msra.mxu0 0.0
    %3152 = vmatprep.subr.mxu0 0.0
    %3153 = vmatpush1.msra.mxu0 0.0
    %3154 = vmatprep.subr.mxu0 0.0
    %3155 = vmatpush1.msra.mxu0 0.0
    %3156 = vmatprep.subr.mxu0 0.0
    %3157 = vmatpush1.msra.mxu0 0.0
    %3158 = vmatprep.subr.mxu0 0.0
    %3159 = vmatpush1.msra.mxu0 0.0
    %3160 = vmatprep.subr.mxu0 0.0
    %3161 = vmatpush1.msra.mxu0 0.0
    %3162 = vmatprep.subr.mxu0 0.0
    %3163 = vmatpush1.msra.mxu0 0.0
    %3164 = vmatprep.subr.mxu0 0.0
    %3165 = vmatpush1.msra.mxu0 0.0
    %3166 = vmatprep.subr.mxu0 0.0
    %3167 = vmatpush1.msra.mxu0 0.0
    %3168 = vmatprep.subr.mxu0 0.0
    %3169 = vmatpush1.msra.mxu0 0.0
    %3170 = vmatprep.mubr.f32.mxu0 0.0
    %3171 = vmatmul.mubr.f32.gmra.mrb[0].mxu0 %v3033
    %v3172 = vpop.f32.mrb[0].mxu0
    %v3173 = vadd.f32 0.0, %v3172
    %v3174 = vpop.f32.mrb[0].mxu0
    %3175 = vdwg.mxu0
    %v3177 = vrot.slane %v3102, 1
    %v3179 = vadd.f32 %v296, %v3177
    %v3180 = vxor.u32 %v3179, 2147483648
    %v3181 = vmul.f32 %v3180, 1.442695
    %v3182 = vpow.pop %v3181
    %v3183 = vadd.f32 %v3182, 1.0
    %v3184 = vrcp.pop %v3183
    %v3185 = vmul.f32 1.0, %v3184
    %v3187 = vrot.slane %v3104, 1
    %v3189 = vadd.f32 %v298, %v3187
    %v3190 = vxor.u32 %v3189, 2147483648
    %v3191 = vmul.f32 %v3190, 1.442695
    %v3192 = vpow.pop %v3191
    %v3193 = vadd.f32 %v3192, 1.0
    %v3194 = vrcp.pop %v3193
    %v3195 = vmul.f32 1.0, %v3194
    %v3196 = vadd.f32 %v3173, %v389
    %v3198 = vrot.slane %v3196, 1
    %v3200 = vmul.f32 %v3185, %v3198
    %v3201 = vadd.f32 %v338, %v3200
    %v3202 = vtanh.pop %v3201
    %v3203 = vsub.f32 1.0, %v3195
    %v3204 = vmul.f32 %v3203, %v3202
    %v3205 = vrot.slane %v3030, 7
    %v3207 = vmul.f32 %v3195, %v3205
    %v3208 = vadd.f32 %v3204, %v3207
    %3209 = vst [vmem:[#allocation9 + $0x8] sm:$0x80] %v3208
    %3210 = vst [vmem:[#allocation2 - $0x7] sm:$0x80] %v3208
    // Predicated region
    $region42: #{tpu_custom_call.1} parent=1 // pred_check
      _
    $region43: #{tpu_custom_call.1} parent=1 // pred_check_branch
      %3212 = sbr.rel (0) target = $region45
    $region44: #{tpu_custom_call.1} parent=1 // pred_region
      %s3214 = ssub.s32 256, 256
      %3215 = vsyncadd [#allocation5], %s3214
      %s3216 = sshll.u32 [#allocation9], 4
      %s3217 = int_to_ptr.vmem [resolvable:$true] %s3216
      %3222 = dma.vmem_to_hbm [thread:$0]  %s3217, 256, %s6, [#allocation5], 128, 128, 8
    $region45: #{tpu_custom_call.1} parent=1 // pred_fallthru
      _
    // Predicated region
    $region46: #{tpu_custom_call.1} parent=1 // pred_check
      _
    $region47: #{tpu_custom_call.1} parent=1 // pred_check_branch
      %3224 = sbr.rel (0) target = $region49
    $region48: #{tpu_custom_call.1} parent=1 // pred_region
      %3225 = dma.done [#allocation5], 256
    $region49: #{tpu_custom_call.1} parent=1 // pred_fallthru
      _
    %3226 = vsyncpa [#allocation4], 1
    %3227 = vsyncpa [#allocation7], 1
    %3228 = vsyncpa [#allocation5], 1

// kernel: tpu_custom_call.1
$region0: #{tpu_custom_call.1}
  #allocation0 [shape = 'u32[]', space=smem, size = 0x4, offset = 0x4, fixed_abs, tag = 'smem constant byte address 0x4 - core index']
  #allocation1 [shape = 'u32[144,128]{1,0:T(1,128)}', space=vmem, size = 0x12000, scoped, tag = 'internal scratch']
  #allocation2 [shape = 'f32[1,128]{1,0:T(1,128)}', space=vmem, size = 0x200, scoped, tag = 'scratch operand']
  %s0 = inlined_call_operand.hbm [shape: bf16[16,128], index: 0, kind: input, shape index: {}]
  %s1 = inlined_call_operand.vmem [shape: f32[1,128], index: 1, kind: input, shape index: {}]
  %s2 = inlined_call_operand.hbm [shape: bf16[128,384], index: 2, kind: input, shape index: {}]
  %s3 = inlined_call_operand.hbm [shape: f32[128,384], index: 3, kind: input, shape index: {}]
  %s4 = inlined_call_operand.vmem [shape: f32[1,384], index: 4, kind: input, shape index: {}]
  %s5 = inlined_call_operand.vmem [shape: f32[1,128], index: 5, kind: input, shape index: {}]
  %s6 = inlined_call_operand.hbm [shape: f32[16,128], index: 6, kind: output, shape index: {}]
  %s7 = sld [smem:[#allocation0]]
  $region50: #{tpu_custom_call.1} parent=0
    _
  %s9 = ssub.s32 1, %s7
  %s10 = scalar_select 0, %s9, %s7
  $region1: #{tpu_custom_call.1} parent=0
    #allocation3 [shape = 'u8[4096]{0}', space=vmem, size = 0x1000, scoped, tag = 'input window, operand 0, single buffered']
    #allocation4 [shape = 's32[1]{0}', space=sflag, size = 0x4, scoped, tag = 'scoped memory for tpu_custom_call.1']
    #allocation5 [shape = 's32[1]{0}', space=sflag, size = 0x4, scoped, tag = 'scoped memory for tpu_custom_call.1']
    #allocation6 [shape = 'u8[98304]{0}', space=vmem, size = 0x18000, scoped, tag = 'input window, operand 2, single buffered']
    #allocation7 [shape = 's32[1]{0}', space=sflag, size = 0x4, scoped, tag = 'scoped memory for tpu_custom_call.1']
    #allocation8 [shape = 'u8[196608]{0}', space=vmem, size = 0x30000, scoped, tag = 'input window, operand 3, single buffered']
    #allocation9 [shape = 'u8[8192]{0}', space=vmem, size = 0x2000, scoped, tag = 'output window, operand 0, single buffered']
    %11 = vsyncpa [#allocation4], 0
    %12 = vsyncpa [#allocation7], 0
    %13 = vsyncpa [#allocation5], 0
    // Predicated region
    $region2: #{tpu_custom_call.1} parent=1 // pred_check
      _
    $region3: #{tpu_custom_call.1} parent=1 // pred_check_branch
      %15 = sbr.rel (0) target = $region5
    $region4: #{tpu_custom_call.1} parent=1 // pred_region
      %s17 = ssub.s32 128, 128
      %18 = vsyncadd [#allocation4], %s17
      %s19 = sshll.u32 [#allocation3], 4
      %s20 = int_to_ptr.vmem [resolvable:$true] %s19
      %25 = dma.hbm_to_vmem [thread:$0]  %s0, 128, %s20, [#allocation4], 64, 64, 4
    $region5: #{tpu_custom_call.1} parent=1 // pred_fallthru
      _
    // Predicated region
    $region6: #{tpu_custom_call.1} parent=1 // pred_check
      _
    $region7: #{tpu_custom_call.1} parent=1 // pred_check_branch
      %27 = sbr.rel (0) target = $region9
    $region8: #{tpu_custom_call.1} parent=1 // pred_region
      _
    $region9: #{tpu_custom_call.1} parent=1 // pred_fallthru
      _
    // Predicated region
    $region10: #{tpu_custom_call.1} parent=1 // pred_check
      _
    $region11: #{tpu_custom_call.1} parent=1 // pred_check_branch
      %29 = sbr.rel (0) target = $region13
    $region12: #{tpu_custom_call.1} parent=1 // pred_region
      %s31 = ssub.s32 3072, 3072
      %32 = vsyncadd [#allocation7], %s31
      %s33 = sshll.u32 [#allocation6], 4
      %s34 = int_to_ptr.vmem [resolvable:$true] %s33
      %39 = dma.hbm_to_vmem [thread:$0]  %s2, 3072, %s34, [#allocation7], 192, 192, 12
    $region13: #{tpu_custom_call.1} parent=1 // pred_fallthru
      _
    // Predicated region
    $region14: #{tpu_custom_call.1} parent=1 // pred_check
      _
    $region15: #{tpu_custom_call.1} parent=1 // pred_check_branch
      %41 = sbr.rel (0) target = $region17
    $region16: #{tpu_custom_call.1} parent=1 // pred_region
      %s43 = ssub.s32 6144, 6144
      %44 = vsyncadd [#allocation7], %s43
      %s45 = sshll.u32 [#allocation8], 4
      %s46 = int_to_ptr.vmem [resolvable:$true] %s45
      %51 = dma.hbm_to_vmem [thread:$0]  %s3, 6144, %s46, [#allocation7], 384, 384, 24
    $region17: #{tpu_custom_call.1} parent=1 // pred_fallthru
      _
    // Predicated region
    $region18: #{tpu_custom_call.1} parent=1 // pred_check
      _
    $region19: #{tpu_custom_call.1} parent=1 // pred_check_branch
      %53 = sbr.rel (0) target = $region21
    $region20: #{tpu_custom_call.1} parent=1 // pred_region
      _
    $region21: #{tpu_custom_call.1} parent=1 // pred_fallthru
      _
    // Predicated region
    $region22: #{tpu_custom_call.1} parent=1 // pred_check
      _
    $region23: #{tpu_custom_call.1} parent=1 // pred_check_branch
      %55 = sbr.rel (0) target = $region25
    $region24: #{tpu_custom_call.1} parent=1 // pred_region
      _
    $region25: #{tpu_custom_call.1} parent=1 // pred_fallthru
      _
    // Predicated region
    $region26: #{tpu_custom_call.1} parent=1 // pred_check
      _
    $region27: #{tpu_custom_call.1} parent=1 // pred_check_branch
      %57 = sbr.rel (0) target = $region29
    $region28: #{tpu_custom_call.1} parent=1 // pred_region
      %58 = dma.done [#allocation4], 128
    $region29: #{tpu_custom_call.1} parent=1 // pred_fallthru
      _
    // Predicated region
    $region30: #{tpu_custom_call.1} parent=1 // pred_check
      _
    $region31: #{tpu_custom_call.1} parent=1 // pred_check_branch
      %60 = sbr.rel (0) target = $region33
    $region32: #{tpu_custom_call.1} parent=1 // pred_region
      %61 = dma.done [#allocation7], 3072
    $region33: #{tpu_custom_call.1} parent=1 // pred_fallthru
      _
    // Predicated region
    $region34: #{tpu_custom_call.1} parent=1 // pred_check
      _
    $region35: #{tpu_custom_call.1} parent=1 // pred_check_branch
      %63 = sbr.rel (0) target = $region37
    $region36: #{tpu_custom_call.1} parent=1 // pred_region
      %64 = dma.done [#allocation7], 6144
    $region37: #{tpu_custom_call.1} parent=1 // pred_fallthru
      _
    %p66 = scmp.eq.s32.totalorder 0, 0
    // Predicated region
    $region38: #{tpu_custom_call.1} parent=1 // pred_check
      %p67 = pneg %p66
    $region39: #{tpu_custom_call.1} parent=1 // pred_check_branch
      %69 = sbr.rel (%p67) target = $region41
    $region40: #{tpu_custom_call.1} parent=1 // pred_region
      %v70 = vld [vmem:[%s1] sm:$0x1]
      %71 = vst [vmem:[#allocation2] sm:$0x1] %v70
    $region41: #{tpu_custom_call.1} parent=1 // pred_fallthru
      _
    %v72 = vld [vmem:[#allocation3] sm:$0xf]
    %v73 = vld [vmem:[#allocation3 + $0x4] sm:$0xf]
    %v74 = vld [vmem:[#allocation6] sm:$0xff]
    %v75 = vld [vmem:[#allocation6 + $0x8] sm:$0xf]
    %v76 = vld [vmem:[#allocation6 + $0xc] sm:$0xff]
    %v77 = vld [vmem:[#allocation6 + $0x14] sm:$0xf]
    %v78 = vld [vmem:[#allocation6 + $0x18] sm:$0xff]
    %v79 = vld [vmem:[#allocation6 + $0x20] sm:$0xf]
    %v80 = vld [vmem:[#allocation6 + $0x24] sm:$0xff]
    %v81 = vld [vmem:[#allocation6 + $0x2c] sm:$0xf]
    %v82 = vld [vmem:[#allocation6 + $0x30] sm:$0xff]
    %v83 = vld [vmem:[#allocation6 + $0x38] sm:$0xf]
    %v84 = vld [vmem:[#allocation6 + $0x3c] sm:$0xff]
    %v85 = vld [vmem:[#allocation6 + $0x44] sm:$0xf]
    %v86 = vld [vmem:[#allocation6 + $0x48] sm:$0xff]
    %v87 = vld [vmem:[#allocation6 + $0x50] sm:$0xf]
    %v88 = vld [vmem:[#allocation6 + $0x54] sm:$0xff]
    %v89 = vld [vmem:[#allocation6 + $0x5c] sm:$0xf]
    %v90 = vld [vmem:[#allocation6 + $0x60] sm:$0xff]
    %v91 = vld [vmem:[#allocation6 + $0x68] sm:$0xf]
    %v92 = vld [vmem:[#allocation6 + $0x6c] sm:$0xff]
    %v93 = vld [vmem:[#allocation6 + $0x74] sm:$0xf]
    %v94 = vld [vmem:[#allocation6 + $0x78] sm:$0xff]
    %v95 = vld [vmem:[#allocation6 + $0x80] sm:$0xf]
    %v96 = vld [vmem:[#allocation6 + $0x84] sm:$0xff]
    %v97 = vld [vmem:[#allocation6 + $0x8c] sm:$0xf]
    %v98 = vld [vmem:[#allocation6 + $0x90] sm:$0xff]
    %v99 = vld [vmem:[#allocation6 + $0x98] sm:$0xf]
    %v100 = vld [vmem:[#allocation6 + $0x9c] sm:$0xff]
    %v101 = vld [vmem:[#allocation6 + $0xa4] sm:$0xf]
    %v102 = vld [vmem:[#allocation6 + $0xa8] sm:$0xff]
    %v103 = vld [vmem:[#allocation6 + $0xb0] sm:$0xf]
    %v104 = vld [vmem:[#allocation6 + $0xb4] sm:$0xff]
    %v105 = vld [vmem:[#allocation6 + $0xbc] sm:$0xf]
    %v106 = vld [vmem:[%s4] sm:$0x7]
    %v108 = vlaneseq
    %v109 = vshrl.u32 %v108, 7
    %v110 = vsub.s32 0, %v109
    %v111 = vrot.slane %v106, %v110
    %v112 = vlaneseq
    %v113 = vshrl.u32 %v112, 7
    %v114 = vsub.s32 1, %v113
    %v115 = vrot.slane %v106, %v114
    %v116 = vlaneseq
    %v117 = vshrl.u32 %v116, 7
    %v118 = vsub.s32 2, %v117
    %v119 = vrot.slane %v106, %v118
    %v125 = vunpack.c.l.b16 %v72
    %v126 = vunpack.c.l.b16 %v73
    %v127 = vpack.c.b16 %v126, %v125
    %v161 = vunpack.c.l.b16 %v74
    %v162 = vunpack.c.h.b16 %v74
    %v163 = vunpack.c.l.b16 %v75
    %v164 = vunpack.c.l.b16 %v76
    %v165 = vunpack.c.h.b16 %v76
    %v166 = vunpack.c.l.b16 %v77
    %v167 = vunpack.c.l.b16 %v78
    %v168 = vunpack.c.h.b16 %v78
    %v169 = vunpack.c.l.b16 %v79
    %v170 = vunpack.c.l.b16 %v80
    %v171 = vunpack.c.h.b16 %v80
    %v172 = vunpack.c.l.b16 %v81
    %v173 = vunpack.c.l.b16 %v82
    %v174 = vunpack.c.h.b16 %v82
    %v175 = vunpack.c.l.b16 %v83
    %v176 = vunpack.c.l.b16 %v84
    %v177 = vunpack.c.h.b16 %v84
    %v178 = vunpack.c.l.b16 %v85
    %v179 = vunpack.c.l.b16 %v86
    %v180 = vunpack.c.h.b16 %v86
    %v181 = vunpack.c.l.b16 %v87
    %v182 = vunpack.c.l.b16 %v88
    %v183 = vunpack.c.h.b16 %v88
    %v184 = vunpack.c.l.b16 %v89
    %v185 = vunpack.c.l.b16 %v90
    %v186 = vunpack.c.h.b16 %v90
    %v187 = vunpack.c.l.b16 %v91
    %v188 = vunpack.c.l.b16 %v92
    %v189 = vunpack.c.h.b16 %v92
    %v190 = vunpack.c.l.b16 %v93
    %v191 = vunpack.c.l.b16 %v94
    %v192 = vunpack.c.h.b16 %v94
    %v193 = vunpack.c.l.b16 %v95
    %v194 = vunpack.c.l.b16 %v96
    %v195 = vunpack.c.h.b16 %v96
    %v196 = vunpack.c.l.b16 %v97
    %v197 = vunpack.c.l.b16 %v98
    %v198 = vunpack.c.h.b16 %v98
    %v199 = vunpack.c.l.b16 %v99
    %v200 = vunpack.c.l.b16 %v100
    %v201 = vunpack.c.h.b16 %v100
    %v202 = vunpack.c.l.b16 %v101
    %v203 = vunpack.c.l.b16 %v102
    %v204 = vunpack.c.h.b16 %v102
    %v205 = vunpack.c.l.b16 %v103
    %v206 = vunpack.c.l.b16 %v104
    %v207 = vunpack.c.h.b16 %v104
    %v208 = vunpack.c.l.b16 %v105
    %v209 = vpack.c.b16 %v164, %v161
    %v210 = vpack.c.b16 %v165, %v162
    %v211 = vpack.c.b16 %v166, %v163
    %v212 = vpack.c.b16 %v170, %v167
    %v213 = vpack.c.b16 %v171, %v168
    %v214 = vpack.c.b16 %v172, %v169
    %v215 = vpack.c.b16 %v176, %v173
    %v216 = vpack.c.b16 %v177, %v174
    %v217 = vpack.c.b16 %v178, %v175
    %v218 = vpack.c.b16 %v182, %v179
    %v219 = vpack.c.b16 %v183, %v180
    %v220 = vpack.c.b16 %v184, %v181
    %v221 = vpack.c.b16 %v188, %v185
    %v222 = vpack.c.b16 %v189, %v186
    %v223 = vpack.c.b16 %v190, %v187
    %v224 = vpack.c.b16 %v194, %v191
    %v225 = vpack.c.b16 %v195, %v192
    %v226 = vpack.c.b16 %v196, %v193
    %v227 = vpack.c.b16 %v200, %v197
    %v228 = vpack.c.b16 %v201, %v198
    %v229 = vpack.c.b16 %v202, %v199
    %v230 = vpack.c.b16 %v206, %v203
    %v231 = vpack.c.b16 %v207, %v204
    %v232 = vpack.c.b16 %v208, %v205
    %257 = vmatprep.subr.bf16.mxu0 %v210
    %258 = vmatpush1.bf16.msra.mxu0 %v209
    %259 = vmatprep.subr.bf16.mxu0 %v213
    %260 = vmatpush1.bf16.msra.mxu0 %v212
    %261 = vmatprep.subr.bf16.mxu0 %v216
    %262 = vmatpush1.bf16.msra.mxu0 %v215
    %263 = vmatprep.subr.bf16.mxu0 %v219
    %264 = vmatpush1.bf16.msra.mxu0 %v218
    %265 = vmatprep.subr.bf16.mxu0 %v222
    %266 = vmatpush1.bf16.msra.mxu0 %v221
    %267 = vmatprep.subr.bf16.mxu0 %v225
    %268 = vmatpush1.bf16.msra.mxu0 %v224
    %269 = vmatprep.subr.bf16.mxu0 %v228
    %270 = vmatpush1.bf16.msra.mxu0 %v227
    %271 = vmatprep.subr.bf16.mxu0 %v231
    %272 = vmatpush1.bf16.msra.mxu0 %v230
    %273 = vmatprep.subr.bf16.mxu0 0
    %274 = vmatpush1.bf16.msra.mxu0 0
    %275 = vmatprep.subr.bf16.mxu0 0
    %276 = vmatpush1.bf16.msra.mxu0 0
    %277 = vmatprep.subr.bf16.mxu0 0
    %278 = vmatpush1.bf16.msra.mxu0 0
    %279 = vmatprep.subr.bf16.mxu0 0
    %280 = vmatpush1.bf16.msra.mxu0 0
    %281 = vmatprep.subr.bf16.mxu0 0
    %282 = vmatpush1.bf16.msra.mxu0 0
    %283 = vmatprep.subr.bf16.mxu0 0
    %284 = vmatpush1.bf16.msra.mxu0 0
    %285 = vmatprep.subr.bf16.mxu0 0
    %286 = vmatpush1.bf16.msra.mxu0 0
    %287 = vmatprep.subr.bf16.mxu0 0
    %288 = vmatpush1.bf16.msra.mxu0 0
    %289 = vmatprep.mubr.bf16.mxu0 0
    %290 = vmatmul.mubr.bf16.gmra.mrb[0].mxu0 %v127
    %v291 = vpop.f32.mrb[0].mxu0
    %v292 = vadd.f32 %v111, %v291
    %v293 = vpop.f32.mrb[0].mxu0
    %v294 = vadd.f32 %v115, %v293
    %v295 = vpop.f32.mrb[0].mxu0
    %v296 = vadd.f32 %v111, %v295
    %v297 = vpop.f32.mrb[0].mxu0
    %v298 = vadd.f32 %v115, %v297
    %299 = vdwg.mxu0
    %300 = vmatprep.subr.bf16.mxu0 0
    %301 = vmatpush1.bf16.msra.mxu0 %v211
    %302 = vmatprep.subr.bf16.mxu0 0
    %303 = vmatpush1.bf16.msra.mxu0 %v214
    %304 = vmatprep.subr.bf16.mxu0 0
    %305 = vmatpush1.bf16.msra.mxu0 %v217
    %306 = vmatprep.subr.bf16.mxu0 0
    %307 = vmatpush1.bf16.msra.mxu0 %v220
    %308 = vmatprep.subr.bf16.mxu0 0
    %309 = vmatpush1.bf16.msra.mxu0 %v223
    %310 = vmatprep.subr.bf16.mxu0 0
    %311 = vmatpush1.bf16.msra.mxu0 %v226
    %312 = vmatprep.subr.bf16.mxu0 0
    %313 = vmatpush1.bf16.msra.mxu0 %v229
    %314 = vmatprep.subr.bf16.mxu0 0
    %315 = vmatpush1.bf16.msra.mxu0 %v232
    %316 = vmatprep.subr.bf16.mxu0 0
    %317 = vmatpush1.bf16.msra.mxu0 0
    %318 = vmatprep.subr.bf16.mxu0 0
    %319 = vmatpush1.bf16.msra.mxu0 0
    %320 = vmatprep.subr.bf16.mxu0 0
    %321 = vmatpush1.bf16.msra.mxu0 0
    %322 = vmatprep.subr.bf16.mxu0 0
    %323 = vmatpush1.bf16.msra.mxu0 0
    %324 = vmatprep.subr.bf16.mxu0 0
    %325 = vmatpush1.bf16.msra.mxu0 0
    %326 = vmatprep.subr.bf16.mxu0 0
    %327 = vmatpush1.bf16.msra.mxu0 0
    %328 = vmatprep.subr.bf16.mxu0 0
    %329 = vmatpush1.bf16.msra.mxu0 0
    %330 = vmatprep.subr.bf16.mxu0 0
    %331 = vmatpush1.bf16.msra.mxu0 0
    %332 = vmatprep.mubr.bf16.mxu0 0
    %333 = vmatmul.mubr.bf16.gmra.mrb[0].mxu0 %v127
    %v334 = vpop.f32.mrb[0].mxu0
    %v335 = vadd.f32 %v119, %v334
    %v336 = vpop.f32.mrb[0].mxu0
    %v337 = vpop.f32.mrb[0].mxu0
    %v338 = vadd.f32 %v119, %v337
    %v339 = vpop.f32.mrb[0].mxu0
    %340 = vdwg.mxu0
    %v341 = vld [vmem:[#allocation8] sm:$0xff]
    %v342 = vld [vmem:[#allocation8 + $0x8] sm:$0xff]
    %v343 = vld [vmem:[#allocation8 + $0x10] sm:$0xff]
    %v344 = vld [vmem:[#allocation8 + $0x18] sm:$0xff]
    %v345 = vld [vmem:[#allocation8 + $0x20] sm:$0xff]
    %v346 = vld [vmem:[#allocation8 + $0x28] sm:$0xff]
    %v347 = vld [vmem:[#allocation8 + $0x30] sm:$0xff]
    %v348 = vld [vmem:[#allocation8 + $0x38] sm:$0xff]
    %v349 = vld [vmem:[#allocation8 + $0x40] sm:$0xff]
    %v350 = vld [vmem:[#allocation8 + $0x48] sm:$0xff]
    %v351 = vld [vmem:[#allocation8 + $0x50] sm:$0xff]
    %v352 = vld [vmem:[#allocation8 + $0x58] sm:$0xff]
    %v353 = vld [vmem:[#allocation8 + $0x60] sm:$0xff]
    %v354 = vld [vmem:[#allocation8 + $0x68] sm:$0xff]
    %v355 = vld [vmem:[#allocation8 + $0x70] sm:$0xff]
    %v356 = vld [vmem:[#allocation8 + $0x78] sm:$0xff]
    %v357 = vld [vmem:[#allocation8 + $0x80] sm:$0xff]
    %v358 = vld [vmem:[#allocation8 + $0x88] sm:$0xff]
    %v359 = vld [vmem:[#allocation8 + $0x90] sm:$0xff]
    %v360 = vld [vmem:[#allocation8 + $0x98] sm:$0xff]
    %v361 = vld [vmem:[#allocation8 + $0xa0] sm:$0xff]
    %v362 = vld [vmem:[#allocation8 + $0xa8] sm:$0xff]
    %v363 = vld [vmem:[#allocation8 + $0xb0] sm:$0xff]
    %v364 = vld [vmem:[#allocation8 + $0xb8] sm:$0xff]
    %v365 = vld [vmem:[#allocation8 + $0xc0] sm:$0xff]
    %v366 = vld [vmem:[#allocation8 + $0xc8] sm:$0xff]
    %v367 = vld [vmem:[#allocation8 + $0xd0] sm:$0xff]
    %v368 = vld [vmem:[#allocation8 + $0xd8] sm:$0xff]
    %v369 = vld [vmem:[#allocation8 + $0xe0] sm:$0xff]
    %v370 = vld [vmem:[#allocation8 + $0xe8] sm:$0xff]
    %v371 = vld [vmem:[#allocation8 + $0xf0] sm:$0xff]
    %v372 = vld [vmem:[#allocation8 + $0xf8] sm:$0xff]
    %v373 = vld [vmem:[#allocation8 + $0x100] sm:$0xff]
    %v374 = vld [vmem:[#allocation8 + $0x108] sm:$0xff]
    %v375 = vld [vmem:[#allocation8 + $0x110] sm:$0xff]
    %v376 = vld [vmem:[#allocation8 + $0x118] sm:$0xff]
    %v377 = vld [vmem:[#allocation8 + $0x120] sm:$0xff]
    %v378 = vld [vmem:[#allocation8 + $0x128] sm:$0xff]
    %v379 = vld [vmem:[#allocation8 + $0x130] sm:$0xff]
    %v380 = vld [vmem:[#allocation8 + $0x138] sm:$0xff]
    %v381 = vld [vmem:[#allocation8 + $0x140] sm:$0xff]
    %v382 = vld [vmem:[#allocation8 + $0x148] sm:$0xff]
    %v383 = vld [vmem:[#allocation8 + $0x150] sm:$0xff]
    %v384 = vld [vmem:[#allocation8 + $0x158] sm:$0xff]
    %v385 = vld [vmem:[#allocation8 + $0x160] sm:$0xff]
    %v386 = vld [vmem:[#allocation8 + $0x168] sm:$0xff]
    %v387 = vld [vmem:[#allocation8 + $0x170] sm:$0xff]
    %v388 = vld [vmem:[#allocation8 + $0x178] sm:$0xff]
    %v389 = vld [vmem:[%s5] sm:$0x1]
    %v390 = vld [vmem:[#allocation2] sm:$0x1]
    %391 = vmatprep.subr.mxu0 %v342
    %392 = vmatpush1.msra.mxu0 %v341
    %393 = vmatprep.subr.mxu0 %v345
    %394 = vmatpush1.msra.mxu0 %v344
    %395 = vmatprep.subr.mxu0 %v348
    %396 = vmatpush1.msra.mxu0 %v347
    %397 = vmatprep.subr.mxu0 %v351
    %398 = vmatpush1.msra.mxu0 %v350
    %399 = vmatprep.subr.mxu0 %v354
    %400 = vmatpush1.msra.mxu0 %v353
    %401 = vmatprep.subr.mxu0 %v357
    %402 = vmatpush1.msra.mxu0 %v356
    %403 = vmatprep.subr.mxu0 %v360
    %404 = vmatpush1.msra.mxu0 %v359
    %405 = vmatprep.subr.mxu0 %v363
    %406 = vmatpush1.msra.mxu0 %v362
    %407 = vmatprep.subr.mxu0 %v366
    %408 = vmatpush1.msra.mxu0 %v365
    %409 = vmatprep.subr.mxu0 %v369
    %410 = vmatpush1.msra.mxu0 %v368
    %411 = vmatprep.subr.mxu0 %v372
    %412 = vmatpush1.msra.mxu0 %v371
    %413 = vmatprep.subr.mxu0 %v375
    %414 = vmatpush1.msra.mxu0 %v374
    %415 = vmatprep.subr.mxu0 %v378
    %416 = vmatpush1.msra.mxu0 %v377
    %417 = vmatprep.subr.mxu0 %v381
    %418 = vmatpush1.msra.mxu0 %v380
    %419 = vmatprep.subr.mxu0 %v384
    %420 = vmatpush1.msra.mxu0 %v383
    %421 = vmatprep.subr.mxu0 %v387
    %422 = vmatpush1.msra.mxu0 %v386
    %423 = vmatprep.subr.mxu0 0.0
    %424 = vmatpush1.msra.mxu0 0.0
    %425 = vmatprep.subr.mxu0 0.0
    %426 = vmatpush1.msra.mxu0 0.0
    %427 = vmatprep.subr.mxu0 0.0
    %428 = vmatpush1.msra.mxu0 0.0
    %429 = vmatprep.subr.mxu0 0.0
    %430 = vmatpush1.msra.mxu0 0.0
    %431 = vmatprep.subr.mxu0 0.0
    %432 = vmatpush1.msra.mxu0 0.0
    %433 = vmatprep.subr.mxu0 0.0
    %434 = vmatpush1.msra.mxu0 0.0
    %435 = vmatprep.subr.mxu0 0.0
    %436 = vmatpush1.msra.mxu0 0.0
    %437 = vmatprep.subr.mxu0 0.0
    %438 = vmatpush1.msra.mxu0 0.0
    %439 = vmatprep.subr.mxu0 0.0
    %440 = vmatpush1.msra.mxu0 0.0
    %441 = vmatprep.subr.mxu0 0.0
    %442 = vmatpush1.msra.mxu0 0.0
    %443 = vmatprep.subr.mxu0 0.0
    %444 = vmatpush1.msra.mxu0 0.0
    %445 = vmatprep.subr.mxu0 0.0
    %446 = vmatpush1.msra.mxu0 0.0
    %447 = vmatprep.subr.mxu0 0.0
    %448 = vmatpush1.msra.mxu0 0.0
    %449 = vmatprep.subr.mxu0 0.0
    %450 = vmatpush1.msra.mxu0 0.0
    %451 = vmatprep.subr.mxu0 0.0
    %452 = vmatpush1.msra.mxu0 0.0
    %453 = vmatprep.subr.mxu0 0.0
    %454 = vmatpush1.msra.mxu0 0.0
    %455 = vmatprep.mubr.f32.mxu0 0.0
    %456 = vmatmul.mubr.f32.gmra.mrb[0].mxu0 %v390
    %v457 = vpop.f32.mrb[0].mxu0
    %v458 = vadd.f32 0.0, %v457
    %v459 = vpop.f32.mrb[0].mxu0
    %v460 = vadd.f32 0.0, %v459
    %461 = vdwg.mxu0
    %462 = vmatprep.subr.mxu0 0.0
    %463 = vmatpush1.msra.mxu0 %v343
    %464 = vmatprep.subr.mxu0 0.0
    %465 = vmatpush1.msra.mxu0 %v346
    %466 = vmatprep.subr.mxu0 0.0
    %467 = vmatpush1.msra.mxu0 %v349
    %468 = vmatprep.subr.mxu0 0.0
    %469 = vmatpush1.msra.mxu0 %v352
    %470 = vmatprep.subr.mxu0 0.0
    %471 = vmatpush1.msra.mxu0 %v355
    %472 = vmatprep.subr.mxu0 0.0
    %473 = vmatpush1.msra.mxu0 %v358
    %474 = vmatprep.subr.mxu0 0.0
    %475 = vmatpush1.msra.mxu0 %v361
    %476 = vmatprep.subr.mxu0 0.0
    %477 = vmatpush1.msra.mxu0 %v364
    %478 = vmatprep.subr.mxu0 0.0
    %479 = vmatpush1.msra.mxu0 %v367
    %480 = vmatprep.subr.mxu0 0.0
    %481 = vmatpush1.msra.mxu0 %v370
    %482 = vmatprep.subr.mxu0 0.0
    %483 = vmatpush1.msra.mxu0 %v373
    %484 = vmatprep.subr.mxu0 0.0
    %485 = vmatpush1.msra.mxu0 %v376
    %486 = vmatprep.subr.mxu0 0.0
    %487 = vmatpush1.msra.mxu0 %v379
    %488 = vmatprep.subr.mxu0 0.0
    %489 = vmatpush1.msra.mxu0 %v382
    %490 = vmatprep.subr.mxu0 0.0
    %491 = vmatpush1.msra.mxu0 %v385
    %492 = vmatprep.subr.mxu0 0.0
    %493 = vmatpush1.msra.mxu0 %v388
    %494 = vmatprep.subr.mxu0 0.0
    %495 = vmatpush1.msra.mxu0 0.0
    %496 = vmatprep.subr.mxu0 0.0
    %497 = vmatpush1.msra.mxu0 0.0
    %498 = vmatprep.subr.mxu0 0.0
    %499 = vmatpush1.msra.mxu0 0.0
    %500 = vmatprep.subr.mxu0 0.0
    %501 = vmatpush1.msra.mxu0 0.0
    %502 = vmatprep.subr.mxu0 0.0
    %503 = vmatpush1.msra.mxu0 0.0
    %504 = vmatprep.subr.mxu0 0.0
    %505 = vmatpush1.msra.mxu0 0.0
    %506 = vmatprep.subr.mxu0 0.0
    %507 = vmatpush1.msra.mxu0 0.0
    %508 = vmatprep.subr.mxu0 0.0
    %509 = vmatpush1.msra.mxu0 0.0
    %510 = vmatprep.subr.mxu0 0.0
    %511 = vmatpush1.msra.mxu0 0.0
    %512 = vmatprep.subr.mxu0 0.0
    %513 = vmatpush1.msra.mxu0 0.0
    %514 = vmatprep.subr.mxu0 0.0
    %515 = vmatpush1.msra.mxu0 0.0
    %516 = vmatprep.subr.mxu0 0.0
    %517 = vmatpush1.msra.mxu0 0.0
    %518 = vmatprep.subr.mxu0 0.0
    %519 = vmatpush1.msra.mxu0 0.0
    %520 = vmatprep.subr.mxu0 0.0
    %521 = vmatpush1.msra.mxu0 0.0
    %522 = vmatprep.subr.mxu0 0.0
    %523 = vmatpush1.msra.mxu0 0.0
    %524 = vmatprep.subr.mxu0 0.0
    %525 = vmatpush1.msra.mxu0 0.0
    %526 = vmatprep.mubr.f32.mxu0 0.0
    %527 = vmatmul.mubr.f32.gmra.mrb[0].mxu0 %v390
    %v528 = vpop.f32.mrb[0].mxu0
    %v529 = vadd.f32 0.0, %v528
    %v530 = vpop.f32.mrb[0].mxu0
    %531 = vdwg.mxu0
    %v532 = vadd.f32 %v292, %v458
    %v533 = vxor.u32 %v532, 2147483648
    %v534 = vmul.f32 %v533, 1.442695
    %v535 = vpow.pop %v534
    %v536 = vadd.f32 %v535, 1.0
    %v537 = vrcp.pop %v536
    %v538 = vmul.f32 1.0, %v537
    %v539 = vadd.f32 %v294, %v460
    %v540 = vxor.u32 %v539, 2147483648
    %v541 = vmul.f32 %v540, 1.442695
    %v542 = vpow.pop %v541
    %v543 = vadd.f32 %v542, 1.0
    %v544 = vrcp.pop %v543
    %v545 = vmul.f32 1.0, %v544
    %v546 = vadd.f32 %v529, %v389
    %v547 = vmul.f32 %v538, %v546
    %v548 = vadd.f32 %v335, %v547
    %v549 = vtanh.pop %v548
    %v550 = vsub.f32 1.0, %v545
    %v551 = vmul.f32 %v550, %v549
    %v552 = vmul.f32 %v545, %v390
    %v553 = vadd.f32 %v551, %v552
    %554 = vst [vmem:[#allocation9] sm:$0x1] %v553
    %555 = vmatprep.subr.mxu0 %v342
    %556 = vmatpush1.msra.mxu0 %v341
    %557 = vmatprep.subr.mxu0 %v345
    %558 = vmatpush1.msra.mxu0 %v344
    %559 = vmatprep.subr.mxu0 %v348
    %560 = vmatpush1.msra.mxu0 %v347
    %561 = vmatprep.subr.mxu0 %v351
    %562 = vmatpush1.msra.mxu0 %v350
    %563 = vmatprep.subr.mxu0 %v354
    %564 = vmatpush1.msra.mxu0 %v353
    %565 = vmatprep.subr.mxu0 %v357
    %566 = vmatpush1.msra.mxu0 %v356
    %567 = vmatprep.subr.mxu0 %v360
    %568 = vmatpush1.msra.mxu0 %v359
    %569 = vmatprep.subr.mxu0 %v363
    %570 = vmatpush1.msra.mxu0 %v362
    %571 = vmatprep.subr.mxu0 %v366
    %572 = vmatpush1.msra.mxu0 %v365
    %573 = vmatprep.subr.mxu0 %v369
    %574 = vmatpush1.msra.mxu0 %v368
    %575 = vmatprep.subr.mxu0 %v372
    %576 = vmatpush1.msra.mxu0 %v371
    %577 = vmatprep.subr.mxu0 %v375
    %578 = vmatpush1.msra.mxu0 %v374
    %579 = vmatprep.subr.mxu0 %v378
    %580 = vmatpush1.msra.mxu0 %v377
    %581 = vmatprep.subr.mxu0 %v381
    %582 = vmatpush1.msra.mxu0 %v380
    %583 = vmatprep.subr.mxu0 %v384
    %584 = vmatpush1.msra.mxu0 %v383
    %585 = vmatprep.subr.mxu0 %v387
    %586 = vmatpush1.msra.mxu0 %v386
    %587 = vmatprep.subr.mxu0 0.0
    %588 = vmatpush1.msra.mxu0 0.0
    %589 = vmatprep.subr.mxu0 0.0
    %590 = vmatpush1.msra.mxu0 0.0
    %591 = vmatprep.subr.mxu0 0.0
    %592 = vmatpush1.msra.mxu0 0.0
    %593 = vmatprep.subr.mxu0 0.0
    %594 = vmatpush1.msra.mxu0 0.0
    %595 = vmatprep.subr.mxu0 0.0
    %596 = vmatpush1.msra.mxu0 0.0
    %597 = vmatprep.subr.mxu0 0.0
    %598 = vmatpush1.msra.mxu0 0.0
    %599 = vmatprep.subr.mxu0 0.0
    %600 = vmatpush1.msra.mxu0 0.0
    %601 = vmatprep.subr.mxu0 0.0
    %602 = vmatpush1.msra.mxu0 0.0
    %603 = vmatprep.subr.mxu0 0.0
    %604 = vmatpush1.msra.mxu0 0.0
    %605 = vmatprep.subr.mxu0 0.0
    %606 = vmatpush1.msra.mxu0 0.0
    %607 = vmatprep.subr.mxu0 0.0
    %608 = vmatpush1.msra.mxu0 0.0
    %609 = vmatprep.subr.mxu0 0.0
    %610 = vmatpush1.msra.mxu0 0.0
    %611 = vmatprep.subr.mxu0 0.0
    %612 = vmatpush1.msra.mxu0 0.0
    %613 = vmatprep.subr.mxu0 0.0
    %614 = vmatpush1.msra.mxu0 0.0
    %615 = vmatprep.subr.mxu0 0.0
    %616 = vmatpush1.msra.mxu0 0.0
    %617 = vmatprep.subr.mxu0 0.0
    %618 = vmatpush1.msra.mxu0 0.0
    %619 = vmatprep.mubr.f32.mxu0 0.0
    %620 = vmatmul.mubr.f32.gmra.mrb[0].mxu0 %v553
    %v621 = vpop.f32.mrb[0].mxu0
    %v622 = vadd.f32 0.0, %v621
    %v623 = vpop.f32.mrb[0].mxu0
    %v624 = vadd.f32 0.0, %v623
    %625 = vdwg.mxu0
    %626 = vmatprep.subr.mxu0 0.0
    %627 = vmatpush1.msra.mxu0 %v343
    %628 = vmatprep.subr.mxu0 0.0
    %629 = vmatpush1.msra.mxu0 %v346
    %630 = vmatprep.subr.mxu0 0.0
    %631 = vmatpush1.msra.mxu0 %v349
    %632 = vmatprep.subr.mxu0 0.0
    %633 = vmatpush1.msra.mxu0 %v352
    %634 = vmatprep.subr.mxu0 0.0
    %635 = vmatpush1.msra.mxu0 %v355
    %636 = vmatprep.subr.mxu0 0.0
    %637 = vmatpush1.msra.mxu0 %v358
    %638 = vmatprep.subr.mxu0 0.0
    %639 = vmatpush1.msra.mxu0 %v361
    %640 = vmatprep.subr.mxu0 0.0
    %641 = vmatpush1.msra.mxu0 %v364
    %642 = vmatprep.subr.mxu0 0.0
    %643 = vmatpush1.msra.mxu0 %v367
    %644 = vmatprep.subr.mxu0 0.0
    %645 = vmatpush1.msra.mxu0 %v370
    %646 = vmatprep.subr.mxu0 0.0
    %647 = vmatpush1.msra.mxu0 %v373
    %648 = vmatprep.subr.mxu0 0.0
    %649 = vmatpush1.msra.mxu0 %v376
    %650 = vmatprep.subr.mxu0 0.0
    %651 = vmatpush1.msra.mxu0 %v379
    %652 = vmatprep.subr.mxu0 0.0
    %653 = vmatpush1.msra.mxu0 %v382
    %654 = vmatprep.subr.mxu0 0.0
    %655 = vmatpush1.msra.mxu0 %v385
    %656 = vmatprep.subr.mxu0 0.0
    %657 = vmatpush1.msra.mxu0 %v388
    %658 = vmatprep.subr.mxu0 0.0
    %659 = vmatpush1.msra.mxu0 0.0
    %660 = vmatprep.subr.mxu0 0.0
    %661 = vmatpush1.msra.mxu0 0.0
    %662 = vmatprep.subr.mxu0 0.0
    %663 = vmatpush1.msra.mxu0 0.0
    %664 = vmatprep.subr.mxu0 0.0
    %665 = vmatpush1.msra.mxu0 0.0
    %666 = vmatprep.subr.mxu0 0.0
    %667 = vmatpush1.msra.mxu0 0.0
    %668 = vmatprep.subr.mxu0 0.0
    %669 = vmatpush1.msra.mxu0 0.0
    %670 = vmatprep.subr.mxu0 0.0
    %671 = vmatpush1.msra.mxu0 0.0
    %672 = vmatprep.subr.mxu0 0.0
    %673 = vmatpush1.msra.mxu0 0.0
    %674 = vmatprep.subr.mxu0 0.0
    %675 = vmatpush1.msra.mxu0 0.0
    %676 = vmatprep.subr.mxu0 0.0
    %677 = vmatpush1.msra.mxu0 0.0
    %678 = vmatprep.subr.mxu0 0.0
    %679 = vmatpush1.msra.mxu0 0.0
    %680 = vmatprep.subr.mxu0 0.0
    %681 = vmatpush1.msra.mxu0 0.0
    %682 = vmatprep.subr.mxu0 0.0
    %683 = vmatpush1.msra.mxu0 0.0
    %684 = vmatprep.subr.mxu0 0.0
    %685 = vmatpush1.msra.mxu0 0.0
    %686 = vmatprep.subr.mxu0 0.0
    %687 = vmatpush1.msra.mxu0 0.0
    %688 = vmatprep.subr.mxu0 0.0
    %689 = vmatpush1.msra.mxu0 0.0
    %690 = vmatprep.mubr.f32.mxu0 0.0
    %691 = vmatmul.mubr.f32.gmra.mrb[0].mxu0 %v553
    %v692 = vpop.f32.mrb[0].mxu0
    %v693 = vadd.f32 0.0, %v692
    %v694 = vpop.f32.mrb[0].mxu0
    %695 = vdwg.mxu0
    %v697 = vrot.slane %v622, 7
    %v699 = vadd.f32 %v292, %v697
    %v700 = vxor.u32 %v699, 2147483648
    %v701 = vmul.f32 %v700, 1.442695
    %v702 = vpow.pop %v701
    %v703 = vadd.f32 %v702, 1.0
    %v704 = vrcp.pop %v703
    %v705 = vmul.f32 1.0, %v704
    %v707 = vrot.slane %v624, 7
    %v709 = vadd.f32 %v294, %v707
    %v710 = vxor.u32 %v709, 2147483648
    %v711 = vmul.f32 %v710, 1.442695
    %v712 = vpow.pop %v711
    %v713 = vadd.f32 %v712, 1.0
    %v714 = vrcp.pop %v713
    %v715 = vmul.f32 1.0, %v714
    %v716 = vadd.f32 %v693, %v389
    %v718 = vrot.slane %v716, 7
    %v720 = vmul.f32 %v705, %v718
    %v721 = vadd.f32 %v335, %v720
    %v722 = vtanh.pop %v721
    %v723 = vsub.f32 1.0, %v715
    %v724 = vmul.f32 %v723, %v722
    %v726 = vrot.slane %v553, 7
    %v728 = vmul.f32 %v715, %v726
    %v729 = vadd.f32 %v724, %v728
    %730 = vst [vmem:[#allocation9] sm:$0x2] %v729
    %v732 = vrot.slane %v729, 1
    %734 = vmatprep.subr.mxu0 %v342
    %735 = vmatpush1.msra.mxu0 %v341
    %736 = vmatprep.subr.mxu0 %v345
    %737 = vmatpush1.msra.mxu0 %v344
    %738 = vmatprep.subr.mxu0 %v348
    %739 = vmatpush1.msra.mxu0 %v347
    %740 = vmatprep.subr.mxu0 %v351
    %741 = vmatpush1.msra.mxu0 %v350
    %742 = vmatprep.subr.mxu0 %v354
    %743 = vmatpush1.msra.mxu0 %v353
    %744 = vmatprep.subr.mxu0 %v357
    %745 = vmatpush1.msra.mxu0 %v356
    %746 = vmatprep.subr.mxu0 %v360
    %747 = vmatpush1.msra.mxu0 %v359
    %748 = vmatprep.subr.mxu0 %v363
    %749 = vmatpush1.msra.mxu0 %v362
    %750 = vmatprep.subr.mxu0 %v366
    %751 = vmatpush1.msra.mxu0 %v365
    %752 = vmatprep.subr.mxu0 %v369
    %753 = vmatpush1.msra.mxu0 %v368
    %754 = vmatprep.subr.mxu0 %v372
    %755 = vmatpush1.msra.mxu0 %v371
    %756 = vmatprep.subr.mxu0 %v375
    %757 = vmatpush1.msra.mxu0 %v374
    %758 = vmatprep.subr.mxu0 %v378
    %759 = vmatpush1.msra.mxu0 %v377
    %760 = vmatprep.subr.mxu0 %v381
    %761 = vmatpush1.msra.mxu0 %v380
    %762 = vmatprep.subr.mxu0 %v384
    %763 = vmatpush1.msra.mxu0 %v383
    %764 = vmatprep.subr.mxu0 %v387
    %765 = vmatpush1.msra.mxu0 %v386
    %766 = vmatprep.subr.mxu0 0.0
    %767 = vmatpush1.msra.mxu0 0.0
    %768 = vmatprep.subr.mxu0 0.0
    %769 = vmatpush1.msra.mxu0 0.0
    %770 = vmatprep.subr.mxu0 0.0
    %771 = vmatpush1.msra.mxu0 0.0
    %772 = vmatprep.subr.mxu0 0.0
    %773 = vmatpush1.msra.mxu0 0.0
    %774 = vmatprep.subr.mxu0 0.0
    %775 = vmatpush1.msra.mxu0 0.0
    %776 = vmatprep.subr.mxu0 0.0
    %777 = vmatpush1.msra.mxu0 0.0
    %778 = vmatprep.subr.mxu0 0.0
    %779 = vmatpush1.msra.mxu0 0.0
    %780 = vmatprep.subr.mxu0 0.0
    %781 = vmatpush1.msra.mxu0 0.0
    %782 = vmatprep.subr.mxu0 0.0
    %783 = vmatpush1.msra.mxu0 0.0
    %784 = vmatprep.subr.mxu0 0.0
    %785 = vmatpush1.msra.mxu0 0.0
    %786 = vmatprep.subr.mxu0 0.0
    %787 = vmatpush1.msra.mxu0 0.0
    %788 = vmatprep.subr.mxu0 0.0
    %789 = vmatpush1.msra.mxu0 0.0
    %790 = vmatprep.subr.mxu0 0.0
    %791 = vmatpush1.msra.mxu0 0.0
    %792 = vmatprep.subr.mxu0 0.0
    %793 = vmatpush1.msra.mxu0 0.0
    %794 = vmatprep.subr.mxu0 0.0
    %795 = vmatpush1.msra.mxu0 0.0
    %796 = vmatprep.subr.mxu0 0.0
    %797 = vmatpush1.msra.mxu0 0.0
    %798 = vmatprep.mubr.f32.mxu0 0.0
    %799 = vmatmul.mubr.f32.gmra.mrb[0].mxu0 %v732
    %v800 = vpop.f32.mrb[0].mxu0
    %v801 = vadd.f32 0.0, %v800
    %v802 = vpop.f32.mrb[0].mxu0
    %v803 = vadd.f32 0.0, %v802
    %804 = vdwg.mxu0
    %805 = vmatprep.subr.mxu0 0.0
    %806 = vmatpush1.msra.mxu0 %v343
    %807 = vmatprep.subr.mxu0 0.0
    %808 = vmatpush1.msra.mxu0 %v346
    %809 = vmatprep.subr.mxu0 0.0
    %810 = vmatpush1.msra.mxu0 %v349
    %811 = vmatprep.subr.mxu0 0.0
    %812 = vmatpush1.msra.mxu0 %v352
    %813 = vmatprep.subr.mxu0 0.0
    %814 = vmatpush1.msra.mxu0 %v355
    %815 = vmatprep.subr.mxu0 0.0
    %816 = vmatpush1.msra.mxu0 %v358
    %817 = vmatprep.subr.mxu0 0.0
    %818 = vmatpush1.msra.mxu0 %v361
    %819 = vmatprep.subr.mxu0 0.0
    %820 = vmatpush1.msra.mxu0 %v364
    %821 = vmatprep.subr.mxu0 0.0
    %822 = vmatpush1.msra.mxu0 %v367
    %823 = vmatprep.subr.mxu0 0.0
    %824 = vmatpush1.msra.mxu0 %v370
    %825 = vmatprep.subr.mxu0 0.0
    %826 = vmatpush1.msra.mxu0 %v373
    %827 = vmatprep.subr.mxu0 0.0
    %828 = vmatpush1.msra.mxu0 %v376
    %829 = vmatprep.subr.mxu0 0.0
    %830 = vmatpush1.msra.mxu0 %v379
    %831 = vmatprep.subr.mxu0 0.0
    %832 = vmatpush1.msra.mxu0 %v382
    %833 = vmatprep.subr.mxu0 0.0
    %834 = vmatpush1.msra.mxu0 %v385
    %835 = vmatprep.subr.mxu0 0.0
    %836 = vmatpush1.msra.mxu0 %v388
    %837 = vmatprep.subr.mxu0 0.0
    %838 = vmatpush1.msra.mxu0 0.0
    %839 = vmatprep.subr.mxu0 0.0
    %840 = vmatpush1.msra.mxu0 0.0
    %841 = vmatprep.subr.mxu0 0.0
    %842 = vmatpush1.msra.mxu0 0.0
    %843 = vmatprep.subr.mxu0 0.0
    %844 = vmatpush1.msra.mxu0 0.0
    %845 = vmatprep.subr.mxu0 0.0
    %846 = vmatpush1.msra.mxu0 0.0
    %847 = vmatprep.subr.mxu0 0.0
    %848 = vmatpush1.msra.mxu0 0.0
    %849 = vmatprep.subr.mxu0 0.0
    %850 = vmatpush1.msra.mxu0 0.0
    %851 = vmatprep.subr.mxu0 0.0
    %852 = vmatpush1.msra.mxu0 0.0
    %853 = vmatprep.subr.mxu0 0.0
    %854 = vmatpush1.msra.mxu0 0.0
    %855 = vmatprep.subr.mxu0 0.0
    %856 = vmatpush1.msra.mxu0 0.0
    %857 = vmatprep.subr.mxu0 0.0
    %858 = vmatpush1.msra.mxu0 0.0
    %859 = vmatprep.subr.mxu0 0.0
    %860 = vmatpush1.msra.mxu0 0.0
    %861 = vmatprep.subr.mxu0 0.0
    %862 = vmatpush1.msra.mxu0 0.0
    %863 = vmatprep.subr.mxu0 0.0
    %864 = vmatpush1.msra.mxu0 0.0
    %865 = vmatprep.subr.mxu0 0.0
    %866 = vmatpush1.msra.mxu0 0.0
    %867 = vmatprep.subr.mxu0 0.0
    %868 = vmatpush1.msra.mxu0 0.0
    %869 = vmatprep.mubr.f32.mxu0 0.0
    %870 = vmatmul.mubr.f32.gmra.mrb[0].mxu0 %v732
    %v871 = vpop.f32.mrb[0].mxu0
    %v872 = vadd.f32 0.0, %v871
    %v873 = vpop.f32.mrb[0].mxu0
    %874 = vdwg.mxu0
    %v876 = vrot.slane %v801, 6
    %v878 = vadd.f32 %v292, %v876
    %v879 = vxor.u32 %v878, 2147483648
    %v880 = vmul.f32 %v879, 1.442695
    %v881 = vpow.pop %v880
    %v882 = vadd.f32 %v881, 1.0
    %v883 = vrcp.pop %v882
    %v884 = vmul.f32 1.0, %v883
    %v886 = vrot.slane %v803, 6
    %v888 = vadd.f32 %v294, %v886
    %v889 = vxor.u32 %v888, 2147483648
    %v890 = vmul.f32 %v889, 1.442695
    %v891 = vpow.pop %v890
    %v892 = vadd.f32 %v891, 1.0
    %v893 = vrcp.pop %v892
    %v894 = vmul.f32 1.0, %v893
    %v895 = vadd.f32 %v872, %v389
    %v897 = vrot.slane %v895, 6
    %v899 = vmul.f32 %v884, %v897
    %v900 = vadd.f32 %v335, %v899
    %v901 = vtanh.pop %v900
    %v902 = vsub.f32 1.0, %v894
    %v903 = vmul.f32 %v902, %v901
    %v904 = vrot.slane %v729, 7
    %v906 = vmul.f32 %v894, %v904
    %v907 = vadd.f32 %v903, %v906
    %908 = vst [vmem:[#allocation9] sm:$0x4] %v907
    %v910 = vrot.slane %v907, 2
    %912 = vmatprep.subr.mxu0 %v342
    %913 = vmatpush1.msra.mxu0 %v341
    %914 = vmatprep.subr.mxu0 %v345
    %915 = vmatpush1.msra.mxu0 %v344
    %916 = vmatprep.subr.mxu0 %v348
    %917 = vmatpush1.msra.mxu0 %v347
    %918 = vmatprep.subr.mxu0 %v351
    %919 = vmatpush1.msra.mxu0 %v350
    %920 = vmatprep.subr.mxu0 %v354
    %921 = vmatpush1.msra.mxu0 %v353
    %922 = vmatprep.subr.mxu0 %v357
    %923 = vmatpush1.msra.mxu0 %v356
    %924 = vmatprep.subr.mxu0 %v360
    %925 = vmatpush1.msra.mxu0 %v359
    %926 = vmatprep.subr.mxu0 %v363
    %927 = vmatpush1.msra.mxu0 %v362
    %928 = vmatprep.subr.mxu0 %v366
    %929 = vmatpush1.msra.mxu0 %v365
    %930 = vmatprep.subr.mxu0 %v369
    %931 = vmatpush1.msra.mxu0 %v368
    %932 = vmatprep.subr.mxu0 %v372
    %933 = vmatpush1.msra.mxu0 %v371
    %934 = vmatprep.subr.mxu0 %v375
    %935 = vmatpush1.msra.mxu0 %v374
    %936 = vmatprep.subr.mxu0 %v378
    %937 = vmatpush1.msra.mxu0 %v377
    %938 = vmatprep.subr.mxu0 %v381
    %939 = vmatpush1.msra.mxu0 %v380
    %940 = vmatprep.subr.mxu0 %v384
    %941 = vmatpush1.msra.mxu0 %v383
    %942 = vmatprep.subr.mxu0 %v387
    %943 = vmatpush1.msra.mxu0 %v386
    %944 = vmatprep.subr.mxu0 0.0
    %945 = vmatpush1.msra.mxu0 0.0
    %946 = vmatprep.subr.mxu0 0.0
    %947 = vmatpush1.msra.mxu0 0.0
    %948 = vmatprep.subr.mxu0 0.0
    %949 = vmatpush1.msra.mxu0 0.0
    %950 = vmatprep.subr.mxu0 0.0
    %951 = vmatpush1.msra.mxu0 0.0
    %952 = vmatprep.subr.mxu0 0.0
    %953 = vmatpush1.msra.mxu0 0.0
    %954 = vmatprep.subr.mxu0 0.0
    %955 = vmatpush1.msra.mxu0 0.0
    %956 = vmatprep.subr.mxu0 0.0
    %957 = vmatpush1.msra.mxu0 0.0
    %958 = vmatprep.subr.mxu0 0.0
    %959 = vmatpush1.msra.mxu0 0.0
    %960 = vmatprep.subr.mxu0 0.0
    %961 = vmatpush1.msra.mxu0 0.0
    %962 = vmatprep.subr.mxu0 0.0
    %963 = vmatpush1.msra.mxu0 0.0
    %964 = vmatprep.subr.mxu0 0.0
    %965 = vmatpush1.msra.mxu0 0.0
    %966 = vmatprep.subr.mxu0 0.0
    %967 = vmatpush1.msra.mxu0 0.0
    %968 = vmatprep.subr.mxu0 0.0
    %969 = vmatpush1.msra.mxu0 0.0
    %970 = vmatprep.subr.mxu0 0.0
    %971 = vmatpush1.msra.mxu0 0.0
    %972 = vmatprep.subr.mxu0 0.0
    %973 = vmatpush1.msra.mxu0 0.0
    %974 = vmatprep.subr.mxu0 0.0
    %975 = vmatpush1.msra.mxu0 0.0
    %976 = vmatprep.mubr.f32.mxu0 0.0
    %977 = vmatmul.mubr.f32.gmra.mrb[0].mxu0 %v910
    %v978 = vpop.f32.mrb[0].mxu0
    %v979 = vadd.f32 0.0, %v978
    %v980 = vpop.f32.mrb[0].mxu0
    %v981 = vadd.f32 0.0, %v980
    %982 = vdwg.mxu0
    %983 = vmatprep.subr.mxu0 0.0
    %984 = vmatpush1.msra.mxu0 %v343
    %985 = vmatprep.subr.mxu0 0.0
    %986 = vmatpush1.msra.mxu0 %v346
    %987 = vmatprep.subr.mxu0 0.0
    %988 = vmatpush1.msra.mxu0 %v349
    %989 = vmatprep.subr.mxu0 0.0
    %990 = vmatpush1.msra.mxu0 %v352
    %991 = vmatprep.subr.mxu0 0.0
    %992 = vmatpush1.msra.mxu0 %v355
    %993 = vmatprep.subr.mxu0 0.0
    %994 = vmatpush1.msra.mxu0 %v358
    %995 = vmatprep.subr.mxu0 0.0
    %996 = vmatpush1.msra.mxu0 %v361
    %997 = vmatprep.subr.mxu0 0.0
    %998 = vmatpush1.msra.mxu0 %v364
    %999 = vmatprep.subr.mxu0 0.0
    %1000 = vmatpush1.msra.mxu0 %v367
    %1001 = vmatprep.subr.mxu0 0.0
    %1002 = vmatpush1.msra.mxu0 %v370
    %1003 = vmatprep.subr.mxu0 0.0
    %1004 = vmatpush1.msra.mxu0 %v373
    %1005 = vmatprep.subr.mxu0 0.0
    %1006 = vmatpush1.msra.mxu0 %v376
    %1007 = vmatprep.subr.mxu0 0.0
    %1008 = vmatpush1.msra.mxu0 %v379
    %1009 = vmatprep.subr.mxu0 0.0
    %1010 = vmatpush1.msra.mxu0 %v382
    %1011 = vmatprep.subr.mxu0 0.0
    %1012 = vmatpush1.msra.mxu0 %v385
    %1013 = vmatprep.subr.mxu0 0.0
    %1014 = vmatpush1.msra.mxu0 %v388
    %1015 = vmatprep.subr.mxu0 0.0
    %1016 = vmatpush1.msra.mxu0 0.0
    %1017 = vmatprep.subr.mxu0 0.0
    %1018 = vmatpush1.msra.mxu0 0.0
    %1019 = vmatprep.subr.mxu0 0.0
    %1020 = vmatpush1.msra.mxu0 0.0
    %1021 = vmatprep.subr.mxu0 0.0
    %1022 = vmatpush1.msra.mxu0 0.0
    %1023 = vmatprep.subr.mxu0 0.0
    %1024 = vmatpush1.msra.mxu0 0.0
    %1025 = vmatprep.subr.mxu0 0.0
    %1026 = vmatpush1.msra.mxu0 0.0
    %1027 = vmatprep.subr.mxu0 0.0
    %1028 = vmatpush1.msra.mxu0 0.0
    %1029 = vmatprep.subr.mxu0 0.0
    %1030 = vmatpush1.msra.mxu0 0.0
    %1031 = vmatprep.subr.mxu0 0.0
    %1032 = vmatpush1.msra.mxu0 0.0
    %1033 = vmatprep.subr.mxu0 0.0
    %1034 = vmatpush1.msra.mxu0 0.0
    %1035 = vmatprep.subr.mxu0 0.0
    %1036 = vmatpush1.msra.mxu0 0.0
    %1037 = vmatprep.subr.mxu0 0.0
    %1038 = vmatpush1.msra.mxu0 0.0
    %1039 = vmatprep.subr.mxu0 0.0
    %1040 = vmatpush1.msra.mxu0 0.0
    %1041 = vmatprep.subr.mxu0 0.0
    %1042 = vmatpush1.msra.mxu0 0.0
    %1043 = vmatprep.subr.mxu0 0.0
    %1044 = vmatpush1.msra.mxu0 0.0
    %1045 = vmatprep.subr.mxu0 0.0
    %1046 = vmatpush1.msra.mxu0 0.0
    %1047 = vmatprep.mubr.f32.mxu0 0.0
    %1048 = vmatmul.mubr.f32.gmra.mrb[0].mxu0 %v910
    %v1049 = vpop.f32.mrb[0].mxu0
    %v1050 = vadd.f32 0.0, %v1049
    %v1051 = vpop.f32.mrb[0].mxu0
    %1052 = vdwg.mxu0
    %v1054 = vrot.slane %v979, 5
    %v1056 = vadd.f32 %v292, %v1054
    %v1057 = vxor.u32 %v1056, 2147483648
    %v1058 = vmul.f32 %v1057, 1.442695
    %v1059 = vpow.pop %v1058
    %v1060 = vadd.f32 %v1059, 1.0
    %v1061 = vrcp.pop %v1060
    %v1062 = vmul.f32 1.0, %v1061
    %v1064 = vrot.slane %v981, 5
    %v1066 = vadd.f32 %v294, %v1064
    %v1067 = vxor.u32 %v1066, 2147483648
    %v1068 = vmul.f32 %v1067, 1.442695
    %v1069 = vpow.pop %v1068
    %v1070 = vadd.f32 %v1069, 1.0
    %v1071 = vrcp.pop %v1070
    %v1072 = vmul.f32 1.0, %v1071
    %v1073 = vadd.f32 %v1050, %v389
    %v1075 = vrot.slane %v1073, 5
    %v1077 = vmul.f32 %v1062, %v1075
    %v1078 = vadd.f32 %v335, %v1077
    %v1079 = vtanh.pop %v1078
    %v1080 = vsub.f32 1.0, %v1072
    %v1081 = vmul.f32 %v1080, %v1079
    %v1082 = vrot.slane %v907, 7
    %v1084 = vmul.f32 %v1072, %v1082
    %v1085 = vadd.f32 %v1081, %v1084
    %1086 = vst [vmem:[#allocation9] sm:$0x8] %v1085
    %v1088 = vrot.slane %v1085, 3
    %1090 = vmatprep.subr.mxu0 %v342
    %1091 = vmatpush1.msra.mxu0 %v341
    %1092 = vmatprep.subr.mxu0 %v345
    %1093 = vmatpush1.msra.mxu0 %v344
    %1094 = vmatprep.subr.mxu0 %v348
    %1095 = vmatpush1.msra.mxu0 %v347
    %1096 = vmatprep.subr.mxu0 %v351
    %1097 = vmatpush1.msra.mxu0 %v350
    %1098 = vmatprep.subr.mxu0 %v354
    %1099 = vmatpush1.msra.mxu0 %v353
    %1100 = vmatprep.subr.mxu0 %v357
    %1101 = vmatpush1.msra.mxu0 %v356
    %1102 = vmatprep.subr.mxu0 %v360
    %1103 = vmatpush1.msra.mxu0 %v359
    %1104 = vmatprep.subr.mxu0 %v363
    %1105 = vmatpush1.msra.mxu0 %v362
    %1106 = vmatprep.subr.mxu0 %v366
    %1107 = vmatpush1.msra.mxu0 %v365
    %1108 = vmatprep.subr.mxu0 %v369
    %1109 = vmatpush1.msra.mxu0 %v368
    %1110 = vmatprep.subr.mxu0 %v372
    %1111 = vmatpush1.msra.mxu0 %v371
    %1112 = vmatprep.subr.mxu0 %v375
    %1113 = vmatpush1.msra.mxu0 %v374
    %1114 = vmatprep.subr.mxu0 %v378
    %1115 = vmatpush1.msra.mxu0 %v377
    %1116 = vmatprep.subr.mxu0 %v381
    %1117 = vmatpush1.msra.mxu0 %v380
    %1118 = vmatprep.subr.mxu0 %v384
    %1119 = vmatpush1.msra.mxu0 %v383
    %1120 = vmatprep.subr.mxu0 %v387
    %1121 = vmatpush1.msra.mxu0 %v386
    %1122 = vmatprep.subr.mxu0 0.0
    %1123 = vmatpush1.msra.mxu0 0.0
    %1124 = vmatprep.subr.mxu0 0.0
    %1125 = vmatpush1.msra.mxu0 0.0
    %1126 = vmatprep.subr.mxu0 0.0
    %1127 = vmatpush1.msra.mxu0 0.0
    %1128 = vmatprep.subr.mxu0 0.0
    %1129 = vmatpush1.msra.mxu0 0.0
    %1130 = vmatprep.subr.mxu0 0.0
    %1131 = vmatpush1.msra.mxu0 0.0
    %1132 = vmatprep.subr.mxu0 0.0
    %1133 = vmatpush1.msra.mxu0 0.0
    %1134 = vmatprep.subr.mxu0 0.0
    %1135 = vmatpush1.msra.mxu0 0.0
    %1136 = vmatprep.subr.mxu0 0.0
    %1137 = vmatpush1.msra.mxu0 0.0
    %1138 = vmatprep.subr.mxu0 0.0
    %1139 = vmatpush1.msra.mxu0 0.0
    %1140 = vmatprep.subr.mxu0 0.0
    %1141 = vmatpush1.msra.mxu0 0.0
    %1142 = vmatprep.subr.mxu0 0.0
    %1143 = vmatpush1.msra.mxu0 0.0
    %1144 = vmatprep.subr.mxu0 0.0
    %1145 = vmatpush1.msra.mxu0 0.0
    %1146 = vmatprep.subr.mxu0 0.0
    %1147 = vmatpush1.msra.mxu0 0.0
    %1148 = vmatprep.subr.mxu0 0.0
    %1149 = vmatpush1.msra.mxu0 0.0
    %1150 = vmatprep.subr.mxu0 0.0
    %1151 = vmatpush1.msra.mxu0 0.0
    %1152 = vmatprep.subr.mxu0 0.0
    %1153 = vmatpush1.msra.mxu0 0.0
    %1154 = vmatprep.mubr.f32.mxu0 0.0
    %1155 = vmatmul.mubr.f32.gmra.mrb[0].mxu0 %v1088
    %v1156 = vpop.f32.mrb[0].mxu0
    %v1157 = vadd.f32 0.0, %v1156
    %v1158 = vpop.f32.mrb[0].mxu0
    %v1159 = vadd.f32 0.0, %v1158
    %1160 = vdwg.mxu0
    %1161 = vmatprep.subr.mxu0 0.0
    %1162 = vmatpush1.msra.mxu0 %v343
    %1163 = vmatprep.subr.mxu0 0.0
    %1164 = vmatpush1.msra.mxu0 %v346
    %1165 = vmatprep.subr.mxu0 0.0
    %1166 = vmatpush1.msra.mxu0 %v349
    %1167 = vmatprep.subr.mxu0 0.0
    %1168 = vmatpush1.msra.mxu0 %v352
    %1169 = vmatprep.subr.mxu0 0.0
    %1170 = vmatpush1.msra.mxu0 %v355
    %1171 = vmatprep.subr.mxu0 0.0
    %1172 = vmatpush1.msra.mxu0 %v358
    %1173 = vmatprep.subr.mxu0 0.0
    %1174 = vmatpush1.msra.mxu0 %v361
    %1175 = vmatprep.subr.mxu0 0.0
    %1176 = vmatpush1.msra.mxu0 %v364
    %1177 = vmatprep.subr.mxu0 0.0
    %1178 = vmatpush1.msra.mxu0 %v367
    %1179 = vmatprep.subr.mxu0 0.0
    %1180 = vmatpush1.msra.mxu0 %v370
    %1181 = vmatprep.subr.mxu0 0.0
    %1182 = vmatpush1.msra.mxu0 %v373
    %1183 = vmatprep.subr.mxu0 0.0
    %1184 = vmatpush1.msra.mxu0 %v376
    %1185 = vmatprep.subr.mxu0 0.0
    %1186 = vmatpush1.msra.mxu0 %v379
    %1187 = vmatprep.subr.mxu0 0.0
    %1188 = vmatpush1.msra.mxu0 %v382
    %1189 = vmatprep.subr.mxu0 0.0
    %1190 = vmatpush1.msra.mxu0 %v385
    %1191 = vmatprep.subr.mxu0 0.0
    %1192 = vmatpush1.msra.mxu0 %v388
    %1193 = vmatprep.subr.mxu0 0.0
    %1194 = vmatpush1.msra.mxu0 0.0
    %1195 = vmatprep.subr.mxu0 0.0
    %1196 = vmatpush1.msra.mxu0 0.0
    %1197 = vmatprep.subr.mxu0 0.0
    %1198 = vmatpush1.msra.mxu0 0.0
    %1199 = vmatprep.subr.mxu0 0.0
    %1200 = vmatpush1.msra.mxu0 0.0
    %1201 = vmatprep.subr.mxu0 0.0
    %1202 = vmatpush1.msra.mxu0 0.0
    %1203 = vmatprep.subr.mxu0 0.0
    %1204 = vmatpush1.msra.mxu0 0.0
    %1205 = vmatprep.subr.mxu0 0.0
    %1206 = vmatpush1.msra.mxu0 0.0
    %1207 = vmatprep.subr.mxu0 0.0
    %1208 = vmatpush1.msra.mxu0 0.0
    %1209 = vmatprep.subr.mxu0 0.0
    %1210 = vmatpush1.msra.mxu0 0.0
    %1211 = vmatprep.subr.mxu0 0.0
    %1212 = vmatpush1.msra.mxu0 0.0
    %1213 = vmatprep.subr.mxu0 0.0
    %1214 = vmatpush1.msra.mxu0 0.0
    %1215 = vmatprep.subr.mxu0 0.0
    %1216 = vmatpush1.msra.mxu0 0.0
    %1217 = vmatprep.subr.mxu0 0.0
    %1218 = vmatpush1.msra.mxu0 0.0
    %1219 = vmatprep.subr.mxu0 0.0
    %1220 = vmatpush1.msra.mxu0 0.0
    %1221 = vmatprep.subr.mxu0 0.0
    %1222 = vmatpush1.msra.mxu0 0.0
    %1223 = vmatprep.subr.mxu0 0.0
    %1224 = vmatpush1.msra.mxu0 0.0
    %1225 = vmatprep.mubr.f32.mxu0 0.0
    %1226 = vmatmul.mubr.f32.gmra.mrb[0].mxu0 %v1088
    %v1227 = vpop.f32.mrb[0].mxu0
    %v1228 = vadd.f32 0.0, %v1227
    %v1229 = vpop.f32.mrb[0].mxu0
    %1230 = vdwg.mxu0
    %v1232 = vrot.slane %v1157, 4
    %v1234 = vadd.f32 %v292, %v1232
    %v1235 = vxor.u32 %v1234, 2147483648
    %v1236 = vmul.f32 %v1235, 1.442695
    %v1237 = vpow.pop %v1236
    %v1238 = vadd.f32 %v1237, 1.0
    %v1239 = vrcp.pop %v1238
    %v1240 = vmul.f32 1.0, %v1239
    %v1242 = vrot.slane %v1159, 4
    %v1244 = vadd.f32 %v294, %v1242
    %v1245 = vxor.u32 %v1244, 2147483648
    %v1246 = vmul.f32 %v1245, 1.442695
    %v1247 = vpow.pop %v1246
    %v1248 = vadd.f32 %v1247, 1.0
    %v1249 = vrcp.pop %v1248
    %v1250 = vmul.f32 1.0, %v1249
    %v1251 = vadd.f32 %v1228, %v389
    %v1253 = vrot.slane %v1251, 4
    %v1255 = vmul.f32 %v1240, %v1253
    %v1256 = vadd.f32 %v335, %v1255
    %v1257 = vtanh.pop %v1256
    %v1258 = vsub.f32 1.0, %v1250
    %v1259 = vmul.f32 %v1258, %v1257
    %v1260 = vrot.slane %v1085, 7
    %v1262 = vmul.f32 %v1250, %v1260
    %v1263 = vadd.f32 %v1259, %v1262
    %1264 = vst [vmem:[#allocation9] sm:$0x10] %v1263
    %v1266 = vrot.slane %v1263, 4
    %1268 = vmatprep.subr.mxu0 %v342
    %1269 = vmatpush1.msra.mxu0 %v341
    %1270 = vmatprep.subr.mxu0 %v345
    %1271 = vmatpush1.msra.mxu0 %v344
    %1272 = vmatprep.subr.mxu0 %v348
    %1273 = vmatpush1.msra.mxu0 %v347
    %1274 = vmatprep.subr.mxu0 %v351
    %1275 = vmatpush1.msra.mxu0 %v350
    %1276 = vmatprep.subr.mxu0 %v354
    %1277 = vmatpush1.msra.mxu0 %v353
    %1278 = vmatprep.subr.mxu0 %v357
    %1279 = vmatpush1.msra.mxu0 %v356
    %1280 = vmatprep.subr.mxu0 %v360
    %1281 = vmatpush1.msra.mxu0 %v359
    %1282 = vmatprep.subr.mxu0 %v363
    %1283 = vmatpush1.msra.mxu0 %v362
    %1284 = vmatprep.subr.mxu0 %v366
    %1285 = vmatpush1.msra.mxu0 %v365
    %1286 = vmatprep.subr.mxu0 %v369
    %1287 = vmatpush1.msra.mxu0 %v368
    %1288 = vmatprep.subr.mxu0 %v372
    %1289 = vmatpush1.msra.mxu0 %v371
    %1290 = vmatprep.subr.mxu0 %v375
    %1291 = vmatpush1.msra.mxu0 %v374
    %1292 = vmatprep.subr.mxu0 %v378
    %1293 = vmatpush1.msra.mxu0 %v377
    %1294 = vmatprep.subr.mxu0 %v381
    %1295 = vmatpush1.msra.mxu0 %v380
    %1296 = vmatprep.subr.mxu0 %v384
    %1297 = vmatpush1.msra.mxu0 %v383
    %1298 = vmatprep.subr.mxu0 %v387
    %1299 = vmatpush1.msra.mxu0 %v386
    %1300 = vmatprep.subr.mxu0 0.0
    %1301 = vmatpush1.msra.mxu0 0.0
    %1302 = vmatprep.subr.mxu0 0.0
    %1303 = vmatpush1.msra.mxu0 0.0
    %1304 = vmatprep.subr.mxu0 0.0
    %1305 = vmatpush1.msra.mxu0 0.0
    %1306 = vmatprep.subr.mxu0 0.0
    %1307 = vmatpush1.msra.mxu0 0.0
    %1308 = vmatprep.subr.mxu0 0.0
    %1309 = vmatpush1.msra.mxu0 0.0
    %1310 = vmatprep.subr.mxu0 0.0
    %1311 = vmatpush1.msra.mxu0 0.0
    %1312 = vmatprep.subr.mxu0 0.0
    %1313 = vmatpush1.msra.mxu0 0.0
    %1314 = vmatprep.subr.mxu0 0.0
    %1315 = vmatpush1.msra.mxu0 0.0
    %1316 = vmatprep.subr.mxu0 0.0
    %1317 = vmatpush1.msra.mxu0 0.0
    %1318 = vmatprep.subr.mxu0 0.0
    %1319 = vmatpush1.msra.mxu0 0.0
    %1320 = vmatprep.subr.mxu0 0.0
    %1321 = vmatpush1.msra.mxu0 0.0
    %1322 = vmatprep.subr.mxu0 0.0
    %1323 = vmatpush1.msra.mxu0 0.0
    %1324 = vmatprep.subr.mxu0 0.0
    %1325 = vmatpush1.msra.mxu0 0.0
    %1326 = vmatprep.subr.mxu0 0.0
    %1327 = vmatpush1.msra.mxu0 0.0
    %1328 = vmatprep.subr.mxu0 0.0
    %1329 = vmatpush1.msra.mxu0 0.0
    %1330 = vmatprep.subr.mxu0 0.0
    %1331 = vmatpush1.msra.mxu0 0.0
    %1332 = vmatprep.mubr.f32.mxu0 0.0
    %1333 = vmatmul.mubr.f32.gmra.mrb[0].mxu0 %v1266
    %v1334 = vpop.f32.mrb[0].mxu0
    %v1335 = vadd.f32 0.0, %v1334
    %v1336 = vpop.f32.mrb[0].mxu0
    %v1337 = vadd.f32 0.0, %v1336
    %1338 = vdwg.mxu0
    %1339 = vmatprep.subr.mxu0 0.0
    %1340 = vmatpush1.msra.mxu0 %v343
    %1341 = vmatprep.subr.mxu0 0.0
    %1342 = vmatpush1.msra.mxu0 %v346
    %1343 = vmatprep.subr.mxu0 0.0
    %1344 = vmatpush1.msra.mxu0 %v349
    %1345 = vmatprep.subr.mxu0 0.0
    %1346 = vmatpush1.msra.mxu0 %v352
    %1347 = vmatprep.subr.mxu0 0.0
    %1348 = vmatpush1.msra.mxu0 %v355
    %1349 = vmatprep.subr.mxu0 0.0
    %1350 = vmatpush1.msra.mxu0 %v358
    %1351 = vmatprep.subr.mxu0 0.0
    %1352 = vmatpush1.msra.mxu0 %v361
    %1353 = vmatprep.subr.mxu0 0.0
    %1354 = vmatpush1.msra.mxu0 %v364
    %1355 = vmatprep.subr.mxu0 0.0
    %1356 = vmatpush1.msra.mxu0 %v367
    %1357 = vmatprep.subr.mxu0 0.0
    %1358 = vmatpush1.msra.mxu0 %v370
    %1359 = vmatprep.subr.mxu0 0.0
    %1360 = vmatpush1.msra.mxu0 %v373
    %1361 = vmatprep.subr.mxu0 0.0
    %1362 = vmatpush1.msra.mxu0 %v376
    %1363 = vmatprep.subr.mxu0 0.0
    %1364 = vmatpush1.msra.mxu0 %v379
    %1365 = vmatprep.subr.mxu0 0.0
    %1366 = vmatpush1.msra.mxu0 %v382
    %1367 = vmatprep.subr.mxu0 0.0
    %1368 = vmatpush1.msra.mxu0 %v385
    %1369 = vmatprep.subr.mxu0 0.0
    %1370 = vmatpush1.msra.mxu0 %v388
    %1371 = vmatprep.subr.mxu0 0.0
    %1372 = vmatpush1.msra.mxu0 0.0
    %1373 = vmatprep.subr.mxu0 0.0
    %1374 = vmatpush1.msra.mxu0 0.0
    %1375 = vmatprep.subr.mxu0 0.0
    %1376 = vmatpush1.msra.mxu0 0.0
    %1377 = vmatprep.subr.mxu0 0.0
    %1378 = vmatpush1.msra.mxu0 0.0
    %1379 = vmatprep.subr.mxu0 0.0
    %1380 = vmatpush1.msra.mxu0 0.0
    %1381 = vmatprep.subr.mxu0 0.0
    %1382 = vmatpush1.msra.mxu0 0.0
    %1383 = vmatprep.subr.mxu0 0.0
    %1384 = vmatpush1.msra.mxu0 0.0
    %1385 = vmatprep.subr.mxu0 0.0
    %1386 = vmatpush1.msra.mxu0 0.0
    %1387 = vmatprep.subr.mxu0 0.0
    %1388 = vmatpush1.msra.mxu0 0.0
    %1389 = vmatprep.subr.mxu0 0.0
    %1390 = vmatpush1.msra.mxu0 0.0
    %1391 = vmatprep.subr.mxu0 0.0
    %1392 = vmatpush1.msra.mxu0 0.0
    %1393 = vmatprep.subr.mxu0 0.0
    %1394 = vmatpush1.msra.mxu0 0.0
    %1395 = vmatprep.subr.mxu0 0.0
    %1396 = vmatpush1.msra.mxu0 0.0
    %1397 = vmatprep.subr.mxu0 0.0
    %1398 = vmatpush1.msra.mxu0 0.0
    %1399 = vmatprep.subr.mxu0 0.0
    %1400 = vmatpush1.msra.mxu0 0.0
    %1401 = vmatprep.subr.mxu0 0.0
    %1402 = vmatpush1.msra.mxu0 0.0
    %1403 = vmatprep.mubr.f32.mxu0 0.0
    %1404 = vmatmul.mubr.f32.gmra.mrb[0].mxu0 %v1266
    %v1405 = vpop.f32.mrb[0].mxu0
    %v1406 = vadd.f32 0.0, %v1405
    %v1407 = vpop.f32.mrb[0].mxu0
    %1408 = vdwg.mxu0
    %v1410 = vrot.slane %v1335, 3
    %v1412 = vadd.f32 %v292, %v1410
    %v1413 = vxor.u32 %v1412, 2147483648
    %v1414 = vmul.f32 %v1413, 1.442695
    %v1415 = vpow.pop %v1414
    %v1416 = vadd.f32 %v1415, 1.0
    %v1417 = vrcp.pop %v1416
    %v1418 = vmul.f32 1.0, %v1417
    %v1420 = vrot.slane %v1337, 3
    %v1422 = vadd.f32 %v294, %v1420
    %v1423 = vxor.u32 %v1422, 2147483648
    %v1424 = vmul.f32 %v1423, 1.442695
    %v1425 = vpow.pop %v1424
    %v1426 = vadd.f32 %v1425, 1.0
    %v1427 = vrcp.pop %v1426
    %v1428 = vmul.f32 1.0, %v1427
    %v1429 = vadd.f32 %v1406, %v389
    %v1431 = vrot.slane %v1429, 3
    %v1433 = vmul.f32 %v1418, %v1431
    %v1434 = vadd.f32 %v335, %v1433
    %v1435 = vtanh.pop %v1434
    %v1436 = vsub.f32 1.0, %v1428
    %v1437 = vmul.f32 %v1436, %v1435
    %v1438 = vrot.slane %v1263, 7
    %v1440 = vmul.f32 %v1428, %v1438
    %v1441 = vadd.f32 %v1437, %v1440
    %1442 = vst [vmem:[#allocation9] sm:$0x20] %v1441
    %v1444 = vrot.slane %v1441, 5
    %1446 = vmatprep.subr.mxu0 %v342
    %1447 = vmatpush1.msra.mxu0 %v341
    %1448 = vmatprep.subr.mxu0 %v345
    %1449 = vmatpush1.msra.mxu0 %v344
    %1450 = vmatprep.subr.mxu0 %v348
    %1451 = vmatpush1.msra.mxu0 %v347
    %1452 = vmatprep.subr.mxu0 %v351
    %1453 = vmatpush1.msra.mxu0 %v350
    %1454 = vmatprep.subr.mxu0 %v354
    %1455 = vmatpush1.msra.mxu0 %v353
    %1456 = vmatprep.subr.mxu0 %v357
    %1457 = vmatpush1.msra.mxu0 %v356
    %1458 = vmatprep.subr.mxu0 %v360
    %1459 = vmatpush1.msra.mxu0 %v359
    %1460 = vmatprep.subr.mxu0 %v363
    %1461 = vmatpush1.msra.mxu0 %v362
    %1462 = vmatprep.subr.mxu0 %v366
    %1463 = vmatpush1.msra.mxu0 %v365
    %1464 = vmatprep.subr.mxu0 %v369
    %1465 = vmatpush1.msra.mxu0 %v368
    %1466 = vmatprep.subr.mxu0 %v372
    %1467 = vmatpush1.msra.mxu0 %v371
    %1468 = vmatprep.subr.mxu0 %v375
    %1469 = vmatpush1.msra.mxu0 %v374
    %1470 = vmatprep.subr.mxu0 %v378
    %1471 = vmatpush1.msra.mxu0 %v377
    %1472 = vmatprep.subr.mxu0 %v381
    %1473 = vmatpush1.msra.mxu0 %v380
    %1474 = vmatprep.subr.mxu0 %v384
    %1475 = vmatpush1.msra.mxu0 %v383
    %1476 = vmatprep.subr.mxu0 %v387
    %1477 = vmatpush1.msra.mxu0 %v386
    %1478 = vmatprep.subr.mxu0 0.0
    %1479 = vmatpush1.msra.mxu0 0.0
    %1480 = vmatprep.subr.mxu0 0.0
    %1481 = vmatpush1.msra.mxu0 0.0
    %1482 = vmatprep.subr.mxu0 0.0
    %1483 = vmatpush1.msra.mxu0 0.0
    %1484 = vmatprep.subr.mxu0 0.0
    %1485 = vmatpush1.msra.mxu0 0.0
    %1486 = vmatprep.subr.mxu0 0.0
    %1487 = vmatpush1.msra.mxu0 0.0
    %1488 = vmatprep.subr.mxu0 0.0
    %1489 = vmatpush1.msra.mxu0 0.0
    %1490 = vmatprep.subr.mxu0 0.0
    %1491 = vmatpush1.msra.mxu0 0.0
    %1492 = vmatprep.subr.mxu0 0.0
    %1493 = vmatpush1.msra.mxu0 0.0
    %1494 = vmatprep.subr.mxu0 0.0
    %1495 = vmatpush1.msra.mxu0 0.0
    %1496 = vmatprep.subr.mxu0 0.0
    %1497 = vmatpush1.msra.mxu0 0.0
    %1498 = vmatprep.subr.mxu0 0.0
    %1499 = vmatpush1.msra.mxu0 0.0
    %1500 = vmatprep.subr.mxu0 0.0
    %1501 = vmatpush1.msra.mxu0 0.0
    %1502 = vmatprep.subr.mxu0 0.0
    %1503 = vmatpush1.msra.mxu0 0.0
    %1504 = vmatprep.subr.mxu0 0.0
    %1505 = vmatpush1.msra.mxu0 0.0
    %1506 = vmatprep.subr.mxu0 0.0
    %1507 = vmatpush1.msra.mxu0 0.0
    %1508 = vmatprep.subr.mxu0 0.0
    %1509 = vmatpush1.msra.mxu0 0.0
    %1510 = vmatprep.mubr.f32.mxu0 0.0
    %1511 = vmatmul.mubr.f32.gmra.mrb[0].mxu0 %v1444
    %v1512 = vpop.f32.mrb[0].mxu0
    %v1513 = vadd.f32 0.0, %v1512
    %v1514 = vpop.f32.mrb[0].mxu0
    %v1515 = vadd.f32 0.0, %v1514
    %1516 = vdwg.mxu0
    %1517 = vmatprep.subr.mxu0 0.0
    %1518 = vmatpush1.msra.mxu0 %v343
    %1519 = vmatprep.subr.mxu0 0.0
    %1520 = vmatpush1.msra.mxu0 %v346
    %1521 = vmatprep.subr.mxu0 0.0
    %1522 = vmatpush1.msra.mxu0 %v349
    %1523 = vmatprep.subr.mxu0 0.0
    %1524 = vmatpush1.msra.mxu0 %v352
    %1525 = vmatprep.subr.mxu0 0.0
    %1526 = vmatpush1.msra.mxu0 %v355
    %1527 = vmatprep.subr.mxu0 0.0
    %1528 = vmatpush1.msra.mxu0 %v358
    %1529 = vmatprep.subr.mxu0 0.0
    %1530 = vmatpush1.msra.mxu0 %v361
    %1531 = vmatprep.subr.mxu0 0.0
    %1532 = vmatpush1.msra.mxu0 %v364
    %1533 = vmatprep.subr.mxu0 0.0
    %1534 = vmatpush1.msra.mxu0 %v367
    %1535 = vmatprep.subr.mxu0 0.0
    %1536 = vmatpush1.msra.mxu0 %v370
    %1537 = vmatprep.subr.mxu0 0.0
    %1538 = vmatpush1.msra.mxu0 %v373
    %1539 = vmatprep.subr.mxu0 0.0
    %1540 = vmatpush1.msra.mxu0 %v376
    %1541 = vmatprep.subr.mxu0 0.0
    %1542 = vmatpush1.msra.mxu0 %v379
    %1543 = vmatprep.subr.mxu0 0.0
    %1544 = vmatpush1.msra.mxu0 %v382
    %1545 = vmatprep.subr.mxu0 0.0
    %1546 = vmatpush1.msra.mxu0 %v385
    %1547 = vmatprep.subr.mxu0 0.0
    %1548 = vmatpush1.msra.mxu0 %v388
    %1549 = vmatprep.subr.mxu0 0.0
    %1550 = vmatpush1.msra.mxu0 0.0
    %1551 = vmatprep.subr.mxu0 0.0
    %1552 = vmatpush1.msra.mxu0 0.0
    %1553 = vmatprep.subr.mxu0 0.0
    %1554 = vmatpush1.msra.mxu0 0.0
    %1555 = vmatprep.subr.mxu0 0.0
    %1556 = vmatpush1.msra.mxu0 0.0
    %1557 = vmatprep.subr.mxu0 0.0
    %1558 = vmatpush1.msra.mxu0 0.0
    %1559 = vmatprep.subr.mxu0 0.0
    %1560 = vmatpush1.msra.mxu0 0.0
    %1561 = vmatprep.subr.mxu0 0.0
    %1562 = vmatpush1.msra.mxu0 0.0
    %1563 = vmatprep.subr.mxu0 0.0
    %1564 = vmatpush1.msra.mxu0 0.0
    %1565 = vmatprep.subr.mxu0 0.0
    %1566 = vmatpush1.msra.mxu0 0.0
    %1567 = vmatprep.subr.mxu0 0.0
    %1568 = vmatpush1.msra.mxu0 0.0
    %1569 = vmatprep.subr.mxu0 0.0
    %1570 = vmatpush1.msra.mxu0 0.0
    %1571 = vmatprep.subr.mxu0 0.0
    %1572 = vmatpush1.msra.mxu0 0.0
    %1573 = vmatprep.subr.mxu0 0.0
    %1574 = vmatpush1.msra.mxu0 0.0
    %1575 = vmatprep.subr.mxu0 0.0
    %1576 = vmatpush1.msra.mxu0 0.0
    %1577 = vmatprep.subr.mxu0 0.0
    %1578 = vmatpush1.msra.mxu0 0.0
    %1579 = vmatprep.subr.mxu0 0.0
    %1580 = vmatpush1.msra.mxu0 0.0
    %1581 = vmatprep.mubr.f32.mxu0 0.0
    %1582 = vmatmul.mubr.f32.gmra.mrb[0].mxu0 %v1444
    %v1583 = vpop.f32.mrb[0].mxu0
    %v1584 = vadd.f32 0.0, %v1583
    %v1585 = vpop.f32.mrb[0].mxu0
    %1586 = vdwg.mxu0
    %v1588 = vrot.slane %v1513, 2
    %v1590 = vadd.f32 %v292, %v1588
    %v1591 = vxor.u32 %v1590, 2147483648
    %v1592 = vmul.f32 %v1591, 1.442695
    %v1593 = vpow.pop %v1592
    %v1594 = vadd.f32 %v1593, 1.0
    %v1595 = vrcp.pop %v1594
    %v1596 = vmul.f32 1.0, %v1595
    %v1598 = vrot.slane %v1515, 2
    %v1600 = vadd.f32 %v294, %v1598
    %v1601 = vxor.u32 %v1600, 2147483648
    %v1602 = vmul.f32 %v1601, 1.442695
    %v1603 = vpow.pop %v1602
    %v1604 = vadd.f32 %v1603, 1.0
    %v1605 = vrcp.pop %v1604
    %v1606 = vmul.f32 1.0, %v1605
    %v1607 = vadd.f32 %v1584, %v389
    %v1609 = vrot.slane %v1607, 2
    %v1611 = vmul.f32 %v1596, %v1609
    %v1612 = vadd.f32 %v335, %v1611
    %v1613 = vtanh.pop %v1612
    %v1614 = vsub.f32 1.0, %v1606
    %v1615 = vmul.f32 %v1614, %v1613
    %v1616 = vrot.slane %v1441, 7
    %v1618 = vmul.f32 %v1606, %v1616
    %v1619 = vadd.f32 %v1615, %v1618
    %1620 = vst [vmem:[#allocation9] sm:$0x40] %v1619
    %v1622 = vrot.slane %v1619, 6
    %1624 = vmatprep.subr.mxu0 %v342
    %1625 = vmatpush1.msra.mxu0 %v341
    %1626 = vmatprep.subr.mxu0 %v345
    %1627 = vmatpush1.msra.mxu0 %v344
    %1628 = vmatprep.subr.mxu0 %v348
    %1629 = vmatpush1.msra.mxu0 %v347
    %1630 = vmatprep.subr.mxu0 %v351
    %1631 = vmatpush1.msra.mxu0 %v350
    %1632 = vmatprep.subr.mxu0 %v354
    %1633 = vmatpush1.msra.mxu0 %v353
    %1634 = vmatprep.subr.mxu0 %v357
    %1635 = vmatpush1.msra.mxu0 %v356
    %1636 = vmatprep.subr.mxu0 %v360
    %1637 = vmatpush1.msra.mxu0 %v359
    %1638 = vmatprep.subr.mxu0 %v363
    %1639 = vmatpush1.msra.mxu0 %v362
    %1640 = vmatprep.subr.mxu0 %v366
    %1641 = vmatpush1.msra.mxu0 %v365
    %1642 = vmatprep.subr.mxu0 %v369
    %1643 = vmatpush1.msra.mxu0 %v368
    %1644 = vmatprep.subr.mxu0 %v372
    %1645 = vmatpush1.msra.mxu0 %v371
    %1646 = vmatprep.subr.mxu0 %v375
    %1647 = vmatpush1.msra.mxu0 %v374
    %1648 = vmatprep.subr.mxu0 %v378
    %1649 = vmatpush1.msra.mxu0 %v377
    %1650 = vmatprep.subr.mxu0 %v381
    %1651 = vmatpush1.msra.mxu0 %v380
    %1652 = vmatprep.subr.mxu0 %v384
    %1653 = vmatpush1.msra.mxu0 %v383
    %1654 = vmatprep.subr.mxu0 %v387
    %1655 = vmatpush1.msra.mxu0 %v386
    %1656 = vmatprep.subr.mxu0 0.0
    %1657 = vmatpush1.msra.mxu0 0.0
    %1658 = vmatprep.subr.mxu0 0.0
    %1659 = vmatpush1.msra.mxu0 0.0
    %1660 = vmatprep.subr.mxu0 0.0
    %1661 = vmatpush1.msra.mxu0 0.0
    %1662 = vmatprep.subr.mxu0 0.0
    %1663 = vmatpush1.msra.mxu0 0.0
    %1664 = vmatprep.subr.mxu0 0.0
    %1665 = vmatpush1.msra.mxu0 0.0
    %1666 = vmatprep.subr.mxu0 0.0
    %1667 = vmatpush1.msra.mxu0 0.0
    %1668 = vmatprep.subr.mxu0 0.0
    %1669 = vmatpush1.msra.mxu0 0.0
    %1670 = vmatprep.subr.mxu0 0.0
    %1671 = vmatpush1.msra.mxu0 0.0
    %1672 = vmatprep.subr.mxu0 0.0
    %1673 = vmatpush1.msra.mxu0 0.0
    %1674 = vmatprep.subr.mxu0 0.0
    %1675 = vmatpush1.msra.mxu0 0.0
    %1676 = vmatprep.subr.mxu0 0.0
    %1677 = vmatpush1.msra.mxu0 0.0
    %1678 = vmatprep.subr.mxu0 0.0
    %1679 = vmatpush1.msra.mxu0 0.0
    %1680 = vmatprep.subr.mxu0 0.0
    %1681 = vmatpush1.msra.mxu0 0.0
    %1682 = vmatprep.subr.mxu0 0.0
    %1683 = vmatpush1.msra.mxu0 0.0
    %1684 = vmatprep.subr.mxu0 0.0
    %1685 = vmatpush1.msra.mxu0 0.0
    %1686 = vmatprep.subr.mxu0 0.0
    %1687 = vmatpush1.msra.mxu0 0.0
    %1688 = vmatprep.mubr.f32.mxu0 0.0
    %1689 = vmatmul.mubr.f32.gmra.mrb[0].mxu0 %v1622
    %v1690 = vpop.f32.mrb[0].mxu0
    %v1691 = vadd.f32 0.0, %v1690
    %v1692 = vpop.f32.mrb[0].mxu0
    %v1693 = vadd.f32 0.0, %v1692
    %1694 = vdwg.mxu0
    %1695 = vmatprep.subr.mxu0 0.0
    %1696 = vmatpush1.msra.mxu0 %v343
    %1697 = vmatprep.subr.mxu0 0.0
    %1698 = vmatpush1.msra.mxu0 %v346
    %1699 = vmatprep.subr.mxu0 0.0
    %1700 = vmatpush1.msra.mxu0 %v349
    %1701 = vmatprep.subr.mxu0 0.0
    %1702 = vmatpush1.msra.mxu0 %v352
    %1703 = vmatprep.subr.mxu0 0.0
    %1704 = vmatpush1.msra.mxu0 %v355
    %1705 = vmatprep.subr.mxu0 0.0
    %1706 = vmatpush1.msra.mxu0 %v358
    %1707 = vmatprep.subr.mxu0 0.0
    %1708 = vmatpush1.msra.mxu0 %v361
    %1709 = vmatprep.subr.mxu0 0.0
    %1710 = vmatpush1.msra.mxu0 %v364
    %1711 = vmatprep.subr.mxu0 0.0
    %1712 = vmatpush1.msra.mxu0 %v367
    %1713 = vmatprep.subr.mxu0 0.0
    %1714 = vmatpush1.msra.mxu0 %v370
    %1715 = vmatprep.subr.mxu0 0.0
    %1716 = vmatpush1.msra.mxu0 %v373
    %1717 = vmatprep.subr.mxu0 0.0
    %1718 = vmatpush1.msra.mxu0 %v376
    %1719 = vmatprep.subr.mxu0 0.0
    %1720 = vmatpush1.msra.mxu0 %v379
    %1721 = vmatprep.subr.mxu0 0.0
    %1722 = vmatpush1.msra.mxu0 %v382
    %1723 = vmatprep.subr.mxu0 0.0
    %1724 = vmatpush1.msra.mxu0 %v385
    %1725 = vmatprep.subr.mxu0 0.0
    %1726 = vmatpush1.msra.mxu0 %v388
    %1727 = vmatprep.subr.mxu0 0.0
    %1728 = vmatpush1.msra.mxu0 0.0
    %1729 = vmatprep.subr.mxu0 0.0
    %1730 = vmatpush1.msra.mxu0 0.0
    %1731 = vmatprep.subr.mxu0 0.0
    %1732 = vmatpush1.msra.mxu0 0.0
    %1733 = vmatprep.subr.mxu0 0.0
    %1734 = vmatpush1.msra.mxu0 0.0
    %1735 = vmatprep.subr.mxu0 0.0
    %1736 = vmatpush1.msra.mxu0 0.0
    %1737 = vmatprep.subr.mxu0 0.0
    %1738 = vmatpush1.msra.mxu0 0.0
    %1739 = vmatprep.subr.mxu0 0.0
    %1740 = vmatpush1.msra.mxu0 0.0
    %1741 = vmatprep.subr.mxu0 0.0
    %1742 = vmatpush1.msra.mxu0 0.0
    %1743 = vmatprep.subr.mxu0 0.0
    %1744 = vmatpush1.msra.mxu0 0.0
    %1745 = vmatprep.subr.mxu0 0.0
    %1746 = vmatpush1.msra.mxu0 0.0
    %1747 = vmatprep.subr.mxu0 0.0
    %1748 = vmatpush1.msra.mxu0 0.0
    %1749 = vmatprep.subr.mxu0 0.0
    %1750 = vmatpush1.msra.mxu0 0.0
    %1751 = vmatprep.subr.mxu0 0.0
    %1752 = vmatpush1.msra.mxu0 0.0
    %1753 = vmatprep.subr.mxu0 0.0
    %1754 = vmatpush1.msra.mxu0 0.0
    %1755 = vmatprep.subr.mxu0 0.0
    %1756 = vmatpush1.msra.mxu0 0.0
    %1757 = vmatprep.subr.mxu0 0.0
    %1758 = vmatpush1.msra.mxu0 0.0
    %1759 = vmatprep.mubr.f32.mxu0 0.0
    %1760 = vmatmul.mubr.f32.gmra.mrb[0].mxu0 %v1622
    %v1761 = vpop.f32.mrb[0].mxu0
    %v1762 = vadd.f32 0.0, %v1761
    %v1763 = vpop.f32.mrb[0].mxu0
    %1764 = vdwg.mxu0
    %v1766 = vrot.slane %v1691, 1
    %v1768 = vadd.f32 %v292, %v1766
    %v1769 = vxor.u32 %v1768, 2147483648
    %v1770 = vmul.f32 %v1769, 1.442695
    %v1771 = vpow.pop %v1770
    %v1772 = vadd.f32 %v1771, 1.0
    %v1773 = vrcp.pop %v1772
    %v1774 = vmul.f32 1.0, %v1773
    %v1776 = vrot.slane %v1693, 1
    %v1778 = vadd.f32 %v294, %v1776
    %v1779 = vxor.u32 %v1778, 2147483648
    %v1780 = vmul.f32 %v1779, 1.442695
    %v1781 = vpow.pop %v1780
    %v1782 = vadd.f32 %v1781, 1.0
    %v1783 = vrcp.pop %v1782
    %v1784 = vmul.f32 1.0, %v1783
    %v1785 = vadd.f32 %v1762, %v389
    %v1787 = vrot.slane %v1785, 1
    %v1789 = vmul.f32 %v1774, %v1787
    %v1790 = vadd.f32 %v335, %v1789
    %v1791 = vtanh.pop %v1790
    %v1792 = vsub.f32 1.0, %v1784
    %v1793 = vmul.f32 %v1792, %v1791
    %v1794 = vrot.slane %v1619, 7
    %v1796 = vmul.f32 %v1784, %v1794
    %v1797 = vadd.f32 %v1793, %v1796
    %1798 = vst [vmem:[#allocation9] sm:$0x80] %v1797
    %v1800 = vrot.slane %v1797, 7
    %1802 = vmatprep.subr.mxu0 %v342
    %1803 = vmatpush1.msra.mxu0 %v341
    %1804 = vmatprep.subr.mxu0 %v345
    %1805 = vmatpush1.msra.mxu0 %v344
    %1806 = vmatprep.subr.mxu0 %v348
    %1807 = vmatpush1.msra.mxu0 %v347
    %1808 = vmatprep.subr.mxu0 %v351
    %1809 = vmatpush1.msra.mxu0 %v350
    %1810 = vmatprep.subr.mxu0 %v354
    %1811 = vmatpush1.msra.mxu0 %v353
    %1812 = vmatprep.subr.mxu0 %v357
    %1813 = vmatpush1.msra.mxu0 %v356
    %1814 = vmatprep.subr.mxu0 %v360
    %1815 = vmatpush1.msra.mxu0 %v359
    %1816 = vmatprep.subr.mxu0 %v363
    %1817 = vmatpush1.msra.mxu0 %v362
    %1818 = vmatprep.subr.mxu0 %v366
    %1819 = vmatpush1.msra.mxu0 %v365
    %1820 = vmatprep.subr.mxu0 %v369
    %1821 = vmatpush1.msra.mxu0 %v368
    %1822 = vmatprep.subr.mxu0 %v372
    %1823 = vmatpush1.msra.mxu0 %v371
    %1824 = vmatprep.subr.mxu0 %v375
    %1825 = vmatpush1.msra.mxu0 %v374
    %1826 = vmatprep.subr.mxu0 %v378
    %1827 = vmatpush1.msra.mxu0 %v377
    %1828 = vmatprep.subr.mxu0 %v381
    %1829 = vmatpush1.msra.mxu0 %v380
    %1830 = vmatprep.subr.mxu0 %v384
    %1831 = vmatpush1.msra.mxu0 %v383
    %1832 = vmatprep.subr.mxu0 %v387
    %1833 = vmatpush1.msra.mxu0 %v386
    %1834 = vmatprep.subr.mxu0 0.0
    %1835 = vmatpush1.msra.mxu0 0.0
    %1836 = vmatprep.subr.mxu0 0.0
    %1837 = vmatpush1.msra.mxu0 0.0
    %1838 = vmatprep.subr.mxu0 0.0
    %1839 = vmatpush1.msra.mxu0 0.0
    %1840 = vmatprep.subr.mxu0 0.0
    %1841 = vmatpush1.msra.mxu0 0.0
    %1842 = vmatprep.subr.mxu0 0.0
    %1843 = vmatpush1.msra.mxu0 0.0
    %1844 = vmatprep.subr.mxu0 0.0
    %1845 = vmatpush1.msra.mxu0 0.0
    %1846 = vmatprep.subr.mxu0 0.0
    %1847 = vmatpush1.msra.mxu0 0.0
    %1848 = vmatprep.subr.mxu0 0.0
    %1849 = vmatpush1.msra.mxu0 0.0
    %1850 = vmatprep.subr.mxu0 0.0
    %1851 = vmatpush1.msra.mxu0 0.0
    %1852 = vmatprep.subr.mxu0 0.0
    %1853 = vmatpush1.msra.mxu0 0.0
    %1854 = vmatprep.subr.mxu0 0.0
    %1855 = vmatpush1.msra.mxu0 0.0
    %1856 = vmatprep.subr.mxu0 0.0
    %1857 = vmatpush1.msra.mxu0 0.0
    %1858 = vmatprep.subr.mxu0 0.0
    %1859 = vmatpush1.msra.mxu0 0.0
    %1860 = vmatprep.subr.mxu0 0.0
    %1861 = vmatpush1.msra.mxu0 0.0
    %1862 = vmatprep.subr.mxu0 0.0
    %1863 = vmatpush1.msra.mxu0 0.0
    %1864 = vmatprep.subr.mxu0 0.0
    %1865 = vmatpush1.msra.mxu0 0.0
    %1866 = vmatprep.mubr.f32.mxu0 0.0
    %1867 = vmatmul.mubr.f32.gmra.mrb[0].mxu0 %v1800
    %v1868 = vpop.f32.mrb[0].mxu0
    %v1869 = vadd.f32 0.0, %v1868
    %v1870 = vpop.f32.mrb[0].mxu0
    %v1871 = vadd.f32 0.0, %v1870
    %1872 = vdwg.mxu0
    %1873 = vmatprep.subr.mxu0 0.0
    %1874 = vmatpush1.msra.mxu0 %v343
    %1875 = vmatprep.subr.mxu0 0.0
    %1876 = vmatpush1.msra.mxu0 %v346
    %1877 = vmatprep.subr.mxu0 0.0
    %1878 = vmatpush1.msra.mxu0 %v349
    %1879 = vmatprep.subr.mxu0 0.0
    %1880 = vmatpush1.msra.mxu0 %v352
    %1881 = vmatprep.subr.mxu0 0.0
    %1882 = vmatpush1.msra.mxu0 %v355
    %1883 = vmatprep.subr.mxu0 0.0
    %1884 = vmatpush1.msra.mxu0 %v358
    %1885 = vmatprep.subr.mxu0 0.0
    %1886 = vmatpush1.msra.mxu0 %v361
    %1887 = vmatprep.subr.mxu0 0.0
    %1888 = vmatpush1.msra.mxu0 %v364
    %1889 = vmatprep.subr.mxu0 0.0
    %1890 = vmatpush1.msra.mxu0 %v367
    %1891 = vmatprep.subr.mxu0 0.0
    %1892 = vmatpush1.msra.mxu0 %v370
    %1893 = vmatprep.subr.mxu0 0.0
    %1894 = vmatpush1.msra.mxu0 %v373
    %1895 = vmatprep.subr.mxu0 0.0
    %1896 = vmatpush1.msra.mxu0 %v376
    %1897 = vmatprep.subr.mxu0 0.0
    %1898 = vmatpush1.msra.mxu0 %v379
    %1899 = vmatprep.subr.mxu0 0.0
    %1900 = vmatpush1.msra.mxu0 %v382
    %1901 = vmatprep.subr.mxu0 0.0
    %1902 = vmatpush1.msra.mxu0 %v385
    %1903 = vmatprep.subr.mxu0 0.0
    %1904 = vmatpush1.msra.mxu0 %v388
    %1905 = vmatprep.subr.mxu0 0.0
    %1906 = vmatpush1.msra.mxu0 0.0
    %1907 = vmatprep.subr.mxu0 0.0
    %1908 = vmatpush1.msra.mxu0 0.0
    %1909 = vmatprep.subr.mxu0 0.0
    %1910 = vmatpush1.msra.mxu0 0.0
    %1911 = vmatprep.subr.mxu0 0.0
    %1912 = vmatpush1.msra.mxu0 0.0
    %1913 = vmatprep.subr.mxu0 0.0
    %1914 = vmatpush1.msra.mxu0 0.0
    %1915 = vmatprep.subr.mxu0 0.0
    %1916 = vmatpush1.msra.mxu0 0.0
    %1917 = vmatprep.subr.mxu0 0.0
    %1918 = vmatpush1.msra.mxu0 0.0
    %1919 = vmatprep.subr.mxu0 0.0
    %1920 = vmatpush1.msra.mxu0 0.0
    %1921 = vmatprep.subr.mxu0 0.0
    %1922 = vmatpush1.msra.mxu0 0.0
    %1923 = vmatprep.subr.mxu0 0.0
    %1924 = vmatpush1.msra.mxu0 0.0
    %1925 = vmatprep.subr.mxu0 0.0
    %1926 = vmatpush1.msra.mxu0 0.0
    %1927 = vmatprep.subr.mxu0 0.0
    %1928 = vmatpush1.msra.mxu0 0.0
    %1929 = vmatprep.subr.mxu0 0.0
    %1930 = vmatpush1.msra.mxu0 0.0
    %1931 = vmatprep.subr.mxu0 0.0
    %1932 = vmatpush1.msra.mxu0 0.0
    %1933 = vmatprep.subr.mxu0 0.0
    %1934 = vmatpush1.msra.mxu0 0.0
    %1935 = vmatprep.subr.mxu0 0.0
    %1936 = vmatpush1.msra.mxu0 0.0
    %1937 = vmatprep.mubr.f32.mxu0 0.0
    %1938 = vmatmul.mubr.f32.gmra.mrb[0].mxu0 %v1800
    %v1939 = vpop.f32.mrb[0].mxu0
    %v1940 = vadd.f32 0.0, %v1939
    %v1941 = vpop.f32.mrb[0].mxu0
    %1942 = vdwg.mxu0
    %v1943 = vadd.f32 %v296, %v1869
    %v1944 = vxor.u32 %v1943, 2147483648
    %v1945 = vmul.f32 %v1944, 1.442695
    %v1946 = vpow.pop %v1945
    %v1947 = vadd.f32 %v1946, 1.0
    %v1948 = vrcp.pop %v1947
    %v1949 = vmul.f32 1.0, %v1948
    %v1950 = vadd.f32 %v298, %v1871
    %v1951 = vxor.u32 %v1950, 2147483648
    %v1952 = vmul.f32 %v1951, 1.442695
    %v1953 = vpow.pop %v1952
    %v1954 = vadd.f32 %v1953, 1.0
    %v1955 = vrcp.pop %v1954
    %v1956 = vmul.f32 1.0, %v1955
    %v1957 = vadd.f32 %v1940, %v389
    %v1958 = vmul.f32 %v1949, %v1957
    %v1959 = vadd.f32 %v338, %v1958
    %v1960 = vtanh.pop %v1959
    %v1961 = vsub.f32 1.0, %v1956
    %v1962 = vmul.f32 %v1961, %v1960
    %v1963 = vmul.f32 %v1956, %v1800
    %v1964 = vadd.f32 %v1962, %v1963
    %1965 = vst [vmem:[#allocation9 + $0x8] sm:$0x1] %v1964
    %1966 = vmatprep.subr.mxu0 %v342
    %1967 = vmatpush1.msra.mxu0 %v341
    %1968 = vmatprep.subr.mxu0 %v345
    %1969 = vmatpush1.msra.mxu0 %v344
    %1970 = vmatprep.subr.mxu0 %v348
    %1971 = vmatpush1.msra.mxu0 %v347
    %1972 = vmatprep.subr.mxu0 %v351
    %1973 = vmatpush1.msra.mxu0 %v350
    %1974 = vmatprep.subr.mxu0 %v354
    %1975 = vmatpush1.msra.mxu0 %v353
    %1976 = vmatprep.subr.mxu0 %v357
    %1977 = vmatpush1.msra.mxu0 %v356
    %1978 = vmatprep.subr.mxu0 %v360
    %1979 = vmatpush1.msra.mxu0 %v359
    %1980 = vmatprep.subr.mxu0 %v363
    %1981 = vmatpush1.msra.mxu0 %v362
    %1982 = vmatprep.subr.mxu0 %v366
    %1983 = vmatpush1.msra.mxu0 %v365
    %1984 = vmatprep.subr.mxu0 %v369
    %1985 = vmatpush1.msra.mxu0 %v368
    %1986 = vmatprep.subr.mxu0 %v372
    %1987 = vmatpush1.msra.mxu0 %v371
    %1988 = vmatprep.subr.mxu0 %v375
    %1989 = vmatpush1.msra.mxu0 %v374
    %1990 = vmatprep.subr.mxu0 %v378
    %1991 = vmatpush1.msra.mxu0 %v377
    %1992 = vmatprep.subr.mxu0 %v381
    %1993 = vmatpush1.msra.mxu0 %v380
    %1994 = vmatprep.subr.mxu0 %v384
    %1995 = vmatpush1.msra.mxu0 %v383
    %1996 = vmatprep.subr.mxu0 %v387
    %1997 = vmatpush1.msra.mxu0 %v386
    %1998 = vmatprep.subr.mxu0 0.0
    %1999 = vmatpush1.msra.mxu0 0.0
    %2000 = vmatprep.subr.mxu0 0.0
    %2001 = vmatpush1.msra.mxu0 0.0
    %2002 = vmatprep.subr.mxu0 0.0
    %2003 = vmatpush1.msra.mxu0 0.0
    %2004 = vmatprep.subr.mxu0 0.0
    %2005 = vmatpush1.msra.mxu0 0.0
    %2006 = vmatprep.subr.mxu0 0.0
    %2007 = vmatpush1.msra.mxu0 0.0
    %2008 = vmatprep.subr.mxu0 0.0
    %2009 = vmatpush1.msra.mxu0 0.0
    %2010 = vmatprep.subr.mxu0 0.0
    %2011 = vmatpush1.msra.mxu0 0.0
    %2012 = vmatprep.subr.mxu0 0.0
    %2013 = vmatpush1.msra.mxu0 0.0
    %2014 = vmatprep.subr.mxu0 0.0
    %2015 = vmatpush1.msra.mxu0 0.0
    %2016 = vmatprep.subr.mxu0 0.0
    %2017 = vmatpush1.msra.mxu0 0.0
    %2018 = vmatprep.subr.mxu0 0.0
    %2019 = vmatpush1.msra.mxu0 0.0
    %2020 = vmatprep.subr.mxu0 0.0
    %2021 = vmatpush1.msra.mxu0 0.0
    %2022 = vmatprep.subr.mxu0 0.0
    %2023 = vmatpush1.msra.mxu0 0.0
    %2024 = vmatprep.subr.mxu0 0.0
    %2025 = vmatpush1.msra.mxu0 0.0
    %2026 = vmatprep.subr.mxu0 0.0
    %2027 = vmatpush1.msra.mxu0 0.0
    %2028 = vmatprep.subr.mxu0 0.0
    %2029 = vmatpush1.msra.mxu0 0.0
    %2030 = vmatprep.mubr.f32.mxu0 0.0
    %2031 = vmatmul.mubr.f32.gmra.mrb[0].mxu0 %v1964
    %v2032 = vpop.f32.mrb[0].mxu0
    %v2033 = vadd.f32 0.0, %v2032
    %v2034 = vpop.f32.mrb[0].mxu0
    %v2035 = vadd.f32 0.0, %v2034
    %2036 = vdwg.mxu0
    %2037 = vmatprep.subr.mxu0 0.0
    %2038 = vmatpush1.msra.mxu0 %v343
    %2039 = vmatprep.subr.mxu0 0.0
    %2040 = vmatpush1.msra.mxu0 %v346
    %2041 = vmatprep.subr.mxu0 0.0
    %2042 = vmatpush1.msra.mxu0 %v349
    %2043 = vmatprep.subr.mxu0 0.0
    %2044 = vmatpush1.msra.mxu0 %v352
    %2045 = vmatprep.subr.mxu0 0.0
    %2046 = vmatpush1.msra.mxu0 %v355
    %2047 = vmatprep.subr.mxu0 0.0
    %2048 = vmatpush1.msra.mxu0 %v358
    %2049 = vmatprep.subr.mxu0 0.0
    %2050 = vmatpush1.msra.mxu0 %v361
    %2051 = vmatprep.subr.mxu0 0.0
    %2052 = vmatpush1.msra.mxu0 %v364
    %2053 = vmatprep.subr.mxu0 0.0
    %2054 = vmatpush1.msra.mxu0 %v367
    %2055 = vmatprep.subr.mxu0 0.0
    %2056 = vmatpush1.msra.mxu0 %v370
    %2057 = vmatprep.subr.mxu0 0.0
    %2058 = vmatpush1.msra.mxu0 %v373
    %2059 = vmatprep.subr.mxu0 0.0
    %2060 = vmatpush1.msra.mxu0 %v376
    %2061 = vmatprep.subr.mxu0 0.0
    %2062 = vmatpush1.msra.mxu0 %v379
    %2063 = vmatprep.subr.mxu0 0.0
    %2064 = vmatpush1.msra.mxu0 %v382
    %2065 = vmatprep.subr.mxu0 0.0
    %2066 = vmatpush1.msra.mxu0 %v385
    %2067 = vmatprep.subr.mxu0 0.0
    %2068 = vmatpush1.msra.mxu0 %v388
    %2069 = vmatprep.subr.mxu0 0.0
    %2070 = vmatpush1.msra.mxu0 0.0
    %2071 = vmatprep.subr.mxu0 0.0
    %2072 = vmatpush1.msra.mxu0 0.0
    %2073 = vmatprep.subr.mxu0 0.0
    %2074 = vmatpush1.msra.mxu0 0.0
    %2075 = vmatprep.subr.mxu0 0.0
    %2076 = vmatpush1.msra.mxu0 0.0
    %2077 = vmatprep.subr.mxu0 0.0
    %2078 = vmatpush1.msra.mxu0 0.0
    %2079 = vmatprep.subr.mxu0 0.0
    %2080 = vmatpush1.msra.mxu0 0.0
    %2081 = vmatprep.subr.mxu0 0.0
    %2082 = vmatpush1.msra.mxu0 0.0
    %2083 = vmatprep.subr.mxu0 0.0
    %2084 = vmatpush1.msra.mxu0 0.0
    %2085 = vmatprep.subr.mxu0 0.0
    %2086 = vmatpush1.msra.mxu0 0.0
    %2087 = vmatprep.subr.mxu0 0.0
    %2088 = vmatpush1.msra.mxu0 0.0
    %2089 = vmatprep.subr.mxu0 0.0
    %2090 = vmatpush1.msra.mxu0 0.0
    %2091 = vmatprep.subr.mxu0 0.0
    %2092 = vmatpush1.msra.mxu0 0.0
    %2093 = vmatprep.subr.mxu0 0.0
    %2094 = vmatpush1.msra.mxu0 0.0
    %2095 = vmatprep.subr.mxu0 0.0
    %2096 = vmatpush1.msra.mxu0 0.0
    %2097 = vmatprep.subr.mxu0 0.0
    %2098 = vmatpush1.msra.mxu0 0.0
    %2099 = vmatprep.subr.mxu0 0.0
    %2100 = vmatpush1.msra.mxu0 0.0
    %2101 = vmatprep.mubr.f32.mxu0 0.0
    %2102 = vmatmul.mubr.f32.gmra.mrb[0].mxu0 %v1964
    %v2103 = vpop.f32.mrb[0].mxu0
    %v2104 = vadd.f32 0.0, %v2103
    %v2105 = vpop.f32.mrb[0].mxu0
    %2106 = vdwg.mxu0
    %v2108 = vrot.slane %v2033, 7
    %v2110 = vadd.f32 %v296, %v2108
    %v2111 = vxor.u32 %v2110, 2147483648
    %v2112 = vmul.f32 %v2111, 1.442695
    %v2113 = vpow.pop %v2112
    %v2114 = vadd.f32 %v2113, 1.0
    %v2115 = vrcp.pop %v2114
    %v2116 = vmul.f32 1.0, %v2115
    %v2118 = vrot.slane %v2035, 7
    %v2120 = vadd.f32 %v298, %v2118
    %v2121 = vxor.u32 %v2120, 2147483648
    %v2122 = vmul.f32 %v2121, 1.442695
    %v2123 = vpow.pop %v2122
    %v2124 = vadd.f32 %v2123, 1.0
    %v2125 = vrcp.pop %v2124
    %v2126 = vmul.f32 1.0, %v2125
    %v2127 = vadd.f32 %v2104, %v389
    %v2129 = vrot.slane %v2127, 7
    %v2131 = vmul.f32 %v2116, %v2129
    %v2132 = vadd.f32 %v338, %v2131
    %v2133 = vtanh.pop %v2132
    %v2134 = vsub.f32 1.0, %v2126
    %v2135 = vmul.f32 %v2134, %v2133
    %v2137 = vrot.slane %v1964, 7
    %v2139 = vmul.f32 %v2126, %v2137
    %v2140 = vadd.f32 %v2135, %v2139
    %2141 = vst [vmem:[#allocation9 + $0x8] sm:$0x2] %v2140
    %v2143 = vrot.slane %v2140, 1
    %2145 = vmatprep.subr.mxu0 %v342
    %2146 = vmatpush1.msra.mxu0 %v341
    %2147 = vmatprep.subr.mxu0 %v345
    %2148 = vmatpush1.msra.mxu0 %v344
    %2149 = vmatprep.subr.mxu0 %v348
    %2150 = vmatpush1.msra.mxu0 %v347
    %2151 = vmatprep.subr.mxu0 %v351
    %2152 = vmatpush1.msra.mxu0 %v350
    %2153 = vmatprep.subr.mxu0 %v354
    %2154 = vmatpush1.msra.mxu0 %v353
    %2155 = vmatprep.subr.mxu0 %v357
    %2156 = vmatpush1.msra.mxu0 %v356
    %2157 = vmatprep.subr.mxu0 %v360
    %2158 = vmatpush1.msra.mxu0 %v359
    %2159 = vmatprep.subr.mxu0 %v363
    %2160 = vmatpush1.msra.mxu0 %v362
    %2161 = vmatprep.subr.mxu0 %v366
    %2162 = vmatpush1.msra.mxu0 %v365
    %2163 = vmatprep.subr.mxu0 %v369
    %2164 = vmatpush1.msra.mxu0 %v368
    %2165 = vmatprep.subr.mxu0 %v372
    %2166 = vmatpush1.msra.mxu0 %v371
    %2167 = vmatprep.subr.mxu0 %v375
    %2168 = vmatpush1.msra.mxu0 %v374
    %2169 = vmatprep.subr.mxu0 %v378
    %2170 = vmatpush1.msra.mxu0 %v377
    %2171 = vmatprep.subr.mxu0 %v381
    %2172 = vmatpush1.msra.mxu0 %v380
    %2173 = vmatprep.subr.mxu0 %v384
    %2174 = vmatpush1.msra.mxu0 %v383
    %2175 = vmatprep.subr.mxu0 %v387
    %2176 = vmatpush1.msra.mxu0 %v386
    %2177 = vmatprep.subr.mxu0 0.0
    %2178 = vmatpush1.msra.mxu0 0.0
    %2179 = vmatprep.subr.mxu0 0.0
    %2180 = vmatpush1.msra.mxu0 0.0
    %2181 = vmatprep.subr.mxu0 0.0
    %2182 = vmatpush1.msra.mxu0 0.0
    %2183 = vmatprep.subr.mxu0 0.0
    %2184 = vmatpush1.msra.mxu0 0.0
    %2185 = vmatprep.subr.mxu0 0.0
    %2186 = vmatpush1.msra.mxu0 0.0
    %2187 = vmatprep.subr.mxu0 0.0
    %2188 = vmatpush1.msra.mxu0 0.0
    %2189 = vmatprep.subr.mxu0 0.0
    %2190 = vmatpush1.msra.mxu0 0.0
    %2191 = vmatprep.subr.mxu0 0.0
    %2192 = vmatpush1.msra.mxu0 0.0
    %2193 = vmatprep.subr.mxu0 0.0
    %2194 = vmatpush1.msra.mxu0 0.0
    %2195 = vmatprep.subr.mxu0 0.0
    %2196 = vmatpush1.msra.mxu0 0.0
    %2197 = vmatprep.subr.mxu0 0.0
    %2198 = vmatpush1.msra.mxu0 0.0
    %2199 = vmatprep.subr.mxu0 0.0
    %2200 = vmatpush1.msra.mxu0 0.0
    %2201 = vmatprep.subr.mxu0 0.0
    %2202 = vmatpush1.msra.mxu0 0.0
    %2203 = vmatprep.subr.mxu0 0.0
    %2204 = vmatpush1.msra.mxu0 0.0
    %2205 = vmatprep.subr.mxu0 0.0
    %2206 = vmatpush1.msra.mxu0 0.0
    %2207 = vmatprep.subr.mxu0 0.0
    %2208 = vmatpush1.msra.mxu0 0.0
    %2209 = vmatprep.mubr.f32.mxu0 0.0
    %2210 = vmatmul.mubr.f32.gmra.mrb[0].mxu0 %v2143
    %v2211 = vpop.f32.mrb[0].mxu0
    %v2212 = vadd.f32 0.0, %v2211
    %v2213 = vpop.f32.mrb[0].mxu0
    %v2214 = vadd.f32 0.0, %v2213
    %2215 = vdwg.mxu0
    %2216 = vmatprep.subr.mxu0 0.0
    %2217 = vmatpush1.msra.mxu0 %v343
    %2218 = vmatprep.subr.mxu0 0.0
    %2219 = vmatpush1.msra.mxu0 %v346
    %2220 = vmatprep.subr.mxu0 0.0
    %2221 = vmatpush1.msra.mxu0 %v349
    %2222 = vmatprep.subr.mxu0 0.0
    %2223 = vmatpush1.msra.mxu0 %v352
    %2224 = vmatprep.subr.mxu0 0.0
    %2225 = vmatpush1.msra.mxu0 %v355
    %2226 = vmatprep.subr.mxu0 0.0
    %2227 = vmatpush1.msra.mxu0 %v358
    %2228 = vmatprep.subr.mxu0 0.0
    %2229 = vmatpush1.msra.mxu0 %v361
    %2230 = vmatprep.subr.mxu0 0.0
    %2231 = vmatpush1.msra.mxu0 %v364
    %2232 = vmatprep.subr.mxu0 0.0
    %2233 = vmatpush1.msra.mxu0 %v367
    %2234 = vmatprep.subr.mxu0 0.0
    %2235 = vmatpush1.msra.mxu0 %v370
    %2236 = vmatprep.subr.mxu0 0.0
    %2237 = vmatpush1.msra.mxu0 %v373
    %2238 = vmatprep.subr.mxu0 0.0
    %2239 = vmatpush1.msra.mxu0 %v376
    %2240 = vmatprep.subr.mxu0 0.0
    %2241 = vmatpush1.msra.mxu0 %v379
    %2242 = vmatprep.subr.mxu0 0.0
    %2243 = vmatpush1.msra.mxu0 %v382
    %2244 = vmatprep.subr.mxu0 0.0
    %2245 = vmatpush1.msra.mxu0 %v385
    %2246 = vmatprep.subr.mxu0 0.0
    %2247 = vmatpush1.msra.mxu0 %v388
    %2248 = vmatprep.subr.mxu0 0.0
    %2249 = vmatpush1.msra.mxu0 0.0
    %2250 = vmatprep.subr.mxu0 0.0
    %2251 = vmatpush1.msra.mxu0 0.0
    %2252 = vmatprep.subr.mxu0 0.0
    %2253 = vmatpush1.msra.mxu0 0.0
    %2254 = vmatprep.subr.mxu0 0.0
    %2255 = vmatpush1.msra.mxu0 0.0
    %2256 = vmatprep.subr.mxu0 0.0
    %2257 = vmatpush1.msra.mxu0 0.0
    %2258 = vmatprep.subr.mxu0 0.0
    %2259 = vmatpush1.msra.mxu0 0.0
    %2260 = vmatprep.subr.mxu0 0.0
    %2261 = vmatpush1.msra.mxu0 0.0
    %2262 = vmatprep.subr.mxu0 0.0
    %2263 = vmatpush1.msra.mxu0 0.0
    %2264 = vmatprep.subr.mxu0 0.0
    %2265 = vmatpush1.msra.mxu0 0.0
    %2266 = vmatprep.subr.mxu0 0.0
    %2267 = vmatpush1.msra.mxu0 0.0
    %2268 = vmatprep.subr.mxu0 0.0
    %2269 = vmatpush1.msra.mxu0 0.0
    %2270 = vmatprep.subr.mxu0 0.0
    %2271 = vmatpush1.msra.mxu0 0.0
    %2272 = vmatprep.subr.mxu0 0.0
    %2273 = vmatpush1.msra.mxu0 0.0
    %2274 = vmatprep.subr.mxu0 0.0
    %2275 = vmatpush1.msra.mxu0 0.0
    %2276 = vmatprep.subr.mxu0 0.0
    %2277 = vmatpush1.msra.mxu0 0.0
    %2278 = vmatprep.subr.mxu0 0.0
    %2279 = vmatpush1.msra.mxu0 0.0
    %2280 = vmatprep.mubr.f32.mxu0 0.0
    %2281 = vmatmul.mubr.f32.gmra.mrb[0].mxu0 %v2143
    %v2282 = vpop.f32.mrb[0].mxu0
    %v2283 = vadd.f32 0.0, %v2282
    %v2284 = vpop.f32.mrb[0].mxu0
    %2285 = vdwg.mxu0
    %v2287 = vrot.slane %v2212, 6
    %v2289 = vadd.f32 %v296, %v2287
    %v2290 = vxor.u32 %v2289, 2147483648
    %v2291 = vmul.f32 %v2290, 1.442695
    %v2292 = vpow.pop %v2291
    %v2293 = vadd.f32 %v2292, 1.0
    %v2294 = vrcp.pop %v2293
    %v2295 = vmul.f32 1.0, %v2294
    %v2297 = vrot.slane %v2214, 6
    %v2299 = vadd.f32 %v298, %v2297
    %v2300 = vxor.u32 %v2299, 2147483648
    %v2301 = vmul.f32 %v2300, 1.442695
    %v2302 = vpow.pop %v2301
    %v2303 = vadd.f32 %v2302, 1.0
    %v2304 = vrcp.pop %v2303
    %v2305 = vmul.f32 1.0, %v2304
    %v2306 = vadd.f32 %v2283, %v389
    %v2308 = vrot.slane %v2306, 6
    %v2310 = vmul.f32 %v2295, %v2308
    %v2311 = vadd.f32 %v338, %v2310
    %v2312 = vtanh.pop %v2311
    %v2313 = vsub.f32 1.0, %v2305
    %v2314 = vmul.f32 %v2313, %v2312
    %v2315 = vrot.slane %v2140, 7
    %v2317 = vmul.f32 %v2305, %v2315
    %v2318 = vadd.f32 %v2314, %v2317
    %2319 = vst [vmem:[#allocation9 + $0x8] sm:$0x4] %v2318
    %v2321 = vrot.slane %v2318, 2
    %2323 = vmatprep.subr.mxu0 %v342
    %2324 = vmatpush1.msra.mxu0 %v341
    %2325 = vmatprep.subr.mxu0 %v345
    %2326 = vmatpush1.msra.mxu0 %v344
    %2327 = vmatprep.subr.mxu0 %v348
    %2328 = vmatpush1.msra.mxu0 %v347
    %2329 = vmatprep.subr.mxu0 %v351
    %2330 = vmatpush1.msra.mxu0 %v350
    %2331 = vmatprep.subr.mxu0 %v354
    %2332 = vmatpush1.msra.mxu0 %v353
    %2333 = vmatprep.subr.mxu0 %v357
    %2334 = vmatpush1.msra.mxu0 %v356
    %2335 = vmatprep.subr.mxu0 %v360
    %2336 = vmatpush1.msra.mxu0 %v359
    %2337 = vmatprep.subr.mxu0 %v363
    %2338 = vmatpush1.msra.mxu0 %v362
    %2339 = vmatprep.subr.mxu0 %v366
    %2340 = vmatpush1.msra.mxu0 %v365
    %2341 = vmatprep.subr.mxu0 %v369
    %2342 = vmatpush1.msra.mxu0 %v368
    %2343 = vmatprep.subr.mxu0 %v372
    %2344 = vmatpush1.msra.mxu0 %v371
    %2345 = vmatprep.subr.mxu0 %v375
    %2346 = vmatpush1.msra.mxu0 %v374
    %2347 = vmatprep.subr.mxu0 %v378
    %2348 = vmatpush1.msra.mxu0 %v377
    %2349 = vmatprep.subr.mxu0 %v381
    %2350 = vmatpush1.msra.mxu0 %v380
    %2351 = vmatprep.subr.mxu0 %v384
    %2352 = vmatpush1.msra.mxu0 %v383
    %2353 = vmatprep.subr.mxu0 %v387
    %2354 = vmatpush1.msra.mxu0 %v386
    %2355 = vmatprep.subr.mxu0 0.0
    %2356 = vmatpush1.msra.mxu0 0.0
    %2357 = vmatprep.subr.mxu0 0.0
    %2358 = vmatpush1.msra.mxu0 0.0
    %2359 = vmatprep.subr.mxu0 0.0
    %2360 = vmatpush1.msra.mxu0 0.0
    %2361 = vmatprep.subr.mxu0 0.0
    %2362 = vmatpush1.msra.mxu0 0.0
    %2363 = vmatprep.subr.mxu0 0.0
    %2364 = vmatpush1.msra.mxu0 0.0
    %2365 = vmatprep.subr.mxu0 0.0
    %2366 = vmatpush1.msra.mxu0 0.0
    %2367 = vmatprep.subr.mxu0 0.0
    %2368 = vmatpush1.msra.mxu0 0.0
    %2369 = vmatprep.subr.mxu0 0.0
    %2370 = vmatpush1.msra.mxu0 0.0
    %2371 = vmatprep.subr.mxu0 0.0
    %2372 = vmatpush1.msra.mxu0 0.0
    %2373 = vmatprep.subr.mxu0 0.0
    %2374 = vmatpush1.msra.mxu0 0.0
    %2375 = vmatprep.subr.mxu0 0.0
    %2376 = vmatpush1.msra.mxu0 0.0
    %2377 = vmatprep.subr.mxu0 0.0
    %2378 = vmatpush1.msra.mxu0 0.0
    %2379 = vmatprep.subr.mxu0 0.0
    %2380 = vmatpush1.msra.mxu0 0.0
    %2381 = vmatprep.subr.mxu0 0.0
    %2382 = vmatpush1.msra.mxu0 0.0
    %2383 = vmatprep.subr.mxu0 0.0
    %2384 = vmatpush1.msra.mxu0 0.0
    %2385 = vmatprep.subr.mxu0 0.0
    %2386 = vmatpush1.msra.mxu0 0.0
    %2387 = vmatprep.mubr.f32.mxu0 0.0
    %2388 = vmatmul.mubr.f32.gmra.mrb[0].mxu0 %v2321
    %v2389 = vpop.f32.mrb[0].mxu0
    %v2390 = vadd.f32 0.0, %v2389
    %v2391 = vpop.f32.mrb[0].mxu0
    %v2392 = vadd.f32 0.0, %v2391
    %2393 = vdwg.mxu0
    %2394 = vmatprep.subr.mxu0 0.0
    %2395 = vmatpush1.msra.mxu0 %v343
    %2396 = vmatprep.subr.mxu0 0.0
    %2397 = vmatpush1.msra.mxu0 %v346
    %2398 = vmatprep.subr.mxu0 0.0
    %2399 = vmatpush1.msra.mxu0 %v349
    %2400 = vmatprep.subr.mxu0 0.0
    %2401 = vmatpush1.msra.mxu0 %v352
    %2402 = vmatprep.subr.mxu0 0.0
    %2403 = vmatpush1.msra.mxu0 %v355
    %2404 = vmatprep.subr.mxu0 0.0
    %2405 = vmatpush1.msra.mxu0 %v358
    %2406 = vmatprep.subr.mxu0 0.0
    %2407 = vmatpush1.msra.mxu0 %v361
    %2408 = vmatprep.subr.mxu0 0.0
    %2409 = vmatpush1.msra.mxu0 %v364
    %2410 = vmatprep.subr.mxu0 0.0
    %2411 = vmatpush1.msra.mxu0 %v367
    %2412 = vmatprep.subr.mxu0 0.0
    %2413 = vmatpush1.msra.mxu0 %v370
    %2414 = vmatprep.subr.mxu0 0.0
    %2415 = vmatpush1.msra.mxu0 %v373
    %2416 = vmatprep.subr.mxu0 0.0
    %2417 = vmatpush1.msra.mxu0 %v376
    %2418 = vmatprep.subr.mxu0 0.0
    %2419 = vmatpush1.msra.mxu0 %v379
    %2420 = vmatprep.subr.mxu0 0.0
    %2421 = vmatpush1.msra.mxu0 %v382
    %2422 = vmatprep.subr.mxu0 0.0
    %2423 = vmatpush1.msra.mxu0 %v385
    %2424 = vmatprep.subr.mxu0 0.0
    %2425 = vmatpush1.msra.mxu0 %v388
    %2426 = vmatprep.subr.mxu0 0.0
    %2427 = vmatpush1.msra.mxu0 0.0
    %2428 = vmatprep.subr.mxu0 0.0
    %2429 = vmatpush1.msra.mxu0 0.0
    %2430 = vmatprep.subr.mxu0 0.0
    %2431 = vmatpush1.msra.mxu0 0.0
    %2432 = vmatprep.subr.mxu0 0.0
    %2433 = vmatpush1.msra.mxu0 0.0
    %2434 = vmatprep.subr.mxu0 0.0
    %2435 = vmatpush1.msra.mxu0 0.0
    %2436 = vmatprep.subr.mxu0 0.0
    %2437 = vmatpush1.msra.mxu0 0.0
    %2438 = vmatprep.subr.mxu0 0.0
    %2439 = vmatpush1.msra.mxu0 0.0
    %2440 = vmatprep.subr.mxu0 0.0
    %2441 = vmatpush1.msra.mxu0 0.0
    %2442 = vmatprep.subr.mxu0 0.0
    %2443 = vmatpush1.msra.mxu0 0.0
    %2444 = vmatprep.subr.mxu0 0.0
    %2445 = vmatpush1.msra.mxu0 0.0
    %2446 = vmatprep.subr.mxu0 0.0
    %2447 = vmatpush1.msra.mxu0 0.0
    %2448 = vmatprep.subr.mxu0 0.0
    %2449 = vmatpush1.msra.mxu0 0.0
    %2450 = vmatprep.subr.mxu0 0.0
    %2451 = vmatpush1.msra.mxu0 0.0
    %2452 = vmatprep.subr.mxu0 0.0
    %2453 = vmatpush1.msra.mxu0 0.0
    %2454 = vmatprep.subr.mxu0 0.0
    %2455 = vmatpush1.msra.mxu0 0.0
    %2456 = vmatprep.subr.mxu0 0.0
    %2457 = vmatpush1.msra.mxu0 0.0
    %2458 = vmatprep.mubr.f32.mxu0 0.0
    %2459 = vmatmul.mubr.f32.gmra.mrb[0].mxu0 %v2321
    %v2460 = vpop.f32.mrb[0].mxu0
    %v2461 = vadd.f32 0.0, %v2460
    %v2462 = vpop.f32.mrb[0].mxu0
    %2463 = vdwg.mxu0
    %v2465 = vrot.slane %v2390, 5
    %v2467 = vadd.f32 %v296, %v2465
    %v2468 = vxor.u32 %v2467, 2147483648
    %v2469 = vmul.f32 %v2468, 1.442695
    %v2470 = vpow.pop %v2469
    %v2471 = vadd.f32 %v2470, 1.0
    %v2472 = vrcp.pop %v2471
    %v2473 = vmul.f32 1.0, %v2472
    %v2475 = vrot.slane %v2392, 5
    %v2477 = vadd.f32 %v298, %v2475
    %v2478 = vxor.u32 %v2477, 2147483648
    %v2479 = vmul.f32 %v2478, 1.442695
    %v2480 = vpow.pop %v2479
    %v2481 = vadd.f32 %v2480, 1.0
    %v2482 = vrcp.pop %v2481
    %v2483 = vmul.f32 1.0, %v2482
    %v2484 = vadd.f32 %v2461, %v389
    %v2486 = vrot.slane %v2484, 5
    %v2488 = vmul.f32 %v2473, %v2486
    %v2489 = vadd.f32 %v338, %v2488
    %v2490 = vtanh.pop %v2489
    %v2491 = vsub.f32 1.0, %v2483
    %v2492 = vmul.f32 %v2491, %v2490
    %v2493 = vrot.slane %v2318, 7
    %v2495 = vmul.f32 %v2483, %v2493
    %v2496 = vadd.f32 %v2492, %v2495
    %2497 = vst [vmem:[#allocation9 + $0x8] sm:$0x8] %v2496
    %v2499 = vrot.slane %v2496, 3
    %2501 = vmatprep.subr.mxu0 %v342
    %2502 = vmatpush1.msra.mxu0 %v341
    %2503 = vmatprep.subr.mxu0 %v345
    %2504 = vmatpush1.msra.mxu0 %v344
    %2505 = vmatprep.subr.mxu0 %v348
    %2506 = vmatpush1.msra.mxu0 %v347
    %2507 = vmatprep.subr.mxu0 %v351
    %2508 = vmatpush1.msra.mxu0 %v350
    %2509 = vmatprep.subr.mxu0 %v354
    %2510 = vmatpush1.msra.mxu0 %v353
    %2511 = vmatprep.subr.mxu0 %v357
    %2512 = vmatpush1.msra.mxu0 %v356
    %2513 = vmatprep.subr.mxu0 %v360
    %2514 = vmatpush1.msra.mxu0 %v359
    %2515 = vmatprep.subr.mxu0 %v363
    %2516 = vmatpush1.msra.mxu0 %v362
    %2517 = vmatprep.subr.mxu0 %v366
    %2518 = vmatpush1.msra.mxu0 %v365
    %2519 = vmatprep.subr.mxu0 %v369
    %2520 = vmatpush1.msra.mxu0 %v368
    %2521 = vmatprep.subr.mxu0 %v372
    %2522 = vmatpush1.msra.mxu0 %v371
    %2523 = vmatprep.subr.mxu0 %v375
    %2524 = vmatpush1.msra.mxu0 %v374
    %2525 = vmatprep.subr.mxu0 %v378
    %2526 = vmatpush1.msra.mxu0 %v377
    %2527 = vmatprep.subr.mxu0 %v381
    %2528 = vmatpush1.msra.mxu0 %v380
    %2529 = vmatprep.subr.mxu0 %v384
    %2530 = vmatpush1.msra.mxu0 %v383
    %2531 = vmatprep.subr.mxu0 %v387
    %2532 = vmatpush1.msra.mxu0 %v386
    %2533 = vmatprep.subr.mxu0 0.0
    %2534 = vmatpush1.msra.mxu0 0.0
    %2535 = vmatprep.subr.mxu0 0.0
    %2536 = vmatpush1.msra.mxu0 0.0
    %2537 = vmatprep.subr.mxu0 0.0
    %2538 = vmatpush1.msra.mxu0 0.0
    %2539 = vmatprep.subr.mxu0 0.0
    %2540 = vmatpush1.msra.mxu0 0.0
    %2541 = vmatprep.subr.mxu0 0.0
    %2542 = vmatpush1.msra.mxu0 0.0
    %2543 = vmatprep.subr.mxu0 0.0
    %2544 = vmatpush1.msra.mxu0 0.0
    %2545 = vmatprep.subr.mxu0 0.0
    %2546 = vmatpush1.msra.mxu0 0.0
    %2547 = vmatprep.subr.mxu0 0.0
    %2548 = vmatpush1.msra.mxu0 0.0
    %2549 = vmatprep.subr.mxu0 0.0
    %2550 = vmatpush1.msra.mxu0 0.0
    %2551 = vmatprep.subr.mxu0 0.0
    %2552 = vmatpush1.msra.mxu0 0.0
    %2553 = vmatprep.subr.mxu0 0.0
    %2554 = vmatpush1.msra.mxu0 0.0
    %2555 = vmatprep.subr.mxu0 0.0
    %2556 = vmatpush1.msra.mxu0 0.0
    %2557 = vmatprep.subr.mxu0 0.0
    %2558 = vmatpush1.msra.mxu0 0.0
    %2559 = vmatprep.subr.mxu0 0.0
    %2560 = vmatpush1.msra.mxu0 0.0
    %2561 = vmatprep.subr.mxu0 0.0
    %2562 = vmatpush1.msra.mxu0 0.0
    %2563 = vmatprep.subr.mxu0 0.0
    %2564 = vmatpush1.msra.mxu0 0.0
    %2565 = vmatprep.mubr.f32.mxu0 0.0
    %2566 = vmatmul.mubr.f32.gmra.mrb[0].mxu0 %v2499
    %v2567 = vpop.f32.mrb[0].mxu0
    %v2568 = vadd.f32 0.0, %v2567
    %v2569 = vpop.f32.mrb[0].mxu0
    %v2570 = vadd.f32 0.0, %v2569
    %2571 = vdwg.mxu0
    %2572 = vmatprep.subr.mxu0 0.0
    %2573 = vmatpush1.msra.mxu0 %v343
    %2574 = vmatprep.subr.mxu0 0.0
    %2575 = vmatpush1.msra.mxu0 %v346
    %2576 = vmatprep.subr.mxu0 0.0
    %2577 = vmatpush1.msra.mxu0 %v349
    %2578 = vmatprep.subr.mxu0 0.0
    %2579 = vmatpush1.msra.mxu0 %v352
    %2580 = vmatprep.subr.mxu0 0.0
    %2581 = vmatpush1.msra.mxu0 %v355
    %2582 = vmatprep.subr.mxu0 0.0
    %2583 = vmatpush1.msra.mxu0 %v358
    %2584 = vmatprep.subr.mxu0 0.0
    %2585 = vmatpush1.msra.mxu0 %v361
    %2586 = vmatprep.subr.mxu0 0.0
    %2587 = vmatpush1.msra.mxu0 %v364
    %2588 = vmatprep.subr.mxu0 0.0
    %2589 = vmatpush1.msra.mxu0 %v367
    %2590 = vmatprep.subr.mxu0 0.0
    %2591 = vmatpush1.msra.mxu0 %v370
    %2592 = vmatprep.subr.mxu0 0.0
    %2593 = vmatpush1.msra.mxu0 %v373
    %2594 = vmatprep.subr.mxu0 0.0
    %2595 = vmatpush1.msra.mxu0 %v376
    %2596 = vmatprep.subr.mxu0 0.0
    %2597 = vmatpush1.msra.mxu0 %v379
    %2598 = vmatprep.subr.mxu0 0.0
    %2599 = vmatpush1.msra.mxu0 %v382
    %2600 = vmatprep.subr.mxu0 0.0
    %2601 = vmatpush1.msra.mxu0 %v385
    %2602 = vmatprep.subr.mxu0 0.0
    %2603 = vmatpush1.msra.mxu0 %v388
    %2604 = vmatprep.subr.mxu0 0.0
    %2605 = vmatpush1.msra.mxu0 0.0
    %2606 = vmatprep.subr.mxu0 0.0
    %2607 = vmatpush1.msra.mxu0 0.0
    %2608 = vmatprep.subr.mxu0 0.0
    %2609 = vmatpush1.msra.mxu0 0.0
    %2610 = vmatprep.subr.mxu0 0.0
    %2611 = vmatpush1.msra.mxu0 0.0
    %2612 = vmatprep.subr.mxu0 0.0
    %2613 = vmatpush1.msra.mxu0 0.0
    %2614 = vmatprep.subr.mxu0 0.0
    %2615 = vmatpush1.msra.mxu0 0.0
    %2616 = vmatprep.subr.mxu0 0.0
    %2617 = vmatpush1.msra.mxu0 0.0
    %2618 = vmatprep.subr.mxu0 0.0
    %2619 = vmatpush1.msra.mxu0 0.0
    %2620 = vmatprep.subr.mxu0 0.0
    %2621 = vmatpush1.msra.mxu0 0.0
    %2622 = vmatprep.subr.mxu0 0.0
    %2623 = vmatpush1.msra.mxu0 0.0
    %2624 = vmatprep.subr.mxu0 0.0
    %2625 = vmatpush1.msra.mxu0 0.0
    %2626 = vmatprep.subr.mxu0 0.0
    %2627 = vmatpush1.msra.mxu0 0.0
    %2628 = vmatprep.subr.mxu0 0.0
    %2629 = vmatpush1.msra.mxu0 0.0
    %2630 = vmatprep.subr.mxu0 0.0
    %2631 = vmatpush1.msra.mxu0 0.0
    %2632 = vmatprep.subr.mxu0 0.0
    %2633 = vmatpush1.msra.mxu0 0.0
    %2634 = vmatprep.subr.mxu0 0.0
    %2635 = vmatpush1.msra.mxu0 0.0
    %2636 = vmatprep.mubr.f32.mxu0 0.0
    %2637 = vmatmul.mubr.f32.gmra.mrb[0].mxu0 %v2499
    %v2638 = vpop.f32.mrb[0].mxu0
    %v2639 = vadd.f32 0.0, %v2638
    %v2640 = vpop.f32.mrb[0].mxu0
    %2641 = vdwg.mxu0
    %v2643 = vrot.slane %v2568, 4
    %v2645 = vadd.f32 %v296, %v2643
    %v2646 = vxor.u32 %v2645, 2147483648
    %v2647 = vmul.f32 %v2646, 1.442695
    %v2648 = vpow.pop %v2647
    %v2649 = vadd.f32 %v2648, 1.0
    %v2650 = vrcp.pop %v2649
    %v2651 = vmul.f32 1.0, %v2650
    %v2653 = vrot.slane %v2570, 4
    %v2655 = vadd.f32 %v298, %v2653
    %v2656 = vxor.u32 %v2655, 2147483648
    %v2657 = vmul.f32 %v2656, 1.442695
    %v2658 = vpow.pop %v2657
    %v2659 = vadd.f32 %v2658, 1.0
    %v2660 = vrcp.pop %v2659
    %v2661 = vmul.f32 1.0, %v2660
    %v2662 = vadd.f32 %v2639, %v389
    %v2664 = vrot.slane %v2662, 4
    %v2666 = vmul.f32 %v2651, %v2664
    %v2667 = vadd.f32 %v338, %v2666
    %v2668 = vtanh.pop %v2667
    %v2669 = vsub.f32 1.0, %v2661
    %v2670 = vmul.f32 %v2669, %v2668
    %v2671 = vrot.slane %v2496, 7
    %v2673 = vmul.f32 %v2661, %v2671
    %v2674 = vadd.f32 %v2670, %v2673
    %2675 = vst [vmem:[#allocation9 + $0x8] sm:$0x10] %v2674
    %v2677 = vrot.slane %v2674, 4
    %2679 = vmatprep.subr.mxu0 %v342
    %2680 = vmatpush1.msra.mxu0 %v341
    %2681 = vmatprep.subr.mxu0 %v345
    %2682 = vmatpush1.msra.mxu0 %v344
    %2683 = vmatprep.subr.mxu0 %v348
    %2684 = vmatpush1.msra.mxu0 %v347
    %2685 = vmatprep.subr.mxu0 %v351
    %2686 = vmatpush1.msra.mxu0 %v350
    %2687 = vmatprep.subr.mxu0 %v354
    %2688 = vmatpush1.msra.mxu0 %v353
    %2689 = vmatprep.subr.mxu0 %v357
    %2690 = vmatpush1.msra.mxu0 %v356
    %2691 = vmatprep.subr.mxu0 %v360
    %2692 = vmatpush1.msra.mxu0 %v359
    %2693 = vmatprep.subr.mxu0 %v363
    %2694 = vmatpush1.msra.mxu0 %v362
    %2695 = vmatprep.subr.mxu0 %v366
    %2696 = vmatpush1.msra.mxu0 %v365
    %2697 = vmatprep.subr.mxu0 %v369
    %2698 = vmatpush1.msra.mxu0 %v368
    %2699 = vmatprep.subr.mxu0 %v372
    %2700 = vmatpush1.msra.mxu0 %v371
    %2701 = vmatprep.subr.mxu0 %v375
    %2702 = vmatpush1.msra.mxu0 %v374
    %2703 = vmatprep.subr.mxu0 %v378
    %2704 = vmatpush1.msra.mxu0 %v377
    %2705 = vmatprep.subr.mxu0 %v381
    %2706 = vmatpush1.msra.mxu0 %v380
    %2707 = vmatprep.subr.mxu0 %v384
    %2708 = vmatpush1.msra.mxu0 %v383
    %2709 = vmatprep.subr.mxu0 %v387
    %2710 = vmatpush1.msra.mxu0 %v386
    %2711 = vmatprep.subr.mxu0 0.0
    %2712 = vmatpush1.msra.mxu0 0.0
    %2713 = vmatprep.subr.mxu0 0.0
    %2714 = vmatpush1.msra.mxu0 0.0
    %2715 = vmatprep.subr.mxu0 0.0
    %2716 = vmatpush1.msra.mxu0 0.0
    %2717 = vmatprep.subr.mxu0 0.0
    %2718 = vmatpush1.msra.mxu0 0.0
    %2719 = vmatprep.subr.mxu0 0.0
    %2720 = vmatpush1.msra.mxu0 0.0
    %2721 = vmatprep.subr.mxu0 0.0
    %2722 = vmatpush1.msra.mxu0 0.0
    %2723 = vmatprep.subr.mxu0 0.0
    %2724 = vmatpush1.msra.mxu0 0.0
    %2725 = vmatprep.subr.mxu0 0.0
    %2726 = vmatpush1.msra.mxu0 0.0
    %2727 = vmatprep.subr.mxu0 0.0
    %2728 = vmatpush1.msra.mxu0 0.0
    %2729 = vmatprep.subr.mxu0 0.0
    %2730 = vmatpush1.msra.mxu0 0.0
    %2731 = vmatprep.subr.mxu0 0.0
    %2732 = vmatpush1.msra.mxu0 0.0
    %2733 = vmatprep.subr.mxu0 0.0
    %2734 = vmatpush1.msra.mxu0 0.0
    %2735 = vmatprep.subr.mxu0 0.0
    %2736 = vmatpush1.msra.mxu0 0.0
    %2737 = vmatprep.subr.mxu0 0.0
    %2738 = vmatpush1.msra.mxu0 0.0
    %2739 = vmatprep.subr.mxu0 0.0
    %2740 = vmatpush1.msra.mxu0 0.0
    %2741 = vmatprep.subr.mxu0 0.0
    %2742 = vmatpush1.msra.mxu0 0.0
    %2743 = vmatprep.mubr.f32.mxu0 0.0
    %2744 = vmatmul.mubr.f32.gmra.mrb[0].mxu0 %v2677
    %v2745 = vpop.f32.mrb[0].mxu0
    %v2746 = vadd.f32 0.0, %v2745
    %v2747 = vpop.f32.mrb[0].mxu0
    %v2748 = vadd.f32 0.0, %v2747
    %2749 = vdwg.mxu0
    %2750 = vmatprep.subr.mxu0 0.0
    %2751 = vmatpush1.msra.mxu0 %v343
    %2752 = vmatprep.subr.mxu0 0.0
    %2753 = vmatpush1.msra.mxu0 %v346
    %2754 = vmatprep.subr.mxu0 0.0
    %2755 = vmatpush1.msra.mxu0 %v349
    %2756 = vmatprep.subr.mxu0 0.0
    %2757 = vmatpush1.msra.mxu0 %v352
    %2758 = vmatprep.subr.mxu0 0.0
    %2759 = vmatpush1.msra.mxu0 %v355
    %2760 = vmatprep.subr.mxu0 0.0
    %2761 = vmatpush1.msra.mxu0 %v358
    %2762 = vmatprep.subr.mxu0 0.0
    %2763 = vmatpush1.msra.mxu0 %v361
    %2764 = vmatprep.subr.mxu0 0.0
    %2765 = vmatpush1.msra.mxu0 %v364
    %2766 = vmatprep.subr.mxu0 0.0
    %2767 = vmatpush1.msra.mxu0 %v367
    %2768 = vmatprep.subr.mxu0 0.0
    %2769 = vmatpush1.msra.mxu0 %v370
    %2770 = vmatprep.subr.mxu0 0.0
    %2771 = vmatpush1.msra.mxu0 %v373
    %2772 = vmatprep.subr.mxu0 0.0
    %2773 = vmatpush1.msra.mxu0 %v376
    %2774 = vmatprep.subr.mxu0 0.0
    %2775 = vmatpush1.msra.mxu0 %v379
    %2776 = vmatprep.subr.mxu0 0.0
    %2777 = vmatpush1.msra.mxu0 %v382
    %2778 = vmatprep.subr.mxu0 0.0
    %2779 = vmatpush1.msra.mxu0 %v385
    %2780 = vmatprep.subr.mxu0 0.0
    %2781 = vmatpush1.msra.mxu0 %v388
    %2782 = vmatprep.subr.mxu0 0.0
    %2783 = vmatpush1.msra.mxu0 0.0
    %2784 = vmatprep.subr.mxu0 0.0
    %2785 = vmatpush1.msra.mxu0 0.0
    %2786 = vmatprep.subr.mxu0 0.0
    %2787 = vmatpush1.msra.mxu0 0.0
    %2788 = vmatprep.subr.mxu0 0.0
    %2789 = vmatpush1.msra.mxu0 0.0
    %2790 = vmatprep.subr.mxu0 0.0
    %2791 = vmatpush1.msra.mxu0 0.0
    %2792 = vmatprep.subr.mxu0 0.0
    %2793 = vmatpush1.msra.mxu0 0.0
    %2794 = vmatprep.subr.mxu0 0.0
    %2795 = vmatpush1.msra.mxu0 0.0
    %2796 = vmatprep.subr.mxu0 0.0
    %2797 = vmatpush1.msra.mxu0 0.0
    %2798 = vmatprep.subr.mxu0 0.0
    %2799 = vmatpush1.msra.mxu0 0.0
    %2800 = vmatprep.subr.mxu0 0.0
    %2801 = vmatpush1.msra.mxu0 0.0
    %2802 = vmatprep.subr.mxu0 0.0
    %2803 = vmatpush1.msra.mxu0 0.0
    %2804 = vmatprep.subr.mxu0 0.0
    %2805 = vmatpush1.msra.mxu0 0.0
    %2806 = vmatprep.subr.mxu0 0.0
    %2807 = vmatpush1.msra.mxu0 0.0
    %2808 = vmatprep.subr.mxu0 0.0
    %2809 = vmatpush1.msra.mxu0 0.0
    %2810 = vmatprep.subr.mxu0 0.0
    %2811 = vmatpush1.msra.mxu0 0.0
    %2812 = vmatprep.subr.mxu0 0.0
    %2813 = vmatpush1.msra.mxu0 0.0
    %2814 = vmatprep.mubr.f32.mxu0 0.0
    %2815 = vmatmul.mubr.f32.gmra.mrb[0].mxu0 %v2677
    %v2816 = vpop.f32.mrb[0].mxu0
    %v2817 = vadd.f32 0.0, %v2816
    %v2818 = vpop.f32.mrb[0].mxu0
    %2819 = vdwg.mxu0
    %v2821 = vrot.slane %v2746, 3
    %v2823 = vadd.f32 %v296, %v2821
    %v2824 = vxor.u32 %v2823, 2147483648
    %v2825 = vmul.f32 %v2824, 1.442695
    %v2826 = vpow.pop %v2825
    %v2827 = vadd.f32 %v2826, 1.0
    %v2828 = vrcp.pop %v2827
    %v2829 = vmul.f32 1.0, %v2828
    %v2831 = vrot.slane %v2748, 3
    %v2833 = vadd.f32 %v298, %v2831
    %v2834 = vxor.u32 %v2833, 2147483648
    %v2835 = vmul.f32 %v2834, 1.442695
    %v2836 = vpow.pop %v2835
    %v2837 = vadd.f32 %v2836, 1.0
    %v2838 = vrcp.pop %v2837
    %v2839 = vmul.f32 1.0, %v2838
    %v2840 = vadd.f32 %v2817, %v389
    %v2842 = vrot.slane %v2840, 3
    %v2844 = vmul.f32 %v2829, %v2842
    %v2845 = vadd.f32 %v338, %v2844
    %v2846 = vtanh.pop %v2845
    %v2847 = vsub.f32 1.0, %v2839
    %v2848 = vmul.f32 %v2847, %v2846
    %v2849 = vrot.slane %v2674, 7
    %v2851 = vmul.f32 %v2839, %v2849
    %v2852 = vadd.f32 %v2848, %v2851
    %2853 = vst [vmem:[#allocation9 + $0x8] sm:$0x20] %v2852
    %v2855 = vrot.slane %v2852, 5
    %2857 = vmatprep.subr.mxu0 %v342
    %2858 = vmatpush1.msra.mxu0 %v341
    %2859 = vmatprep.subr.mxu0 %v345
    %2860 = vmatpush1.msra.mxu0 %v344
    %2861 = vmatprep.subr.mxu0 %v348
    %2862 = vmatpush1.msra.mxu0 %v347
    %2863 = vmatprep.subr.mxu0 %v351
    %2864 = vmatpush1.msra.mxu0 %v350
    %2865 = vmatprep.subr.mxu0 %v354
    %2866 = vmatpush1.msra.mxu0 %v353
    %2867 = vmatprep.subr.mxu0 %v357
    %2868 = vmatpush1.msra.mxu0 %v356
    %2869 = vmatprep.subr.mxu0 %v360
    %2870 = vmatpush1.msra.mxu0 %v359
    %2871 = vmatprep.subr.mxu0 %v363
    %2872 = vmatpush1.msra.mxu0 %v362
    %2873 = vmatprep.subr.mxu0 %v366
    %2874 = vmatpush1.msra.mxu0 %v365
    %2875 = vmatprep.subr.mxu0 %v369
    %2876 = vmatpush1.msra.mxu0 %v368
    %2877 = vmatprep.subr.mxu0 %v372
    %2878 = vmatpush1.msra.mxu0 %v371
    %2879 = vmatprep.subr.mxu0 %v375
    %2880 = vmatpush1.msra.mxu0 %v374
    %2881 = vmatprep.subr.mxu0 %v378
    %2882 = vmatpush1.msra.mxu0 %v377
    %2883 = vmatprep.subr.mxu0 %v381
    %2884 = vmatpush1.msra.mxu0 %v380
    %2885 = vmatprep.subr.mxu0 %v384
    %2886 = vmatpush1.msra.mxu0 %v383
    %2887 = vmatprep.subr.mxu0 %v387
    %2888 = vmatpush1.msra.mxu0 %v386
    %2889 = vmatprep.subr.mxu0 0.0
    %2890 = vmatpush1.msra.mxu0 0.0
    %2891 = vmatprep.subr.mxu0 0.0
    %2892 = vmatpush1.msra.mxu0 0.0
    %2893 = vmatprep.subr.mxu0 0.0
    %2894 = vmatpush1.msra.mxu0 0.0
    %2895 = vmatprep.subr.mxu0 0.0
    %2896 = vmatpush1.msra.mxu0 0.0
    %2897 = vmatprep.subr.mxu0 0.0
    %2898 = vmatpush1.msra.mxu0 0.0
    %2899 = vmatprep.subr.mxu0 0.0
    %2900 = vmatpush1.msra.mxu0 0.0
    %2901 = vmatprep.subr.mxu0 0.0
    %2902 = vmatpush1.msra.mxu0 0.0
    %2903 = vmatprep.subr.mxu0 0.0
    %2904 = vmatpush1.msra.mxu0 0.0
    %2905 = vmatprep.subr.mxu0 0.0
    %2906 = vmatpush1.msra.mxu0 0.0
    %2907 = vmatprep.subr.mxu0 0.0
    %2908 = vmatpush1.msra.mxu0 0.0
    %2909 = vmatprep.subr.mxu0 0.0
    %2910 = vmatpush1.msra.mxu0 0.0
    %2911 = vmatprep.subr.mxu0 0.0
    %2912 = vmatpush1.msra.mxu0 0.0
    %2913 = vmatprep.subr.mxu0 0.0
    %2914 = vmatpush1.msra.mxu0 0.0
    %2915 = vmatprep.subr.mxu0 0.0
    %2916 = vmatpush1.msra.mxu0 0.0
    %2917 = vmatprep.subr.mxu0 0.0
    %2918 = vmatpush1.msra.mxu0 0.0
    %2919 = vmatprep.subr.mxu0 0.0
    %2920 = vmatpush1.msra.mxu0 0.0
    %2921 = vmatprep.mubr.f32.mxu0 0.0
    %2922 = vmatmul.mubr.f32.gmra.mrb[0].mxu0 %v2855
    %v2923 = vpop.f32.mrb[0].mxu0
    %v2924 = vadd.f32 0.0, %v2923
    %v2925 = vpop.f32.mrb[0].mxu0
    %v2926 = vadd.f32 0.0, %v2925
    %2927 = vdwg.mxu0
    %2928 = vmatprep.subr.mxu0 0.0
    %2929 = vmatpush1.msra.mxu0 %v343
    %2930 = vmatprep.subr.mxu0 0.0
    %2931 = vmatpush1.msra.mxu0 %v346
    %2932 = vmatprep.subr.mxu0 0.0
    %2933 = vmatpush1.msra.mxu0 %v349
    %2934 = vmatprep.subr.mxu0 0.0
    %2935 = vmatpush1.msra.mxu0 %v352
    %2936 = vmatprep.subr.mxu0 0.0
    %2937 = vmatpush1.msra.mxu0 %v355
    %2938 = vmatprep.subr.mxu0 0.0
    %2939 = vmatpush1.msra.mxu0 %v358
    %2940 = vmatprep.subr.mxu0 0.0
    %2941 = vmatpush1.msra.mxu0 %v361
    %2942 = vmatprep.subr.mxu0 0.0
    %2943 = vmatpush1.msra.mxu0 %v364
    %2944 = vmatprep.subr.mxu0 0.0
    %2945 = vmatpush1.msra.mxu0 %v367
    %2946 = vmatprep.subr.mxu0 0.0
    %2947 = vmatpush1.msra.mxu0 %v370
    %2948 = vmatprep.subr.mxu0 0.0
    %2949 = vmatpush1.msra.mxu0 %v373
    %2950 = vmatprep.subr.mxu0 0.0
    %2951 = vmatpush1.msra.mxu0 %v376
    %2952 = vmatprep.subr.mxu0 0.0
    %2953 = vmatpush1.msra.mxu0 %v379
    %2954 = vmatprep.subr.mxu0 0.0
    %2955 = vmatpush1.msra.mxu0 %v382
    %2956 = vmatprep.subr.mxu0 0.0
    %2957 = vmatpush1.msra.mxu0 %v385
    %2958 = vmatprep.subr.mxu0 0.0
    %2959 = vmatpush1.msra.mxu0 %v388
    %2960 = vmatprep.subr.mxu0 0.0
    %2961 = vmatpush1.msra.mxu0 0.0
    %2962 = vmatprep.subr.mxu0 0.0
    %2963 = vmatpush1.msra.mxu0 0.0
    %2964 = vmatprep.subr.mxu0 0.0
    %2965 = vmatpush1.msra.mxu0 0.0
    %2966 = vmatprep.subr.mxu0 0.0
    %2967 = vmatpush1.msra.mxu0 0.0
    %2968 = vmatprep.subr.mxu0 0.0
    %2969 = vmatpush1.msra.mxu0 0.0
    %2970 = vmatprep.subr.mxu0 0.0
    %2971 = vmatpush1.msra.mxu0 0.0
    %2972 = vmatprep.subr.mxu0 0.0
    %2973 = vmatpush1.msra.mxu0 0.0
    %2974 = vmatprep.subr.mxu0 0.0
    %2975 = vmatpush1.msra.mxu0 0.0
    %2976 = vmatprep.subr.mxu0 0.0
    %2977 = vmatpush1.msra.mxu0 0.0
    %2978 = vmatprep.subr.mxu0 0.0
    %2979 = vmatpush1.msra.mxu0 0.0
    %2980 = vmatprep.subr.mxu0 0.0
    %2981 = vmatpush1.msra.mxu0 0.0
    %2982 = vmatprep.subr.mxu0 0.0
    %2983 = vmatpush1.msra.mxu0 0.0
    %2984 = vmatprep.subr.mxu0 0.0
    %2985 = vmatpush1.msra.mxu0 0.0
    %2986 = vmatprep.subr.mxu0 0.0
    %2987 = vmatpush1.msra.mxu0 0.0
    %2988 = vmatprep.subr.mxu0 0.0
    %2989 = vmatpush1.msra.mxu0 0.0
    %2990 = vmatprep.subr.mxu0 0.0
    %2991 = vmatpush1.msra.mxu0 0.0
    %2992 = vmatprep.mubr.f32.mxu0 0.0
    %2993 = vmatmul.mubr.f32.gmra.mrb[0].mxu0 %v2855
    %v2994 = vpop.f32.mrb[0].mxu0
    %v2995 = vadd.f32 0.0, %v2994
    %v2996 = vpop.f32.mrb[0].mxu0
    %2997 = vdwg.mxu0
    %v2999 = vrot.slane %v2924, 2
    %v3001 = vadd.f32 %v296, %v2999
    %v3002 = vxor.u32 %v3001, 2147483648
    %v3003 = vmul.f32 %v3002, 1.442695
    %v3004 = vpow.pop %v3003
    %v3005 = vadd.f32 %v3004, 1.0
    %v3006 = vrcp.pop %v3005
    %v3007 = vmul.f32 1.0, %v3006
    %v3009 = vrot.slane %v2926, 2
    %v3011 = vadd.f32 %v298, %v3009
    %v3012 = vxor.u32 %v3011, 2147483648
    %v3013 = vmul.f32 %v3012, 1.442695
    %v3014 = vpow.pop %v3013
    %v3015 = vadd.f32 %v3014, 1.0
    %v3016 = vrcp.pop %v3015
    %v3017 = vmul.f32 1.0, %v3016
    %v3018 = vadd.f32 %v2995, %v389
    %v3020 = vrot.slane %v3018, 2
    %v3022 = vmul.f32 %v3007, %v3020
    %v3023 = vadd.f32 %v338, %v3022
    %v3024 = vtanh.pop %v3023
    %v3025 = vsub.f32 1.0, %v3017
    %v3026 = vmul.f32 %v3025, %v3024
    %v3027 = vrot.slane %v2852, 7
    %v3029 = vmul.f32 %v3017, %v3027
    %v3030 = vadd.f32 %v3026, %v3029
    %3031 = vst [vmem:[#allocation9 + $0x8] sm:$0x40] %v3030
    %v3033 = vrot.slane %v3030, 6
    %3035 = vmatprep.subr.mxu0 %v342
    %3036 = vmatpush1.msra.mxu0 %v341
    %3037 = vmatprep.subr.mxu0 %v345
    %3038 = vmatpush1.msra.mxu0 %v344
    %3039 = vmatprep.subr.mxu0 %v348
    %3040 = vmatpush1.msra.mxu0 %v347
    %3041 = vmatprep.subr.mxu0 %v351
    %3042 = vmatpush1.msra.mxu0 %v350
    %3043 = vmatprep.subr.mxu0 %v354
    %3044 = vmatpush1.msra.mxu0 %v353
    %3045 = vmatprep.subr.mxu0 %v357
    %3046 = vmatpush1.msra.mxu0 %v356
    %3047 = vmatprep.subr.mxu0 %v360
    %3048 = vmatpush1.msra.mxu0 %v359
    %3049 = vmatprep.subr.mxu0 %v363
    %3050 = vmatpush1.msra.mxu0 %v362
    %3051 = vmatprep.subr.mxu0 %v366
    %3052 = vmatpush1.msra.mxu0 %v365
    %3053 = vmatprep.subr.mxu0 %v369
    %3054 = vmatpush1.msra.mxu0 %v368
    %3055 = vmatprep.subr.mxu0 %v372
    %3056 = vmatpush1.msra.mxu0 %v371
    %3057 = vmatprep.subr.mxu0 %v375
    %3058 = vmatpush1.msra.mxu0 %v374
    %3059 = vmatprep.subr.mxu0 %v378
    %3060 = vmatpush1.msra.mxu0 %v377
    %3061 = vmatprep.subr.mxu0 %v381
    %3062 = vmatpush1.msra.mxu0 %v380
    %3063 = vmatprep.subr.mxu0 %v384
    %3064 = vmatpush1.msra.mxu0 %v383
    %3065 = vmatprep.subr.mxu0 %v387
    %3066 = vmatpush1.msra.mxu0 %v386
    %3067 = vmatprep.subr.mxu0 0.0
    %3068 = vmatpush1.msra.mxu0 0.0
    %3069 = vmatprep.subr.mxu0 0.0
    %3070 = vmatpush1.msra.mxu0 0.0
    %3071 = vmatprep.subr.mxu0 0.0
    %3072 = vmatpush1.msra.mxu0 0.0
    %3073 = vmatprep.subr.mxu0 0.0
    %3074 = vmatpush1.msra.mxu0 0.0
    %3075 = vmatprep.subr.mxu0 0.0
    %3076 = vmatpush1.msra.mxu0 0.0
    %3077 = vmatprep.subr.mxu0 0.0
    %3078 = vmatpush1.msra.mxu0 0.0
    %3079 = vmatprep.subr.mxu0 0.0
    %3080 = vmatpush1.msra.mxu0 0.0
    %3081 = vmatprep.subr.mxu0 0.0
    %3082 = vmatpush1.msra.mxu0 0.0
    %3083 = vmatprep.subr.mxu0 0.0
    %3084 = vmatpush1.msra.mxu0 0.0
    %3085 = vmatprep.subr.mxu0 0.0
    %3086 = vmatpush1.msra.mxu0 0.0
    %3087 = vmatprep.subr.mxu0 0.0
    %3088 = vmatpush1.msra.mxu0 0.0
    %3089 = vmatprep.subr.mxu0 0.0
    %3090 = vmatpush1.msra.mxu0 0.0
    %3091 = vmatprep.subr.mxu0 0.0
    %3092 = vmatpush1.msra.mxu0 0.0
    %3093 = vmatprep.subr.mxu0 0.0
    %3094 = vmatpush1.msra.mxu0 0.0
    %3095 = vmatprep.subr.mxu0 0.0
    %3096 = vmatpush1.msra.mxu0 0.0
    %3097 = vmatprep.subr.mxu0 0.0
    %3098 = vmatpush1.msra.mxu0 0.0
    %3099 = vmatprep.mubr.f32.mxu0 0.0
    %3100 = vmatmul.mubr.f32.gmra.mrb[0].mxu0 %v3033
    %v3101 = vpop.f32.mrb[0].mxu0
    %v3102 = vadd.f32 0.0, %v3101
    %v3103 = vpop.f32.mrb[0].mxu0
    %v3104 = vadd.f32 0.0, %v3103
    %3105 = vdwg.mxu0
    %3106 = vmatprep.subr.mxu0 0.0
    %3107 = vmatpush1.msra.mxu0 %v343
    %3108 = vmatprep.subr.mxu0 0.0
    %3109 = vmatpush1.msra.mxu0 %v346
    %3110 = vmatprep.subr.mxu0 0.0
    %3111 = vmatpush1.msra.mxu0 %v349
    %3112 = vmatprep.subr.mxu0 0.0
    %3113 = vmatpush1.msra.mxu0 %v352
    %3114 = vmatprep.subr.mxu0 0.0
    %3115 = vmatpush1.msra.mxu0 %v355
    %3116 = vmatprep.subr.mxu0 0.0
    %3117 = vmatpush1.msra.mxu0 %v358
    %3118 = vmatprep.subr.mxu0 0.0
    %3119 = vmatpush1.msra.mxu0 %v361
    %3120 = vmatprep.subr.mxu0 0.0
    %3121 = vmatpush1.msra.mxu0 %v364
    %3122 = vmatprep.subr.mxu0 0.0
    %3123 = vmatpush1.msra.mxu0 %v367
    %3124 = vmatprep.subr.mxu0 0.0
    %3125 = vmatpush1.msra.mxu0 %v370
    %3126 = vmatprep.subr.mxu0 0.0
    %3127 = vmatpush1.msra.mxu0 %v373
    %3128 = vmatprep.subr.mxu0 0.0
    %3129 = vmatpush1.msra.mxu0 %v376
    %3130 = vmatprep.subr.mxu0 0.0
    %3131 = vmatpush1.msra.mxu0 %v379
    %3132 = vmatprep.subr.mxu0 0.0
    %3133 = vmatpush1.msra.mxu0 %v382
    %3134 = vmatprep.subr.mxu0 0.0
    %3135 = vmatpush1.msra.mxu0 %v385
    %3136 = vmatprep.subr.mxu0 0.0
    %3137 = vmatpush1.msra.mxu0 %v388
    %3138 = vmatprep.subr.mxu0 0.0
    %3139 = vmatpush1.msra.mxu0 0.0
    %3140 = vmatprep.subr.mxu0 0.0
    %3141 = vmatpush1.msra.mxu0 0.0
    %3142 = vmatprep.subr.mxu0 0.0
    %3143 = vmatpush1.msra.mxu0 0.0
    %3144 = vmatprep.subr.mxu0 0.0
    %3145 = vmatpush1.msra.mxu0 0.0
    %3146 = vmatprep.subr.mxu0 0.0
    %3147 = vmatpush1.msra.mxu0 0.0
    %3148 = vmatprep.subr.mxu0 0.0
    %3149 = vmatpush1.msra.mxu0 0.0
    %3150 = vmatprep.subr.mxu0 0.0
    %3151 = vmatpush1.msra.mxu0 0.0
    %3152 = vmatprep.subr.mxu0 0.0
    %3153 = vmatpush1.msra.mxu0 0.0
    %3154 = vmatprep.subr.mxu0 0.0
    %3155 = vmatpush1.msra.mxu0 0.0
    %3156 = vmatprep.subr.mxu0 0.0
    %3157 = vmatpush1.msra.mxu0 0.0
    %3158 = vmatprep.subr.mxu0 0.0
    %3159 = vmatpush1.msra.mxu0 0.0
    %3160 = vmatprep.subr.mxu0 0.0
    %3161 = vmatpush1.msra.mxu0 0.0
    %3162 = vmatprep.subr.mxu0 0.0
    %3163 = vmatpush1.msra.mxu0 0.0
    %3164 = vmatprep.subr.mxu0 0.0
    %3165 = vmatpush1.msra.mxu0 0.0
    %3166 = vmatprep.subr.mxu0 0.0
    %3167 = vmatpush1.msra.mxu0 0.0
    %3168 = vmatprep.subr.mxu0 0.0
    %3169 = vmatpush1.msra.mxu0 0.0
    %3170 = vmatprep.mubr.f32.mxu0 0.0
    %3171 = vmatmul.mubr.f32.gmra.mrb[0].mxu0 %v3033
    %v3172 = vpop.f32.mrb[0].mxu0
    %v3173 = vadd.f32 0.0, %v3172
    %v3174 = vpop.f32.mrb[0].mxu0
    %3175 = vdwg.mxu0
    %v3177 = vrot.slane %v3102, 1
    %v3179 = vadd.f32 %v296, %v3177
    %v3180 = vxor.u32 %v3179, 2147483648
    %v3181 = vmul.f32 %v3180, 1.442695
    %v3182 = vpow.pop %v3181
    %v3183 = vadd.f32 %v3182, 1.0
    %v3184 = vrcp.pop %v3183
    %v3185 = vmul.f32 1.0, %v3184
    %v3187 = vrot.slane %v3104, 1
    %v3189 = vadd.f32 %v298, %v3187
    %v3190 = vxor.u32 %v3189, 2147483648
    %v3191 = vmul.f32 %v3190, 1.442695
    %v3192 = vpow.pop %v3191
    %v3193 = vadd.f32 %v3192, 1.0
    %v3194 = vrcp.pop %v3193
    %v3195 = vmul.f32 1.0, %v3194
    %v3196 = vadd.f32 %v3173, %v389
    %v3198 = vrot.slane %v3196, 1
    %v3200 = vmul.f32 %v3185, %v3198
    %v3201 = vadd.f32 %v338, %v3200
    %v3202 = vtanh.pop %v3201
    %v3203 = vsub.f32 1.0, %v3195
    %v3204 = vmul.f32 %v3203, %v3202
    %v3205 = vrot.slane %v3030, 7
    %v3207 = vmul.f32 %v3195, %v3205
    %v3208 = vadd.f32 %v3204, %v3207
    %3209 = vst [vmem:[#allocation9 + $0x8] sm:$0x80] %v3208
    %3210 = vst [vmem:[#allocation2 - $0x7] sm:$0x80] %v3208
    // Predicated region
    $region42: #{tpu_custom_call.1} parent=1 // pred_check
      _
    $region43: #{tpu_custom_call.1} parent=1 // pred_check_branch
      %3212 = sbr.rel (0) target = $region45
    $region44: #{tpu_custom_call.1} parent=1 // pred_region
      %s3214 = ssub.s32 256, 256
      %3215 = vsyncadd [#allocation5], %s3214
      %s3216 = sshll.u32 [#allocation9], 4
      %s3217 = int_to_ptr.vmem [resolvable:$true] %s3216
      %3222 = dma.vmem_to_hbm [thread:$0]  %s3217, 256, %s6, [#allocation5], 128, 128, 8
    $region45: #{tpu_custom_call.1} parent=1 // pred_fallthru
      _
    // Predicated region
    $region46: #{tpu_custom_call.1} parent=1 // pred_check
      _
    $region47: #{tpu_custom_call.1} parent=1 // pred_check_branch
      %3224 = sbr.rel (0) target = $region49
    $region48: #{tpu_custom_call.1} parent=1 // pred_region
      %3225 = dma.done [#allocation5], 256
    $region49: #{tpu_custom_call.1} parent=1 // pred_fallthru
      _
    %3226 = vsyncpa [#allocation4], 1
    %3227 = vsyncpa [#allocation7], 1
    %3228 = vsyncpa [#allocation5], 1

</llo_original>
